<compile_context>
chip_gen: v5e
topology: v5e:2x2
jax: 0.10.0
libtpu: 0.0.40
codegen_flags: <defaults>
</compile_context>

<pallas_src>
import functools

import jax
import jax.numpy as jnp
from jax import lax
from jax.experimental import pallas as pl
from jax.experimental.pallas import tpu as pltpu


def _round_up(n: int, m: int) -> int:
    return ((n + m - 1) // m) * m


def _make_mlp_kernel(dropout_rate: float, training: bool):
    use_dropout = bool(training) and dropout_rate > 0.0
    # keep element iff hash_u32 >= threshold  ->  P(keep) = 1 - dropout_rate
    threshold = min(int(round(dropout_rate * 2.0 ** 32)), 2 ** 32 - 1)

    def _keep_mask(seed_u32, salt, shape):
        rows = lax.broadcasted_iota(jnp.int32, shape, 0).astype(jnp.uint32)
        cols = lax.broadcasted_iota(jnp.int32, shape, 1).astype(jnp.uint32)
        tile = pl.program_id(0).astype(jnp.uint32)
        h = (seed_u32 * jnp.uint32(0x9E3779B1)
             + tile * jnp.uint32(0x85EBCA77)
             + jnp.uint32(salt) * jnp.uint32(0xC2B2AE3D))
        h = h + rows * jnp.uint32(0x27D4EB2F) + cols * jnp.uint32(0x165667B1)
        # murmur3 fmix32 finalizer
        h = h ^ (h >> 16)
        h = h * jnp.uint32(0x85EBCA6B)
        h = h ^ (h >> 13)
        h = h * jnp.uint32(0xC2B2AE35)
        h = h ^ (h >> 16)
        return h >= jnp.uint32(threshold)

    def kernel(seed_ref, x_ref, w1_ref, b1_ref, w2_ref, b2_ref, w3_ref, b3_ref,
               o_ref):
        seed_u = seed_ref[0].astype(jnp.uint32)

        # fc1 + ReLU (+ dropout1).  bf16 operands, f32 accumulation.
        h = jnp.dot(x_ref[...], w1_ref[...],
                    preferred_element_type=jnp.float32) + b1_ref[...]
        h = jnp.maximum(h, 0.0)
        if use_dropout:
            h = jnp.where(_keep_mask(seed_u, 0x1, h.shape), h, 0.0)

        # fc2 + ReLU (+ dropout2).  1/(1-p) scale is pre-folded into w2/w3.
        h = jnp.dot(h.astype(w2_ref.dtype), w2_ref[...],
                    preferred_element_type=jnp.float32) + b2_ref[...]
        h = jnp.maximum(h, 0.0)
        if use_dropout:
            h = jnp.where(_keep_mask(seed_u, 0x2, h.shape), h, 0.0)

        # fc3 (logits)
        o_ref[...] = (jnp.dot(h.astype(w3_ref.dtype), w3_ref[...],
                              preferred_element_type=jnp.float32)
                      + b3_ref[...]).astype(o_ref.dtype)

    return kernel


@functools.partial(jax.jit,
                   static_argnames=("dropout_rate", "training", "block_rows"))
def mc_dropout_forward(x, w1, b1, w2, b2, w3, b3, seed,
                       dropout_rate=0.5, training=True, block_rows=256):
    """Forward pass of MCDropoutNetwork.

    x:  (B, input_dim) float32
    w*: (in, out) float32 (already transposed vs. PyTorch's (out, in))
    b*: (out,)    float32
    """
    x = jnp.asarray(x, jnp.float32)
    B, d_in = x.shape
    h1 = w1.shape[1]
    h2 = w2.shape[1]
    num_classes = w3.shape[1]

    use_dropout = bool(training) and float(dropout_rate) > 0.0
    inv_keep = (1.0 / (1.0 - float(dropout_rate))) if use_dropout else 1.0

    # bf16 weights for the MXU / halved HBM traffic; inverted-dropout scale
    # folded into the downstream weights (biases untouched).
    w1b = w1.astype(jnp.bfloat16)
    w2b = (w2 * inv_keep).astype(jnp.bfloat16)
    w3b = (w3 * inv_keep).astype(jnp.bfloat16)
    b1f = b1.reshape(1, -1).astype(jnp.float32)
    b2f = b2.reshape(1, -1).astype(jnp.float32)
    b3f = b3.reshape(1, -1).astype(jnp.float32)

    # Tile the (padded) batch over a parallel grid axis; weights stay resident.
    tm = min(int(block_rows), _round_up(B, 8))
    b_pad = _round_up(B, tm)
    if b_pad != B:
        x = jnp.pad(x, ((0, b_pad - B), (0, 0)))
    xb = x.astype(jnp.bfloat16)
    grid = (b_pad // tm,)

    seed_arr = jnp.reshape(jnp.asarray(seed, jnp.int32), (1,))
    kernel = _make_mlp_kernel(float(dropout_rate), bool(training))

    cost = pl.CostEstimate(
        flops=2 * b_pad * (d_in * h1 + h1 * h2 + h2 * num_classes),
        transcendentals=0,
        bytes_accessed=(xb.size * 2 + w1b.size * 2 + w2b.size * 2
                        + w3b.size * 2 + (h1 + h2 + num_classes) * 4
                        + b_pad * num_classes * 4),
    )

    out = pl.pallas_call(
        kernel,
        out_shape=jax.ShapeDtypeStruct((b_pad, num_classes), jnp.float32),
        grid_spec=pltpu.PrefetchScalarGridSpec(
            num_scalar_prefetch=1,
            grid=grid,
            in_specs=[
                pl.BlockSpec((tm, d_in), lambda i, sref: (i, 0)),      # x tile
                pl.BlockSpec((d_in, h1), lambda i, sref: (0, 0)),      # W1
                pl.BlockSpec((1, h1), lambda i, sref: (0, 0)),         # b1
                pl.BlockSpec((h1, h2), lambda i, sref: (0, 0)),        # W2
                pl.BlockSpec((1, h2), lambda i, sref: (0, 0)),         # b2
                pl.BlockSpec((h2, num_classes), lambda i, sref: (0, 0)),  # W3
                pl.BlockSpec((1, num_classes), lambda i, sref: (0, 0)),   # b3
            ],
            out_specs=pl.BlockSpec((tm, num_classes), lambda i, sref: (i, 0)),
        ),
        compiler_params=pltpu.CompilerParams(
            dimension_semantics=("parallel",),
            vmem_limit_bytes=48 * 1024 * 1024),
        cost_estimate=cost,
    )(seed_arr, xb, w1b, b1f, w2b, b2f, w3b, b3f)

    return out[:B]


def mc_dropout_samples(x, w1, b1, w2, b2, w3, b3, seed, num_samples,
                       dropout_rate=0.5):
    """num_samples MC-dropout forward passes in ONE pallas_call (samples are
    folded into the batch axis so the weight DMA is amortized)."""
    B = x.shape[0]
    x_rep = jnp.tile(x, (num_samples, 1))
    out = mc_dropout_forward(x_rep, w1, b1, w2, b2, w3, b3, seed,
                             dropout_rate=dropout_rate, training=True)
    return out.reshape(num_samples, B, -1)


def init_params(key, input_dim=2048, num_classes=5):
    """Deterministic PyTorch-style init: U(-1/sqrt(fan_in), 1/sqrt(fan_in))."""
    dims = [(input_dim, 1024), (1024, 128), (128, num_classes)]
    params = []
    for (fan_in, fan_out) in dims:
        key, kw, kb = jax.random.split(key, 3)
        bound = 1.0 / jnp.sqrt(fan_in)
        w = jax.random.uniform(kw, (fan_in, fan_out), jnp.float32,
                               -bound, bound)
        b = jax.random.uniform(kb, (fan_out,), jnp.float32, -bound, bound)
        params += [w, b]
    return params


def reference_forward_no_dropout(x, w1, b1, w2, b2, w3, b3):
    """Eval-path reference with the same bf16 operand / f32 accum casts."""
    xb = x.astype(jnp.bfloat16)
    h = jnp.dot(xb, w1.astype(jnp.bfloat16),
                preferred_element_type=jnp.float32) + b1
    h = jnp.maximum(h, 0.0)
    h = jnp.dot(h.astype(jnp.bfloat16), w2.astype(jnp.bfloat16),
                preferred_element_type=jnp.float32) + b2
    h = jnp.maximum(h, 0.0)
    return jnp.dot(h.astype(jnp.bfloat16), w3.astype(jnp.bfloat16),
                   preferred_element_type=jnp.float32) + b3


if __name__ == "__main__":
    key = jax.random.PRNGKey(0)
    key, kx = jax.random.split(key)

    B, INPUT_DIM, NUM_CLASSES = 8, 2048, 5
    x = jax.random.normal(kx, (B, INPUT_DIM), jnp.float32)
    w1, b1, w2, b2, w3, b3 = init_params(key, INPUT_DIM, NUM_CLASSES)
    seed = jnp.int32(1234)

    # MC-dropout (training/sampling) path: dropout active inside the kernel.
    out_mc = mc_dropout_forward(x, w1, b1, w2, b2, w3, b3, seed,
                                dropout_rate=0.5, training=True)
    jax.block_until_ready(out_mc)
    assert out_mc.shape == (B, NUM_CLASSES)
    assert bool(jnp.all(jnp.isfinite(out_mc)))

    # Eval path (dropout == identity) checked against a pure-JAX reference.
    out_eval = mc_dropout_forward(x, w1, b1, w2, b2, w3, b3, seed,
                                  dropout_rate=0.5, training=False)
    jax.block_until_ready(out_eval)
    ref = reference_forward_no_dropout(x, w1, b1, w2, b2, w3, b3)
    assert bool(jnp.allclose(out_eval, ref, atol=2e-2, rtol=2e-2))

    # Dropout must actually perturb the training-path output.
    assert float(jnp.max(jnp.abs(out_mc - out_eval))) > 0.0

    # Several MC samples fused into a single kernel launch.
    samples = mc_dropout_samples(x, w1, b1, w2, b2, w3, b3, seed,
                                 num_samples=4, dropout_rate=0.5)
    jax.block_until_ready(samples)
    assert samples.shape == (4, B, NUM_CLASSES)
    assert bool(jnp.all(jnp.isfinite(samples)))

    print("KERNEL_OK")
</pallas_src>

<mosaic_0001>
module attributes {stable_mosaic.version = 11 : i64} {
  func.func @kernel(%arg0: i32, %arg1: memref<1xi32, #tpu.memory_space<smem>>, %arg2: memref<8x2048xbf16, #tpu.memory_space<vmem>>, %arg3: memref<2048x1024xbf16, #tpu.memory_space<vmem>>, %arg4: memref<1x1024xf32, #tpu.memory_space<vmem>>, %arg5: memref<1024x128xbf16, #tpu.memory_space<vmem>>, %arg6: memref<1x128xf32, #tpu.memory_space<vmem>>, %arg7: memref<128x5xbf16, #tpu.memory_space<vmem>>, %arg8: memref<1x5xf32, #tpu.memory_space<vmem>>, %arg9: memref<8x5xf32, #tpu.memory_space<vmem>>) attributes {dimension_semantics = [#tpu.dimension_semantics<parallel>], iteration_bounds = array<i64: 1>, scalar_prefetch = 1 : i64, scratch_operands = 0 : i64, tpu.core_type = #tpu.core_type<tc>, window_params = [{transform_indices = @transform_0, window_bounds = array<i64: 8, 2048>}, {pipeline_mode = #tpu.pipeline_mode<synchronous>, transform_indices = @transform_1, window_bounds = array<i64: 2048, 1024>}, {pipeline_mode = #tpu.pipeline_mode<synchronous>, transform_indices = @transform_2, window_bounds = array<i64: 1, 1024>}, {pipeline_mode = #tpu.pipeline_mode<synchronous>, transform_indices = @transform_3, window_bounds = array<i64: 1024, 128>}, {pipeline_mode = #tpu.pipeline_mode<synchronous>, transform_indices = @transform_4, window_bounds = array<i64: 1, 128>}, {pipeline_mode = #tpu.pipeline_mode<synchronous>, transform_indices = @transform_5, window_bounds = array<i64: 128, 5>}, {pipeline_mode = #tpu.pipeline_mode<synchronous>, transform_indices = @transform_6, window_bounds = array<i64: 1, 5>}, {transform_indices = @transform_7, window_bounds = array<i64: 8, 5>}]} {
    %c0 = arith.constant 0 : index
    %0 = memref.load %arg1[%c0] : memref<1xi32, #tpu.memory_space<smem>>
    %c0_0 = arith.constant 0 : index
    %c0_1 = arith.constant 0 : index
    %1 = vector.load %arg2[%c0_0, %c0_1] : memref<8x2048xbf16, #tpu.memory_space<vmem>>, vector<8x2048xbf16>
    %c0_2 = arith.constant 0 : index
    %c0_3 = arith.constant 0 : index
    %2 = vector.load %arg3[%c0_2, %c0_3] : memref<2048x1024xbf16, #tpu.memory_space<vmem>>, vector<2048x1024xbf16>
    %cst = arith.constant dense<0.000000e+00> : vector<8x1024xf32>
    %3 = tpu.matmul %1, %2, %cst {dimension_numbers = #tpu.dot_dimension_numbers<[1], [0], [0], [1], [0, 0, 1, 1], [], []>} : vector<8x2048xbf16>, vector<2048x1024xbf16>, vector<8x1024xf32> -> vector<8x1024xf32>
    %c0_4 = arith.constant 0 : index
    %c0_5 = arith.constant 0 : index
    %4 = vector.load %arg4[%c0_4, %c0_5] : memref<1x1024xf32, #tpu.memory_space<vmem>>, vector<1x1024xf32>
    %5 = vector.broadcast %4 : vector<1x1024xf32> to vector<8x1024xf32>
    %6 = arith.addf %3, %5 : vector<8x1024xf32>
    %cst_6 = arith.constant 0.000000e+00 : f32
    %7 = vector.broadcast %cst_6 : f32 to vector<8x1024xf32>
    %8 = arith.maximumf %6, %7 : vector<8x1024xf32>
    %9 = tpu.iota {dimensions = array<i32: 0>} : vector<8x1024xi32>
    %10 = tpu.iota {dimensions = array<i32: 1>} : vector<8x1024xi32>
    %c-1640531535_i32 = arith.constant -1640531535 : i32
    %11 = arith.muli %0, %c-1640531535_i32 : i32
    %c-2048144777_i32 = arith.constant -2048144777 : i32
    %12 = arith.muli %arg0, %c-2048144777_i32 : i32
    %13 = arith.addi %11, %12 : i32
    %c1_i32 = arith.constant 1 : i32
    %c-1028477379_i32 = arith.constant -1028477379 : i32
    %14 = arith.muli %c1_i32, %c-1028477379_i32 : i32
    %15 = arith.addi %13, %14 : i32
    %c668265263_i32 = arith.constant 668265263 : i32
    %16 = vector.broadcast %c668265263_i32 : i32 to vector<8x1024xi32>
    %17 = arith.muli %9, %16 : vector<8x1024xi32>
    %18 = vector.broadcast %15 : i32 to vector<8x1024xi32>
    %19 = arith.addi %18, %17 : vector<8x1024xi32>
    %c374761393_i32 = arith.constant 374761393 : i32
    %20 = vector.broadcast %c374761393_i32 : i32 to vector<8x1024xi32>
    %21 = arith.muli %10, %20 : vector<8x1024xi32>
    %22 = arith.addi %19, %21 : vector<8x1024xi32>
    %c16_i32 = arith.constant 16 : i32
    %23 = vector.broadcast %c16_i32 : i32 to vector<8x1024xi32>
    %24 = arith.shrui %22, %23 : vector<8x1024xi32>
    %25 = arith.xori %22, %24 : vector<8x1024xi32>
    %c-2048144789_i32 = arith.constant -2048144789 : i32
    %26 = vector.broadcast %c-2048144789_i32 : i32 to vector<8x1024xi32>
    %27 = arith.muli %25, %26 : vector<8x1024xi32>
    %c13_i32 = arith.constant 13 : i32
    %28 = vector.broadcast %c13_i32 : i32 to vector<8x1024xi32>
    %29 = arith.shrui %27, %28 : vector<8x1024xi32>
    %30 = arith.xori %27, %29 : vector<8x1024xi32>
    %c-1028477387_i32 = arith.constant -1028477387 : i32
    %31 = vector.broadcast %c-1028477387_i32 : i32 to vector<8x1024xi32>
    %32 = arith.muli %30, %31 : vector<8x1024xi32>
    %c16_i32_7 = arith.constant 16 : i32
    %33 = vector.broadcast %c16_i32_7 : i32 to vector<8x1024xi32>
    %34 = arith.shrui %32, %33 : vector<8x1024xi32>
    %35 = arith.xori %32, %34 : vector<8x1024xi32>
    %c-2147483648_i32 = arith.constant -2147483648 : i32
    %36 = vector.broadcast %c-2147483648_i32 : i32 to vector<8x1024xi32>
    %37 = arith.cmpi uge, %35, %36 : vector<8x1024xi32>
    %cst_8 = arith.constant 0.000000e+00 : f32
    %38 = vector.broadcast %cst_8 : f32 to vector<8x1024xf32>
    %39 = arith.select %37, %8, %38 : vector<8x1024xi1>, vector<8x1024xf32>
    %40 = arith.truncf %39 : vector<8x1024xf32> to vector<8x1024xbf16>
    %c0_9 = arith.constant 0 : index
    %c0_10 = arith.constant 0 : index
    %41 = vector.load %arg5[%c0_9, %c0_10] : memref<1024x128xbf16, #tpu.memory_space<vmem>>, vector<1024x128xbf16>
    %cst_11 = arith.constant dense<0.000000e+00> : vector<8x128xf32>
    %42 = tpu.matmul %40, %41, %cst_11 {dimension_numbers = #tpu.dot_dimension_numbers<[1], [0], [0], [1], [0, 0, 1, 1], [], []>} : vector<8x1024xbf16>, vector<1024x128xbf16>, vector<8x128xf32> -> vector<8x128xf32>
    %c0_12 = arith.constant 0 : index
    %c0_13 = arith.constant 0 : index
    %43 = vector.load %arg6[%c0_12, %c0_13] : memref<1x128xf32, #tpu.memory_space<vmem>>, vector<1x128xf32>
    %44 = vector.broadcast %43 : vector<1x128xf32> to vector<8x128xf32>
    %45 = arith.addf %42, %44 : vector<8x128xf32>
    %cst_14 = arith.constant 0.000000e+00 : f32
    %46 = vector.broadcast %cst_14 : f32 to vector<8x128xf32>
    %47 = arith.maximumf %45, %46 : vector<8x128xf32>
    %48 = tpu.iota {dimensions = array<i32: 0>} : vector<8x128xi32>
    %49 = tpu.iota {dimensions = array<i32: 1>} : vector<8x128xi32>
    %c-1640531535_i32_15 = arith.constant -1640531535 : i32
    %50 = arith.muli %0, %c-1640531535_i32_15 : i32
    %c-2048144777_i32_16 = arith.constant -2048144777 : i32
    %51 = arith.muli %arg0, %c-2048144777_i32_16 : i32
    %52 = arith.addi %50, %51 : i32
    %c2_i32 = arith.constant 2 : i32
    %c-1028477379_i32_17 = arith.constant -1028477379 : i32
    %53 = arith.muli %c2_i32, %c-1028477379_i32_17 : i32
    %54 = arith.addi %52, %53 : i32
    %c668265263_i32_18 = arith.constant 668265263 : i32
    %55 = vector.broadcast %c668265263_i32_18 : i32 to vector<8x128xi32>
    %56 = arith.muli %48, %55 : vector<8x128xi32>
    %57 = vector.broadcast %54 : i32 to vector<8x128xi32>
    %58 = arith.addi %57, %56 : vector<8x128xi32>
    %c374761393_i32_19 = arith.constant 374761393 : i32
    %59 = vector.broadcast %c374761393_i32_19 : i32 to vector<8x128xi32>
    %60 = arith.muli %49, %59 : vector<8x128xi32>
    %61 = arith.addi %58, %60 : vector<8x128xi32>
    %c16_i32_20 = arith.constant 16 : i32
    %62 = vector.broadcast %c16_i32_20 : i32 to vector<8x128xi32>
    %63 = arith.shrui %61, %62 : vector<8x128xi32>
    %64 = arith.xori %61, %63 : vector<8x128xi32>
    %c-2048144789_i32_21 = arith.constant -2048144789 : i32
    %65 = vector.broadcast %c-2048144789_i32_21 : i32 to vector<8x128xi32>
    %66 = arith.muli %64, %65 : vector<8x128xi32>
    %c13_i32_22 = arith.constant 13 : i32
    %67 = vector.broadcast %c13_i32_22 : i32 to vector<8x128xi32>
    %68 = arith.shrui %66, %67 : vector<8x128xi32>
    %69 = arith.xori %66, %68 : vector<8x128xi32>
    %c-1028477387_i32_23 = arith.constant -1028477387 : i32
    %70 = vector.broadcast %c-1028477387_i32_23 : i32 to vector<8x128xi32>
    %71 = arith.muli %69, %70 : vector<8x128xi32>
    %c16_i32_24 = arith.constant 16 : i32
    %72 = vector.broadcast %c16_i32_24 : i32 to vector<8x128xi32>
    %73 = arith.shrui %71, %72 : vector<8x128xi32>
    %74 = arith.xori %71, %73 : vector<8x128xi32>
    %c-2147483648_i32_25 = arith.constant -2147483648 : i32
    %75 = vector.broadcast %c-2147483648_i32_25 : i32 to vector<8x128xi32>
    %76 = arith.cmpi uge, %74, %75 : vector<8x128xi32>
    %cst_26 = arith.constant 0.000000e+00 : f32
    %77 = vector.broadcast %cst_26 : f32 to vector<8x128xf32>
    %78 = arith.select %76, %47, %77 : vector<8x128xi1>, vector<8x128xf32>
    %79 = arith.truncf %78 : vector<8x128xf32> to vector<8x128xbf16>
    %c0_27 = arith.constant 0 : index
    %c0_28 = arith.constant 0 : index
    %80 = vector.load %arg7[%c0_27, %c0_28] : memref<128x5xbf16, #tpu.memory_space<vmem>>, vector<128x5xbf16>
    %cst_29 = arith.constant dense<0.000000e+00> : vector<8x5xf32>
    %81 = tpu.matmul %79, %80, %cst_29 {dimension_numbers = #tpu.dot_dimension_numbers<[1], [0], [0], [1], [0, 0, 1, 1], [], []>} : vector<8x128xbf16>, vector<128x5xbf16>, vector<8x5xf32> -> vector<8x5xf32>
    %c0_30 = arith.constant 0 : index
    %c0_31 = arith.constant 0 : index
    %82 = vector.load %arg8[%c0_30, %c0_31] : memref<1x5xf32, #tpu.memory_space<vmem>>, vector<1x5xf32>
    %83 = vector.broadcast %82 : vector<1x5xf32> to vector<8x5xf32>
    %84 = arith.addf %81, %83 : vector<8x5xf32>
    %c0_32 = arith.constant 0 : index
    %c0_33 = arith.constant 0 : index
    %85 = vector.load %arg9[%c0_32, %c0_33] : memref<8x5xf32, #tpu.memory_space<vmem>>, vector<8x5xf32>
    tpu.vector_store %arg9[%c0_32, %c0_33], %84 {strides = array<i32>} : memref<8x5xf32, #tpu.memory_space<vmem>>, vector<8x5xf32>,
    return
  }
  func.func @transform_0(%arg0: i32, %arg1: memref<1xi32, #tpu.memory_space<smem>>) -> (i32, i32) {
    %c0_i32 = arith.constant 0 : i32
    %c0_i32_0 = arith.constant 0 : i32
    return %arg0, %c0_i32 : i32, i32
  }
  func.func @transform_1(%arg0: i32, %arg1: memref<1xi32, #tpu.memory_space<smem>>) -> (i32, i32) {
    %c0_i32 = arith.constant 0 : i32
    %c0_i32_0 = arith.constant 0 : i32
    %c0_i32_1 = arith.constant 0 : i32
    return %c0_i32, %c0_i32_0 : i32, i32
  }
  func.func @transform_2(%arg0: i32, %arg1: memref<1xi32, #tpu.memory_space<smem>>) -> (i32, i32) {
    %c0_i32 = arith.constant 0 : i32
    %c0_i32_0 = arith.constant 0 : i32
    %c0_i32_1 = arith.constant 0 : i32
    return %c0_i32, %c0_i32_0 : i32, i32
  }
  func.func @transform_3(%arg0: i32, %arg1: memref<1xi32, #tpu.memory_space<smem>>) -> (i32, i32) {
    %c0_i32 = arith.constant 0 : i32
    %c0_i32_0 = arith.constant 0 : i32
    %c0_i32_1 = arith.constant 0 : i32
    return %c0_i32, %c0_i32_0 : i32, i32
  }
  func.func @transform_4(%arg0: i32, %arg1: memref<1xi32, #tpu.memory_space<smem>>) -> (i32, i32) {
    %c0_i32 = arith.constant 0 : i32
    %c0_i32_0 = arith.constant 0 : i32
    %c0_i32_1 = arith.constant 0 : i32
    return %c0_i32, %c0_i32_0 : i32, i32
  }
  func.func @transform_5(%arg0: i32, %arg1: memref<1xi32, #tpu.memory_space<smem>>) -> (i32, i32) {
    %c0_i32 = arith.constant 0 : i32
    %c0_i32_0 = arith.constant 0 : i32
    %c0_i32_1 = arith.constant 0 : i32
    return %c0_i32, %c0_i32_0 : i32, i32
  }
  func.func @transform_6(%arg0: i32, %arg1: memref<1xi32, #tpu.memory_space<smem>>) -> (i32, i32) {
    %c0_i32 = arith.constant 0 : i32
    %c0_i32_0 = arith.constant 0 : i32
    %c0_i32_1 = arith.constant 0 : i32
    return %c0_i32, %c0_i32_0 : i32, i32
  }
  func.func @transform_7(%arg0: i32, %arg1: memref<1xi32, #tpu.memory_space<smem>>) -> (i32, i32) {
    %c0_i32 = arith.constant 0 : i32
    %c0_i32_0 = arith.constant 0 : i32
    return %arg0, %c0_i32 : i32, i32
  }
}

</mosaic_0001>

<llo_original>
// kernel: mc_dropout_forward.1
$region0: #{mc_dropout_forward.1}
  #allocation0 [shape = 'u32[]', space=smem, size = 0x4, offset = 0x4, fixed_abs, tag = 'smem constant byte address 0x4 - core index']
  #allocation1 [shape = 'u32[72,128]{1,0:T(1,128)}', space=vmem, size = 0x9000, scoped, tag = 'internal scratch']
  #allocation2 [shape = 's32[1]{0}', space=sflag, size = 0x4, scoped, tag = 'scoped memory for mc_dropout_forward.1']
  #allocation3 [shape = 's32[1]{0:T(128)S(6)}', space=smem, size = 0x200, scoped, tag = 'prefetched SMEM operand 0']
  %s0 = inlined_call_operand.<no memory space> [shape: s32[1], index: 0, kind: input, shape index: {}]
  %s1 = inlined_call_operand.vmem [shape: bf16[8,2048], index: 1, kind: input, shape index: {}]
  %s2 = inlined_call_operand.vmem [shape: bf16[2048,1024], index: 2, kind: input, shape index: {}]
  %s3 = inlined_call_operand.vmem [shape: f32[1,1024], index: 3, kind: input, shape index: {}]
  %s4 = inlined_call_operand.vmem [shape: bf16[1024,128], index: 4, kind: input, shape index: {}]
  %s5 = inlined_call_operand.vmem [shape: f32[1,128], index: 5, kind: input, shape index: {}]
  %s6 = inlined_call_operand.vmem [shape: bf16[128,5], index: 6, kind: input, shape index: {}]
  %s7 = inlined_call_operand.vmem [shape: f32[1,5], index: 7, kind: input, shape index: {}]
  %s8 = inlined_call_operand.hbm [shape: f32[8,5], index: 8, kind: output, shape index: {}]
  %s9 = sld [smem:[#allocation0]]
  $region38: #{mc_dropout_forward.1} parent=0
    _
  %s11 = ssub.s32 1, %s9
  %s12 = scalar_select 0, %s11, %s9
  %13 = sst [smem:[#allocation3]] %s0
  $region1: #{mc_dropout_forward.1} parent=0
    #allocation4 [shape = 'u8[4096]{0}', space=vmem, size = 0x1000, scoped, tag = 'output window, operand 0, single buffered']
    #allocation5 [shape = 's32[1]{0}', space=sflag, size = 0x4, scoped, tag = 'scoped memory for mc_dropout_forward.1']
    %14 = vsyncpa [#allocation5], 0
    // Predicated region
    $region2: #{mc_dropout_forward.1} parent=1 // pred_check
      _
    $region3: #{mc_dropout_forward.1} parent=1 // pred_check_branch
      %16 = sbr.rel (0) target = $region5
    $region4: #{mc_dropout_forward.1} parent=1 // pred_region
      _
    $region5: #{mc_dropout_forward.1} parent=1 // pred_fallthru
      _
    // Predicated region
    $region6: #{mc_dropout_forward.1} parent=1 // pred_check
      _
    $region7: #{mc_dropout_forward.1} parent=1 // pred_check_branch
      %18 = sbr.rel (0) target = $region9
    $region8: #{mc_dropout_forward.1} parent=1 // pred_region
      _
    $region9: #{mc_dropout_forward.1} parent=1 // pred_fallthru
      _
    // Predicated region
    $region10: #{mc_dropout_forward.1} parent=1 // pred_check
      _
    $region11: #{mc_dropout_forward.1} parent=1 // pred_check_branch
      %20 = sbr.rel (0) target = $region13
    $region12: #{mc_dropout_forward.1} parent=1 // pred_region
      _
    $region13: #{mc_dropout_forward.1} parent=1 // pred_fallthru
      _
    // Predicated region
    $region14: #{mc_dropout_forward.1} parent=1 // pred_check
      _
    $region15: #{mc_dropout_forward.1} parent=1 // pred_check_branch
      %22 = sbr.rel (0) target = $region17
    $region16: #{mc_dropout_forward.1} parent=1 // pred_region
      _
    $region17: #{mc_dropout_forward.1} parent=1 // pred_fallthru
      _
    // Predicated region
    $region18: #{mc_dropout_forward.1} parent=1 // pred_check
      _
    $region19: #{mc_dropout_forward.1} parent=1 // pred_check_branch
      %24 = sbr.rel (0) target = $region21
    $region20: #{mc_dropout_forward.1} parent=1 // pred_region
      _
    $region21: #{mc_dropout_forward.1} parent=1 // pred_fallthru
      _
    // Predicated region
    $region22: #{mc_dropout_forward.1} parent=1 // pred_check
      _
    $region23: #{mc_dropout_forward.1} parent=1 // pred_check_branch
      %26 = sbr.rel (0) target = $region25
    $region24: #{mc_dropout_forward.1} parent=1 // pred_region
      _
    $region25: #{mc_dropout_forward.1} parent=1 // pred_fallthru
      _
    // Predicated region
    $region26: #{mc_dropout_forward.1} parent=1 // pred_check
      _
    $region27: #{mc_dropout_forward.1} parent=1 // pred_check_branch
      %28 = sbr.rel (0) target = $region29
    $region28: #{mc_dropout_forward.1} parent=1 // pred_region
      _
    $region29: #{mc_dropout_forward.1} parent=1 // pred_fallthru
      _
    %s29 = sld [smem:[#allocation3]]
    %v30 = vld [vmem:[%s1] sm:$0xff]
    %v31 = vld [vmem:[%s1 + $0x8] sm:$0xff]
    %v32 = vld [vmem:[%s1 + $0x10] sm:$0xff]
    %v33 = vld [vmem:[%s1 + $0x18] sm:$0xff]
    %v34 = vld [vmem:[%s1 + $0x20] sm:$0xff]
    %v35 = vld [vmem:[%s1 + $0x28] sm:$0xff]
    %v36 = vld [vmem:[%s1 + $0x30] sm:$0xff]
    %v37 = vld [vmem:[%s1 + $0x38] sm:$0xff]
    %v38 = vld [vmem:[%s2] sm:$0xff]
    %v39 = vld [vmem:[%s2 + $0x8] sm:$0xff]
    %v40 = vld [vmem:[%s2 + $0x10] sm:$0xff]
    %v41 = vld [vmem:[%s2 + $0x18] sm:$0xff]
    %v42 = vld [vmem:[%s2 + $0x20] sm:$0xff]
    %v43 = vld [vmem:[%s2 + $0x28] sm:$0xff]
    %v44 = vld [vmem:[%s2 + $0x30] sm:$0xff]
    %v45 = vld [vmem:[%s2 + $0x38] sm:$0xff]
    %v46 = vld [vmem:[%s2 + $0x40] sm:$0xff]
    %v47 = vld [vmem:[%s2 + $0x48] sm:$0xff]
    %v48 = vld [vmem:[%s2 + $0x50] sm:$0xff]
    %v49 = vld [vmem:[%s2 + $0x58] sm:$0xff]
    %v50 = vld [vmem:[%s2 + $0x60] sm:$0xff]
    %v51 = vld [vmem:[%s2 + $0x68] sm:$0xff]
    %v52 = vld [vmem:[%s2 + $0x70] sm:$0xff]
    %v53 = vld [vmem:[%s2 + $0x78] sm:$0xff]
    %v54 = vld [vmem:[%s2 + $0x80] sm:$0xff]
    %v55 = vld [vmem:[%s2 + $0x88] sm:$0xff]
    %v56 = vld [vmem:[%s2 + $0x90] sm:$0xff]
    %v57 = vld [vmem:[%s2 + $0x98] sm:$0xff]
    %v58 = vld [vmem:[%s2 + $0xa0] sm:$0xff]
    %v59 = vld [vmem:[%s2 + $0xa8] sm:$0xff]
    %v60 = vld [vmem:[%s2 + $0xb0] sm:$0xff]
    %v61 = vld [vmem:[%s2 + $0xb8] sm:$0xff]
    %v62 = vld [vmem:[%s2 + $0xc0] sm:$0xff]
    %v63 = vld [vmem:[%s2 + $0xc8] sm:$0xff]
    %v64 = vld [vmem:[%s2 + $0xd0] sm:$0xff]
    %v65 = vld [vmem:[%s2 + $0xd8] sm:$0xff]
    %v66 = vld [vmem:[%s2 + $0xe0] sm:$0xff]
    %v67 = vld [vmem:[%s2 + $0xe8] sm:$0xff]
    %v68 = vld [vmem:[%s2 + $0xf0] sm:$0xff]
    %v69 = vld [vmem:[%s2 + $0xf8] sm:$0xff]
    %v70 = vld [vmem:[%s2 + $0x100] sm:$0xff]
    %v71 = vld [vmem:[%s2 + $0x108] sm:$0xff]
    %v72 = vld [vmem:[%s2 + $0x110] sm:$0xff]
    %v73 = vld [vmem:[%s2 + $0x118] sm:$0xff]
    %v74 = vld [vmem:[%s2 + $0x120] sm:$0xff]
    %v75 = vld [vmem:[%s2 + $0x128] sm:$0xff]
    %v76 = vld [vmem:[%s2 + $0x130] sm:$0xff]
    %v77 = vld [vmem:[%s2 + $0x138] sm:$0xff]
    %v78 = vld [vmem:[%s2 + $0x140] sm:$0xff]
    %v79 = vld [vmem:[%s2 + $0x148] sm:$0xff]
    %v80 = vld [vmem:[%s2 + $0x150] sm:$0xff]
    %v81 = vld [vmem:[%s2 + $0x158] sm:$0xff]
    %v82 = vld [vmem:[%s2 + $0x160] sm:$0xff]
    %v83 = vld [vmem:[%s2 + $0x168] sm:$0xff]
    %v84 = vld [vmem:[%s2 + $0x170] sm:$0xff]
    %v85 = vld [vmem:[%s2 + $0x178] sm:$0xff]
    %v86 = vld [vmem:[%s2 + $0x180] sm:$0xff]
    %v87 = vld [vmem:[%s2 + $0x188] sm:$0xff]
    %v88 = vld [vmem:[%s2 + $0x190] sm:$0xff]
    %v89 = vld [vmem:[%s2 + $0x198] sm:$0xff]
    %v90 = vld [vmem:[%s2 + $0x1a0] sm:$0xff]
    %v91 = vld [vmem:[%s2 + $0x1a8] sm:$0xff]
    %v92 = vld [vmem:[%s2 + $0x1b0] sm:$0xff]
    %v93 = vld [vmem:[%s2 + $0x1b8] sm:$0xff]
    %v94 = vld [vmem:[%s2 + $0x1c0] sm:$0xff]
    %v95 = vld [vmem:[%s2 + $0x1c8] sm:$0xff]
    %v96 = vld [vmem:[%s2 + $0x1d0] sm:$0xff]
    %v97 = vld [vmem:[%s2 + $0x1d8] sm:$0xff]
    %v98 = vld [vmem:[%s2 + $0x1e0] sm:$0xff]
    %v99 = vld [vmem:[%s2 + $0x1e8] sm:$0xff]
    %v100 = vld [vmem:[%s2 + $0x1f0] sm:$0xff]
    %v101 = vld [vmem:[%s2 + $0x1f8] sm:$0xff]
    %v102 = vld [vmem:[%s2 + $0x200] sm:$0xff]
    %v103 = vld [vmem:[%s2 + $0x208] sm:$0xff]
    %v104 = vld [vmem:[%s2 + $0x210] sm:$0xff]
    %v105 = vld [vmem:[%s2 + $0x218] sm:$0xff]
    %v106 = vld [vmem:[%s2 + $0x220] sm:$0xff]
    %v107 = vld [vmem:[%s2 + $0x228] sm:$0xff]
    %v108 = vld [vmem:[%s2 + $0x230] sm:$0xff]
    %v109 = vld [vmem:[%s2 + $0x238] sm:$0xff]
    %v110 = vld [vmem:[%s2 + $0x240] sm:$0xff]
    %v111 = vld [vmem:[%s2 + $0x248] sm:$0xff]
    %v112 = vld [vmem:[%s2 + $0x250] sm:$0xff]
    %v113 = vld [vmem:[%s2 + $0x258] sm:$0xff]
    %v114 = vld [vmem:[%s2 + $0x260] sm:$0xff]
    %v115 = vld [vmem:[%s2 + $0x268] sm:$0xff]
    %v116 = vld [vmem:[%s2 + $0x270] sm:$0xff]
    %v117 = vld [vmem:[%s2 + $0x278] sm:$0xff]
    %v118 = vld [vmem:[%s2 + $0x280] sm:$0xff]
    %v119 = vld [vmem:[%s2 + $0x288] sm:$0xff]
    %v120 = vld [vmem:[%s2 + $0x290] sm:$0xff]
    %v121 = vld [vmem:[%s2 + $0x298] sm:$0xff]
    %v122 = vld [vmem:[%s2 + $0x2a0] sm:$0xff]
    %v123 = vld [vmem:[%s2 + $0x2a8] sm:$0xff]
    %v124 = vld [vmem:[%s2 + $0x2b0] sm:$0xff]
    %v125 = vld [vmem:[%s2 + $0x2b8] sm:$0xff]
    %v126 = vld [vmem:[%s2 + $0x2c0] sm:$0xff]
    %v127 = vld [vmem:[%s2 + $0x2c8] sm:$0xff]
    %v128 = vld [vmem:[%s2 + $0x2d0] sm:$0xff]
    %v129 = vld [vmem:[%s2 + $0x2d8] sm:$0xff]
    %v130 = vld [vmem:[%s2 + $0x2e0] sm:$0xff]
    %v131 = vld [vmem:[%s2 + $0x2e8] sm:$0xff]
    %v132 = vld [vmem:[%s2 + $0x2f0] sm:$0xff]
    %v133 = vld [vmem:[%s2 + $0x2f8] sm:$0xff]
    %v134 = vld [vmem:[%s2 + $0x300] sm:$0xff]
    %v135 = vld [vmem:[%s2 + $0x308] sm:$0xff]
    %v136 = vld [vmem:[%s2 + $0x310] sm:$0xff]
    %v137 = vld [vmem:[%s2 + $0x318] sm:$0xff]
    %v138 = vld [vmem:[%s2 + $0x320] sm:$0xff]
    %v139 = vld [vmem:[%s2 + $0x328] sm:$0xff]
    %v140 = vld [vmem:[%s2 + $0x330] sm:$0xff]
    %v141 = vld [vmem:[%s2 + $0x338] sm:$0xff]
    %v142 = vld [vmem:[%s2 + $0x340] sm:$0xff]
    %v143 = vld [vmem:[%s2 + $0x348] sm:$0xff]
    %v144 = vld [vmem:[%s2 + $0x350] sm:$0xff]
    %v145 = vld [vmem:[%s2 + $0x358] sm:$0xff]
    %v146 = vld [vmem:[%s2 + $0x360] sm:$0xff]
    %v147 = vld [vmem:[%s2 + $0x368] sm:$0xff]
    %v148 = vld [vmem:[%s2 + $0x370] sm:$0xff]
    %v149 = vld [vmem:[%s2 + $0x378] sm:$0xff]
    %v150 = vld [vmem:[%s2 + $0x380] sm:$0xff]
    %v151 = vld [vmem:[%s2 + $0x388] sm:$0xff]
    %v152 = vld [vmem:[%s2 + $0x390] sm:$0xff]
    %v153 = vld [vmem:[%s2 + $0x398] sm:$0xff]
    %v154 = vld [vmem:[%s2 + $0x3a0] sm:$0xff]
    %v155 = vld [vmem:[%s2 + $0x3a8] sm:$0xff]
    %v156 = vld [vmem:[%s2 + $0x3b0] sm:$0xff]
    %v157 = vld [vmem:[%s2 + $0x3b8] sm:$0xff]
    %v158 = vld [vmem:[%s2 + $0x3c0] sm:$0xff]
    %v159 = vld [vmem:[%s2 + $0x3c8] sm:$0xff]
    %v160 = vld [vmem:[%s2 + $0x3d0] sm:$0xff]
    %v161 = vld [vmem:[%s2 + $0x3d8] sm:$0xff]
    %v162 = vld [vmem:[%s2 + $0x3e0] sm:$0xff]
    %v163 = vld [vmem:[%s2 + $0x3e8] sm:$0xff]
    %v164 = vld [vmem:[%s2 + $0x3f0] sm:$0xff]
    %v165 = vld [vmem:[%s2 + $0x3f8] sm:$0xff]
    %v166 = vld [vmem:[%s2 + $0x400] sm:$0xff]
    %v167 = vld [vmem:[%s2 + $0x408] sm:$0xff]
    %v168 = vld [vmem:[%s2 + $0x410] sm:$0xff]
    %v169 = vld [vmem:[%s2 + $0x418] sm:$0xff]
    %v170 = vld [vmem:[%s2 + $0x420] sm:$0xff]
    %v171 = vld [vmem:[%s2 + $0x428] sm:$0xff]
    %v172 = vld [vmem:[%s2 + $0x430] sm:$0xff]
    %v173 = vld [vmem:[%s2 + $0x438] sm:$0xff]
    %v174 = vld [vmem:[%s2 + $0x440] sm:$0xff]
    %v175 = vld [vmem:[%s2 + $0x448] sm:$0xff]
    %v176 = vld [vmem:[%s2 + $0x450] sm:$0xff]
    %v177 = vld [vmem:[%s2 + $0x458] sm:$0xff]
    %v178 = vld [vmem:[%s2 + $0x460] sm:$0xff]
    %v179 = vld [vmem:[%s2 + $0x468] sm:$0xff]
    %v180 = vld [vmem:[%s2 + $0x470] sm:$0xff]
    %v181 = vld [vmem:[%s2 + $0x478] sm:$0xff]
    %v182 = vld [vmem:[%s2 + $0x480] sm:$0xff]
    %v183 = vld [vmem:[%s2 + $0x488] sm:$0xff]
    %v184 = vld [vmem:[%s2 + $0x490] sm:$0xff]
    %v185 = vld [vmem:[%s2 + $0x498] sm:$0xff]
    %v186 = vld [vmem:[%s2 + $0x4a0] sm:$0xff]
    %v187 = vld [vmem:[%s2 + $0x4a8] sm:$0xff]
    %v188 = vld [vmem:[%s2 + $0x4b0] sm:$0xff]
    %v189 = vld [vmem:[%s2 + $0x4b8] sm:$0xff]
    %v190 = vld [vmem:[%s2 + $0x4c0] sm:$0xff]
    %v191 = vld [vmem:[%s2 + $0x4c8] sm:$0xff]
    %v192 = vld [vmem:[%s2 + $0x4d0] sm:$0xff]
    %v193 = vld [vmem:[%s2 + $0x4d8] sm:$0xff]
    %v194 = vld [vmem:[%s2 + $0x4e0] sm:$0xff]
    %v195 = vld [vmem:[%s2 + $0x4e8] sm:$0xff]
    %v196 = vld [vmem:[%s2 + $0x4f0] sm:$0xff]
    %v197 = vld [vmem:[%s2 + $0x4f8] sm:$0xff]
    %v198 = vld [vmem:[%s2 + $0x500] sm:$0xff]
    %v199 = vld [vmem:[%s2 + $0x508] sm:$0xff]
    %v200 = vld [vmem:[%s2 + $0x510] sm:$0xff]
    %v201 = vld [vmem:[%s2 + $0x518] sm:$0xff]
    %v202 = vld [vmem:[%s2 + $0x520] sm:$0xff]
    %v203 = vld [vmem:[%s2 + $0x528] sm:$0xff]
    %v204 = vld [vmem:[%s2 + $0x530] sm:$0xff]
    %v205 = vld [vmem:[%s2 + $0x538] sm:$0xff]
    %v206 = vld [vmem:[%s2 + $0x540] sm:$0xff]
    %v207 = vld [vmem:[%s2 + $0x548] sm:$0xff]
    %v208 = vld [vmem:[%s2 + $0x550] sm:$0xff]
    %v209 = vld [vmem:[%s2 + $0x558] sm:$0xff]
    %v210 = vld [vmem:[%s2 + $0x560] sm:$0xff]
    %v211 = vld [vmem:[%s2 + $0x568] sm:$0xff]
    %v212 = vld [vmem:[%s2 + $0x570] sm:$0xff]
    %v213 = vld [vmem:[%s2 + $0x578] sm:$0xff]
    %v214 = vld [vmem:[%s2 + $0x580] sm:$0xff]
    %v215 = vld [vmem:[%s2 + $0x588] sm:$0xff]
    %v216 = vld [vmem:[%s2 + $0x590] sm:$0xff]
    %v217 = vld [vmem:[%s2 + $0x598] sm:$0xff]
    %v218 = vld [vmem:[%s2 + $0x5a0] sm:$0xff]
    %v219 = vld [vmem:[%s2 + $0x5a8] sm:$0xff]
    %v220 = vld [vmem:[%s2 + $0x5b0] sm:$0xff]
    %v221 = vld [vmem:[%s2 + $0x5b8] sm:$0xff]
    %v222 = vld [vmem:[%s2 + $0x5c0] sm:$0xff]
    %v223 = vld [vmem:[%s2 + $0x5c8] sm:$0xff]
    %v224 = vld [vmem:[%s2 + $0x5d0] sm:$0xff]
    %v225 = vld [vmem:[%s2 + $0x5d8] sm:$0xff]
    %v226 = vld [vmem:[%s2 + $0x5e0] sm:$0xff]
    %v227 = vld [vmem:[%s2 + $0x5e8] sm:$0xff]
    %v228 = vld [vmem:[%s2 + $0x5f0] sm:$0xff]
    %v229 = vld [vmem:[%s2 + $0x5f8] sm:$0xff]
    %v230 = vld [vmem:[%s2 + $0x600] sm:$0xff]
    %v231 = vld [vmem:[%s2 + $0x608] sm:$0xff]
    %v232 = vld [vmem:[%s2 + $0x610] sm:$0xff]
    %v233 = vld [vmem:[%s2 + $0x618] sm:$0xff]
    %v234 = vld [vmem:[%s2 + $0x620] sm:$0xff]
    %v235 = vld [vmem:[%s2 + $0x628] sm:$0xff]
    %v236 = vld [vmem:[%s2 + $0x630] sm:$0xff]
    %v237 = vld [vmem:[%s2 + $0x638] sm:$0xff]
    %v238 = vld [vmem:[%s2 + $0x640] sm:$0xff]
    %v239 = vld [vmem:[%s2 + $0x648] sm:$0xff]
    %v240 = vld [vmem:[%s2 + $0x650] sm:$0xff]
    %v241 = vld [vmem:[%s2 + $0x658] sm:$0xff]
    %v242 = vld [vmem:[%s2 + $0x660] sm:$0xff]
    %v243 = vld [vmem:[%s2 + $0x668] sm:$0xff]
    %v244 = vld [vmem:[%s2 + $0x670] sm:$0xff]
    %v245 = vld [vmem:[%s2 + $0x678] sm:$0xff]
    %v246 = vld [vmem:[%s2 + $0x680] sm:$0xff]
    %v247 = vld [vmem:[%s2 + $0x688] sm:$0xff]
    %v248 = vld [vmem:[%s2 + $0x690] sm:$0xff]
    %v249 = vld [vmem:[%s2 + $0x698] sm:$0xff]
    %v250 = vld [vmem:[%s2 + $0x6a0] sm:$0xff]
    %v251 = vld [vmem:[%s2 + $0x6a8] sm:$0xff]
    %v252 = vld [vmem:[%s2 + $0x6b0] sm:$0xff]
    %v253 = vld [vmem:[%s2 + $0x6b8] sm:$0xff]
    %v254 = vld [vmem:[%s2 + $0x6c0] sm:$0xff]
    %v255 = vld [vmem:[%s2 + $0x6c8] sm:$0xff]
    %v256 = vld [vmem:[%s2 + $0x6d0] sm:$0xff]
    %v257 = vld [vmem:[%s2 + $0x6d8] sm:$0xff]
    %v258 = vld [vmem:[%s2 + $0x6e0] sm:$0xff]
    %v259 = vld [vmem:[%s2 + $0x6e8] sm:$0xff]
    %v260 = vld [vmem:[%s2 + $0x6f0] sm:$0xff]
    %v261 = vld [vmem:[%s2 + $0x6f8] sm:$0xff]
    %v262 = vld [vmem:[%s2 + $0x700] sm:$0xff]
    %v263 = vld [vmem:[%s2 + $0x708] sm:$0xff]
    %v264 = vld [vmem:[%s2 + $0x710] sm:$0xff]
    %v265 = vld [vmem:[%s2 + $0x718] sm:$0xff]
    %v266 = vld [vmem:[%s2 + $0x720] sm:$0xff]
    %v267 = vld [vmem:[%s2 + $0x728] sm:$0xff]
    %v268 = vld [vmem:[%s2 + $0x730] sm:$0xff]
    %v269 = vld [vmem:[%s2 + $0x738] sm:$0xff]
    %v270 = vld [vmem:[%s2 + $0x740] sm:$0xff]
    %v271 = vld [vmem:[%s2 + $0x748] sm:$0xff]
    %v272 = vld [vmem:[%s2 + $0x750] sm:$0xff]
    %v273 = vld [vmem:[%s2 + $0x758] sm:$0xff]
    %v274 = vld [vmem:[%s2 + $0x760] sm:$0xff]
    %v275 = vld [vmem:[%s2 + $0x768] sm:$0xff]
    %v276 = vld [vmem:[%s2 + $0x770] sm:$0xff]
    %v277 = vld [vmem:[%s2 + $0x778] sm:$0xff]
    %v278 = vld [vmem:[%s2 + $0x780] sm:$0xff]
    %v279 = vld [vmem:[%s2 + $0x788] sm:$0xff]
    %v280 = vld [vmem:[%s2 + $0x790] sm:$0xff]
    %v281 = vld [vmem:[%s2 + $0x798] sm:$0xff]
    %v282 = vld [vmem:[%s2 + $0x7a0] sm:$0xff]
    %v283 = vld [vmem:[%s2 + $0x7a8] sm:$0xff]
    %v284 = vld [vmem:[%s2 + $0x7b0] sm:$0xff]
    %v285 = vld [vmem:[%s2 + $0x7b8] sm:$0xff]
    %v286 = vld [vmem:[%s2 + $0x7c0] sm:$0xff]
    %v287 = vld [vmem:[%s2 + $0x7c8] sm:$0xff]
    %v288 = vld [vmem:[%s2 + $0x7d0] sm:$0xff]
    %v289 = vld [vmem:[%s2 + $0x7d8] sm:$0xff]
    %v290 = vld [vmem:[%s2 + $0x7e0] sm:$0xff]
    %v291 = vld [vmem:[%s2 + $0x7e8] sm:$0xff]
    %v292 = vld [vmem:[%s2 + $0x7f0] sm:$0xff]
    %v293 = vld [vmem:[%s2 + $0x7f8] sm:$0xff]
    %v294 = vld [vmem:[%s2 + $0x800] sm:$0xff]
    %v295 = vld [vmem:[%s2 + $0x808] sm:$0xff]
    %v296 = vld [vmem:[%s2 + $0x810] sm:$0xff]
    %v297 = vld [vmem:[%s2 + $0x818] sm:$0xff]
    %v298 = vld [vmem:[%s2 + $0x820] sm:$0xff]
    %v299 = vld [vmem:[%s2 + $0x828] sm:$0xff]
    %v300 = vld [vmem:[%s2 + $0x830] sm:$0xff]
    %v301 = vld [vmem:[%s2 + $0x838] sm:$0xff]
    %v302 = vld [vmem:[%s2 + $0x840] sm:$0xff]
    %v303 = vld [vmem:[%s2 + $0x848] sm:$0xff]
    %v304 = vld [vmem:[%s2 + $0x850] sm:$0xff]
    %v305 = vld [vmem:[%s2 + $0x858] sm:$0xff]
    %v306 = vld [vmem:[%s2 + $0x860] sm:$0xff]
    %v307 = vld [vmem:[%s2 + $0x868] sm:$0xff]
    %v308 = vld [vmem:[%s2 + $0x870] sm:$0xff]
    %v309 = vld [vmem:[%s2 + $0x878] sm:$0xff]
    %v310 = vld [vmem:[%s2 + $0x880] sm:$0xff]
    %v311 = vld [vmem:[%s2 + $0x888] sm:$0xff]
    %v312 = vld [vmem:[%s2 + $0x890] sm:$0xff]
    %v313 = vld [vmem:[%s2 + $0x898] sm:$0xff]
    %v314 = vld [vmem:[%s2 + $0x8a0] sm:$0xff]
    %v315 = vld [vmem:[%s2 + $0x8a8] sm:$0xff]
    %v316 = vld [vmem:[%s2 + $0x8b0] sm:$0xff]
    %v317 = vld [vmem:[%s2 + $0x8b8] sm:$0xff]
    %v318 = vld [vmem:[%s2 + $0x8c0] sm:$0xff]
    %v319 = vld [vmem:[%s2 + $0x8c8] sm:$0xff]
    %v320 = vld [vmem:[%s2 + $0x8d0] sm:$0xff]
    %v321 = vld [vmem:[%s2 + $0x8d8] sm:$0xff]
    %v322 = vld [vmem:[%s2 + $0x8e0] sm:$0xff]
    %v323 = vld [vmem:[%s2 + $0x8e8] sm:$0xff]
    %v324 = vld [vmem:[%s2 + $0x8f0] sm:$0xff]
    %v325 = vld [vmem:[%s2 + $0x8f8] sm:$0xff]
    %v326 = vld [vmem:[%s2 + $0x900] sm:$0xff]
    %v327 = vld [vmem:[%s2 + $0x908] sm:$0xff]
    %v328 = vld [vmem:[%s2 + $0x910] sm:$0xff]
    %v329 = vld [vmem:[%s2 + $0x918] sm:$0xff]
    %v330 = vld [vmem:[%s2 + $0x920] sm:$0xff]
    %v331 = vld [vmem:[%s2 + $0x928] sm:$0xff]
    %v332 = vld [vmem:[%s2 + $0x930] sm:$0xff]
    %v333 = vld [vmem:[%s2 + $0x938] sm:$0xff]
    %v334 = vld [vmem:[%s2 + $0x940] sm:$0xff]
    %v335 = vld [vmem:[%s2 + $0x948] sm:$0xff]
    %v336 = vld [vmem:[%s2 + $0x950] sm:$0xff]
    %v337 = vld [vmem:[%s2 + $0x958] sm:$0xff]
    %v338 = vld [vmem:[%s2 + $0x960] sm:$0xff]
    %v339 = vld [vmem:[%s2 + $0x968] sm:$0xff]
    %v340 = vld [vmem:[%s2 + $0x970] sm:$0xff]
    %v341 = vld [vmem:[%s2 + $0x978] sm:$0xff]
    %v342 = vld [vmem:[%s2 + $0x980] sm:$0xff]
    %v343 = vld [vmem:[%s2 + $0x988] sm:$0xff]
    %v344 = vld [vmem:[%s2 + $0x990] sm:$0xff]
    %v345 = vld [vmem:[%s2 + $0x998] sm:$0xff]
    %v346 = vld [vmem:[%s2 + $0x9a0] sm:$0xff]
    %v347 = vld [vmem:[%s2 + $0x9a8] sm:$0xff]
    %v348 = vld [vmem:[%s2 + $0x9b0] sm:$0xff]
    %v349 = vld [vmem:[%s2 + $0x9b8] sm:$0xff]
    %v350 = vld [vmem:[%s2 + $0x9c0] sm:$0xff]
    %v351 = vld [vmem:[%s2 + $0x9c8] sm:$0xff]
    %v352 = vld [vmem:[%s2 + $0x9d0] sm:$0xff]
    %v353 = vld [vmem:[%s2 + $0x9d8] sm:$0xff]
    %v354 = vld [vmem:[%s2 + $0x9e0] sm:$0xff]
    %v355 = vld [vmem:[%s2 + $0x9e8] sm:$0xff]
    %v356 = vld [vmem:[%s2 + $0x9f0] sm:$0xff]
    %v357 = vld [vmem:[%s2 + $0x9f8] sm:$0xff]
    %v358 = vld [vmem:[%s2 + $0xa00] sm:$0xff]
    %v359 = vld [vmem:[%s2 + $0xa08] sm:$0xff]
    %v360 = vld [vmem:[%s2 + $0xa10] sm:$0xff]
    %v361 = vld [vmem:[%s2 + $0xa18] sm:$0xff]
    %v362 = vld [vmem:[%s2 + $0xa20] sm:$0xff]
    %v363 = vld [vmem:[%s2 + $0xa28] sm:$0xff]
    %v364 = vld [vmem:[%s2 + $0xa30] sm:$0xff]
    %v365 = vld [vmem:[%s2 + $0xa38] sm:$0xff]
    %v366 = vld [vmem:[%s2 + $0xa40] sm:$0xff]
    %v367 = vld [vmem:[%s2 + $0xa48] sm:$0xff]
    %v368 = vld [vmem:[%s2 + $0xa50] sm:$0xff]
    %v369 = vld [vmem:[%s2 + $0xa58] sm:$0xff]
    %v370 = vld [vmem:[%s2 + $0xa60] sm:$0xff]
    %v371 = vld [vmem:[%s2 + $0xa68] sm:$0xff]
    %v372 = vld [vmem:[%s2 + $0xa70] sm:$0xff]
    %v373 = vld [vmem:[%s2 + $0xa78] sm:$0xff]
    %v374 = vld [vmem:[%s2 + $0xa80] sm:$0xff]
    %v375 = vld [vmem:[%s2 + $0xa88] sm:$0xff]
    %v376 = vld [vmem:[%s2 + $0xa90] sm:$0xff]
    %v377 = vld [vmem:[%s2 + $0xa98] sm:$0xff]
    %v378 = vld [vmem:[%s2 + $0xaa0] sm:$0xff]
    %v379 = vld [vmem:[%s2 + $0xaa8] sm:$0xff]
    %v380 = vld [vmem:[%s2 + $0xab0] sm:$0xff]
    %v381 = vld [vmem:[%s2 + $0xab8] sm:$0xff]
    %v382 = vld [vmem:[%s2 + $0xac0] sm:$0xff]
    %v383 = vld [vmem:[%s2 + $0xac8] sm:$0xff]
    %v384 = vld [vmem:[%s2 + $0xad0] sm:$0xff]
    %v385 = vld [vmem:[%s2 + $0xad8] sm:$0xff]
    %v386 = vld [vmem:[%s2 + $0xae0] sm:$0xff]
    %v387 = vld [vmem:[%s2 + $0xae8] sm:$0xff]
    %v388 = vld [vmem:[%s2 + $0xaf0] sm:$0xff]
    %v389 = vld [vmem:[%s2 + $0xaf8] sm:$0xff]
    %v390 = vld [vmem:[%s2 + $0xb00] sm:$0xff]
    %v391 = vld [vmem:[%s2 + $0xb08] sm:$0xff]
    %v392 = vld [vmem:[%s2 + $0xb10] sm:$0xff]
    %v393 = vld [vmem:[%s2 + $0xb18] sm:$0xff]
    %v394 = vld [vmem:[%s2 + $0xb20] sm:$0xff]
    %v395 = vld [vmem:[%s2 + $0xb28] sm:$0xff]
    %v396 = vld [vmem:[%s2 + $0xb30] sm:$0xff]
    %v397 = vld [vmem:[%s2 + $0xb38] sm:$0xff]
    %v398 = vld [vmem:[%s2 + $0xb40] sm:$0xff]
    %v399 = vld [vmem:[%s2 + $0xb48] sm:$0xff]
    %v400 = vld [vmem:[%s2 + $0xb50] sm:$0xff]
    %v401 = vld [vmem:[%s2 + $0xb58] sm:$0xff]
    %v402 = vld [vmem:[%s2 + $0xb60] sm:$0xff]
    %v403 = vld [vmem:[%s2 + $0xb68] sm:$0xff]
    %v404 = vld [vmem:[%s2 + $0xb70] sm:$0xff]
    %v405 = vld [vmem:[%s2 + $0xb78] sm:$0xff]
    %v406 = vld [vmem:[%s2 + $0xb80] sm:$0xff]
    %v407 = vld [vmem:[%s2 + $0xb88] sm:$0xff]
    %v408 = vld [vmem:[%s2 + $0xb90] sm:$0xff]
    %v409 = vld [vmem:[%s2 + $0xb98] sm:$0xff]
    %v410 = vld [vmem:[%s2 + $0xba0] sm:$0xff]
    %v411 = vld [vmem:[%s2 + $0xba8] sm:$0xff]
    %v412 = vld [vmem:[%s2 + $0xbb0] sm:$0xff]
    %v413 = vld [vmem:[%s2 + $0xbb8] sm:$0xff]
    %v414 = vld [vmem:[%s2 + $0xbc0] sm:$0xff]
    %v415 = vld [vmem:[%s2 + $0xbc8] sm:$0xff]
    %v416 = vld [vmem:[%s2 + $0xbd0] sm:$0xff]
    %v417 = vld [vmem:[%s2 + $0xbd8] sm:$0xff]
    %v418 = vld [vmem:[%s2 + $0xbe0] sm:$0xff]
    %v419 = vld [vmem:[%s2 + $0xbe8] sm:$0xff]
    %v420 = vld [vmem:[%s2 + $0xbf0] sm:$0xff]
    %v421 = vld [vmem:[%s2 + $0xbf8] sm:$0xff]
    %v422 = vld [vmem:[%s2 + $0xc00] sm:$0xff]
    %v423 = vld [vmem:[%s2 + $0xc08] sm:$0xff]
    %v424 = vld [vmem:[%s2 + $0xc10] sm:$0xff]
    %v425 = vld [vmem:[%s2 + $0xc18] sm:$0xff]
    %v426 = vld [vmem:[%s2 + $0xc20] sm:$0xff]
    %v427 = vld [vmem:[%s2 + $0xc28] sm:$0xff]
    %v428 = vld [vmem:[%s2 + $0xc30] sm:$0xff]
    %v429 = vld [vmem:[%s2 + $0xc38] sm:$0xff]
    %v430 = vld [vmem:[%s2 + $0xc40] sm:$0xff]
    %v431 = vld [vmem:[%s2 + $0xc48] sm:$0xff]
    %v432 = vld [vmem:[%s2 + $0xc50] sm:$0xff]
    %v433 = vld [vmem:[%s2 + $0xc58] sm:$0xff]
    %v434 = vld [vmem:[%s2 + $0xc60] sm:$0xff]
    %v435 = vld [vmem:[%s2 + $0xc68] sm:$0xff]
    %v436 = vld [vmem:[%s2 + $0xc70] sm:$0xff]
    %v437 = vld [vmem:[%s2 + $0xc78] sm:$0xff]
    %v438 = vld [vmem:[%s2 + $0xc80] sm:$0xff]
    %v439 = vld [vmem:[%s2 + $0xc88] sm:$0xff]
    %v440 = vld [vmem:[%s2 + $0xc90] sm:$0xff]
    %v441 = vld [vmem:[%s2 + $0xc98] sm:$0xff]
    %v442 = vld [vmem:[%s2 + $0xca0] sm:$0xff]
    %v443 = vld [vmem:[%s2 + $0xca8] sm:$0xff]
    %v444 = vld [vmem:[%s2 + $0xcb0] sm:$0xff]
    %v445 = vld [vmem:[%s2 + $0xcb8] sm:$0xff]
    %v446 = vld [vmem:[%s2 + $0xcc0] sm:$0xff]
    %v447 = vld [vmem:[%s2 + $0xcc8] sm:$0xff]
    %v448 = vld [vmem:[%s2 + $0xcd0] sm:$0xff]
    %v449 = vld [vmem:[%s2 + $0xcd8] sm:$0xff]
    %v450 = vld [vmem:[%s2 + $0xce0] sm:$0xff]
    %v451 = vld [vmem:[%s2 + $0xce8] sm:$0xff]
    %v452 = vld [vmem:[%s2 + $0xcf0] sm:$0xff]
    %v453 = vld [vmem:[%s2 + $0xcf8] sm:$0xff]
    %v454 = vld [vmem:[%s2 + $0xd00] sm:$0xff]
    %v455 = vld [vmem:[%s2 + $0xd08] sm:$0xff]
    %v456 = vld [vmem:[%s2 + $0xd10] sm:$0xff]
    %v457 = vld [vmem:[%s2 + $0xd18] sm:$0xff]
    %v458 = vld [vmem:[%s2 + $0xd20] sm:$0xff]
    %v459 = vld [vmem:[%s2 + $0xd28] sm:$0xff]
    %v460 = vld [vmem:[%s2 + $0xd30] sm:$0xff]
    %v461 = vld [vmem:[%s2 + $0xd38] sm:$0xff]
    %v462 = vld [vmem:[%s2 + $0xd40] sm:$0xff]
    %v463 = vld [vmem:[%s2 + $0xd48] sm:$0xff]
    %v464 = vld [vmem:[%s2 + $0xd50] sm:$0xff]
    %v465 = vld [vmem:[%s2 + $0xd58] sm:$0xff]
    %v466 = vld [vmem:[%s2 + $0xd60] sm:$0xff]
    %v467 = vld [vmem:[%s2 + $0xd68] sm:$0xff]
    %v468 = vld [vmem:[%s2 + $0xd70] sm:$0xff]
    %v469 = vld [vmem:[%s2 + $0xd78] sm:$0xff]
    %v470 = vld [vmem:[%s2 + $0xd80] sm:$0xff]
    %v471 = vld [vmem:[%s2 + $0xd88] sm:$0xff]
    %v472 = vld [vmem:[%s2 + $0xd90] sm:$0xff]
    %v473 = vld [vmem:[%s2 + $0xd98] sm:$0xff]
    %v474 = vld [vmem:[%s2 + $0xda0] sm:$0xff]
    %v475 = vld [vmem:[%s2 + $0xda8] sm:$0xff]
    %v476 = vld [vmem:[%s2 + $0xdb0] sm:$0xff]
    %v477 = vld [vmem:[%s2 + $0xdb8] sm:$0xff]
    %v478 = vld [vmem:[%s2 + $0xdc0] sm:$0xff]
    %v479 = vld [vmem:[%s2 + $0xdc8] sm:$0xff]
    %v480 = vld [vmem:[%s2 + $0xdd0] sm:$0xff]
    %v481 = vld [vmem:[%s2 + $0xdd8] sm:$0xff]
    %v482 = vld [vmem:[%s2 + $0xde0] sm:$0xff]
    %v483 = vld [vmem:[%s2 + $0xde8] sm:$0xff]
    %v484 = vld [vmem:[%s2 + $0xdf0] sm:$0xff]
    %v485 = vld [vmem:[%s2 + $0xdf8] sm:$0xff]
    %v486 = vld [vmem:[%s2 + $0xe00] sm:$0xff]
    %v487 = vld [vmem:[%s2 + $0xe08] sm:$0xff]
    %v488 = vld [vmem:[%s2 + $0xe10] sm:$0xff]
    %v489 = vld [vmem:[%s2 + $0xe18] sm:$0xff]
    %v490 = vld [vmem:[%s2 + $0xe20] sm:$0xff]
    %v491 = vld [vmem:[%s2 + $0xe28] sm:$0xff]
    %v492 = vld [vmem:[%s2 + $0xe30] sm:$0xff]
    %v493 = vld [vmem:[%s2 + $0xe38] sm:$0xff]
    %v494 = vld [vmem:[%s2 + $0xe40] sm:$0xff]
    %v495 = vld [vmem:[%s2 + $0xe48] sm:$0xff]
    %v496 = vld [vmem:[%s2 + $0xe50] sm:$0xff]
    %v497 = vld [vmem:[%s2 + $0xe58] sm:$0xff]
    %v498 = vld [vmem:[%s2 + $0xe60] sm:$0xff]
    %v499 = vld [vmem:[%s2 + $0xe68] sm:$0xff]
    %v500 = vld [vmem:[%s2 + $0xe70] sm:$0xff]
    %v501 = vld [vmem:[%s2 + $0xe78] sm:$0xff]
    %v502 = vld [vmem:[%s2 + $0xe80] sm:$0xff]
    %v503 = vld [vmem:[%s2 + $0xe88] sm:$0xff]
    %v504 = vld [vmem:[%s2 + $0xe90] sm:$0xff]
    %v505 = vld [vmem:[%s2 + $0xe98] sm:$0xff]
    %v506 = vld [vmem:[%s2 + $0xea0] sm:$0xff]
    %v507 = vld [vmem:[%s2 + $0xea8] sm:$0xff]
    %v508 = vld [vmem:[%s2 + $0xeb0] sm:$0xff]
    %v509 = vld [vmem:[%s2 + $0xeb8] sm:$0xff]
    %v510 = vld [vmem:[%s2 + $0xec0] sm:$0xff]
    %v511 = vld [vmem:[%s2 + $0xec8] sm:$0xff]
    %v512 = vld [vmem:[%s2 + $0xed0] sm:$0xff]
    %v513 = vld [vmem:[%s2 + $0xed8] sm:$0xff]
    %v514 = vld [vmem:[%s2 + $0xee0] sm:$0xff]
    %v515 = vld [vmem:[%s2 + $0xee8] sm:$0xff]
    %v516 = vld [vmem:[%s2 + $0xef0] sm:$0xff]
    %v517 = vld [vmem:[%s2 + $0xef8] sm:$0xff]
    %v518 = vld [vmem:[%s2 + $0xf00] sm:$0xff]
    %v519 = vld [vmem:[%s2 + $0xf08] sm:$0xff]
    %v520 = vld [vmem:[%s2 + $0xf10] sm:$0xff]
    %v521 = vld [vmem:[%s2 + $0xf18] sm:$0xff]
    %v522 = vld [vmem:[%s2 + $0xf20] sm:$0xff]
    %v523 = vld [vmem:[%s2 + $0xf28] sm:$0xff]
    %v524 = vld [vmem:[%s2 + $0xf30] sm:$0xff]
    %v525 = vld [vmem:[%s2 + $0xf38] sm:$0xff]
    %v526 = vld [vmem:[%s2 + $0xf40] sm:$0xff]
    %v527 = vld [vmem:[%s2 + $0xf48] sm:$0xff]
    %v528 = vld [vmem:[%s2 + $0xf50] sm:$0xff]
    %v529 = vld [vmem:[%s2 + $0xf58] sm:$0xff]
    %v530 = vld [vmem:[%s2 + $0xf60] sm:$0xff]
    %v531 = vld [vmem:[%s2 + $0xf68] sm:$0xff]
    %v532 = vld [vmem:[%s2 + $0xf70] sm:$0xff]
    %v533 = vld [vmem:[%s2 + $0xf78] sm:$0xff]
    %v534 = vld [vmem:[%s2 + $0xf80] sm:$0xff]
    %v535 = vld [vmem:[%s2 + $0xf88] sm:$0xff]
    %v536 = vld [vmem:[%s2 + $0xf90] sm:$0xff]
    %v537 = vld [vmem:[%s2 + $0xf98] sm:$0xff]
    %v538 = vld [vmem:[%s2 + $0xfa0] sm:$0xff]
    %v539 = vld [vmem:[%s2 + $0xfa8] sm:$0xff]
    %v540 = vld [vmem:[%s2 + $0xfb0] sm:$0xff]
    %v541 = vld [vmem:[%s2 + $0xfb8] sm:$0xff]
    %v542 = vld [vmem:[%s2 + $0xfc0] sm:$0xff]
    %v543 = vld [vmem:[%s2 + $0xfc8] sm:$0xff]
    %v544 = vld [vmem:[%s2 + $0xfd0] sm:$0xff]
    %v545 = vld [vmem:[%s2 + $0xfd8] sm:$0xff]
    %v546 = vld [vmem:[%s2 + $0xfe0] sm:$0xff]
    %v547 = vld [vmem:[%s2 + $0xfe8] sm:$0xff]
    %v548 = vld [vmem:[%s2 + $0xff0] sm:$0xff]
    %v549 = vld [vmem:[%s2 + $0xff8] sm:$0xff]
    %v550 = vld [vmem:[%s2 + $0x1000] sm:$0xff]
    %v551 = vld [vmem:[%s2 + $0x1008] sm:$0xff]
    %v552 = vld [vmem:[%s2 + $0x1010] sm:$0xff]
    %v553 = vld [vmem:[%s2 + $0x1018] sm:$0xff]
    %v554 = vld [vmem:[%s2 + $0x1020] sm:$0xff]
    %v555 = vld [vmem:[%s2 + $0x1028] sm:$0xff]
    %v556 = vld [vmem:[%s2 + $0x1030] sm:$0xff]
    %v557 = vld [vmem:[%s2 + $0x1038] sm:$0xff]
    %v558 = vld [vmem:[%s2 + $0x1040] sm:$0xff]
    %v559 = vld [vmem:[%s2 + $0x1048] sm:$0xff]
    %v560 = vld [vmem:[%s2 + $0x1050] sm:$0xff]
    %v561 = vld [vmem:[%s2 + $0x1058] sm:$0xff]
    %v562 = vld [vmem:[%s2 + $0x1060] sm:$0xff]
    %v563 = vld [vmem:[%s2 + $0x1068] sm:$0xff]
    %v564 = vld [vmem:[%s2 + $0x1070] sm:$0xff]
    %v565 = vld [vmem:[%s2 + $0x1078] sm:$0xff]
    %v566 = vld [vmem:[%s2 + $0x1080] sm:$0xff]
    %v567 = vld [vmem:[%s2 + $0x1088] sm:$0xff]
    %v568 = vld [vmem:[%s2 + $0x1090] sm:$0xff]
    %v569 = vld [vmem:[%s2 + $0x1098] sm:$0xff]
    %v570 = vld [vmem:[%s2 + $0x10a0] sm:$0xff]
    %v571 = vld [vmem:[%s2 + $0x10a8] sm:$0xff]
    %v572 = vld [vmem:[%s2 + $0x10b0] sm:$0xff]
    %v573 = vld [vmem:[%s2 + $0x10b8] sm:$0xff]
    %v574 = vld [vmem:[%s2 + $0x10c0] sm:$0xff]
    %v575 = vld [vmem:[%s2 + $0x10c8] sm:$0xff]
    %v576 = vld [vmem:[%s2 + $0x10d0] sm:$0xff]
    %v577 = vld [vmem:[%s2 + $0x10d8] sm:$0xff]
    %v578 = vld [vmem:[%s2 + $0x10e0] sm:$0xff]
    %v579 = vld [vmem:[%s2 + $0x10e8] sm:$0xff]
    %v580 = vld [vmem:[%s2 + $0x10f0] sm:$0xff]
    %v581 = vld [vmem:[%s2 + $0x10f8] sm:$0xff]
    %v582 = vld [vmem:[%s2 + $0x1100] sm:$0xff]
    %v583 = vld [vmem:[%s2 + $0x1108] sm:$0xff]
    %v584 = vld [vmem:[%s2 + $0x1110] sm:$0xff]
    %v585 = vld [vmem:[%s2 + $0x1118] sm:$0xff]
    %v586 = vld [vmem:[%s2 + $0x1120] sm:$0xff]
    %v587 = vld [vmem:[%s2 + $0x1128] sm:$0xff]
    %v588 = vld [vmem:[%s2 + $0x1130] sm:$0xff]
    %v589 = vld [vmem:[%s2 + $0x1138] sm:$0xff]
    %v590 = vld [vmem:[%s2 + $0x1140] sm:$0xff]
    %v591 = vld [vmem:[%s2 + $0x1148] sm:$0xff]
    %v592 = vld [vmem:[%s2 + $0x1150] sm:$0xff]
    %v593 = vld [vmem:[%s2 + $0x1158] sm:$0xff]
    %v594 = vld [vmem:[%s2 + $0x1160] sm:$0xff]
    %v595 = vld [vmem:[%s2 + $0x1168] sm:$0xff]
    %v596 = vld [vmem:[%s2 + $0x1170] sm:$0xff]
    %v597 = vld [vmem:[%s2 + $0x1178] sm:$0xff]
    %v598 = vld [vmem:[%s2 + $0x1180] sm:$0xff]
    %v599 = vld [vmem:[%s2 + $0x1188] sm:$0xff]
    %v600 = vld [vmem:[%s2 + $0x1190] sm:$0xff]
    %v601 = vld [vmem:[%s2 + $0x1198] sm:$0xff]
    %v602 = vld [vmem:[%s2 + $0x11a0] sm:$0xff]
    %v603 = vld [vmem:[%s2 + $0x11a8] sm:$0xff]
    %v604 = vld [vmem:[%s2 + $0x11b0] sm:$0xff]
    %v605 = vld [vmem:[%s2 + $0x11b8] sm:$0xff]
    %v606 = vld [vmem:[%s2 + $0x11c0] sm:$0xff]
    %v607 = vld [vmem:[%s2 + $0x11c8] sm:$0xff]
    %v608 = vld [vmem:[%s2 + $0x11d0] sm:$0xff]
    %v609 = vld [vmem:[%s2 + $0x11d8] sm:$0xff]
    %v610 = vld [vmem:[%s2 + $0x11e0] sm:$0xff]
    %v611 = vld [vmem:[%s2 + $0x11e8] sm:$0xff]
    %v612 = vld [vmem:[%s2 + $0x11f0] sm:$0xff]
    %v613 = vld [vmem:[%s2 + $0x11f8] sm:$0xff]
    %v614 = vld [vmem:[%s2 + $0x1200] sm:$0xff]
    %v615 = vld [vmem:[%s2 + $0x1208] sm:$0xff]
    %v616 = vld [vmem:[%s2 + $0x1210] sm:$0xff]
    %v617 = vld [vmem:[%s2 + $0x1218] sm:$0xff]
    %v618 = vld [vmem:[%s2 + $0x1220] sm:$0xff]
    %v619 = vld [vmem:[%s2 + $0x1228] sm:$0xff]
    %v620 = vld [vmem:[%s2 + $0x1230] sm:$0xff]
    %v621 = vld [vmem:[%s2 + $0x1238] sm:$0xff]
    %v622 = vld [vmem:[%s2 + $0x1240] sm:$0xff]
    %v623 = vld [vmem:[%s2 + $0x1248] sm:$0xff]
    %v624 = vld [vmem:[%s2 + $0x1250] sm:$0xff]
    %v625 = vld [vmem:[%s2 + $0x1258] sm:$0xff]
    %v626 = vld [vmem:[%s2 + $0x1260] sm:$0xff]
    %v627 = vld [vmem:[%s2 + $0x1268] sm:$0xff]
    %v628 = vld [vmem:[%s2 + $0x1270] sm:$0xff]
    %v629 = vld [vmem:[%s2 + $0x1278] sm:$0xff]
    %v630 = vld [vmem:[%s2 + $0x1280] sm:$0xff]
    %v631 = vld [vmem:[%s2 + $0x1288] sm:$0xff]
    %v632 = vld [vmem:[%s2 + $0x1290] sm:$0xff]
    %v633 = vld [vmem:[%s2 + $0x1298] sm:$0xff]
    %v634 = vld [vmem:[%s2 + $0x12a0] sm:$0xff]
    %v635 = vld [vmem:[%s2 + $0x12a8] sm:$0xff]
    %v636 = vld [vmem:[%s2 + $0x12b0] sm:$0xff]
    %v637 = vld [vmem:[%s2 + $0x12b8] sm:$0xff]
    %v638 = vld [vmem:[%s2 + $0x12c0] sm:$0xff]
    %v639 = vld [vmem:[%s2 + $0x12c8] sm:$0xff]
    %v640 = vld [vmem:[%s2 + $0x12d0] sm:$0xff]
    %v641 = vld [vmem:[%s2 + $0x12d8] sm:$0xff]
    %v642 = vld [vmem:[%s2 + $0x12e0] sm:$0xff]
    %v643 = vld [vmem:[%s2 + $0x12e8] sm:$0xff]
    %v644 = vld [vmem:[%s2 + $0x12f0] sm:$0xff]
    %v645 = vld [vmem:[%s2 + $0x12f8] sm:$0xff]
    %v646 = vld [vmem:[%s2 + $0x1300] sm:$0xff]
    %v647 = vld [vmem:[%s2 + $0x1308] sm:$0xff]
    %v648 = vld [vmem:[%s2 + $0x1310] sm:$0xff]
    %v649 = vld [vmem:[%s2 + $0x1318] sm:$0xff]
    %v650 = vld [vmem:[%s2 + $0x1320] sm:$0xff]
    %v651 = vld [vmem:[%s2 + $0x1328] sm:$0xff]
    %v652 = vld [vmem:[%s2 + $0x1330] sm:$0xff]
    %v653 = vld [vmem:[%s2 + $0x1338] sm:$0xff]
    %v654 = vld [vmem:[%s2 + $0x1340] sm:$0xff]
    %v655 = vld [vmem:[%s2 + $0x1348] sm:$0xff]
    %v656 = vld [vmem:[%s2 + $0x1350] sm:$0xff]
    %v657 = vld [vmem:[%s2 + $0x1358] sm:$0xff]
    %v658 = vld [vmem:[%s2 + $0x1360] sm:$0xff]
    %v659 = vld [vmem:[%s2 + $0x1368] sm:$0xff]
    %v660 = vld [vmem:[%s2 + $0x1370] sm:$0xff]
    %v661 = vld [vmem:[%s2 + $0x1378] sm:$0xff]
    %v662 = vld [vmem:[%s2 + $0x1380] sm:$0xff]
    %v663 = vld [vmem:[%s2 + $0x1388] sm:$0xff]
    %v664 = vld [vmem:[%s2 + $0x1390] sm:$0xff]
    %v665 = vld [vmem:[%s2 + $0x1398] sm:$0xff]
    %v666 = vld [vmem:[%s2 + $0x13a0] sm:$0xff]
    %v667 = vld [vmem:[%s2 + $0x13a8] sm:$0xff]
    %v668 = vld [vmem:[%s2 + $0x13b0] sm:$0xff]
    %v669 = vld [vmem:[%s2 + $0x13b8] sm:$0xff]
    %v670 = vld [vmem:[%s2 + $0x13c0] sm:$0xff]
    %v671 = vld [vmem:[%s2 + $0x13c8] sm:$0xff]
    %v672 = vld [vmem:[%s2 + $0x13d0] sm:$0xff]
    %v673 = vld [vmem:[%s2 + $0x13d8] sm:$0xff]
    %v674 = vld [vmem:[%s2 + $0x13e0] sm:$0xff]
    %v675 = vld [vmem:[%s2 + $0x13e8] sm:$0xff]
    %v676 = vld [vmem:[%s2 + $0x13f0] sm:$0xff]
    %v677 = vld [vmem:[%s2 + $0x13f8] sm:$0xff]
    %v678 = vld [vmem:[%s2 + $0x1400] sm:$0xff]
    %v679 = vld [vmem:[%s2 + $0x1408] sm:$0xff]
    %v680 = vld [vmem:[%s2 + $0x1410] sm:$0xff]
    %v681 = vld [vmem:[%s2 + $0x1418] sm:$0xff]
    %v682 = vld [vmem:[%s2 + $0x1420] sm:$0xff]
    %v683 = vld [vmem:[%s2 + $0x1428] sm:$0xff]
    %v684 = vld [vmem:[%s2 + $0x1430] sm:$0xff]
    %v685 = vld [vmem:[%s2 + $0x1438] sm:$0xff]
    %v686 = vld [vmem:[%s2 + $0x1440] sm:$0xff]
    %v687 = vld [vmem:[%s2 + $0x1448] sm:$0xff]
    %v688 = vld [vmem:[%s2 + $0x1450] sm:$0xff]
    %v689 = vld [vmem:[%s2 + $0x1458] sm:$0xff]
    %v690 = vld [vmem:[%s2 + $0x1460] sm:$0xff]
    %v691 = vld [vmem:[%s2 + $0x1468] sm:$0xff]
    %v692 = vld [vmem:[%s2 + $0x1470] sm:$0xff]
    %v693 = vld [vmem:[%s2 + $0x1478] sm:$0xff]
    %v694 = vld [vmem:[%s2 + $0x1480] sm:$0xff]
    %v695 = vld [vmem:[%s2 + $0x1488] sm:$0xff]
    %v696 = vld [vmem:[%s2 + $0x1490] sm:$0xff]
    %v697 = vld [vmem:[%s2 + $0x1498] sm:$0xff]
    %v698 = vld [vmem:[%s2 + $0x14a0] sm:$0xff]
    %v699 = vld [vmem:[%s2 + $0x14a8] sm:$0xff]
    %v700 = vld [vmem:[%s2 + $0x14b0] sm:$0xff]
    %v701 = vld [vmem:[%s2 + $0x14b8] sm:$0xff]
    %v702 = vld [vmem:[%s2 + $0x14c0] sm:$0xff]
    %v703 = vld [vmem:[%s2 + $0x14c8] sm:$0xff]
    %v704 = vld [vmem:[%s2 + $0x14d0] sm:$0xff]
    %v705 = vld [vmem:[%s2 + $0x14d8] sm:$0xff]
    %v706 = vld [vmem:[%s2 + $0x14e0] sm:$0xff]
    %v707 = vld [vmem:[%s2 + $0x14e8] sm:$0xff]
    %v708 = vld [vmem:[%s2 + $0x14f0] sm:$0xff]
    %v709 = vld [vmem:[%s2 + $0x14f8] sm:$0xff]
    %v710 = vld [vmem:[%s2 + $0x1500] sm:$0xff]
    %v711 = vld [vmem:[%s2 + $0x1508] sm:$0xff]
    %v712 = vld [vmem:[%s2 + $0x1510] sm:$0xff]
    %v713 = vld [vmem:[%s2 + $0x1518] sm:$0xff]
    %v714 = vld [vmem:[%s2 + $0x1520] sm:$0xff]
    %v715 = vld [vmem:[%s2 + $0x1528] sm:$0xff]
    %v716 = vld [vmem:[%s2 + $0x1530] sm:$0xff]
    %v717 = vld [vmem:[%s2 + $0x1538] sm:$0xff]
    %v718 = vld [vmem:[%s2 + $0x1540] sm:$0xff]
    %v719 = vld [vmem:[%s2 + $0x1548] sm:$0xff]
    %v720 = vld [vmem:[%s2 + $0x1550] sm:$0xff]
    %v721 = vld [vmem:[%s2 + $0x1558] sm:$0xff]
    %v722 = vld [vmem:[%s2 + $0x1560] sm:$0xff]
    %v723 = vld [vmem:[%s2 + $0x1568] sm:$0xff]
    %v724 = vld [vmem:[%s2 + $0x1570] sm:$0xff]
    %v725 = vld [vmem:[%s2 + $0x1578] sm:$0xff]
    %v726 = vld [vmem:[%s2 + $0x1580] sm:$0xff]
    %v727 = vld [vmem:[%s2 + $0x1588] sm:$0xff]
    %v728 = vld [vmem:[%s2 + $0x1590] sm:$0xff]
    %v729 = vld [vmem:[%s2 + $0x1598] sm:$0xff]
    %v730 = vld [vmem:[%s2 + $0x15a0] sm:$0xff]
    %v731 = vld [vmem:[%s2 + $0x15a8] sm:$0xff]
    %v732 = vld [vmem:[%s2 + $0x15b0] sm:$0xff]
    %v733 = vld [vmem:[%s2 + $0x15b8] sm:$0xff]
    %v734 = vld [vmem:[%s2 + $0x15c0] sm:$0xff]
    %v735 = vld [vmem:[%s2 + $0x15c8] sm:$0xff]
    %v736 = vld [vmem:[%s2 + $0x15d0] sm:$0xff]
    %v737 = vld [vmem:[%s2 + $0x15d8] sm:$0xff]
    %v738 = vld [vmem:[%s2 + $0x15e0] sm:$0xff]
    %v739 = vld [vmem:[%s2 + $0x15e8] sm:$0xff]
    %v740 = vld [vmem:[%s2 + $0x15f0] sm:$0xff]
    %v741 = vld [vmem:[%s2 + $0x15f8] sm:$0xff]
    %v742 = vld [vmem:[%s2 + $0x1600] sm:$0xff]
    %v743 = vld [vmem:[%s2 + $0x1608] sm:$0xff]
    %v744 = vld [vmem:[%s2 + $0x1610] sm:$0xff]
    %v745 = vld [vmem:[%s2 + $0x1618] sm:$0xff]
    %v746 = vld [vmem:[%s2 + $0x1620] sm:$0xff]
    %v747 = vld [vmem:[%s2 + $0x1628] sm:$0xff]
    %v748 = vld [vmem:[%s2 + $0x1630] sm:$0xff]
    %v749 = vld [vmem:[%s2 + $0x1638] sm:$0xff]
    %v750 = vld [vmem:[%s2 + $0x1640] sm:$0xff]
    %v751 = vld [vmem:[%s2 + $0x1648] sm:$0xff]
    %v752 = vld [vmem:[%s2 + $0x1650] sm:$0xff]
    %v753 = vld [vmem:[%s2 + $0x1658] sm:$0xff]
    %v754 = vld [vmem:[%s2 + $0x1660] sm:$0xff]
    %v755 = vld [vmem:[%s2 + $0x1668] sm:$0xff]
    %v756 = vld [vmem:[%s2 + $0x1670] sm:$0xff]
    %v757 = vld [vmem:[%s2 + $0x1678] sm:$0xff]
    %v758 = vld [vmem:[%s2 + $0x1680] sm:$0xff]
    %v759 = vld [vmem:[%s2 + $0x1688] sm:$0xff]
    %v760 = vld [vmem:[%s2 + $0x1690] sm:$0xff]
    %v761 = vld [vmem:[%s2 + $0x1698] sm:$0xff]
    %v762 = vld [vmem:[%s2 + $0x16a0] sm:$0xff]
    %v763 = vld [vmem:[%s2 + $0x16a8] sm:$0xff]
    %v764 = vld [vmem:[%s2 + $0x16b0] sm:$0xff]
    %v765 = vld [vmem:[%s2 + $0x16b8] sm:$0xff]
    %v766 = vld [vmem:[%s2 + $0x16c0] sm:$0xff]
    %v767 = vld [vmem:[%s2 + $0x16c8] sm:$0xff]
    %v768 = vld [vmem:[%s2 + $0x16d0] sm:$0xff]
    %v769 = vld [vmem:[%s2 + $0x16d8] sm:$0xff]
    %v770 = vld [vmem:[%s2 + $0x16e0] sm:$0xff]
    %v771 = vld [vmem:[%s2 + $0x16e8] sm:$0xff]
    %v772 = vld [vmem:[%s2 + $0x16f0] sm:$0xff]
    %v773 = vld [vmem:[%s2 + $0x16f8] sm:$0xff]
    %v774 = vld [vmem:[%s2 + $0x1700] sm:$0xff]
    %v775 = vld [vmem:[%s2 + $0x1708] sm:$0xff]
    %v776 = vld [vmem:[%s2 + $0x1710] sm:$0xff]
    %v777 = vld [vmem:[%s2 + $0x1718] sm:$0xff]
    %v778 = vld [vmem:[%s2 + $0x1720] sm:$0xff]
    %v779 = vld [vmem:[%s2 + $0x1728] sm:$0xff]
    %v780 = vld [vmem:[%s2 + $0x1730] sm:$0xff]
    %v781 = vld [vmem:[%s2 + $0x1738] sm:$0xff]
    %v782 = vld [vmem:[%s2 + $0x1740] sm:$0xff]
    %v783 = vld [vmem:[%s2 + $0x1748] sm:$0xff]
    %v784 = vld [vmem:[%s2 + $0x1750] sm:$0xff]
    %v785 = vld [vmem:[%s2 + $0x1758] sm:$0xff]
    %v786 = vld [vmem:[%s2 + $0x1760] sm:$0xff]
    %v787 = vld [vmem:[%s2 + $0x1768] sm:$0xff]
    %v788 = vld [vmem:[%s2 + $0x1770] sm:$0xff]
    %v789 = vld [vmem:[%s2 + $0x1778] sm:$0xff]
    %v790 = vld [vmem:[%s2 + $0x1780] sm:$0xff]
    %v791 = vld [vmem:[%s2 + $0x1788] sm:$0xff]
    %v792 = vld [vmem:[%s2 + $0x1790] sm:$0xff]
    %v793 = vld [vmem:[%s2 + $0x1798] sm:$0xff]
    %v794 = vld [vmem:[%s2 + $0x17a0] sm:$0xff]
    %v795 = vld [vmem:[%s2 + $0x17a8] sm:$0xff]
    %v796 = vld [vmem:[%s2 + $0x17b0] sm:$0xff]
    %v797 = vld [vmem:[%s2 + $0x17b8] sm:$0xff]
    %v798 = vld [vmem:[%s2 + $0x17c0] sm:$0xff]
    %v799 = vld [vmem:[%s2 + $0x17c8] sm:$0xff]
    %v800 = vld [vmem:[%s2 + $0x17d0] sm:$0xff]
    %v801 = vld [vmem:[%s2 + $0x17d8] sm:$0xff]
    %v802 = vld [vmem:[%s2 + $0x17e0] sm:$0xff]
    %v803 = vld [vmem:[%s2 + $0x17e8] sm:$0xff]
    %v804 = vld [vmem:[%s2 + $0x17f0] sm:$0xff]
    %v805 = vld [vmem:[%s2 + $0x17f8] sm:$0xff]
    %v806 = vld [vmem:[%s2 + $0x1800] sm:$0xff]
    %v807 = vld [vmem:[%s2 + $0x1808] sm:$0xff]
    %v808 = vld [vmem:[%s2 + $0x1810] sm:$0xff]
    %v809 = vld [vmem:[%s2 + $0x1818] sm:$0xff]
    %v810 = vld [vmem:[%s2 + $0x1820] sm:$0xff]
    %v811 = vld [vmem:[%s2 + $0x1828] sm:$0xff]
    %v812 = vld [vmem:[%s2 + $0x1830] sm:$0xff]
    %v813 = vld [vmem:[%s2 + $0x1838] sm:$0xff]
    %v814 = vld [vmem:[%s2 + $0x1840] sm:$0xff]
    %v815 = vld [vmem:[%s2 + $0x1848] sm:$0xff]
    %v816 = vld [vmem:[%s2 + $0x1850] sm:$0xff]
    %v817 = vld [vmem:[%s2 + $0x1858] sm:$0xff]
    %v818 = vld [vmem:[%s2 + $0x1860] sm:$0xff]
    %v819 = vld [vmem:[%s2 + $0x1868] sm:$0xff]
    %v820 = vld [vmem:[%s2 + $0x1870] sm:$0xff]
    %v821 = vld [vmem:[%s2 + $0x1878] sm:$0xff]
    %v822 = vld [vmem:[%s2 + $0x1880] sm:$0xff]
    %v823 = vld [vmem:[%s2 + $0x1888] sm:$0xff]
    %v824 = vld [vmem:[%s2 + $0x1890] sm:$0xff]
    %v825 = vld [vmem:[%s2 + $0x1898] sm:$0xff]
    %v826 = vld [vmem:[%s2 + $0x18a0] sm:$0xff]
    %v827 = vld [vmem:[%s2 + $0x18a8] sm:$0xff]
    %v828 = vld [vmem:[%s2 + $0x18b0] sm:$0xff]
    %v829 = vld [vmem:[%s2 + $0x18b8] sm:$0xff]
    %v830 = vld [vmem:[%s2 + $0x18c0] sm:$0xff]
    %v831 = vld [vmem:[%s2 + $0x18c8] sm:$0xff]
    %v832 = vld [vmem:[%s2 + $0x18d0] sm:$0xff]
    %v833 = vld [vmem:[%s2 + $0x18d8] sm:$0xff]
    %v834 = vld [vmem:[%s2 + $0x18e0] sm:$0xff]
    %v835 = vld [vmem:[%s2 + $0x18e8] sm:$0xff]
    %v836 = vld [vmem:[%s2 + $0x18f0] sm:$0xff]
    %v837 = vld [vmem:[%s2 + $0x18f8] sm:$0xff]
    %v838 = vld [vmem:[%s2 + $0x1900] sm:$0xff]
    %v839 = vld [vmem:[%s2 + $0x1908] sm:$0xff]
    %v840 = vld [vmem:[%s2 + $0x1910] sm:$0xff]
    %v841 = vld [vmem:[%s2 + $0x1918] sm:$0xff]
    %v842 = vld [vmem:[%s2 + $0x1920] sm:$0xff]
    %v843 = vld [vmem:[%s2 + $0x1928] sm:$0xff]
    %v844 = vld [vmem:[%s2 + $0x1930] sm:$0xff]
    %v845 = vld [vmem:[%s2 + $0x1938] sm:$0xff]
    %v846 = vld [vmem:[%s2 + $0x1940] sm:$0xff]
    %v847 = vld [vmem:[%s2 + $0x1948] sm:$0xff]
    %v848 = vld [vmem:[%s2 + $0x1950] sm:$0xff]
    %v849 = vld [vmem:[%s2 + $0x1958] sm:$0xff]
    %v850 = vld [vmem:[%s2 + $0x1960] sm:$0xff]
    %v851 = vld [vmem:[%s2 + $0x1968] sm:$0xff]
    %v852 = vld [vmem:[%s2 + $0x1970] sm:$0xff]
    %v853 = vld [vmem:[%s2 + $0x1978] sm:$0xff]
    %v854 = vld [vmem:[%s2 + $0x1980] sm:$0xff]
    %v855 = vld [vmem:[%s2 + $0x1988] sm:$0xff]
    %v856 = vld [vmem:[%s2 + $0x1990] sm:$0xff]
    %v857 = vld [vmem:[%s2 + $0x1998] sm:$0xff]
    %v858 = vld [vmem:[%s2 + $0x19a0] sm:$0xff]
    %v859 = vld [vmem:[%s2 + $0x19a8] sm:$0xff]
    %v860 = vld [vmem:[%s2 + $0x19b0] sm:$0xff]
    %v861 = vld [vmem:[%s2 + $0x19b8] sm:$0xff]
    %v862 = vld [vmem:[%s2 + $0x19c0] sm:$0xff]
    %v863 = vld [vmem:[%s2 + $0x19c8] sm:$0xff]
    %v864 = vld [vmem:[%s2 + $0x19d0] sm:$0xff]
    %v865 = vld [vmem:[%s2 + $0x19d8] sm:$0xff]
    %v866 = vld [vmem:[%s2 + $0x19e0] sm:$0xff]
    %v867 = vld [vmem:[%s2 + $0x19e8] sm:$0xff]
    %v868 = vld [vmem:[%s2 + $0x19f0] sm:$0xff]
    %v869 = vld [vmem:[%s2 + $0x19f8] sm:$0xff]
    %v870 = vld [vmem:[%s2 + $0x1a00] sm:$0xff]
    %v871 = vld [vmem:[%s2 + $0x1a08] sm:$0xff]
    %v872 = vld [vmem:[%s2 + $0x1a10] sm:$0xff]
    %v873 = vld [vmem:[%s2 + $0x1a18] sm:$0xff]
    %v874 = vld [vmem:[%s2 + $0x1a20] sm:$0xff]
    %v875 = vld [vmem:[%s2 + $0x1a28] sm:$0xff]
    %v876 = vld [vmem:[%s2 + $0x1a30] sm:$0xff]
    %v877 = vld [vmem:[%s2 + $0x1a38] sm:$0xff]
    %v878 = vld [vmem:[%s2 + $0x1a40] sm:$0xff]
    %v879 = vld [vmem:[%s2 + $0x1a48] sm:$0xff]
    %v880 = vld [vmem:[%s2 + $0x1a50] sm:$0xff]
    %v881 = vld [vmem:[%s2 + $0x1a58] sm:$0xff]
    %v882 = vld [vmem:[%s2 + $0x1a60] sm:$0xff]
    %v883 = vld [vmem:[%s2 + $0x1a68] sm:$0xff]
    %v884 = vld [vmem:[%s2 + $0x1a70] sm:$0xff]
    %v885 = vld [vmem:[%s2 + $0x1a78] sm:$0xff]
    %v886 = vld [vmem:[%s2 + $0x1a80] sm:$0xff]
    %v887 = vld [vmem:[%s2 + $0x1a88] sm:$0xff]
    %v888 = vld [vmem:[%s2 + $0x1a90] sm:$0xff]
    %v889 = vld [vmem:[%s2 + $0x1a98] sm:$0xff]
    %v890 = vld [vmem:[%s2 + $0x1aa0] sm:$0xff]
    %v891 = vld [vmem:[%s2 + $0x1aa8] sm:$0xff]
    %v892 = vld [vmem:[%s2 + $0x1ab0] sm:$0xff]
    %v893 = vld [vmem:[%s2 + $0x1ab8] sm:$0xff]
    %v894 = vld [vmem:[%s2 + $0x1ac0] sm:$0xff]
    %v895 = vld [vmem:[%s2 + $0x1ac8] sm:$0xff]
    %v896 = vld [vmem:[%s2 + $0x1ad0] sm:$0xff]
    %v897 = vld [vmem:[%s2 + $0x1ad8] sm:$0xff]
    %v898 = vld [vmem:[%s2 + $0x1ae0] sm:$0xff]
    %v899 = vld [vmem:[%s2 + $0x1ae8] sm:$0xff]
    %v900 = vld [vmem:[%s2 + $0x1af0] sm:$0xff]
    %v901 = vld [vmem:[%s2 + $0x1af8] sm:$0xff]
    %v902 = vld [vmem:[%s2 + $0x1b00] sm:$0xff]
    %v903 = vld [vmem:[%s2 + $0x1b08] sm:$0xff]
    %v904 = vld [vmem:[%s2 + $0x1b10] sm:$0xff]
    %v905 = vld [vmem:[%s2 + $0x1b18] sm:$0xff]
    %v906 = vld [vmem:[%s2 + $0x1b20] sm:$0xff]
    %v907 = vld [vmem:[%s2 + $0x1b28] sm:$0xff]
    %v908 = vld [vmem:[%s2 + $0x1b30] sm:$0xff]
    %v909 = vld [vmem:[%s2 + $0x1b38] sm:$0xff]
    %v910 = vld [vmem:[%s2 + $0x1b40] sm:$0xff]
    %v911 = vld [vmem:[%s2 + $0x1b48] sm:$0xff]
    %v912 = vld [vmem:[%s2 + $0x1b50] sm:$0xff]
    %v913 = vld [vmem:[%s2 + $0x1b58] sm:$0xff]
    %v914 = vld [vmem:[%s2 + $0x1b60] sm:$0xff]
    %v915 = vld [vmem:[%s2 + $0x1b68] sm:$0xff]
    %v916 = vld [vmem:[%s2 + $0x1b70] sm:$0xff]
    %v917 = vld [vmem:[%s2 + $0x1b78] sm:$0xff]
    %v918 = vld [vmem:[%s2 + $0x1b80] sm:$0xff]
    %v919 = vld [vmem:[%s2 + $0x1b88] sm:$0xff]
    %v920 = vld [vmem:[%s2 + $0x1b90] sm:$0xff]
    %v921 = vld [vmem:[%s2 + $0x1b98] sm:$0xff]
    %v922 = vld [vmem:[%s2 + $0x1ba0] sm:$0xff]
    %v923 = vld [vmem:[%s2 + $0x1ba8] sm:$0xff]
    %v924 = vld [vmem:[%s2 + $0x1bb0] sm:$0xff]
    %v925 = vld [vmem:[%s2 + $0x1bb8] sm:$0xff]
    %v926 = vld [vmem:[%s2 + $0x1bc0] sm:$0xff]
    %v927 = vld [vmem:[%s2 + $0x1bc8] sm:$0xff]
    %v928 = vld [vmem:[%s2 + $0x1bd0] sm:$0xff]
    %v929 = vld [vmem:[%s2 + $0x1bd8] sm:$0xff]
    %v930 = vld [vmem:[%s2 + $0x1be0] sm:$0xff]
    %v931 = vld [vmem:[%s2 + $0x1be8] sm:$0xff]
    %v932 = vld [vmem:[%s2 + $0x1bf0] sm:$0xff]
    %v933 = vld [vmem:[%s2 + $0x1bf8] sm:$0xff]
    %v934 = vld [vmem:[%s2 + $0x1c00] sm:$0xff]
    %v935 = vld [vmem:[%s2 + $0x1c08] sm:$0xff]
    %v936 = vld [vmem:[%s2 + $0x1c10] sm:$0xff]
    %v937 = vld [vmem:[%s2 + $0x1c18] sm:$0xff]
    %v938 = vld [vmem:[%s2 + $0x1c20] sm:$0xff]
    %v939 = vld [vmem:[%s2 + $0x1c28] sm:$0xff]
    %v940 = vld [vmem:[%s2 + $0x1c30] sm:$0xff]
    %v941 = vld [vmem:[%s2 + $0x1c38] sm:$0xff]
    %v942 = vld [vmem:[%s2 + $0x1c40] sm:$0xff]
    %v943 = vld [vmem:[%s2 + $0x1c48] sm:$0xff]
    %v944 = vld [vmem:[%s2 + $0x1c50] sm:$0xff]
    %v945 = vld [vmem:[%s2 + $0x1c58] sm:$0xff]
    %v946 = vld [vmem:[%s2 + $0x1c60] sm:$0xff]
    %v947 = vld [vmem:[%s2 + $0x1c68] sm:$0xff]
    %v948 = vld [vmem:[%s2 + $0x1c70] sm:$0xff]
    %v949 = vld [vmem:[%s2 + $0x1c78] sm:$0xff]
    %v950 = vld [vmem:[%s2 + $0x1c80] sm:$0xff]
    %v951 = vld [vmem:[%s2 + $0x1c88] sm:$0xff]
    %v952 = vld [vmem:[%s2 + $0x1c90] sm:$0xff]
    %v953 = vld [vmem:[%s2 + $0x1c98] sm:$0xff]
    %v954 = vld [vmem:[%s2 + $0x1ca0] sm:$0xff]
    %v955 = vld [vmem:[%s2 + $0x1ca8] sm:$0xff]
    %v956 = vld [vmem:[%s2 + $0x1cb0] sm:$0xff]
    %v957 = vld [vmem:[%s2 + $0x1cb8] sm:$0xff]
    %v958 = vld [vmem:[%s2 + $0x1cc0] sm:$0xff]
    %v959 = vld [vmem:[%s2 + $0x1cc8] sm:$0xff]
    %v960 = vld [vmem:[%s2 + $0x1cd0] sm:$0xff]
    %v961 = vld [vmem:[%s2 + $0x1cd8] sm:$0xff]
    %v962 = vld [vmem:[%s2 + $0x1ce0] sm:$0xff]
    %v963 = vld [vmem:[%s2 + $0x1ce8] sm:$0xff]
    %v964 = vld [vmem:[%s2 + $0x1cf0] sm:$0xff]
    %v965 = vld [vmem:[%s2 + $0x1cf8] sm:$0xff]
    %v966 = vld [vmem:[%s2 + $0x1d00] sm:$0xff]
    %v967 = vld [vmem:[%s2 + $0x1d08] sm:$0xff]
    %v968 = vld [vmem:[%s2 + $0x1d10] sm:$0xff]
    %v969 = vld [vmem:[%s2 + $0x1d18] sm:$0xff]
    %v970 = vld [vmem:[%s2 + $0x1d20] sm:$0xff]
    %v971 = vld [vmem:[%s2 + $0x1d28] sm:$0xff]
    %v972 = vld [vmem:[%s2 + $0x1d30] sm:$0xff]
    %v973 = vld [vmem:[%s2 + $0x1d38] sm:$0xff]
    %v974 = vld [vmem:[%s2 + $0x1d40] sm:$0xff]
    %v975 = vld [vmem:[%s2 + $0x1d48] sm:$0xff]
    %v976 = vld [vmem:[%s2 + $0x1d50] sm:$0xff]
    %v977 = vld [vmem:[%s2 + $0x1d58] sm:$0xff]
    %v978 = vld [vmem:[%s2 + $0x1d60] sm:$0xff]
    %v979 = vld [vmem:[%s2 + $0x1d68] sm:$0xff]
    %v980 = vld [vmem:[%s2 + $0x1d70] sm:$0xff]
    %v981 = vld [vmem:[%s2 + $0x1d78] sm:$0xff]
    %v982 = vld [vmem:[%s2 + $0x1d80] sm:$0xff]
    %v983 = vld [vmem:[%s2 + $0x1d88] sm:$0xff]
    %v984 = vld [vmem:[%s2 + $0x1d90] sm:$0xff]
    %v985 = vld [vmem:[%s2 + $0x1d98] sm:$0xff]
    %v986 = vld [vmem:[%s2 + $0x1da0] sm:$0xff]
    %v987 = vld [vmem:[%s2 + $0x1da8] sm:$0xff]
    %v988 = vld [vmem:[%s2 + $0x1db0] sm:$0xff]
    %v989 = vld [vmem:[%s2 + $0x1db8] sm:$0xff]
    %v990 = vld [vmem:[%s2 + $0x1dc0] sm:$0xff]
    %v991 = vld [vmem:[%s2 + $0x1dc8] sm:$0xff]
    %v992 = vld [vmem:[%s2 + $0x1dd0] sm:$0xff]
    %v993 = vld [vmem:[%s2 + $0x1dd8] sm:$0xff]
    %v994 = vld [vmem:[%s2 + $0x1de0] sm:$0xff]
    %v995 = vld [vmem:[%s2 + $0x1de8] sm:$0xff]
    %v996 = vld [vmem:[%s2 + $0x1df0] sm:$0xff]
    %v997 = vld [vmem:[%s2 + $0x1df8] sm:$0xff]
    %v998 = vld [vmem:[%s2 + $0x1e00] sm:$0xff]
    %v999 = vld [vmem:[%s2 + $0x1e08] sm:$0xff]
    %v1000 = vld [vmem:[%s2 + $0x1e10] sm:$0xff]
    %v1001 = vld [vmem:[%s2 + $0x1e18] sm:$0xff]
    %v1002 = vld [vmem:[%s2 + $0x1e20] sm:$0xff]
    %v1003 = vld [vmem:[%s2 + $0x1e28] sm:$0xff]
    %v1004 = vld [vmem:[%s2 + $0x1e30] sm:$0xff]
    %v1005 = vld [vmem:[%s2 + $0x1e38] sm:$0xff]
    %v1006 = vld [vmem:[%s2 + $0x1e40] sm:$0xff]
    %v1007 = vld [vmem:[%s2 + $0x1e48] sm:$0xff]
    %v1008 = vld [vmem:[%s2 + $0x1e50] sm:$0xff]
    %v1009 = vld [vmem:[%s2 + $0x1e58] sm:$0xff]
    %v1010 = vld [vmem:[%s2 + $0x1e60] sm:$0xff]
    %v1011 = vld [vmem:[%s2 + $0x1e68] sm:$0xff]
    %v1012 = vld [vmem:[%s2 + $0x1e70] sm:$0xff]
    %v1013 = vld [vmem:[%s2 + $0x1e78] sm:$0xff]
    %v1014 = vld [vmem:[%s2 + $0x1e80] sm:$0xff]
    %v1015 = vld [vmem:[%s2 + $0x1e88] sm:$0xff]
    %v1016 = vld [vmem:[%s2 + $0x1e90] sm:$0xff]
    %v1017 = vld [vmem:[%s2 + $0x1e98] sm:$0xff]
    %v1018 = vld [vmem:[%s2 + $0x1ea0] sm:$0xff]
    %v1019 = vld [vmem:[%s2 + $0x1ea8] sm:$0xff]
    %v1020 = vld [vmem:[%s2 + $0x1eb0] sm:$0xff]
    %v1021 = vld [vmem:[%s2 + $0x1eb8] sm:$0xff]
    %v1022 = vld [vmem:[%s2 + $0x1ec0] sm:$0xff]
    %v1023 = vld [vmem:[%s2 + $0x1ec8] sm:$0xff]
    %v1024 = vld [vmem:[%s2 + $0x1ed0] sm:$0xff]
    %v1025 = vld [vmem:[%s2 + $0x1ed8] sm:$0xff]
    %v1026 = vld [vmem:[%s2 + $0x1ee0] sm:$0xff]
    %v1027 = vld [vmem:[%s2 + $0x1ee8] sm:$0xff]
    %v1028 = vld [vmem:[%s2 + $0x1ef0] sm:$0xff]
    %v1029 = vld [vmem:[%s2 + $0x1ef8] sm:$0xff]
    %v1030 = vld [vmem:[%s2 + $0x1f00] sm:$0xff]
    %v1031 = vld [vmem:[%s2 + $0x1f08] sm:$0xff]
    %v1032 = vld [vmem:[%s2 + $0x1f10] sm:$0xff]
    %v1033 = vld [vmem:[%s2 + $0x1f18] sm:$0xff]
    %v1034 = vld [vmem:[%s2 + $0x1f20] sm:$0xff]
    %v1035 = vld [vmem:[%s2 + $0x1f28] sm:$0xff]
    %v1036 = vld [vmem:[%s2 + $0x1f30] sm:$0xff]
    %v1037 = vld [vmem:[%s2 + $0x1f38] sm:$0xff]
    %v1038 = vld [vmem:[%s2 + $0x1f40] sm:$0xff]
    %v1039 = vld [vmem:[%s2 + $0x1f48] sm:$0xff]
    %v1040 = vld [vmem:[%s2 + $0x1f50] sm:$0xff]
    %v1041 = vld [vmem:[%s2 + $0x1f58] sm:$0xff]
    %v1042 = vld [vmem:[%s2 + $0x1f60] sm:$0xff]
    %v1043 = vld [vmem:[%s2 + $0x1f68] sm:$0xff]
    %v1044 = vld [vmem:[%s2 + $0x1f70] sm:$0xff]
    %v1045 = vld [vmem:[%s2 + $0x1f78] sm:$0xff]
    %v1046 = vld [vmem:[%s2 + $0x1f80] sm:$0xff]
    %v1047 = vld [vmem:[%s2 + $0x1f88] sm:$0xff]
    %v1048 = vld [vmem:[%s2 + $0x1f90] sm:$0xff]
    %v1049 = vld [vmem:[%s2 + $0x1f98] sm:$0xff]
    %v1050 = vld [vmem:[%s2 + $0x1fa0] sm:$0xff]
    %v1051 = vld [vmem:[%s2 + $0x1fa8] sm:$0xff]
    %v1052 = vld [vmem:[%s2 + $0x1fb0] sm:$0xff]
    %v1053 = vld [vmem:[%s2 + $0x1fb8] sm:$0xff]
    %v1054 = vld [vmem:[%s2 + $0x1fc0] sm:$0xff]
    %v1055 = vld [vmem:[%s2 + $0x1fc8] sm:$0xff]
    %v1056 = vld [vmem:[%s2 + $0x1fd0] sm:$0xff]
    %v1057 = vld [vmem:[%s2 + $0x1fd8] sm:$0xff]
    %v1058 = vld [vmem:[%s2 + $0x1fe0] sm:$0xff]
    %v1059 = vld [vmem:[%s2 + $0x1fe8] sm:$0xff]
    %v1060 = vld [vmem:[%s2 + $0x1ff0] sm:$0xff]
    %v1061 = vld [vmem:[%s2 + $0x1ff8] sm:$0xff]
    %v1062 = vld [vmem:[%s3] sm:$0xff]
    %v1064 = vperm.slane %v1062, 0
    %v1065 = vperm.slane %v1062, 1
    %v1066 = vperm.slane %v1062, 2
    %v1067 = vperm.slane %v1062, 3
    %v1068 = vperm.slane %v1062, 4
    %v1069 = vperm.slane %v1062, 5
    %v1070 = vperm.slane %v1062, 6
    %v1071 = vperm.slane %v1062, 7
    %v1088 = vunpack.c.l.b16 %v30
    %v1089 = vunpack.c.h.b16 %v30
    %v1090 = vunpack.c.l.b16 %v31
    %v1091 = vunpack.c.h.b16 %v31
    %v1092 = vunpack.c.l.b16 %v32
    %v1093 = vunpack.c.h.b16 %v32
    %v1094 = vunpack.c.l.b16 %v33
    %v1095 = vunpack.c.h.b16 %v33
    %v1096 = vunpack.c.l.b16 %v34
    %v1097 = vunpack.c.h.b16 %v34
    %v1098 = vunpack.c.l.b16 %v35
    %v1099 = vunpack.c.h.b16 %v35
    %v1100 = vunpack.c.l.b16 %v36
    %v1101 = vunpack.c.h.b16 %v36
    %v1102 = vunpack.c.l.b16 %v37
    %v1103 = vunpack.c.h.b16 %v37
    %v1104 = vpack.c.b16 %v1088, %v1088
    %v1105 = vpack.c.b16 %v1089, %v1089
    %v1106 = vpack.c.b16 %v1090, %v1090
    %v1107 = vpack.c.b16 %v1091, %v1091
    %v1108 = vpack.c.b16 %v1092, %v1092
    %v1109 = vpack.c.b16 %v1093, %v1093
    %v1110 = vpack.c.b16 %v1094, %v1094
    %v1111 = vpack.c.b16 %v1095, %v1095
    %v1112 = vpack.c.b16 %v1096, %v1096
    %v1113 = vpack.c.b16 %v1097, %v1097
    %v1114 = vpack.c.b16 %v1098, %v1098
    %v1115 = vpack.c.b16 %v1099, %v1099
    %v1116 = vpack.c.b16 %v1100, %v1100
    %v1117 = vpack.c.b16 %v1101, %v1101
    %v1118 = vpack.c.b16 %v1102, %v1102
    %v1119 = vpack.c.b16 %v1103, %v1103
    %v2160 = vunpack.c.l.b16 %v38
    %v2161 = vunpack.c.h.b16 %v38
    %v2162 = vunpack.c.l.b16 %v39
    %v2163 = vunpack.c.h.b16 %v39
    %v2164 = vunpack.c.l.b16 %v40
    %v2165 = vunpack.c.h.b16 %v40
    %v2166 = vunpack.c.l.b16 %v41
    %v2167 = vunpack.c.h.b16 %v41
    %v2168 = vunpack.c.l.b16 %v42
    %v2169 = vunpack.c.h.b16 %v42
    %v2170 = vunpack.c.l.b16 %v43
    %v2171 = vunpack.c.h.b16 %v43
    %v2172 = vunpack.c.l.b16 %v44
    %v2173 = vunpack.c.h.b16 %v44
    %v2174 = vunpack.c.l.b16 %v45
    %v2175 = vunpack.c.h.b16 %v45
    %v2176 = vunpack.c.l.b16 %v46
    %v2177 = vunpack.c.h.b16 %v46
    %v2178 = vunpack.c.l.b16 %v47
    %v2179 = vunpack.c.h.b16 %v47
    %v2180 = vunpack.c.l.b16 %v48
    %v2181 = vunpack.c.h.b16 %v48
    %v2182 = vunpack.c.l.b16 %v49
    %v2183 = vunpack.c.h.b16 %v49
    %v2184 = vunpack.c.l.b16 %v50
    %v2185 = vunpack.c.h.b16 %v50
    %v2186 = vunpack.c.l.b16 %v51
    %v2187 = vunpack.c.h.b16 %v51
    %v2188 = vunpack.c.l.b16 %v52
    %v2189 = vunpack.c.h.b16 %v52
    %v2190 = vunpack.c.l.b16 %v53
    %v2191 = vunpack.c.h.b16 %v53
    %v2192 = vunpack.c.l.b16 %v54
    %v2193 = vunpack.c.h.b16 %v54
    %v2194 = vunpack.c.l.b16 %v55
    %v2195 = vunpack.c.h.b16 %v55
    %v2196 = vunpack.c.l.b16 %v56
    %v2197 = vunpack.c.h.b16 %v56
    %v2198 = vunpack.c.l.b16 %v57
    %v2199 = vunpack.c.h.b16 %v57
    %v2200 = vunpack.c.l.b16 %v58
    %v2201 = vunpack.c.h.b16 %v58
    %v2202 = vunpack.c.l.b16 %v59
    %v2203 = vunpack.c.h.b16 %v59
    %v2204 = vunpack.c.l.b16 %v60
    %v2205 = vunpack.c.h.b16 %v60
    %v2206 = vunpack.c.l.b16 %v61
    %v2207 = vunpack.c.h.b16 %v61
    %v2208 = vunpack.c.l.b16 %v62
    %v2209 = vunpack.c.h.b16 %v62
    %v2210 = vunpack.c.l.b16 %v63
    %v2211 = vunpack.c.h.b16 %v63
    %v2212 = vunpack.c.l.b16 %v64
    %v2213 = vunpack.c.h.b16 %v64
    %v2214 = vunpack.c.l.b16 %v65
    %v2215 = vunpack.c.h.b16 %v65
    %v2216 = vunpack.c.l.b16 %v66
    %v2217 = vunpack.c.h.b16 %v66
    %v2218 = vunpack.c.l.b16 %v67
    %v2219 = vunpack.c.h.b16 %v67
    %v2220 = vunpack.c.l.b16 %v68
    %v2221 = vunpack.c.h.b16 %v68
    %v2222 = vunpack.c.l.b16 %v69
    %v2223 = vunpack.c.h.b16 %v69
    %v2224 = vunpack.c.l.b16 %v70
    %v2225 = vunpack.c.h.b16 %v70
    %v2226 = vunpack.c.l.b16 %v71
    %v2227 = vunpack.c.h.b16 %v71
    %v2228 = vunpack.c.l.b16 %v72
    %v2229 = vunpack.c.h.b16 %v72
    %v2230 = vunpack.c.l.b16 %v73
    %v2231 = vunpack.c.h.b16 %v73
    %v2232 = vunpack.c.l.b16 %v74
    %v2233 = vunpack.c.h.b16 %v74
    %v2234 = vunpack.c.l.b16 %v75
    %v2235 = vunpack.c.h.b16 %v75
    %v2236 = vunpack.c.l.b16 %v76
    %v2237 = vunpack.c.h.b16 %v76
    %v2238 = vunpack.c.l.b16 %v77
    %v2239 = vunpack.c.h.b16 %v77
    %v2240 = vunpack.c.l.b16 %v78
    %v2241 = vunpack.c.h.b16 %v78
    %v2242 = vunpack.c.l.b16 %v79
    %v2243 = vunpack.c.h.b16 %v79
    %v2244 = vunpack.c.l.b16 %v80
    %v2245 = vunpack.c.h.b16 %v80
    %v2246 = vunpack.c.l.b16 %v81
    %v2247 = vunpack.c.h.b16 %v81
    %v2248 = vunpack.c.l.b16 %v82
    %v2249 = vunpack.c.h.b16 %v82
    %v2250 = vunpack.c.l.b16 %v83
    %v2251 = vunpack.c.h.b16 %v83
    %v2252 = vunpack.c.l.b16 %v84
    %v2253 = vunpack.c.h.b16 %v84
    %v2254 = vunpack.c.l.b16 %v85
    %v2255 = vunpack.c.h.b16 %v85
    %v2256 = vunpack.c.l.b16 %v86
    %v2257 = vunpack.c.h.b16 %v86
    %v2258 = vunpack.c.l.b16 %v87
    %v2259 = vunpack.c.h.b16 %v87
    %v2260 = vunpack.c.l.b16 %v88
    %v2261 = vunpack.c.h.b16 %v88
    %v2262 = vunpack.c.l.b16 %v89
    %v2263 = vunpack.c.h.b16 %v89
    %v2264 = vunpack.c.l.b16 %v90
    %v2265 = vunpack.c.h.b16 %v90
    %v2266 = vunpack.c.l.b16 %v91
    %v2267 = vunpack.c.h.b16 %v91
    %v2268 = vunpack.c.l.b16 %v92
    %v2269 = vunpack.c.h.b16 %v92
    %v2270 = vunpack.c.l.b16 %v93
    %v2271 = vunpack.c.h.b16 %v93
    %v2272 = vunpack.c.l.b16 %v94
    %v2273 = vunpack.c.h.b16 %v94
    %v2274 = vunpack.c.l.b16 %v95
    %v2275 = vunpack.c.h.b16 %v95
    %v2276 = vunpack.c.l.b16 %v96
    %v2277 = vunpack.c.h.b16 %v96
    %v2278 = vunpack.c.l.b16 %v97
    %v2279 = vunpack.c.h.b16 %v97
    %v2280 = vunpack.c.l.b16 %v98
    %v2281 = vunpack.c.h.b16 %v98
    %v2282 = vunpack.c.l.b16 %v99
    %v2283 = vunpack.c.h.b16 %v99
    %v2284 = vunpack.c.l.b16 %v100
    %v2285 = vunpack.c.h.b16 %v100
    %v2286 = vunpack.c.l.b16 %v101
    %v2287 = vunpack.c.h.b16 %v101
    %v2288 = vunpack.c.l.b16 %v102
    %v2289 = vunpack.c.h.b16 %v102
    %v2290 = vunpack.c.l.b16 %v103
    %v2291 = vunpack.c.h.b16 %v103
    %v2292 = vunpack.c.l.b16 %v104
    %v2293 = vunpack.c.h.b16 %v104
    %v2294 = vunpack.c.l.b16 %v105
    %v2295 = vunpack.c.h.b16 %v105
    %v2296 = vunpack.c.l.b16 %v106
    %v2297 = vunpack.c.h.b16 %v106
    %v2298 = vunpack.c.l.b16 %v107
    %v2299 = vunpack.c.h.b16 %v107
    %v2300 = vunpack.c.l.b16 %v108
    %v2301 = vunpack.c.h.b16 %v108
    %v2302 = vunpack.c.l.b16 %v109
    %v2303 = vunpack.c.h.b16 %v109
    %v2304 = vunpack.c.l.b16 %v110
    %v2305 = vunpack.c.h.b16 %v110
    %v2306 = vunpack.c.l.b16 %v111
    %v2307 = vunpack.c.h.b16 %v111
    %v2308 = vunpack.c.l.b16 %v112
    %v2309 = vunpack.c.h.b16 %v112
    %v2310 = vunpack.c.l.b16 %v113
    %v2311 = vunpack.c.h.b16 %v113
    %v2312 = vunpack.c.l.b16 %v114
    %v2313 = vunpack.c.h.b16 %v114
    %v2314 = vunpack.c.l.b16 %v115
    %v2315 = vunpack.c.h.b16 %v115
    %v2316 = vunpack.c.l.b16 %v116
    %v2317 = vunpack.c.h.b16 %v116
    %v2318 = vunpack.c.l.b16 %v117
    %v2319 = vunpack.c.h.b16 %v117
    %v2320 = vunpack.c.l.b16 %v118
    %v2321 = vunpack.c.h.b16 %v118
    %v2322 = vunpack.c.l.b16 %v119
    %v2323 = vunpack.c.h.b16 %v119
    %v2324 = vunpack.c.l.b16 %v120
    %v2325 = vunpack.c.h.b16 %v120
    %v2326 = vunpack.c.l.b16 %v121
    %v2327 = vunpack.c.h.b16 %v121
    %v2328 = vunpack.c.l.b16 %v122
    %v2329 = vunpack.c.h.b16 %v122
    %v2330 = vunpack.c.l.b16 %v123
    %v2331 = vunpack.c.h.b16 %v123
    %v2332 = vunpack.c.l.b16 %v124
    %v2333 = vunpack.c.h.b16 %v124
    %v2334 = vunpack.c.l.b16 %v125
    %v2335 = vunpack.c.h.b16 %v125
    %v2336 = vunpack.c.l.b16 %v126
    %v2337 = vunpack.c.h.b16 %v126
    %v2338 = vunpack.c.l.b16 %v127
    %v2339 = vunpack.c.h.b16 %v127
    %v2340 = vunpack.c.l.b16 %v128
    %v2341 = vunpack.c.h.b16 %v128
    %v2342 = vunpack.c.l.b16 %v129
    %v2343 = vunpack.c.h.b16 %v129
    %v2344 = vunpack.c.l.b16 %v130
    %v2345 = vunpack.c.h.b16 %v130
    %v2346 = vunpack.c.l.b16 %v131
    %v2347 = vunpack.c.h.b16 %v131
    %v2348 = vunpack.c.l.b16 %v132
    %v2349 = vunpack.c.h.b16 %v132
    %v2350 = vunpack.c.l.b16 %v133
    %v2351 = vunpack.c.h.b16 %v133
    %v2352 = vunpack.c.l.b16 %v134
    %v2353 = vunpack.c.h.b16 %v134
    %v2354 = vunpack.c.l.b16 %v135
    %v2355 = vunpack.c.h.b16 %v135
    %v2356 = vunpack.c.l.b16 %v136
    %v2357 = vunpack.c.h.b16 %v136
    %v2358 = vunpack.c.l.b16 %v137
    %v2359 = vunpack.c.h.b16 %v137
    %v2360 = vunpack.c.l.b16 %v138
    %v2361 = vunpack.c.h.b16 %v138
    %v2362 = vunpack.c.l.b16 %v139
    %v2363 = vunpack.c.h.b16 %v139
    %v2364 = vunpack.c.l.b16 %v140
    %v2365 = vunpack.c.h.b16 %v140
    %v2366 = vunpack.c.l.b16 %v141
    %v2367 = vunpack.c.h.b16 %v141
    %v2368 = vunpack.c.l.b16 %v142
    %v2369 = vunpack.c.h.b16 %v142
    %v2370 = vunpack.c.l.b16 %v143
    %v2371 = vunpack.c.h.b16 %v143
    %v2372 = vunpack.c.l.b16 %v144
    %v2373 = vunpack.c.h.b16 %v144
    %v2374 = vunpack.c.l.b16 %v145
    %v2375 = vunpack.c.h.b16 %v145
    %v2376 = vunpack.c.l.b16 %v146
    %v2377 = vunpack.c.h.b16 %v146
    %v2378 = vunpack.c.l.b16 %v147
    %v2379 = vunpack.c.h.b16 %v147
    %v2380 = vunpack.c.l.b16 %v148
    %v2381 = vunpack.c.h.b16 %v148
    %v2382 = vunpack.c.l.b16 %v149
    %v2383 = vunpack.c.h.b16 %v149
    %v2384 = vunpack.c.l.b16 %v150
    %v2385 = vunpack.c.h.b16 %v150
    %v2386 = vunpack.c.l.b16 %v151
    %v2387 = vunpack.c.h.b16 %v151
    %v2388 = vunpack.c.l.b16 %v152
    %v2389 = vunpack.c.h.b16 %v152
    %v2390 = vunpack.c.l.b16 %v153
    %v2391 = vunpack.c.h.b16 %v153
    %v2392 = vunpack.c.l.b16 %v154
    %v2393 = vunpack.c.h.b16 %v154
    %v2394 = vunpack.c.l.b16 %v155
    %v2395 = vunpack.c.h.b16 %v155
    %v2396 = vunpack.c.l.b16 %v156
    %v2397 = vunpack.c.h.b16 %v156
    %v2398 = vunpack.c.l.b16 %v157
    %v2399 = vunpack.c.h.b16 %v157
    %v2400 = vunpack.c.l.b16 %v158
    %v2401 = vunpack.c.h.b16 %v158
    %v2402 = vunpack.c.l.b16 %v159
    %v2403 = vunpack.c.h.b16 %v159
    %v2404 = vunpack.c.l.b16 %v160
    %v2405 = vunpack.c.h.b16 %v160
    %v2406 = vunpack.c.l.b16 %v161
    %v2407 = vunpack.c.h.b16 %v161
    %v2408 = vunpack.c.l.b16 %v162
    %v2409 = vunpack.c.h.b16 %v162
    %v2410 = vunpack.c.l.b16 %v163
    %v2411 = vunpack.c.h.b16 %v163
    %v2412 = vunpack.c.l.b16 %v164
    %v2413 = vunpack.c.h.b16 %v164
    %v2414 = vunpack.c.l.b16 %v165
    %v2415 = vunpack.c.h.b16 %v165
    %v2416 = vunpack.c.l.b16 %v166
    %v2417 = vunpack.c.h.b16 %v166
    %v2418 = vunpack.c.l.b16 %v167
    %v2419 = vunpack.c.h.b16 %v167
    %v2420 = vunpack.c.l.b16 %v168
    %v2421 = vunpack.c.h.b16 %v168
    %v2422 = vunpack.c.l.b16 %v169
    %v2423 = vunpack.c.h.b16 %v169
    %v2424 = vunpack.c.l.b16 %v170
    %v2425 = vunpack.c.h.b16 %v170
    %v2426 = vunpack.c.l.b16 %v171
    %v2427 = vunpack.c.h.b16 %v171
    %v2428 = vunpack.c.l.b16 %v172
    %v2429 = vunpack.c.h.b16 %v172
    %v2430 = vunpack.c.l.b16 %v173
    %v2431 = vunpack.c.h.b16 %v173
    %v2432 = vunpack.c.l.b16 %v174
    %v2433 = vunpack.c.h.b16 %v174
    %v2434 = vunpack.c.l.b16 %v175
    %v2435 = vunpack.c.h.b16 %v175
    %v2436 = vunpack.c.l.b16 %v176
    %v2437 = vunpack.c.h.b16 %v176
    %v2438 = vunpack.c.l.b16 %v177
    %v2439 = vunpack.c.h.b16 %v177
    %v2440 = vunpack.c.l.b16 %v178
    %v2441 = vunpack.c.h.b16 %v178
    %v2442 = vunpack.c.l.b16 %v179
    %v2443 = vunpack.c.h.b16 %v179
    %v2444 = vunpack.c.l.b16 %v180
    %v2445 = vunpack.c.h.b16 %v180
    %v2446 = vunpack.c.l.b16 %v181
    %v2447 = vunpack.c.h.b16 %v181
    %v2448 = vunpack.c.l.b16 %v182
    %v2449 = vunpack.c.h.b16 %v182
    %v2450 = vunpack.c.l.b16 %v183
    %v2451 = vunpack.c.h.b16 %v183
    %v2452 = vunpack.c.l.b16 %v184
    %v2453 = vunpack.c.h.b16 %v184
    %v2454 = vunpack.c.l.b16 %v185
    %v2455 = vunpack.c.h.b16 %v185
    %v2456 = vunpack.c.l.b16 %v186
    %v2457 = vunpack.c.h.b16 %v186
    %v2458 = vunpack.c.l.b16 %v187
    %v2459 = vunpack.c.h.b16 %v187
    %v2460 = vunpack.c.l.b16 %v188
    %v2461 = vunpack.c.h.b16 %v188
    %v2462 = vunpack.c.l.b16 %v189
    %v2463 = vunpack.c.h.b16 %v189
    %v2464 = vunpack.c.l.b16 %v190
    %v2465 = vunpack.c.h.b16 %v190
    %v2466 = vunpack.c.l.b16 %v191
    %v2467 = vunpack.c.h.b16 %v191
    %v2468 = vunpack.c.l.b16 %v192
    %v2469 = vunpack.c.h.b16 %v192
    %v2470 = vunpack.c.l.b16 %v193
    %v2471 = vunpack.c.h.b16 %v193
    %v2472 = vunpack.c.l.b16 %v194
    %v2473 = vunpack.c.h.b16 %v194
    %v2474 = vunpack.c.l.b16 %v195
    %v2475 = vunpack.c.h.b16 %v195
    %v2476 = vunpack.c.l.b16 %v196
    %v2477 = vunpack.c.h.b16 %v196
    %v2478 = vunpack.c.l.b16 %v197
    %v2479 = vunpack.c.h.b16 %v197
    %v2480 = vunpack.c.l.b16 %v198
    %v2481 = vunpack.c.h.b16 %v198
    %v2482 = vunpack.c.l.b16 %v199
    %v2483 = vunpack.c.h.b16 %v199
    %v2484 = vunpack.c.l.b16 %v200
    %v2485 = vunpack.c.h.b16 %v200
    %v2486 = vunpack.c.l.b16 %v201
    %v2487 = vunpack.c.h.b16 %v201
    %v2488 = vunpack.c.l.b16 %v202
    %v2489 = vunpack.c.h.b16 %v202
    %v2490 = vunpack.c.l.b16 %v203
    %v2491 = vunpack.c.h.b16 %v203
    %v2492 = vunpack.c.l.b16 %v204
    %v2493 = vunpack.c.h.b16 %v204
    %v2494 = vunpack.c.l.b16 %v205
    %v2495 = vunpack.c.h.b16 %v205
    %v2496 = vunpack.c.l.b16 %v206
    %v2497 = vunpack.c.h.b16 %v206
    %v2498 = vunpack.c.l.b16 %v207
    %v2499 = vunpack.c.h.b16 %v207
    %v2500 = vunpack.c.l.b16 %v208
    %v2501 = vunpack.c.h.b16 %v208
    %v2502 = vunpack.c.l.b16 %v209
    %v2503 = vunpack.c.h.b16 %v209
    %v2504 = vunpack.c.l.b16 %v210
    %v2505 = vunpack.c.h.b16 %v210
    %v2506 = vunpack.c.l.b16 %v211
    %v2507 = vunpack.c.h.b16 %v211
    %v2508 = vunpack.c.l.b16 %v212
    %v2509 = vunpack.c.h.b16 %v212
    %v2510 = vunpack.c.l.b16 %v213
    %v2511 = vunpack.c.h.b16 %v213
    %v2512 = vunpack.c.l.b16 %v214
    %v2513 = vunpack.c.h.b16 %v214
    %v2514 = vunpack.c.l.b16 %v215
    %v2515 = vunpack.c.h.b16 %v215
    %v2516 = vunpack.c.l.b16 %v216
    %v2517 = vunpack.c.h.b16 %v216
    %v2518 = vunpack.c.l.b16 %v217
    %v2519 = vunpack.c.h.b16 %v217
    %v2520 = vunpack.c.l.b16 %v218
    %v2521 = vunpack.c.h.b16 %v218
    %v2522 = vunpack.c.l.b16 %v219
    %v2523 = vunpack.c.h.b16 %v219
    %v2524 = vunpack.c.l.b16 %v220
    %v2525 = vunpack.c.h.b16 %v220
    %v2526 = vunpack.c.l.b16 %v221
    %v2527 = vunpack.c.h.b16 %v221
    %v2528 = vunpack.c.l.b16 %v222
    %v2529 = vunpack.c.h.b16 %v222
    %v2530 = vunpack.c.l.b16 %v223
    %v2531 = vunpack.c.h.b16 %v223
    %v2532 = vunpack.c.l.b16 %v224
    %v2533 = vunpack.c.h.b16 %v224
    %v2534 = vunpack.c.l.b16 %v225
    %v2535 = vunpack.c.h.b16 %v225
    %v2536 = vunpack.c.l.b16 %v226
    %v2537 = vunpack.c.h.b16 %v226
    %v2538 = vunpack.c.l.b16 %v227
    %v2539 = vunpack.c.h.b16 %v227
    %v2540 = vunpack.c.l.b16 %v228
    %v2541 = vunpack.c.h.b16 %v228
    %v2542 = vunpack.c.l.b16 %v229
    %v2543 = vunpack.c.h.b16 %v229
    %v2544 = vunpack.c.l.b16 %v230
    %v2545 = vunpack.c.h.b16 %v230
    %v2546 = vunpack.c.l.b16 %v231
    %v2547 = vunpack.c.h.b16 %v231
    %v2548 = vunpack.c.l.b16 %v232
    %v2549 = vunpack.c.h.b16 %v232
    %v2550 = vunpack.c.l.b16 %v233
    %v2551 = vunpack.c.h.b16 %v233
    %v2552 = vunpack.c.l.b16 %v234
    %v2553 = vunpack.c.h.b16 %v234
    %v2554 = vunpack.c.l.b16 %v235
    %v2555 = vunpack.c.h.b16 %v235
    %v2556 = vunpack.c.l.b16 %v236
    %v2557 = vunpack.c.h.b16 %v236
    %v2558 = vunpack.c.l.b16 %v237
    %v2559 = vunpack.c.h.b16 %v237
    %v2560 = vunpack.c.l.b16 %v238
    %v2561 = vunpack.c.h.b16 %v238
    %v2562 = vunpack.c.l.b16 %v239
    %v2563 = vunpack.c.h.b16 %v239
    %v2564 = vunpack.c.l.b16 %v240
    %v2565 = vunpack.c.h.b16 %v240
    %v2566 = vunpack.c.l.b16 %v241
    %v2567 = vunpack.c.h.b16 %v241
    %v2568 = vunpack.c.l.b16 %v242
    %v2569 = vunpack.c.h.b16 %v242
    %v2570 = vunpack.c.l.b16 %v243
    %v2571 = vunpack.c.h.b16 %v243
    %v2572 = vunpack.c.l.b16 %v244
    %v2573 = vunpack.c.h.b16 %v244
    %v2574 = vunpack.c.l.b16 %v245
    %v2575 = vunpack.c.h.b16 %v245
    %v2576 = vunpack.c.l.b16 %v246
    %v2577 = vunpack.c.h.b16 %v246
    %v2578 = vunpack.c.l.b16 %v247
    %v2579 = vunpack.c.h.b16 %v247
    %v2580 = vunpack.c.l.b16 %v248
    %v2581 = vunpack.c.h.b16 %v248
    %v2582 = vunpack.c.l.b16 %v249
    %v2583 = vunpack.c.h.b16 %v249
    %v2584 = vunpack.c.l.b16 %v250
    %v2585 = vunpack.c.h.b16 %v250
    %v2586 = vunpack.c.l.b16 %v251
    %v2587 = vunpack.c.h.b16 %v251
    %v2588 = vunpack.c.l.b16 %v252
    %v2589 = vunpack.c.h.b16 %v252
    %v2590 = vunpack.c.l.b16 %v253
    %v2591 = vunpack.c.h.b16 %v253
    %v2592 = vunpack.c.l.b16 %v254
    %v2593 = vunpack.c.h.b16 %v254
    %v2594 = vunpack.c.l.b16 %v255
    %v2595 = vunpack.c.h.b16 %v255
    %v2596 = vunpack.c.l.b16 %v256
    %v2597 = vunpack.c.h.b16 %v256
    %v2598 = vunpack.c.l.b16 %v257
    %v2599 = vunpack.c.h.b16 %v257
    %v2600 = vunpack.c.l.b16 %v258
    %v2601 = vunpack.c.h.b16 %v258
    %v2602 = vunpack.c.l.b16 %v259
    %v2603 = vunpack.c.h.b16 %v259
    %v2604 = vunpack.c.l.b16 %v260
    %v2605 = vunpack.c.h.b16 %v260
    %v2606 = vunpack.c.l.b16 %v261
    %v2607 = vunpack.c.h.b16 %v261
    %v2608 = vunpack.c.l.b16 %v262
    %v2609 = vunpack.c.h.b16 %v262
    %v2610 = vunpack.c.l.b16 %v263
    %v2611 = vunpack.c.h.b16 %v263
    %v2612 = vunpack.c.l.b16 %v264
    %v2613 = vunpack.c.h.b16 %v264
    %v2614 = vunpack.c.l.b16 %v265
    %v2615 = vunpack.c.h.b16 %v265
    %v2616 = vunpack.c.l.b16 %v266
    %v2617 = vunpack.c.h.b16 %v266
    %v2618 = vunpack.c.l.b16 %v267
    %v2619 = vunpack.c.h.b16 %v267
    %v2620 = vunpack.c.l.b16 %v268
    %v2621 = vunpack.c.h.b16 %v268
    %v2622 = vunpack.c.l.b16 %v269
    %v2623 = vunpack.c.h.b16 %v269
    %v2624 = vunpack.c.l.b16 %v270
    %v2625 = vunpack.c.h.b16 %v270
    %v2626 = vunpack.c.l.b16 %v271
    %v2627 = vunpack.c.h.b16 %v271
    %v2628 = vunpack.c.l.b16 %v272
    %v2629 = vunpack.c.h.b16 %v272
    %v2630 = vunpack.c.l.b16 %v273
    %v2631 = vunpack.c.h.b16 %v273
    %v2632 = vunpack.c.l.b16 %v274
    %v2633 = vunpack.c.h.b16 %v274
    %v2634 = vunpack.c.l.b16 %v275
    %v2635 = vunpack.c.h.b16 %v275
    %v2636 = vunpack.c.l.b16 %v276
    %v2637 = vunpack.c.h.b16 %v276
    %v2638 = vunpack.c.l.b16 %v277
    %v2639 = vunpack.c.h.b16 %v277
    %v2640 = vunpack.c.l.b16 %v278
    %v2641 = vunpack.c.h.b16 %v278
    %v2642 = vunpack.c.l.b16 %v279
    %v2643 = vunpack.c.h.b16 %v279
    %v2644 = vunpack.c.l.b16 %v280
    %v2645 = vunpack.c.h.b16 %v280
    %v2646 = vunpack.c.l.b16 %v281
    %v2647 = vunpack.c.h.b16 %v281
    %v2648 = vunpack.c.l.b16 %v282
    %v2649 = vunpack.c.h.b16 %v282
    %v2650 = vunpack.c.l.b16 %v283
    %v2651 = vunpack.c.h.b16 %v283
    %v2652 = vunpack.c.l.b16 %v284
    %v2653 = vunpack.c.h.b16 %v284
    %v2654 = vunpack.c.l.b16 %v285
    %v2655 = vunpack.c.h.b16 %v285
    %v2656 = vunpack.c.l.b16 %v286
    %v2657 = vunpack.c.h.b16 %v286
    %v2658 = vunpack.c.l.b16 %v287
    %v2659 = vunpack.c.h.b16 %v287
    %v2660 = vunpack.c.l.b16 %v288
    %v2661 = vunpack.c.h.b16 %v288
    %v2662 = vunpack.c.l.b16 %v289
    %v2663 = vunpack.c.h.b16 %v289
    %v2664 = vunpack.c.l.b16 %v290
    %v2665 = vunpack.c.h.b16 %v290
    %v2666 = vunpack.c.l.b16 %v291
    %v2667 = vunpack.c.h.b16 %v291
    %v2668 = vunpack.c.l.b16 %v292
    %v2669 = vunpack.c.h.b16 %v292
    %v2670 = vunpack.c.l.b16 %v293
    %v2671 = vunpack.c.h.b16 %v293
    %v2672 = vunpack.c.l.b16 %v294
    %v2673 = vunpack.c.h.b16 %v294
    %v2674 = vunpack.c.l.b16 %v295
    %v2675 = vunpack.c.h.b16 %v295
    %v2676 = vunpack.c.l.b16 %v296
    %v2677 = vunpack.c.h.b16 %v296
    %v2678 = vunpack.c.l.b16 %v297
    %v2679 = vunpack.c.h.b16 %v297
    %v2680 = vunpack.c.l.b16 %v298
    %v2681 = vunpack.c.h.b16 %v298
    %v2682 = vunpack.c.l.b16 %v299
    %v2683 = vunpack.c.h.b16 %v299
    %v2684 = vunpack.c.l.b16 %v300
    %v2685 = vunpack.c.h.b16 %v300
    %v2686 = vunpack.c.l.b16 %v301
    %v2687 = vunpack.c.h.b16 %v301
    %v2688 = vunpack.c.l.b16 %v302
    %v2689 = vunpack.c.h.b16 %v302
    %v2690 = vunpack.c.l.b16 %v303
    %v2691 = vunpack.c.h.b16 %v303
    %v2692 = vunpack.c.l.b16 %v304
    %v2693 = vunpack.c.h.b16 %v304
    %v2694 = vunpack.c.l.b16 %v305
    %v2695 = vunpack.c.h.b16 %v305
    %v2696 = vunpack.c.l.b16 %v306
    %v2697 = vunpack.c.h.b16 %v306
    %v2698 = vunpack.c.l.b16 %v307
    %v2699 = vunpack.c.h.b16 %v307
    %v2700 = vunpack.c.l.b16 %v308
    %v2701 = vunpack.c.h.b16 %v308
    %v2702 = vunpack.c.l.b16 %v309
    %v2703 = vunpack.c.h.b16 %v309
    %v2704 = vunpack.c.l.b16 %v310
    %v2705 = vunpack.c.h.b16 %v310
    %v2706 = vunpack.c.l.b16 %v311
    %v2707 = vunpack.c.h.b16 %v311
    %v2708 = vunpack.c.l.b16 %v312
    %v2709 = vunpack.c.h.b16 %v312
    %v2710 = vunpack.c.l.b16 %v313
    %v2711 = vunpack.c.h.b16 %v313
    %v2712 = vunpack.c.l.b16 %v314
    %v2713 = vunpack.c.h.b16 %v314
    %v2714 = vunpack.c.l.b16 %v315
    %v2715 = vunpack.c.h.b16 %v315
    %v2716 = vunpack.c.l.b16 %v316
    %v2717 = vunpack.c.h.b16 %v316
    %v2718 = vunpack.c.l.b16 %v317
    %v2719 = vunpack.c.h.b16 %v317
    %v2720 = vunpack.c.l.b16 %v318
    %v2721 = vunpack.c.h.b16 %v318
    %v2722 = vunpack.c.l.b16 %v319
    %v2723 = vunpack.c.h.b16 %v319
    %v2724 = vunpack.c.l.b16 %v320
    %v2725 = vunpack.c.h.b16 %v320
    %v2726 = vunpack.c.l.b16 %v321
    %v2727 = vunpack.c.h.b16 %v321
    %v2728 = vunpack.c.l.b16 %v322
    %v2729 = vunpack.c.h.b16 %v322
    %v2730 = vunpack.c.l.b16 %v323
    %v2731 = vunpack.c.h.b16 %v323
    %v2732 = vunpack.c.l.b16 %v324
    %v2733 = vunpack.c.h.b16 %v324
    %v2734 = vunpack.c.l.b16 %v325
    %v2735 = vunpack.c.h.b16 %v325
    %v2736 = vunpack.c.l.b16 %v326
    %v2737 = vunpack.c.h.b16 %v326
    %v2738 = vunpack.c.l.b16 %v327
    %v2739 = vunpack.c.h.b16 %v327
    %v2740 = vunpack.c.l.b16 %v328
    %v2741 = vunpack.c.h.b16 %v328
    %v2742 = vunpack.c.l.b16 %v329
    %v2743 = vunpack.c.h.b16 %v329
    %v2744 = vunpack.c.l.b16 %v330
    %v2745 = vunpack.c.h.b16 %v330
    %v2746 = vunpack.c.l.b16 %v331
    %v2747 = vunpack.c.h.b16 %v331
    %v2748 = vunpack.c.l.b16 %v332
    %v2749 = vunpack.c.h.b16 %v332
    %v2750 = vunpack.c.l.b16 %v333
    %v2751 = vunpack.c.h.b16 %v333
    %v2752 = vunpack.c.l.b16 %v334
    %v2753 = vunpack.c.h.b16 %v334
    %v2754 = vunpack.c.l.b16 %v335
    %v2755 = vunpack.c.h.b16 %v335
    %v2756 = vunpack.c.l.b16 %v336
    %v2757 = vunpack.c.h.b16 %v336
    %v2758 = vunpack.c.l.b16 %v337
    %v2759 = vunpack.c.h.b16 %v337
    %v2760 = vunpack.c.l.b16 %v338
    %v2761 = vunpack.c.h.b16 %v338
    %v2762 = vunpack.c.l.b16 %v339
    %v2763 = vunpack.c.h.b16 %v339
    %v2764 = vunpack.c.l.b16 %v340
    %v2765 = vunpack.c.h.b16 %v340
    %v2766 = vunpack.c.l.b16 %v341
    %v2767 = vunpack.c.h.b16 %v341
    %v2768 = vunpack.c.l.b16 %v342
    %v2769 = vunpack.c.h.b16 %v342
    %v2770 = vunpack.c.l.b16 %v343
    %v2771 = vunpack.c.h.b16 %v343
    %v2772 = vunpack.c.l.b16 %v344
    %v2773 = vunpack.c.h.b16 %v344
    %v2774 = vunpack.c.l.b16 %v345
    %v2775 = vunpack.c.h.b16 %v345
    %v2776 = vunpack.c.l.b16 %v346
    %v2777 = vunpack.c.h.b16 %v346
    %v2778 = vunpack.c.l.b16 %v347
    %v2779 = vunpack.c.h.b16 %v347
    %v2780 = vunpack.c.l.b16 %v348
    %v2781 = vunpack.c.h.b16 %v348
    %v2782 = vunpack.c.l.b16 %v349
    %v2783 = vunpack.c.h.b16 %v349
    %v2784 = vunpack.c.l.b16 %v350
    %v2785 = vunpack.c.h.b16 %v350
    %v2786 = vunpack.c.l.b16 %v351
    %v2787 = vunpack.c.h.b16 %v351
    %v2788 = vunpack.c.l.b16 %v352
    %v2789 = vunpack.c.h.b16 %v352
    %v2790 = vunpack.c.l.b16 %v353
    %v2791 = vunpack.c.h.b16 %v353
    %v2792 = vunpack.c.l.b16 %v354
    %v2793 = vunpack.c.h.b16 %v354
    %v2794 = vunpack.c.l.b16 %v355
    %v2795 = vunpack.c.h.b16 %v355
    %v2796 = vunpack.c.l.b16 %v356
    %v2797 = vunpack.c.h.b16 %v356
    %v2798 = vunpack.c.l.b16 %v357
    %v2799 = vunpack.c.h.b16 %v357
    %v2800 = vunpack.c.l.b16 %v358
    %v2801 = vunpack.c.h.b16 %v358
    %v2802 = vunpack.c.l.b16 %v359
    %v2803 = vunpack.c.h.b16 %v359
    %v2804 = vunpack.c.l.b16 %v360
    %v2805 = vunpack.c.h.b16 %v360
    %v2806 = vunpack.c.l.b16 %v361
    %v2807 = vunpack.c.h.b16 %v361
    %v2808 = vunpack.c.l.b16 %v362
    %v2809 = vunpack.c.h.b16 %v362
    %v2810 = vunpack.c.l.b16 %v363
    %v2811 = vunpack.c.h.b16 %v363
    %v2812 = vunpack.c.l.b16 %v364
    %v2813 = vunpack.c.h.b16 %v364
    %v2814 = vunpack.c.l.b16 %v365
    %v2815 = vunpack.c.h.b16 %v365
    %v2816 = vunpack.c.l.b16 %v366
    %v2817 = vunpack.c.h.b16 %v366
    %v2818 = vunpack.c.l.b16 %v367
    %v2819 = vunpack.c.h.b16 %v367
    %v2820 = vunpack.c.l.b16 %v368
    %v2821 = vunpack.c.h.b16 %v368
    %v2822 = vunpack.c.l.b16 %v369
    %v2823 = vunpack.c.h.b16 %v369
    %v2824 = vunpack.c.l.b16 %v370
    %v2825 = vunpack.c.h.b16 %v370
    %v2826 = vunpack.c.l.b16 %v371
    %v2827 = vunpack.c.h.b16 %v371
    %v2828 = vunpack.c.l.b16 %v372
    %v2829 = vunpack.c.h.b16 %v372
    %v2830 = vunpack.c.l.b16 %v373
    %v2831 = vunpack.c.h.b16 %v373
    %v2832 = vunpack.c.l.b16 %v374
    %v2833 = vunpack.c.h.b16 %v374
    %v2834 = vunpack.c.l.b16 %v375
    %v2835 = vunpack.c.h.b16 %v375
    %v2836 = vunpack.c.l.b16 %v376
    %v2837 = vunpack.c.h.b16 %v376
    %v2838 = vunpack.c.l.b16 %v377
    %v2839 = vunpack.c.h.b16 %v377
    %v2840 = vunpack.c.l.b16 %v378
    %v2841 = vunpack.c.h.b16 %v378
    %v2842 = vunpack.c.l.b16 %v379
    %v2843 = vunpack.c.h.b16 %v379
    %v2844 = vunpack.c.l.b16 %v380
    %v2845 = vunpack.c.h.b16 %v380
    %v2846 = vunpack.c.l.b16 %v381
    %v2847 = vunpack.c.h.b16 %v381
    %v2848 = vunpack.c.l.b16 %v382
    %v2849 = vunpack.c.h.b16 %v382
    %v2850 = vunpack.c.l.b16 %v383
    %v2851 = vunpack.c.h.b16 %v383
    %v2852 = vunpack.c.l.b16 %v384
    %v2853 = vunpack.c.h.b16 %v384
    %v2854 = vunpack.c.l.b16 %v385
    %v2855 = vunpack.c.h.b16 %v385
    %v2856 = vunpack.c.l.b16 %v386
    %v2857 = vunpack.c.h.b16 %v386
    %v2858 = vunpack.c.l.b16 %v387
    %v2859 = vunpack.c.h.b16 %v387
    %v2860 = vunpack.c.l.b16 %v388
    %v2861 = vunpack.c.h.b16 %v388
    %v2862 = vunpack.c.l.b16 %v389
    %v2863 = vunpack.c.h.b16 %v389
    %v2864 = vunpack.c.l.b16 %v390
    %v2865 = vunpack.c.h.b16 %v390
    %v2866 = vunpack.c.l.b16 %v391
    %v2867 = vunpack.c.h.b16 %v391
    %v2868 = vunpack.c.l.b16 %v392
    %v2869 = vunpack.c.h.b16 %v392
    %v2870 = vunpack.c.l.b16 %v393
    %v2871 = vunpack.c.h.b16 %v393
    %v2872 = vunpack.c.l.b16 %v394
    %v2873 = vunpack.c.h.b16 %v394
    %v2874 = vunpack.c.l.b16 %v395
    %v2875 = vunpack.c.h.b16 %v395
    %v2876 = vunpack.c.l.b16 %v396
    %v2877 = vunpack.c.h.b16 %v396
    %v2878 = vunpack.c.l.b16 %v397
    %v2879 = vunpack.c.h.b16 %v397
    %v2880 = vunpack.c.l.b16 %v398
    %v2881 = vunpack.c.h.b16 %v398
    %v2882 = vunpack.c.l.b16 %v399
    %v2883 = vunpack.c.h.b16 %v399
    %v2884 = vunpack.c.l.b16 %v400
    %v2885 = vunpack.c.h.b16 %v400
    %v2886 = vunpack.c.l.b16 %v401
    %v2887 = vunpack.c.h.b16 %v401
    %v2888 = vunpack.c.l.b16 %v402
    %v2889 = vunpack.c.h.b16 %v402
    %v2890 = vunpack.c.l.b16 %v403
    %v2891 = vunpack.c.h.b16 %v403
    %v2892 = vunpack.c.l.b16 %v404
    %v2893 = vunpack.c.h.b16 %v404
    %v2894 = vunpack.c.l.b16 %v405
    %v2895 = vunpack.c.h.b16 %v405
    %v2896 = vunpack.c.l.b16 %v406
    %v2897 = vunpack.c.h.b16 %v406
    %v2898 = vunpack.c.l.b16 %v407
    %v2899 = vunpack.c.h.b16 %v407
    %v2900 = vunpack.c.l.b16 %v408
    %v2901 = vunpack.c.h.b16 %v408
    %v2902 = vunpack.c.l.b16 %v409
    %v2903 = vunpack.c.h.b16 %v409
    %v2904 = vunpack.c.l.b16 %v410
    %v2905 = vunpack.c.h.b16 %v410
    %v2906 = vunpack.c.l.b16 %v411
    %v2907 = vunpack.c.h.b16 %v411
    %v2908 = vunpack.c.l.b16 %v412
    %v2909 = vunpack.c.h.b16 %v412
    %v2910 = vunpack.c.l.b16 %v413
    %v2911 = vunpack.c.h.b16 %v413
    %v2912 = vunpack.c.l.b16 %v414
    %v2913 = vunpack.c.h.b16 %v414
    %v2914 = vunpack.c.l.b16 %v415
    %v2915 = vunpack.c.h.b16 %v415
    %v2916 = vunpack.c.l.b16 %v416
    %v2917 = vunpack.c.h.b16 %v416
    %v2918 = vunpack.c.l.b16 %v417
    %v2919 = vunpack.c.h.b16 %v417
    %v2920 = vunpack.c.l.b16 %v418
    %v2921 = vunpack.c.h.b16 %v418
    %v2922 = vunpack.c.l.b16 %v419
    %v2923 = vunpack.c.h.b16 %v419
    %v2924 = vunpack.c.l.b16 %v420
    %v2925 = vunpack.c.h.b16 %v420
    %v2926 = vunpack.c.l.b16 %v421
    %v2927 = vunpack.c.h.b16 %v421
    %v2928 = vunpack.c.l.b16 %v422
    %v2929 = vunpack.c.h.b16 %v422
    %v2930 = vunpack.c.l.b16 %v423
    %v2931 = vunpack.c.h.b16 %v423
    %v2932 = vunpack.c.l.b16 %v424
    %v2933 = vunpack.c.h.b16 %v424
    %v2934 = vunpack.c.l.b16 %v425
    %v2935 = vunpack.c.h.b16 %v425
    %v2936 = vunpack.c.l.b16 %v426
    %v2937 = vunpack.c.h.b16 %v426
    %v2938 = vunpack.c.l.b16 %v427
    %v2939 = vunpack.c.h.b16 %v427
    %v2940 = vunpack.c.l.b16 %v428
    %v2941 = vunpack.c.h.b16 %v428
    %v2942 = vunpack.c.l.b16 %v429
    %v2943 = vunpack.c.h.b16 %v429
    %v2944 = vunpack.c.l.b16 %v430
    %v2945 = vunpack.c.h.b16 %v430
    %v2946 = vunpack.c.l.b16 %v431
    %v2947 = vunpack.c.h.b16 %v431
    %v2948 = vunpack.c.l.b16 %v432
    %v2949 = vunpack.c.h.b16 %v432
    %v2950 = vunpack.c.l.b16 %v433
    %v2951 = vunpack.c.h.b16 %v433
    %v2952 = vunpack.c.l.b16 %v434
    %v2953 = vunpack.c.h.b16 %v434
    %v2954 = vunpack.c.l.b16 %v435
    %v2955 = vunpack.c.h.b16 %v435
    %v2956 = vunpack.c.l.b16 %v436
    %v2957 = vunpack.c.h.b16 %v436
    %v2958 = vunpack.c.l.b16 %v437
    %v2959 = vunpack.c.h.b16 %v437
    %v2960 = vunpack.c.l.b16 %v438
    %v2961 = vunpack.c.h.b16 %v438
    %v2962 = vunpack.c.l.b16 %v439
    %v2963 = vunpack.c.h.b16 %v439
    %v2964 = vunpack.c.l.b16 %v440
    %v2965 = vunpack.c.h.b16 %v440
    %v2966 = vunpack.c.l.b16 %v441
    %v2967 = vunpack.c.h.b16 %v441
    %v2968 = vunpack.c.l.b16 %v442
    %v2969 = vunpack.c.h.b16 %v442
    %v2970 = vunpack.c.l.b16 %v443
    %v2971 = vunpack.c.h.b16 %v443
    %v2972 = vunpack.c.l.b16 %v444
    %v2973 = vunpack.c.h.b16 %v444
    %v2974 = vunpack.c.l.b16 %v445
    %v2975 = vunpack.c.h.b16 %v445
    %v2976 = vunpack.c.l.b16 %v446
    %v2977 = vunpack.c.h.b16 %v446
    %v2978 = vunpack.c.l.b16 %v447
    %v2979 = vunpack.c.h.b16 %v447
    %v2980 = vunpack.c.l.b16 %v448
    %v2981 = vunpack.c.h.b16 %v448
    %v2982 = vunpack.c.l.b16 %v449
    %v2983 = vunpack.c.h.b16 %v449
    %v2984 = vunpack.c.l.b16 %v450
    %v2985 = vunpack.c.h.b16 %v450
    %v2986 = vunpack.c.l.b16 %v451
    %v2987 = vunpack.c.h.b16 %v451
    %v2988 = vunpack.c.l.b16 %v452
    %v2989 = vunpack.c.h.b16 %v452
    %v2990 = vunpack.c.l.b16 %v453
    %v2991 = vunpack.c.h.b16 %v453
    %v2992 = vunpack.c.l.b16 %v454
    %v2993 = vunpack.c.h.b16 %v454
    %v2994 = vunpack.c.l.b16 %v455
    %v2995 = vunpack.c.h.b16 %v455
    %v2996 = vunpack.c.l.b16 %v456
    %v2997 = vunpack.c.h.b16 %v456
    %v2998 = vunpack.c.l.b16 %v457
    %v2999 = vunpack.c.h.b16 %v457
    %v3000 = vunpack.c.l.b16 %v458
    %v3001 = vunpack.c.h.b16 %v458
    %v3002 = vunpack.c.l.b16 %v459
    %v3003 = vunpack.c.h.b16 %v459
    %v3004 = vunpack.c.l.b16 %v460
    %v3005 = vunpack.c.h.b16 %v460
    %v3006 = vunpack.c.l.b16 %v461
    %v3007 = vunpack.c.h.b16 %v461
    %v3008 = vunpack.c.l.b16 %v462
    %v3009 = vunpack.c.h.b16 %v462
    %v3010 = vunpack.c.l.b16 %v463
    %v3011 = vunpack.c.h.b16 %v463
    %v3012 = vunpack.c.l.b16 %v464
    %v3013 = vunpack.c.h.b16 %v464
    %v3014 = vunpack.c.l.b16 %v465
    %v3015 = vunpack.c.h.b16 %v465
    %v3016 = vunpack.c.l.b16 %v466
    %v3017 = vunpack.c.h.b16 %v466
    %v3018 = vunpack.c.l.b16 %v467
    %v3019 = vunpack.c.h.b16 %v467
    %v3020 = vunpack.c.l.b16 %v468
    %v3021 = vunpack.c.h.b16 %v468
    %v3022 = vunpack.c.l.b16 %v469
    %v3023 = vunpack.c.h.b16 %v469
    %v3024 = vunpack.c.l.b16 %v470
    %v3025 = vunpack.c.h.b16 %v470
    %v3026 = vunpack.c.l.b16 %v471
    %v3027 = vunpack.c.h.b16 %v471
    %v3028 = vunpack.c.l.b16 %v472
    %v3029 = vunpack.c.h.b16 %v472
    %v3030 = vunpack.c.l.b16 %v473
    %v3031 = vunpack.c.h.b16 %v473
    %v3032 = vunpack.c.l.b16 %v474
    %v3033 = vunpack.c.h.b16 %v474
    %v3034 = vunpack.c.l.b16 %v475
    %v3035 = vunpack.c.h.b16 %v475
    %v3036 = vunpack.c.l.b16 %v476
    %v3037 = vunpack.c.h.b16 %v476
    %v3038 = vunpack.c.l.b16 %v477
    %v3039 = vunpack.c.h.b16 %v477
    %v3040 = vunpack.c.l.b16 %v478
    %v3041 = vunpack.c.h.b16 %v478
    %v3042 = vunpack.c.l.b16 %v479
    %v3043 = vunpack.c.h.b16 %v479
    %v3044 = vunpack.c.l.b16 %v480
    %v3045 = vunpack.c.h.b16 %v480
    %v3046 = vunpack.c.l.b16 %v481
    %v3047 = vunpack.c.h.b16 %v481
    %v3048 = vunpack.c.l.b16 %v482
    %v3049 = vunpack.c.h.b16 %v482
    %v3050 = vunpack.c.l.b16 %v483
    %v3051 = vunpack.c.h.b16 %v483
    %v3052 = vunpack.c.l.b16 %v484
    %v3053 = vunpack.c.h.b16 %v484
    %v3054 = vunpack.c.l.b16 %v485
    %v3055 = vunpack.c.h.b16 %v485
    %v3056 = vunpack.c.l.b16 %v486
    %v3057 = vunpack.c.h.b16 %v486
    %v3058 = vunpack.c.l.b16 %v487
    %v3059 = vunpack.c.h.b16 %v487
    %v3060 = vunpack.c.l.b16 %v488
    %v3061 = vunpack.c.h.b16 %v488
    %v3062 = vunpack.c.l.b16 %v489
    %v3063 = vunpack.c.h.b16 %v489
    %v3064 = vunpack.c.l.b16 %v490
    %v3065 = vunpack.c.h.b16 %v490
    %v3066 = vunpack.c.l.b16 %v491
    %v3067 = vunpack.c.h.b16 %v491
    %v3068 = vunpack.c.l.b16 %v492
    %v3069 = vunpack.c.h.b16 %v492
    %v3070 = vunpack.c.l.b16 %v493
    %v3071 = vunpack.c.h.b16 %v493
    %v3072 = vunpack.c.l.b16 %v494
    %v3073 = vunpack.c.h.b16 %v494
    %v3074 = vunpack.c.l.b16 %v495
    %v3075 = vunpack.c.h.b16 %v495
    %v3076 = vunpack.c.l.b16 %v496
    %v3077 = vunpack.c.h.b16 %v496
    %v3078 = vunpack.c.l.b16 %v497
    %v3079 = vunpack.c.h.b16 %v497
    %v3080 = vunpack.c.l.b16 %v498
    %v3081 = vunpack.c.h.b16 %v498
    %v3082 = vunpack.c.l.b16 %v499
    %v3083 = vunpack.c.h.b16 %v499
    %v3084 = vunpack.c.l.b16 %v500
    %v3085 = vunpack.c.h.b16 %v500
    %v3086 = vunpack.c.l.b16 %v501
    %v3087 = vunpack.c.h.b16 %v501
    %v3088 = vunpack.c.l.b16 %v502
    %v3089 = vunpack.c.h.b16 %v502
    %v3090 = vunpack.c.l.b16 %v503
    %v3091 = vunpack.c.h.b16 %v503
    %v3092 = vunpack.c.l.b16 %v504
    %v3093 = vunpack.c.h.b16 %v504
    %v3094 = vunpack.c.l.b16 %v505
    %v3095 = vunpack.c.h.b16 %v505
    %v3096 = vunpack.c.l.b16 %v506
    %v3097 = vunpack.c.h.b16 %v506
    %v3098 = vunpack.c.l.b16 %v507
    %v3099 = vunpack.c.h.b16 %v507
    %v3100 = vunpack.c.l.b16 %v508
    %v3101 = vunpack.c.h.b16 %v508
    %v3102 = vunpack.c.l.b16 %v509
    %v3103 = vunpack.c.h.b16 %v509
    %v3104 = vunpack.c.l.b16 %v510
    %v3105 = vunpack.c.h.b16 %v510
    %v3106 = vunpack.c.l.b16 %v511
    %v3107 = vunpack.c.h.b16 %v511
    %v3108 = vunpack.c.l.b16 %v512
    %v3109 = vunpack.c.h.b16 %v512
    %v3110 = vunpack.c.l.b16 %v513
    %v3111 = vunpack.c.h.b16 %v513
    %v3112 = vunpack.c.l.b16 %v514
    %v3113 = vunpack.c.h.b16 %v514
    %v3114 = vunpack.c.l.b16 %v515
    %v3115 = vunpack.c.h.b16 %v515
    %v3116 = vunpack.c.l.b16 %v516
    %v3117 = vunpack.c.h.b16 %v516
    %v3118 = vunpack.c.l.b16 %v517
    %v3119 = vunpack.c.h.b16 %v517
    %v3120 = vunpack.c.l.b16 %v518
    %v3121 = vunpack.c.h.b16 %v518
    %v3122 = vunpack.c.l.b16 %v519
    %v3123 = vunpack.c.h.b16 %v519
    %v3124 = vunpack.c.l.b16 %v520
    %v3125 = vunpack.c.h.b16 %v520
    %v3126 = vunpack.c.l.b16 %v521
    %v3127 = vunpack.c.h.b16 %v521
    %v3128 = vunpack.c.l.b16 %v522
    %v3129 = vunpack.c.h.b16 %v522
    %v3130 = vunpack.c.l.b16 %v523
    %v3131 = vunpack.c.h.b16 %v523
    %v3132 = vunpack.c.l.b16 %v524
    %v3133 = vunpack.c.h.b16 %v524
    %v3134 = vunpack.c.l.b16 %v525
    %v3135 = vunpack.c.h.b16 %v525
    %v3136 = vunpack.c.l.b16 %v526
    %v3137 = vunpack.c.h.b16 %v526
    %v3138 = vunpack.c.l.b16 %v527
    %v3139 = vunpack.c.h.b16 %v527
    %v3140 = vunpack.c.l.b16 %v528
    %v3141 = vunpack.c.h.b16 %v528
    %v3142 = vunpack.c.l.b16 %v529
    %v3143 = vunpack.c.h.b16 %v529
    %v3144 = vunpack.c.l.b16 %v530
    %v3145 = vunpack.c.h.b16 %v530
    %v3146 = vunpack.c.l.b16 %v531
    %v3147 = vunpack.c.h.b16 %v531
    %v3148 = vunpack.c.l.b16 %v532
    %v3149 = vunpack.c.h.b16 %v532
    %v3150 = vunpack.c.l.b16 %v533
    %v3151 = vunpack.c.h.b16 %v533
    %v3152 = vunpack.c.l.b16 %v534
    %v3153 = vunpack.c.h.b16 %v534
    %v3154 = vunpack.c.l.b16 %v535
    %v3155 = vunpack.c.h.b16 %v535
    %v3156 = vunpack.c.l.b16 %v536
    %v3157 = vunpack.c.h.b16 %v536
    %v3158 = vunpack.c.l.b16 %v537
    %v3159 = vunpack.c.h.b16 %v537
    %v3160 = vunpack.c.l.b16 %v538
    %v3161 = vunpack.c.h.b16 %v538
    %v3162 = vunpack.c.l.b16 %v539
    %v3163 = vunpack.c.h.b16 %v539
    %v3164 = vunpack.c.l.b16 %v540
    %v3165 = vunpack.c.h.b16 %v540
    %v3166 = vunpack.c.l.b16 %v541
    %v3167 = vunpack.c.h.b16 %v541
    %v3168 = vunpack.c.l.b16 %v542
    %v3169 = vunpack.c.h.b16 %v542
    %v3170 = vunpack.c.l.b16 %v543
    %v3171 = vunpack.c.h.b16 %v543
    %v3172 = vunpack.c.l.b16 %v544
    %v3173 = vunpack.c.h.b16 %v544
    %v3174 = vunpack.c.l.b16 %v545
    %v3175 = vunpack.c.h.b16 %v545
    %v3176 = vunpack.c.l.b16 %v546
    %v3177 = vunpack.c.h.b16 %v546
    %v3178 = vunpack.c.l.b16 %v547
    %v3179 = vunpack.c.h.b16 %v547
    %v3180 = vunpack.c.l.b16 %v548
    %v3181 = vunpack.c.h.b16 %v548
    %v3182 = vunpack.c.l.b16 %v549
    %v3183 = vunpack.c.h.b16 %v549
    %v3184 = vunpack.c.l.b16 %v550
    %v3185 = vunpack.c.h.b16 %v550
    %v3186 = vunpack.c.l.b16 %v551
    %v3187 = vunpack.c.h.b16 %v551
    %v3188 = vunpack.c.l.b16 %v552
    %v3189 = vunpack.c.h.b16 %v552
    %v3190 = vunpack.c.l.b16 %v553
    %v3191 = vunpack.c.h.b16 %v553
    %v3192 = vunpack.c.l.b16 %v554
    %v3193 = vunpack.c.h.b16 %v554
    %v3194 = vunpack.c.l.b16 %v555
    %v3195 = vunpack.c.h.b16 %v555
    %v3196 = vunpack.c.l.b16 %v556
    %v3197 = vunpack.c.h.b16 %v556
    %v3198 = vunpack.c.l.b16 %v557
    %v3199 = vunpack.c.h.b16 %v557
    %v3200 = vunpack.c.l.b16 %v558
    %v3201 = vunpack.c.h.b16 %v558
    %v3202 = vunpack.c.l.b16 %v559
    %v3203 = vunpack.c.h.b16 %v559
    %v3204 = vunpack.c.l.b16 %v560
    %v3205 = vunpack.c.h.b16 %v560
    %v3206 = vunpack.c.l.b16 %v561
    %v3207 = vunpack.c.h.b16 %v561
    %v3208 = vunpack.c.l.b16 %v562
    %v3209 = vunpack.c.h.b16 %v562
    %v3210 = vunpack.c.l.b16 %v563
    %v3211 = vunpack.c.h.b16 %v563
    %v3212 = vunpack.c.l.b16 %v564
    %v3213 = vunpack.c.h.b16 %v564
    %v3214 = vunpack.c.l.b16 %v565
    %v3215 = vunpack.c.h.b16 %v565
    %v3216 = vunpack.c.l.b16 %v566
    %v3217 = vunpack.c.h.b16 %v566
    %v3218 = vunpack.c.l.b16 %v567
    %v3219 = vunpack.c.h.b16 %v567
    %v3220 = vunpack.c.l.b16 %v568
    %v3221 = vunpack.c.h.b16 %v568
    %v3222 = vunpack.c.l.b16 %v569
    %v3223 = vunpack.c.h.b16 %v569
    %v3224 = vunpack.c.l.b16 %v570
    %v3225 = vunpack.c.h.b16 %v570
    %v3226 = vunpack.c.l.b16 %v571
    %v3227 = vunpack.c.h.b16 %v571
    %v3228 = vunpack.c.l.b16 %v572
    %v3229 = vunpack.c.h.b16 %v572
    %v3230 = vunpack.c.l.b16 %v573
    %v3231 = vunpack.c.h.b16 %v573
    %v3232 = vunpack.c.l.b16 %v574
    %v3233 = vunpack.c.h.b16 %v574
    %v3234 = vunpack.c.l.b16 %v575
    %v3235 = vunpack.c.h.b16 %v575
    %v3236 = vunpack.c.l.b16 %v576
    %v3237 = vunpack.c.h.b16 %v576
    %v3238 = vunpack.c.l.b16 %v577
    %v3239 = vunpack.c.h.b16 %v577
    %v3240 = vunpack.c.l.b16 %v578
    %v3241 = vunpack.c.h.b16 %v578
    %v3242 = vunpack.c.l.b16 %v579
    %v3243 = vunpack.c.h.b16 %v579
    %v3244 = vunpack.c.l.b16 %v580
    %v3245 = vunpack.c.h.b16 %v580
    %v3246 = vunpack.c.l.b16 %v581
    %v3247 = vunpack.c.h.b16 %v581
    %v3248 = vunpack.c.l.b16 %v582
    %v3249 = vunpack.c.h.b16 %v582
    %v3250 = vunpack.c.l.b16 %v583
    %v3251 = vunpack.c.h.b16 %v583
    %v3252 = vunpack.c.l.b16 %v584
    %v3253 = vunpack.c.h.b16 %v584
    %v3254 = vunpack.c.l.b16 %v585
    %v3255 = vunpack.c.h.b16 %v585
    %v3256 = vunpack.c.l.b16 %v586
    %v3257 = vunpack.c.h.b16 %v586
    %v3258 = vunpack.c.l.b16 %v587
    %v3259 = vunpack.c.h.b16 %v587
    %v3260 = vunpack.c.l.b16 %v588
    %v3261 = vunpack.c.h.b16 %v588
    %v3262 = vunpack.c.l.b16 %v589
    %v3263 = vunpack.c.h.b16 %v589
    %v3264 = vunpack.c.l.b16 %v590
    %v3265 = vunpack.c.h.b16 %v590
    %v3266 = vunpack.c.l.b16 %v591
    %v3267 = vunpack.c.h.b16 %v591
    %v3268 = vunpack.c.l.b16 %v592
    %v3269 = vunpack.c.h.b16 %v592
    %v3270 = vunpack.c.l.b16 %v593
    %v3271 = vunpack.c.h.b16 %v593
    %v3272 = vunpack.c.l.b16 %v594
    %v3273 = vunpack.c.h.b16 %v594
    %v3274 = vunpack.c.l.b16 %v595
    %v3275 = vunpack.c.h.b16 %v595
    %v3276 = vunpack.c.l.b16 %v596
    %v3277 = vunpack.c.h.b16 %v596
    %v3278 = vunpack.c.l.b16 %v597
    %v3279 = vunpack.c.h.b16 %v597
    %v3280 = vunpack.c.l.b16 %v598
    %v3281 = vunpack.c.h.b16 %v598
    %v3282 = vunpack.c.l.b16 %v599
    %v3283 = vunpack.c.h.b16 %v599
    %v3284 = vunpack.c.l.b16 %v600
    %v3285 = vunpack.c.h.b16 %v600
    %v3286 = vunpack.c.l.b16 %v601
    %v3287 = vunpack.c.h.b16 %v601
    %v3288 = vunpack.c.l.b16 %v602
    %v3289 = vunpack.c.h.b16 %v602
    %v3290 = vunpack.c.l.b16 %v603
    %v3291 = vunpack.c.h.b16 %v603
    %v3292 = vunpack.c.l.b16 %v604
    %v3293 = vunpack.c.h.b16 %v604
    %v3294 = vunpack.c.l.b16 %v605
    %v3295 = vunpack.c.h.b16 %v605
    %v3296 = vunpack.c.l.b16 %v606
    %v3297 = vunpack.c.h.b16 %v606
    %v3298 = vunpack.c.l.b16 %v607
    %v3299 = vunpack.c.h.b16 %v607
    %v3300 = vunpack.c.l.b16 %v608
    %v3301 = vunpack.c.h.b16 %v608
    %v3302 = vunpack.c.l.b16 %v609
    %v3303 = vunpack.c.h.b16 %v609
    %v3304 = vunpack.c.l.b16 %v610
    %v3305 = vunpack.c.h.b16 %v610
    %v3306 = vunpack.c.l.b16 %v611
    %v3307 = vunpack.c.h.b16 %v611
    %v3308 = vunpack.c.l.b16 %v612
    %v3309 = vunpack.c.h.b16 %v612
    %v3310 = vunpack.c.l.b16 %v613
    %v3311 = vunpack.c.h.b16 %v613
    %v3312 = vunpack.c.l.b16 %v614
    %v3313 = vunpack.c.h.b16 %v614
    %v3314 = vunpack.c.l.b16 %v615
    %v3315 = vunpack.c.h.b16 %v615
    %v3316 = vunpack.c.l.b16 %v616
    %v3317 = vunpack.c.h.b16 %v616
    %v3318 = vunpack.c.l.b16 %v617
    %v3319 = vunpack.c.h.b16 %v617
    %v3320 = vunpack.c.l.b16 %v618
    %v3321 = vunpack.c.h.b16 %v618
    %v3322 = vunpack.c.l.b16 %v619
    %v3323 = vunpack.c.h.b16 %v619
    %v3324 = vunpack.c.l.b16 %v620
    %v3325 = vunpack.c.h.b16 %v620
    %v3326 = vunpack.c.l.b16 %v621
    %v3327 = vunpack.c.h.b16 %v621
    %v3328 = vunpack.c.l.b16 %v622
    %v3329 = vunpack.c.h.b16 %v622
    %v3330 = vunpack.c.l.b16 %v623
    %v3331 = vunpack.c.h.b16 %v623
    %v3332 = vunpack.c.l.b16 %v624
    %v3333 = vunpack.c.h.b16 %v624
    %v3334 = vunpack.c.l.b16 %v625
    %v3335 = vunpack.c.h.b16 %v625
    %v3336 = vunpack.c.l.b16 %v626
    %v3337 = vunpack.c.h.b16 %v626
    %v3338 = vunpack.c.l.b16 %v627
    %v3339 = vunpack.c.h.b16 %v627
    %v3340 = vunpack.c.l.b16 %v628
    %v3341 = vunpack.c.h.b16 %v628
    %v3342 = vunpack.c.l.b16 %v629
    %v3343 = vunpack.c.h.b16 %v629
    %v3344 = vunpack.c.l.b16 %v630
    %v3345 = vunpack.c.h.b16 %v630
    %v3346 = vunpack.c.l.b16 %v631
    %v3347 = vunpack.c.h.b16 %v631
    %v3348 = vunpack.c.l.b16 %v632
    %v3349 = vunpack.c.h.b16 %v632
    %v3350 = vunpack.c.l.b16 %v633
    %v3351 = vunpack.c.h.b16 %v633
    %v3352 = vunpack.c.l.b16 %v634
    %v3353 = vunpack.c.h.b16 %v634
    %v3354 = vunpack.c.l.b16 %v635
    %v3355 = vunpack.c.h.b16 %v635
    %v3356 = vunpack.c.l.b16 %v636
    %v3357 = vunpack.c.h.b16 %v636
    %v3358 = vunpack.c.l.b16 %v637
    %v3359 = vunpack.c.h.b16 %v637
    %v3360 = vunpack.c.l.b16 %v638
    %v3361 = vunpack.c.h.b16 %v638
    %v3362 = vunpack.c.l.b16 %v639
    %v3363 = vunpack.c.h.b16 %v639
    %v3364 = vunpack.c.l.b16 %v640
    %v3365 = vunpack.c.h.b16 %v640
    %v3366 = vunpack.c.l.b16 %v641
    %v3367 = vunpack.c.h.b16 %v641
    %v3368 = vunpack.c.l.b16 %v642
    %v3369 = vunpack.c.h.b16 %v642
    %v3370 = vunpack.c.l.b16 %v643
    %v3371 = vunpack.c.h.b16 %v643
    %v3372 = vunpack.c.l.b16 %v644
    %v3373 = vunpack.c.h.b16 %v644
    %v3374 = vunpack.c.l.b16 %v645
    %v3375 = vunpack.c.h.b16 %v645
    %v3376 = vunpack.c.l.b16 %v646
    %v3377 = vunpack.c.h.b16 %v646
    %v3378 = vunpack.c.l.b16 %v647
    %v3379 = vunpack.c.h.b16 %v647
    %v3380 = vunpack.c.l.b16 %v648
    %v3381 = vunpack.c.h.b16 %v648
    %v3382 = vunpack.c.l.b16 %v649
    %v3383 = vunpack.c.h.b16 %v649
    %v3384 = vunpack.c.l.b16 %v650
    %v3385 = vunpack.c.h.b16 %v650
    %v3386 = vunpack.c.l.b16 %v651
    %v3387 = vunpack.c.h.b16 %v651
    %v3388 = vunpack.c.l.b16 %v652
    %v3389 = vunpack.c.h.b16 %v652
    %v3390 = vunpack.c.l.b16 %v653
    %v3391 = vunpack.c.h.b16 %v653
    %v3392 = vunpack.c.l.b16 %v654
    %v3393 = vunpack.c.h.b16 %v654
    %v3394 = vunpack.c.l.b16 %v655
    %v3395 = vunpack.c.h.b16 %v655
    %v3396 = vunpack.c.l.b16 %v656
    %v3397 = vunpack.c.h.b16 %v656
    %v3398 = vunpack.c.l.b16 %v657
    %v3399 = vunpack.c.h.b16 %v657
    %v3400 = vunpack.c.l.b16 %v658
    %v3401 = vunpack.c.h.b16 %v658
    %v3402 = vunpack.c.l.b16 %v659
    %v3403 = vunpack.c.h.b16 %v659
    %v3404 = vunpack.c.l.b16 %v660
    %v3405 = vunpack.c.h.b16 %v660
    %v3406 = vunpack.c.l.b16 %v661
    %v3407 = vunpack.c.h.b16 %v661
    %v3408 = vunpack.c.l.b16 %v662
    %v3409 = vunpack.c.h.b16 %v662
    %v3410 = vunpack.c.l.b16 %v663
    %v3411 = vunpack.c.h.b16 %v663
    %v3412 = vunpack.c.l.b16 %v664
    %v3413 = vunpack.c.h.b16 %v664
    %v3414 = vunpack.c.l.b16 %v665
    %v3415 = vunpack.c.h.b16 %v665
    %v3416 = vunpack.c.l.b16 %v666
    %v3417 = vunpack.c.h.b16 %v666
    %v3418 = vunpack.c.l.b16 %v667
    %v3419 = vunpack.c.h.b16 %v667
    %v3420 = vunpack.c.l.b16 %v668
    %v3421 = vunpack.c.h.b16 %v668
    %v3422 = vunpack.c.l.b16 %v669
    %v3423 = vunpack.c.h.b16 %v669
    %v3424 = vunpack.c.l.b16 %v670
    %v3425 = vunpack.c.h.b16 %v670
    %v3426 = vunpack.c.l.b16 %v671
    %v3427 = vunpack.c.h.b16 %v671
    %v3428 = vunpack.c.l.b16 %v672
    %v3429 = vunpack.c.h.b16 %v672
    %v3430 = vunpack.c.l.b16 %v673
    %v3431 = vunpack.c.h.b16 %v673
    %v3432 = vunpack.c.l.b16 %v674
    %v3433 = vunpack.c.h.b16 %v674
    %v3434 = vunpack.c.l.b16 %v675
    %v3435 = vunpack.c.h.b16 %v675
    %v3436 = vunpack.c.l.b16 %v676
    %v3437 = vunpack.c.h.b16 %v676
    %v3438 = vunpack.c.l.b16 %v677
    %v3439 = vunpack.c.h.b16 %v677
    %v3440 = vunpack.c.l.b16 %v678
    %v3441 = vunpack.c.h.b16 %v678
    %v3442 = vunpack.c.l.b16 %v679
    %v3443 = vunpack.c.h.b16 %v679
    %v3444 = vunpack.c.l.b16 %v680
    %v3445 = vunpack.c.h.b16 %v680
    %v3446 = vunpack.c.l.b16 %v681
    %v3447 = vunpack.c.h.b16 %v681
    %v3448 = vunpack.c.l.b16 %v682
    %v3449 = vunpack.c.h.b16 %v682
    %v3450 = vunpack.c.l.b16 %v683
    %v3451 = vunpack.c.h.b16 %v683
    %v3452 = vunpack.c.l.b16 %v684
    %v3453 = vunpack.c.h.b16 %v684
    %v3454 = vunpack.c.l.b16 %v685
    %v3455 = vunpack.c.h.b16 %v685
    %v3456 = vunpack.c.l.b16 %v686
    %v3457 = vunpack.c.h.b16 %v686
    %v3458 = vunpack.c.l.b16 %v687
    %v3459 = vunpack.c.h.b16 %v687
    %v3460 = vunpack.c.l.b16 %v688
    %v3461 = vunpack.c.h.b16 %v688
    %v3462 = vunpack.c.l.b16 %v689
    %v3463 = vunpack.c.h.b16 %v689
    %v3464 = vunpack.c.l.b16 %v690
    %v3465 = vunpack.c.h.b16 %v690
    %v3466 = vunpack.c.l.b16 %v691
    %v3467 = vunpack.c.h.b16 %v691
    %v3468 = vunpack.c.l.b16 %v692
    %v3469 = vunpack.c.h.b16 %v692
    %v3470 = vunpack.c.l.b16 %v693
    %v3471 = vunpack.c.h.b16 %v693
    %v3472 = vunpack.c.l.b16 %v694
    %v3473 = vunpack.c.h.b16 %v694
    %v3474 = vunpack.c.l.b16 %v695
    %v3475 = vunpack.c.h.b16 %v695
    %v3476 = vunpack.c.l.b16 %v696
    %v3477 = vunpack.c.h.b16 %v696
    %v3478 = vunpack.c.l.b16 %v697
    %v3479 = vunpack.c.h.b16 %v697
    %v3480 = vunpack.c.l.b16 %v698
    %v3481 = vunpack.c.h.b16 %v698
    %v3482 = vunpack.c.l.b16 %v699
    %v3483 = vunpack.c.h.b16 %v699
    %v3484 = vunpack.c.l.b16 %v700
    %v3485 = vunpack.c.h.b16 %v700
    %v3486 = vunpack.c.l.b16 %v701
    %v3487 = vunpack.c.h.b16 %v701
    %v3488 = vunpack.c.l.b16 %v702
    %v3489 = vunpack.c.h.b16 %v702
    %v3490 = vunpack.c.l.b16 %v703
    %v3491 = vunpack.c.h.b16 %v703
    %v3492 = vunpack.c.l.b16 %v704
    %v3493 = vunpack.c.h.b16 %v704
    %v3494 = vunpack.c.l.b16 %v705
    %v3495 = vunpack.c.h.b16 %v705
    %v3496 = vunpack.c.l.b16 %v706
    %v3497 = vunpack.c.h.b16 %v706
    %v3498 = vunpack.c.l.b16 %v707
    %v3499 = vunpack.c.h.b16 %v707
    %v3500 = vunpack.c.l.b16 %v708
    %v3501 = vunpack.c.h.b16 %v708
    %v3502 = vunpack.c.l.b16 %v709
    %v3503 = vunpack.c.h.b16 %v709
    %v3504 = vunpack.c.l.b16 %v710
    %v3505 = vunpack.c.h.b16 %v710
    %v3506 = vunpack.c.l.b16 %v711
    %v3507 = vunpack.c.h.b16 %v711
    %v3508 = vunpack.c.l.b16 %v712
    %v3509 = vunpack.c.h.b16 %v712
    %v3510 = vunpack.c.l.b16 %v713
    %v3511 = vunpack.c.h.b16 %v713
    %v3512 = vunpack.c.l.b16 %v714
    %v3513 = vunpack.c.h.b16 %v714
    %v3514 = vunpack.c.l.b16 %v715
    %v3515 = vunpack.c.h.b16 %v715
    %v3516 = vunpack.c.l.b16 %v716
    %v3517 = vunpack.c.h.b16 %v716
    %v3518 = vunpack.c.l.b16 %v717
    %v3519 = vunpack.c.h.b16 %v717
    %v3520 = vunpack.c.l.b16 %v718
    %v3521 = vunpack.c.h.b16 %v718
    %v3522 = vunpack.c.l.b16 %v719
    %v3523 = vunpack.c.h.b16 %v719
    %v3524 = vunpack.c.l.b16 %v720
    %v3525 = vunpack.c.h.b16 %v720
    %v3526 = vunpack.c.l.b16 %v721
    %v3527 = vunpack.c.h.b16 %v721
    %v3528 = vunpack.c.l.b16 %v722
    %v3529 = vunpack.c.h.b16 %v722
    %v3530 = vunpack.c.l.b16 %v723
    %v3531 = vunpack.c.h.b16 %v723
    %v3532 = vunpack.c.l.b16 %v724
    %v3533 = vunpack.c.h.b16 %v724
    %v3534 = vunpack.c.l.b16 %v725
    %v3535 = vunpack.c.h.b16 %v725
    %v3536 = vunpack.c.l.b16 %v726
    %v3537 = vunpack.c.h.b16 %v726
    %v3538 = vunpack.c.l.b16 %v727
    %v3539 = vunpack.c.h.b16 %v727
    %v3540 = vunpack.c.l.b16 %v728
    %v3541 = vunpack.c.h.b16 %v728
    %v3542 = vunpack.c.l.b16 %v729
    %v3543 = vunpack.c.h.b16 %v729
    %v3544 = vunpack.c.l.b16 %v730
    %v3545 = vunpack.c.h.b16 %v730
    %v3546 = vunpack.c.l.b16 %v731
    %v3547 = vunpack.c.h.b16 %v731
    %v3548 = vunpack.c.l.b16 %v732
    %v3549 = vunpack.c.h.b16 %v732
    %v3550 = vunpack.c.l.b16 %v733
    %v3551 = vunpack.c.h.b16 %v733
    %v3552 = vunpack.c.l.b16 %v734
    %v3553 = vunpack.c.h.b16 %v734
    %v3554 = vunpack.c.l.b16 %v735
    %v3555 = vunpack.c.h.b16 %v735
    %v3556 = vunpack.c.l.b16 %v736
    %v3557 = vunpack.c.h.b16 %v736
    %v3558 = vunpack.c.l.b16 %v737
    %v3559 = vunpack.c.h.b16 %v737
    %v3560 = vunpack.c.l.b16 %v738
    %v3561 = vunpack.c.h.b16 %v738
    %v3562 = vunpack.c.l.b16 %v739
    %v3563 = vunpack.c.h.b16 %v739
    %v3564 = vunpack.c.l.b16 %v740
    %v3565 = vunpack.c.h.b16 %v740
    %v3566 = vunpack.c.l.b16 %v741
    %v3567 = vunpack.c.h.b16 %v741
    %v3568 = vunpack.c.l.b16 %v742
    %v3569 = vunpack.c.h.b16 %v742
    %v3570 = vunpack.c.l.b16 %v743
    %v3571 = vunpack.c.h.b16 %v743
    %v3572 = vunpack.c.l.b16 %v744
    %v3573 = vunpack.c.h.b16 %v744
    %v3574 = vunpack.c.l.b16 %v745
    %v3575 = vunpack.c.h.b16 %v745
    %v3576 = vunpack.c.l.b16 %v746
    %v3577 = vunpack.c.h.b16 %v746
    %v3578 = vunpack.c.l.b16 %v747
    %v3579 = vunpack.c.h.b16 %v747
    %v3580 = vunpack.c.l.b16 %v748
    %v3581 = vunpack.c.h.b16 %v748
    %v3582 = vunpack.c.l.b16 %v749
    %v3583 = vunpack.c.h.b16 %v749
    %v3584 = vunpack.c.l.b16 %v750
    %v3585 = vunpack.c.h.b16 %v750
    %v3586 = vunpack.c.l.b16 %v751
    %v3587 = vunpack.c.h.b16 %v751
    %v3588 = vunpack.c.l.b16 %v752
    %v3589 = vunpack.c.h.b16 %v752
    %v3590 = vunpack.c.l.b16 %v753
    %v3591 = vunpack.c.h.b16 %v753
    %v3592 = vunpack.c.l.b16 %v754
    %v3593 = vunpack.c.h.b16 %v754
    %v3594 = vunpack.c.l.b16 %v755
    %v3595 = vunpack.c.h.b16 %v755
    %v3596 = vunpack.c.l.b16 %v756
    %v3597 = vunpack.c.h.b16 %v756
    %v3598 = vunpack.c.l.b16 %v757
    %v3599 = vunpack.c.h.b16 %v757
    %v3600 = vunpack.c.l.b16 %v758
    %v3601 = vunpack.c.h.b16 %v758
    %v3602 = vunpack.c.l.b16 %v759
    %v3603 = vunpack.c.h.b16 %v759
    %v3604 = vunpack.c.l.b16 %v760
    %v3605 = vunpack.c.h.b16 %v760
    %v3606 = vunpack.c.l.b16 %v761
    %v3607 = vunpack.c.h.b16 %v761
    %v3608 = vunpack.c.l.b16 %v762
    %v3609 = vunpack.c.h.b16 %v762
    %v3610 = vunpack.c.l.b16 %v763
    %v3611 = vunpack.c.h.b16 %v763
    %v3612 = vunpack.c.l.b16 %v764
    %v3613 = vunpack.c.h.b16 %v764
    %v3614 = vunpack.c.l.b16 %v765
    %v3615 = vunpack.c.h.b16 %v765
    %v3616 = vunpack.c.l.b16 %v766
    %v3617 = vunpack.c.h.b16 %v766
    %v3618 = vunpack.c.l.b16 %v767
    %v3619 = vunpack.c.h.b16 %v767
    %v3620 = vunpack.c.l.b16 %v768
    %v3621 = vunpack.c.h.b16 %v768
    %v3622 = vunpack.c.l.b16 %v769
    %v3623 = vunpack.c.h.b16 %v769
    %v3624 = vunpack.c.l.b16 %v770
    %v3625 = vunpack.c.h.b16 %v770
    %v3626 = vunpack.c.l.b16 %v771
    %v3627 = vunpack.c.h.b16 %v771
    %v3628 = vunpack.c.l.b16 %v772
    %v3629 = vunpack.c.h.b16 %v772
    %v3630 = vunpack.c.l.b16 %v773
    %v3631 = vunpack.c.h.b16 %v773
    %v3632 = vunpack.c.l.b16 %v774
    %v3633 = vunpack.c.h.b16 %v774
    %v3634 = vunpack.c.l.b16 %v775
    %v3635 = vunpack.c.h.b16 %v775
    %v3636 = vunpack.c.l.b16 %v776
    %v3637 = vunpack.c.h.b16 %v776
    %v3638 = vunpack.c.l.b16 %v777
    %v3639 = vunpack.c.h.b16 %v777
    %v3640 = vunpack.c.l.b16 %v778
    %v3641 = vunpack.c.h.b16 %v778
    %v3642 = vunpack.c.l.b16 %v779
    %v3643 = vunpack.c.h.b16 %v779
    %v3644 = vunpack.c.l.b16 %v780
    %v3645 = vunpack.c.h.b16 %v780
    %v3646 = vunpack.c.l.b16 %v781
    %v3647 = vunpack.c.h.b16 %v781
    %v3648 = vunpack.c.l.b16 %v782
    %v3649 = vunpack.c.h.b16 %v782
    %v3650 = vunpack.c.l.b16 %v783
    %v3651 = vunpack.c.h.b16 %v783
    %v3652 = vunpack.c.l.b16 %v784
    %v3653 = vunpack.c.h.b16 %v784
    %v3654 = vunpack.c.l.b16 %v785
    %v3655 = vunpack.c.h.b16 %v785
    %v3656 = vunpack.c.l.b16 %v786
    %v3657 = vunpack.c.h.b16 %v786
    %v3658 = vunpack.c.l.b16 %v787
    %v3659 = vunpack.c.h.b16 %v787
    %v3660 = vunpack.c.l.b16 %v788
    %v3661 = vunpack.c.h.b16 %v788
    %v3662 = vunpack.c.l.b16 %v789
    %v3663 = vunpack.c.h.b16 %v789
    %v3664 = vunpack.c.l.b16 %v790
    %v3665 = vunpack.c.h.b16 %v790
    %v3666 = vunpack.c.l.b16 %v791
    %v3667 = vunpack.c.h.b16 %v791
    %v3668 = vunpack.c.l.b16 %v792
    %v3669 = vunpack.c.h.b16 %v792
    %v3670 = vunpack.c.l.b16 %v793
    %v3671 = vunpack.c.h.b16 %v793
    %v3672 = vunpack.c.l.b16 %v794
    %v3673 = vunpack.c.h.b16 %v794
    %v3674 = vunpack.c.l.b16 %v795
    %v3675 = vunpack.c.h.b16 %v795
    %v3676 = vunpack.c.l.b16 %v796
    %v3677 = vunpack.c.h.b16 %v796
    %v3678 = vunpack.c.l.b16 %v797
    %v3679 = vunpack.c.h.b16 %v797
    %v3680 = vunpack.c.l.b16 %v798
    %v3681 = vunpack.c.h.b16 %v798
    %v3682 = vunpack.c.l.b16 %v799
    %v3683 = vunpack.c.h.b16 %v799
    %v3684 = vunpack.c.l.b16 %v800
    %v3685 = vunpack.c.h.b16 %v800
    %v3686 = vunpack.c.l.b16 %v801
    %v3687 = vunpack.c.h.b16 %v801
    %v3688 = vunpack.c.l.b16 %v802
    %v3689 = vunpack.c.h.b16 %v802
    %v3690 = vunpack.c.l.b16 %v803
    %v3691 = vunpack.c.h.b16 %v803
    %v3692 = vunpack.c.l.b16 %v804
    %v3693 = vunpack.c.h.b16 %v804
    %v3694 = vunpack.c.l.b16 %v805
    %v3695 = vunpack.c.h.b16 %v805
    %v3696 = vunpack.c.l.b16 %v806
    %v3697 = vunpack.c.h.b16 %v806
    %v3698 = vunpack.c.l.b16 %v807
    %v3699 = vunpack.c.h.b16 %v807
    %v3700 = vunpack.c.l.b16 %v808
    %v3701 = vunpack.c.h.b16 %v808
    %v3702 = vunpack.c.l.b16 %v809
    %v3703 = vunpack.c.h.b16 %v809
    %v3704 = vunpack.c.l.b16 %v810
    %v3705 = vunpack.c.h.b16 %v810
    %v3706 = vunpack.c.l.b16 %v811
    %v3707 = vunpack.c.h.b16 %v811
    %v3708 = vunpack.c.l.b16 %v812
    %v3709 = vunpack.c.h.b16 %v812
    %v3710 = vunpack.c.l.b16 %v813
    %v3711 = vunpack.c.h.b16 %v813
    %v3712 = vunpack.c.l.b16 %v814
    %v3713 = vunpack.c.h.b16 %v814
    %v3714 = vunpack.c.l.b16 %v815
    %v3715 = vunpack.c.h.b16 %v815
    %v3716 = vunpack.c.l.b16 %v816
    %v3717 = vunpack.c.h.b16 %v816
    %v3718 = vunpack.c.l.b16 %v817
    %v3719 = vunpack.c.h.b16 %v817
    %v3720 = vunpack.c.l.b16 %v818
    %v3721 = vunpack.c.h.b16 %v818
    %v3722 = vunpack.c.l.b16 %v819
    %v3723 = vunpack.c.h.b16 %v819
    %v3724 = vunpack.c.l.b16 %v820
    %v3725 = vunpack.c.h.b16 %v820
    %v3726 = vunpack.c.l.b16 %v821
    %v3727 = vunpack.c.h.b16 %v821
    %v3728 = vunpack.c.l.b16 %v822
    %v3729 = vunpack.c.h.b16 %v822
    %v3730 = vunpack.c.l.b16 %v823
    %v3731 = vunpack.c.h.b16 %v823
    %v3732 = vunpack.c.l.b16 %v824
    %v3733 = vunpack.c.h.b16 %v824
    %v3734 = vunpack.c.l.b16 %v825
    %v3735 = vunpack.c.h.b16 %v825
    %v3736 = vunpack.c.l.b16 %v826
    %v3737 = vunpack.c.h.b16 %v826
    %v3738 = vunpack.c.l.b16 %v827
    %v3739 = vunpack.c.h.b16 %v827
    %v3740 = vunpack.c.l.b16 %v828
    %v3741 = vunpack.c.h.b16 %v828
    %v3742 = vunpack.c.l.b16 %v829
    %v3743 = vunpack.c.h.b16 %v829
    %v3744 = vunpack.c.l.b16 %v830
    %v3745 = vunpack.c.h.b16 %v830
    %v3746 = vunpack.c.l.b16 %v831
    %v3747 = vunpack.c.h.b16 %v831
    %v3748 = vunpack.c.l.b16 %v832
    %v3749 = vunpack.c.h.b16 %v832
    %v3750 = vunpack.c.l.b16 %v833
    %v3751 = vunpack.c.h.b16 %v833
    %v3752 = vunpack.c.l.b16 %v834
    %v3753 = vunpack.c.h.b16 %v834
    %v3754 = vunpack.c.l.b16 %v835
    %v3755 = vunpack.c.h.b16 %v835
    %v3756 = vunpack.c.l.b16 %v836
    %v3757 = vunpack.c.h.b16 %v836
    %v3758 = vunpack.c.l.b16 %v837
    %v3759 = vunpack.c.h.b16 %v837
    %v3760 = vunpack.c.l.b16 %v838
    %v3761 = vunpack.c.h.b16 %v838
    %v3762 = vunpack.c.l.b16 %v839
    %v3763 = vunpack.c.h.b16 %v839
    %v3764 = vunpack.c.l.b16 %v840
    %v3765 = vunpack.c.h.b16 %v840
    %v3766 = vunpack.c.l.b16 %v841
    %v3767 = vunpack.c.h.b16 %v841
    %v3768 = vunpack.c.l.b16 %v842
    %v3769 = vunpack.c.h.b16 %v842
    %v3770 = vunpack.c.l.b16 %v843
    %v3771 = vunpack.c.h.b16 %v843
    %v3772 = vunpack.c.l.b16 %v844
    %v3773 = vunpack.c.h.b16 %v844
    %v3774 = vunpack.c.l.b16 %v845
    %v3775 = vunpack.c.h.b16 %v845
    %v3776 = vunpack.c.l.b16 %v846
    %v3777 = vunpack.c.h.b16 %v846
    %v3778 = vunpack.c.l.b16 %v847
    %v3779 = vunpack.c.h.b16 %v847
    %v3780 = vunpack.c.l.b16 %v848
    %v3781 = vunpack.c.h.b16 %v848
    %v3782 = vunpack.c.l.b16 %v849
    %v3783 = vunpack.c.h.b16 %v849
    %v3784 = vunpack.c.l.b16 %v850
    %v3785 = vunpack.c.h.b16 %v850
    %v3786 = vunpack.c.l.b16 %v851
    %v3787 = vunpack.c.h.b16 %v851
    %v3788 = vunpack.c.l.b16 %v852
    %v3789 = vunpack.c.h.b16 %v852
    %v3790 = vunpack.c.l.b16 %v853
    %v3791 = vunpack.c.h.b16 %v853
    %v3792 = vunpack.c.l.b16 %v854
    %v3793 = vunpack.c.h.b16 %v854
    %v3794 = vunpack.c.l.b16 %v855
    %v3795 = vunpack.c.h.b16 %v855
    %v3796 = vunpack.c.l.b16 %v856
    %v3797 = vunpack.c.h.b16 %v856
    %v3798 = vunpack.c.l.b16 %v857
    %v3799 = vunpack.c.h.b16 %v857
    %v3800 = vunpack.c.l.b16 %v858
    %v3801 = vunpack.c.h.b16 %v858
    %v3802 = vunpack.c.l.b16 %v859
    %v3803 = vunpack.c.h.b16 %v859
    %v3804 = vunpack.c.l.b16 %v860
    %v3805 = vunpack.c.h.b16 %v860
    %v3806 = vunpack.c.l.b16 %v861
    %v3807 = vunpack.c.h.b16 %v861
    %v3808 = vunpack.c.l.b16 %v862
    %v3809 = vunpack.c.h.b16 %v862
    %v3810 = vunpack.c.l.b16 %v863
    %v3811 = vunpack.c.h.b16 %v863
    %v3812 = vunpack.c.l.b16 %v864
    %v3813 = vunpack.c.h.b16 %v864
    %v3814 = vunpack.c.l.b16 %v865
    %v3815 = vunpack.c.h.b16 %v865
    %v3816 = vunpack.c.l.b16 %v866
    %v3817 = vunpack.c.h.b16 %v866
    %v3818 = vunpack.c.l.b16 %v867
    %v3819 = vunpack.c.h.b16 %v867
    %v3820 = vunpack.c.l.b16 %v868
    %v3821 = vunpack.c.h.b16 %v868
    %v3822 = vunpack.c.l.b16 %v869
    %v3823 = vunpack.c.h.b16 %v869
    %v3824 = vunpack.c.l.b16 %v870
    %v3825 = vunpack.c.h.b16 %v870
    %v3826 = vunpack.c.l.b16 %v871
    %v3827 = vunpack.c.h.b16 %v871
    %v3828 = vunpack.c.l.b16 %v872
    %v3829 = vunpack.c.h.b16 %v872
    %v3830 = vunpack.c.l.b16 %v873
    %v3831 = vunpack.c.h.b16 %v873
    %v3832 = vunpack.c.l.b16 %v874
    %v3833 = vunpack.c.h.b16 %v874
    %v3834 = vunpack.c.l.b16 %v875
    %v3835 = vunpack.c.h.b16 %v875
    %v3836 = vunpack.c.l.b16 %v876
    %v3837 = vunpack.c.h.b16 %v876
    %v3838 = vunpack.c.l.b16 %v877
    %v3839 = vunpack.c.h.b16 %v877
    %v3840 = vunpack.c.l.b16 %v878
    %v3841 = vunpack.c.h.b16 %v878
    %v3842 = vunpack.c.l.b16 %v879
    %v3843 = vunpack.c.h.b16 %v879
    %v3844 = vunpack.c.l.b16 %v880
    %v3845 = vunpack.c.h.b16 %v880
    %v3846 = vunpack.c.l.b16 %v881
    %v3847 = vunpack.c.h.b16 %v881
    %v3848 = vunpack.c.l.b16 %v882
    %v3849 = vunpack.c.h.b16 %v882
    %v3850 = vunpack.c.l.b16 %v883
    %v3851 = vunpack.c.h.b16 %v883
    %v3852 = vunpack.c.l.b16 %v884
    %v3853 = vunpack.c.h.b16 %v884
    %v3854 = vunpack.c.l.b16 %v885
    %v3855 = vunpack.c.h.b16 %v885
    %v3856 = vunpack.c.l.b16 %v886
    %v3857 = vunpack.c.h.b16 %v886
    %v3858 = vunpack.c.l.b16 %v887
    %v3859 = vunpack.c.h.b16 %v887
    %v3860 = vunpack.c.l.b16 %v888
    %v3861 = vunpack.c.h.b16 %v888
    %v3862 = vunpack.c.l.b16 %v889
    %v3863 = vunpack.c.h.b16 %v889
    %v3864 = vunpack.c.l.b16 %v890
    %v3865 = vunpack.c.h.b16 %v890
    %v3866 = vunpack.c.l.b16 %v891
    %v3867 = vunpack.c.h.b16 %v891
    %v3868 = vunpack.c.l.b16 %v892
    %v3869 = vunpack.c.h.b16 %v892
    %v3870 = vunpack.c.l.b16 %v893
    %v3871 = vunpack.c.h.b16 %v893
    %v3872 = vunpack.c.l.b16 %v894
    %v3873 = vunpack.c.h.b16 %v894
    %v3874 = vunpack.c.l.b16 %v895
    %v3875 = vunpack.c.h.b16 %v895
    %v3876 = vunpack.c.l.b16 %v896
    %v3877 = vunpack.c.h.b16 %v896
    %v3878 = vunpack.c.l.b16 %v897
    %v3879 = vunpack.c.h.b16 %v897
    %v3880 = vunpack.c.l.b16 %v898
    %v3881 = vunpack.c.h.b16 %v898
    %v3882 = vunpack.c.l.b16 %v899
    %v3883 = vunpack.c.h.b16 %v899
    %v3884 = vunpack.c.l.b16 %v900
    %v3885 = vunpack.c.h.b16 %v900
    %v3886 = vunpack.c.l.b16 %v901
    %v3887 = vunpack.c.h.b16 %v901
    %v3888 = vunpack.c.l.b16 %v902
    %v3889 = vunpack.c.h.b16 %v902
    %v3890 = vunpack.c.l.b16 %v903
    %v3891 = vunpack.c.h.b16 %v903
    %v3892 = vunpack.c.l.b16 %v904
    %v3893 = vunpack.c.h.b16 %v904
    %v3894 = vunpack.c.l.b16 %v905
    %v3895 = vunpack.c.h.b16 %v905
    %v3896 = vunpack.c.l.b16 %v906
    %v3897 = vunpack.c.h.b16 %v906
    %v3898 = vunpack.c.l.b16 %v907
    %v3899 = vunpack.c.h.b16 %v907
    %v3900 = vunpack.c.l.b16 %v908
    %v3901 = vunpack.c.h.b16 %v908
    %v3902 = vunpack.c.l.b16 %v909
    %v3903 = vunpack.c.h.b16 %v909
    %v3904 = vunpack.c.l.b16 %v910
    %v3905 = vunpack.c.h.b16 %v910
    %v3906 = vunpack.c.l.b16 %v911
    %v3907 = vunpack.c.h.b16 %v911
    %v3908 = vunpack.c.l.b16 %v912
    %v3909 = vunpack.c.h.b16 %v912
    %v3910 = vunpack.c.l.b16 %v913
    %v3911 = vunpack.c.h.b16 %v913
    %v3912 = vunpack.c.l.b16 %v914
    %v3913 = vunpack.c.h.b16 %v914
    %v3914 = vunpack.c.l.b16 %v915
    %v3915 = vunpack.c.h.b16 %v915
    %v3916 = vunpack.c.l.b16 %v916
    %v3917 = vunpack.c.h.b16 %v916
    %v3918 = vunpack.c.l.b16 %v917
    %v3919 = vunpack.c.h.b16 %v917
    %v3920 = vunpack.c.l.b16 %v918
    %v3921 = vunpack.c.h.b16 %v918
    %v3922 = vunpack.c.l.b16 %v919
    %v3923 = vunpack.c.h.b16 %v919
    %v3924 = vunpack.c.l.b16 %v920
    %v3925 = vunpack.c.h.b16 %v920
    %v3926 = vunpack.c.l.b16 %v921
    %v3927 = vunpack.c.h.b16 %v921
    %v3928 = vunpack.c.l.b16 %v922
    %v3929 = vunpack.c.h.b16 %v922
    %v3930 = vunpack.c.l.b16 %v923
    %v3931 = vunpack.c.h.b16 %v923
    %v3932 = vunpack.c.l.b16 %v924
    %v3933 = vunpack.c.h.b16 %v924
    %v3934 = vunpack.c.l.b16 %v925
    %v3935 = vunpack.c.h.b16 %v925
    %v3936 = vunpack.c.l.b16 %v926
    %v3937 = vunpack.c.h.b16 %v926
    %v3938 = vunpack.c.l.b16 %v927
    %v3939 = vunpack.c.h.b16 %v927
    %v3940 = vunpack.c.l.b16 %v928
    %v3941 = vunpack.c.h.b16 %v928
    %v3942 = vunpack.c.l.b16 %v929
    %v3943 = vunpack.c.h.b16 %v929
    %v3944 = vunpack.c.l.b16 %v930
    %v3945 = vunpack.c.h.b16 %v930
    %v3946 = vunpack.c.l.b16 %v931
    %v3947 = vunpack.c.h.b16 %v931
    %v3948 = vunpack.c.l.b16 %v932
    %v3949 = vunpack.c.h.b16 %v932
    %v3950 = vunpack.c.l.b16 %v933
    %v3951 = vunpack.c.h.b16 %v933
    %v3952 = vunpack.c.l.b16 %v934
    %v3953 = vunpack.c.h.b16 %v934
    %v3954 = vunpack.c.l.b16 %v935
    %v3955 = vunpack.c.h.b16 %v935
    %v3956 = vunpack.c.l.b16 %v936
    %v3957 = vunpack.c.h.b16 %v936
    %v3958 = vunpack.c.l.b16 %v937
    %v3959 = vunpack.c.h.b16 %v937
    %v3960 = vunpack.c.l.b16 %v938
    %v3961 = vunpack.c.h.b16 %v938
    %v3962 = vunpack.c.l.b16 %v939
    %v3963 = vunpack.c.h.b16 %v939
    %v3964 = vunpack.c.l.b16 %v940
    %v3965 = vunpack.c.h.b16 %v940
    %v3966 = vunpack.c.l.b16 %v941
    %v3967 = vunpack.c.h.b16 %v941
    %v3968 = vunpack.c.l.b16 %v942
    %v3969 = vunpack.c.h.b16 %v942
    %v3970 = vunpack.c.l.b16 %v943
    %v3971 = vunpack.c.h.b16 %v943
    %v3972 = vunpack.c.l.b16 %v944
    %v3973 = vunpack.c.h.b16 %v944
    %v3974 = vunpack.c.l.b16 %v945
    %v3975 = vunpack.c.h.b16 %v945
    %v3976 = vunpack.c.l.b16 %v946
    %v3977 = vunpack.c.h.b16 %v946
    %v3978 = vunpack.c.l.b16 %v947
    %v3979 = vunpack.c.h.b16 %v947
    %v3980 = vunpack.c.l.b16 %v948
    %v3981 = vunpack.c.h.b16 %v948
    %v3982 = vunpack.c.l.b16 %v949
    %v3983 = vunpack.c.h.b16 %v949
    %v3984 = vunpack.c.l.b16 %v950
    %v3985 = vunpack.c.h.b16 %v950
    %v3986 = vunpack.c.l.b16 %v951
    %v3987 = vunpack.c.h.b16 %v951
    %v3988 = vunpack.c.l.b16 %v952
    %v3989 = vunpack.c.h.b16 %v952
    %v3990 = vunpack.c.l.b16 %v953
    %v3991 = vunpack.c.h.b16 %v953
    %v3992 = vunpack.c.l.b16 %v954
    %v3993 = vunpack.c.h.b16 %v954
    %v3994 = vunpack.c.l.b16 %v955
    %v3995 = vunpack.c.h.b16 %v955
    %v3996 = vunpack.c.l.b16 %v956
    %v3997 = vunpack.c.h.b16 %v956
    %v3998 = vunpack.c.l.b16 %v957
    %v3999 = vunpack.c.h.b16 %v957
    %v4000 = vunpack.c.l.b16 %v958
    %v4001 = vunpack.c.h.b16 %v958
    %v4002 = vunpack.c.l.b16 %v959
    %v4003 = vunpack.c.h.b16 %v959
    %v4004 = vunpack.c.l.b16 %v960
    %v4005 = vunpack.c.h.b16 %v960
    %v4006 = vunpack.c.l.b16 %v961
    %v4007 = vunpack.c.h.b16 %v961
    %v4008 = vunpack.c.l.b16 %v962
    %v4009 = vunpack.c.h.b16 %v962
    %v4010 = vunpack.c.l.b16 %v963
    %v4011 = vunpack.c.h.b16 %v963
    %v4012 = vunpack.c.l.b16 %v964
    %v4013 = vunpack.c.h.b16 %v964
    %v4014 = vunpack.c.l.b16 %v965
    %v4015 = vunpack.c.h.b16 %v965
    %v4016 = vunpack.c.l.b16 %v966
    %v4017 = vunpack.c.h.b16 %v966
    %v4018 = vunpack.c.l.b16 %v967
    %v4019 = vunpack.c.h.b16 %v967
    %v4020 = vunpack.c.l.b16 %v968
    %v4021 = vunpack.c.h.b16 %v968
    %v4022 = vunpack.c.l.b16 %v969
    %v4023 = vunpack.c.h.b16 %v969
    %v4024 = vunpack.c.l.b16 %v970
    %v4025 = vunpack.c.h.b16 %v970
    %v4026 = vunpack.c.l.b16 %v971
    %v4027 = vunpack.c.h.b16 %v971
    %v4028 = vunpack.c.l.b16 %v972
    %v4029 = vunpack.c.h.b16 %v972
    %v4030 = vunpack.c.l.b16 %v973
    %v4031 = vunpack.c.h.b16 %v973
    %v4032 = vunpack.c.l.b16 %v974
    %v4033 = vunpack.c.h.b16 %v974
    %v4034 = vunpack.c.l.b16 %v975
    %v4035 = vunpack.c.h.b16 %v975
    %v4036 = vunpack.c.l.b16 %v976
    %v4037 = vunpack.c.h.b16 %v976
    %v4038 = vunpack.c.l.b16 %v977
    %v4039 = vunpack.c.h.b16 %v977
    %v4040 = vunpack.c.l.b16 %v978
    %v4041 = vunpack.c.h.b16 %v978
    %v4042 = vunpack.c.l.b16 %v979
    %v4043 = vunpack.c.h.b16 %v979
    %v4044 = vunpack.c.l.b16 %v980
    %v4045 = vunpack.c.h.b16 %v980
    %v4046 = vunpack.c.l.b16 %v981
    %v4047 = vunpack.c.h.b16 %v981
    %v4048 = vunpack.c.l.b16 %v982
    %v4049 = vunpack.c.h.b16 %v982
    %v4050 = vunpack.c.l.b16 %v983
    %v4051 = vunpack.c.h.b16 %v983
    %v4052 = vunpack.c.l.b16 %v984
    %v4053 = vunpack.c.h.b16 %v984
    %v4054 = vunpack.c.l.b16 %v985
    %v4055 = vunpack.c.h.b16 %v985
    %v4056 = vunpack.c.l.b16 %v986
    %v4057 = vunpack.c.h.b16 %v986
    %v4058 = vunpack.c.l.b16 %v987
    %v4059 = vunpack.c.h.b16 %v987
    %v4060 = vunpack.c.l.b16 %v988
    %v4061 = vunpack.c.h.b16 %v988
    %v4062 = vunpack.c.l.b16 %v989
    %v4063 = vunpack.c.h.b16 %v989
    %v4064 = vunpack.c.l.b16 %v990
    %v4065 = vunpack.c.h.b16 %v990
    %v4066 = vunpack.c.l.b16 %v991
    %v4067 = vunpack.c.h.b16 %v991
    %v4068 = vunpack.c.l.b16 %v992
    %v4069 = vunpack.c.h.b16 %v992
    %v4070 = vunpack.c.l.b16 %v993
    %v4071 = vunpack.c.h.b16 %v993
    %v4072 = vunpack.c.l.b16 %v994
    %v4073 = vunpack.c.h.b16 %v994
    %v4074 = vunpack.c.l.b16 %v995
    %v4075 = vunpack.c.h.b16 %v995
    %v4076 = vunpack.c.l.b16 %v996
    %v4077 = vunpack.c.h.b16 %v996
    %v4078 = vunpack.c.l.b16 %v997
    %v4079 = vunpack.c.h.b16 %v997
    %v4080 = vunpack.c.l.b16 %v998
    %v4081 = vunpack.c.h.b16 %v998
    %v4082 = vunpack.c.l.b16 %v999
    %v4083 = vunpack.c.h.b16 %v999
    %v4084 = vunpack.c.l.b16 %v1000
    %v4085 = vunpack.c.h.b16 %v1000
    %v4086 = vunpack.c.l.b16 %v1001
    %v4087 = vunpack.c.h.b16 %v1001
    %v4088 = vunpack.c.l.b16 %v1002
    %v4089 = vunpack.c.h.b16 %v1002
    %v4090 = vunpack.c.l.b16 %v1003
    %v4091 = vunpack.c.h.b16 %v1003
    %v4092 = vunpack.c.l.b16 %v1004
    %v4093 = vunpack.c.h.b16 %v1004
    %v4094 = vunpack.c.l.b16 %v1005
    %v4095 = vunpack.c.h.b16 %v1005
    %v4096 = vunpack.c.l.b16 %v1006
    %v4097 = vunpack.c.h.b16 %v1006
    %v4098 = vunpack.c.l.b16 %v1007
    %v4099 = vunpack.c.h.b16 %v1007
    %v4100 = vunpack.c.l.b16 %v1008
    %v4101 = vunpack.c.h.b16 %v1008
    %v4102 = vunpack.c.l.b16 %v1009
    %v4103 = vunpack.c.h.b16 %v1009
    %v4104 = vunpack.c.l.b16 %v1010
    %v4105 = vunpack.c.h.b16 %v1010
    %v4106 = vunpack.c.l.b16 %v1011
    %v4107 = vunpack.c.h.b16 %v1011
    %v4108 = vunpack.c.l.b16 %v1012
    %v4109 = vunpack.c.h.b16 %v1012
    %v4110 = vunpack.c.l.b16 %v1013
    %v4111 = vunpack.c.h.b16 %v1013
    %v4112 = vunpack.c.l.b16 %v1014
    %v4113 = vunpack.c.h.b16 %v1014
    %v4114 = vunpack.c.l.b16 %v1015
    %v4115 = vunpack.c.h.b16 %v1015
    %v4116 = vunpack.c.l.b16 %v1016
    %v4117 = vunpack.c.h.b16 %v1016
    %v4118 = vunpack.c.l.b16 %v1017
    %v4119 = vunpack.c.h.b16 %v1017
    %v4120 = vunpack.c.l.b16 %v1018
    %v4121 = vunpack.c.h.b16 %v1018
    %v4122 = vunpack.c.l.b16 %v1019
    %v4123 = vunpack.c.h.b16 %v1019
    %v4124 = vunpack.c.l.b16 %v1020
    %v4125 = vunpack.c.h.b16 %v1020
    %v4126 = vunpack.c.l.b16 %v1021
    %v4127 = vunpack.c.h.b16 %v1021
    %v4128 = vunpack.c.l.b16 %v1022
    %v4129 = vunpack.c.h.b16 %v1022
    %v4130 = vunpack.c.l.b16 %v1023
    %v4131 = vunpack.c.h.b16 %v1023
    %v4132 = vunpack.c.l.b16 %v1024
    %v4133 = vunpack.c.h.b16 %v1024
    %v4134 = vunpack.c.l.b16 %v1025
    %v4135 = vunpack.c.h.b16 %v1025
    %v4136 = vunpack.c.l.b16 %v1026
    %v4137 = vunpack.c.h.b16 %v1026
    %v4138 = vunpack.c.l.b16 %v1027
    %v4139 = vunpack.c.h.b16 %v1027
    %v4140 = vunpack.c.l.b16 %v1028
    %v4141 = vunpack.c.h.b16 %v1028
    %v4142 = vunpack.c.l.b16 %v1029
    %v4143 = vunpack.c.h.b16 %v1029
    %v4144 = vunpack.c.l.b16 %v1030
    %v4145 = vunpack.c.h.b16 %v1030
    %v4146 = vunpack.c.l.b16 %v1031
    %v4147 = vunpack.c.h.b16 %v1031
    %v4148 = vunpack.c.l.b16 %v1032
    %v4149 = vunpack.c.h.b16 %v1032
    %v4150 = vunpack.c.l.b16 %v1033
    %v4151 = vunpack.c.h.b16 %v1033
    %v4152 = vunpack.c.l.b16 %v1034
    %v4153 = vunpack.c.h.b16 %v1034
    %v4154 = vunpack.c.l.b16 %v1035
    %v4155 = vunpack.c.h.b16 %v1035
    %v4156 = vunpack.c.l.b16 %v1036
    %v4157 = vunpack.c.h.b16 %v1036
    %v4158 = vunpack.c.l.b16 %v1037
    %v4159 = vunpack.c.h.b16 %v1037
    %v4160 = vunpack.c.l.b16 %v1038
    %v4161 = vunpack.c.h.b16 %v1038
    %v4162 = vunpack.c.l.b16 %v1039
    %v4163 = vunpack.c.h.b16 %v1039
    %v4164 = vunpack.c.l.b16 %v1040
    %v4165 = vunpack.c.h.b16 %v1040
    %v4166 = vunpack.c.l.b16 %v1041
    %v4167 = vunpack.c.h.b16 %v1041
    %v4168 = vunpack.c.l.b16 %v1042
    %v4169 = vunpack.c.h.b16 %v1042
    %v4170 = vunpack.c.l.b16 %v1043
    %v4171 = vunpack.c.h.b16 %v1043
    %v4172 = vunpack.c.l.b16 %v1044
    %v4173 = vunpack.c.h.b16 %v1044
    %v4174 = vunpack.c.l.b16 %v1045
    %v4175 = vunpack.c.h.b16 %v1045
    %v4176 = vunpack.c.l.b16 %v1046
    %v4177 = vunpack.c.h.b16 %v1046
    %v4178 = vunpack.c.l.b16 %v1047
    %v4179 = vunpack.c.h.b16 %v1047
    %v4180 = vunpack.c.l.b16 %v1048
    %v4181 = vunpack.c.h.b16 %v1048
    %v4182 = vunpack.c.l.b16 %v1049
    %v4183 = vunpack.c.h.b16 %v1049
    %v4184 = vunpack.c.l.b16 %v1050
    %v4185 = vunpack.c.h.b16 %v1050
    %v4186 = vunpack.c.l.b16 %v1051
    %v4187 = vunpack.c.h.b16 %v1051
    %v4188 = vunpack.c.l.b16 %v1052
    %v4189 = vunpack.c.h.b16 %v1052
    %v4190 = vunpack.c.l.b16 %v1053
    %v4191 = vunpack.c.h.b16 %v1053
    %v4192 = vunpack.c.l.b16 %v1054
    %v4193 = vunpack.c.h.b16 %v1054
    %v4194 = vunpack.c.l.b16 %v1055
    %v4195 = vunpack.c.h.b16 %v1055
    %v4196 = vunpack.c.l.b16 %v1056
    %v4197 = vunpack.c.h.b16 %v1056
    %v4198 = vunpack.c.l.b16 %v1057
    %v4199 = vunpack.c.h.b16 %v1057
    %v4200 = vunpack.c.l.b16 %v1058
    %v4201 = vunpack.c.h.b16 %v1058
    %v4202 = vunpack.c.l.b16 %v1059
    %v4203 = vunpack.c.h.b16 %v1059
    %v4204 = vunpack.c.l.b16 %v1060
    %v4205 = vunpack.c.h.b16 %v1060
    %v4206 = vunpack.c.l.b16 %v1061
    %v4207 = vunpack.c.h.b16 %v1061
    %v4208 = vpack.c.b16 %v2168, %v2160
    %v4209 = vpack.c.b16 %v2169, %v2161
    %v4210 = vpack.c.b16 %v2170, %v2162
    %v4211 = vpack.c.b16 %v2171, %v2163
    %v4212 = vpack.c.b16 %v2172, %v2164
    %v4213 = vpack.c.b16 %v2173, %v2165
    %v4214 = vpack.c.b16 %v2174, %v2166
    %v4215 = vpack.c.b16 %v2175, %v2167
    %v4216 = vpack.c.b16 %v2184, %v2176
    %v4217 = vpack.c.b16 %v2185, %v2177
    %v4218 = vpack.c.b16 %v2186, %v2178
    %v4219 = vpack.c.b16 %v2187, %v2179
    %v4220 = vpack.c.b16 %v2188, %v2180
    %v4221 = vpack.c.b16 %v2189, %v2181
    %v4222 = vpack.c.b16 %v2190, %v2182
    %v4223 = vpack.c.b16 %v2191, %v2183
    %v4224 = vpack.c.b16 %v2200, %v2192
    %v4225 = vpack.c.b16 %v2201, %v2193
    %v4226 = vpack.c.b16 %v2202, %v2194
    %v4227 = vpack.c.b16 %v2203, %v2195
    %v4228 = vpack.c.b16 %v2204, %v2196
    %v4229 = vpack.c.b16 %v2205, %v2197
    %v4230 = vpack.c.b16 %v2206, %v2198
    %v4231 = vpack.c.b16 %v2207, %v2199
    %v4232 = vpack.c.b16 %v2216, %v2208
    %v4233 = vpack.c.b16 %v2217, %v2209
    %v4234 = vpack.c.b16 %v2218, %v2210
    %v4235 = vpack.c.b16 %v2219, %v2211
    %v4236 = vpack.c.b16 %v2220, %v2212
    %v4237 = vpack.c.b16 %v2221, %v2213
    %v4238 = vpack.c.b16 %v2222, %v2214
    %v4239 = vpack.c.b16 %v2223, %v2215
    %v4240 = vpack.c.b16 %v2232, %v2224
    %v4241 = vpack.c.b16 %v2233, %v2225
    %v4242 = vpack.c.b16 %v2234, %v2226
    %v4243 = vpack.c.b16 %v2235, %v2227
    %v4244 = vpack.c.b16 %v2236, %v2228
    %v4245 = vpack.c.b16 %v2237, %v2229
    %v4246 = vpack.c.b16 %v2238, %v2230
    %v4247 = vpack.c.b16 %v2239, %v2231
    %v4248 = vpack.c.b16 %v2248, %v2240
    %v4249 = vpack.c.b16 %v2249, %v2241
    %v4250 = vpack.c.b16 %v2250, %v2242
    %v4251 = vpack.c.b16 %v2251, %v2243
    %v4252 = vpack.c.b16 %v2252, %v2244
    %v4253 = vpack.c.b16 %v2253, %v2245
    %v4254 = vpack.c.b16 %v2254, %v2246
    %v4255 = vpack.c.b16 %v2255, %v2247
    %v4256 = vpack.c.b16 %v2264, %v2256
    %v4257 = vpack.c.b16 %v2265, %v2257
    %v4258 = vpack.c.b16 %v2266, %v2258
    %v4259 = vpack.c.b16 %v2267, %v2259
    %v4260 = vpack.c.b16 %v2268, %v2260
    %v4261 = vpack.c.b16 %v2269, %v2261
    %v4262 = vpack.c.b16 %v2270, %v2262
    %v4263 = vpack.c.b16 %v2271, %v2263
    %v4264 = vpack.c.b16 %v2280, %v2272
    %v4265 = vpack.c.b16 %v2281, %v2273
    %v4266 = vpack.c.b16 %v2282, %v2274
    %v4267 = vpack.c.b16 %v2283, %v2275
    %v4268 = vpack.c.b16 %v2284, %v2276
    %v4269 = vpack.c.b16 %v2285, %v2277
    %v4270 = vpack.c.b16 %v2286, %v2278
    %v4271 = vpack.c.b16 %v2287, %v2279
    %v4272 = vpack.c.b16 %v2296, %v2288
    %v4273 = vpack.c.b16 %v2297, %v2289
    %v4274 = vpack.c.b16 %v2298, %v2290
    %v4275 = vpack.c.b16 %v2299, %v2291
    %v4276 = vpack.c.b16 %v2300, %v2292
    %v4277 = vpack.c.b16 %v2301, %v2293
    %v4278 = vpack.c.b16 %v2302, %v2294
    %v4279 = vpack.c.b16 %v2303, %v2295
    %v4280 = vpack.c.b16 %v2312, %v2304
    %v4281 = vpack.c.b16 %v2313, %v2305
    %v4282 = vpack.c.b16 %v2314, %v2306
    %v4283 = vpack.c.b16 %v2315, %v2307
    %v4284 = vpack.c.b16 %v2316, %v2308
    %v4285 = vpack.c.b16 %v2317, %v2309
    %v4286 = vpack.c.b16 %v2318, %v2310
    %v4287 = vpack.c.b16 %v2319, %v2311
    %v4288 = vpack.c.b16 %v2328, %v2320
    %v4289 = vpack.c.b16 %v2329, %v2321
    %v4290 = vpack.c.b16 %v2330, %v2322
    %v4291 = vpack.c.b16 %v2331, %v2323
    %v4292 = vpack.c.b16 %v2332, %v2324
    %v4293 = vpack.c.b16 %v2333, %v2325
    %v4294 = vpack.c.b16 %v2334, %v2326
    %v4295 = vpack.c.b16 %v2335, %v2327
    %v4296 = vpack.c.b16 %v2344, %v2336
    %v4297 = vpack.c.b16 %v2345, %v2337
    %v4298 = vpack.c.b16 %v2346, %v2338
    %v4299 = vpack.c.b16 %v2347, %v2339
    %v4300 = vpack.c.b16 %v2348, %v2340
    %v4301 = vpack.c.b16 %v2349, %v2341
    %v4302 = vpack.c.b16 %v2350, %v2342
    %v4303 = vpack.c.b16 %v2351, %v2343
    %v4304 = vpack.c.b16 %v2360, %v2352
    %v4305 = vpack.c.b16 %v2361, %v2353
    %v4306 = vpack.c.b16 %v2362, %v2354
    %v4307 = vpack.c.b16 %v2363, %v2355
    %v4308 = vpack.c.b16 %v2364, %v2356
    %v4309 = vpack.c.b16 %v2365, %v2357
    %v4310 = vpack.c.b16 %v2366, %v2358
    %v4311 = vpack.c.b16 %v2367, %v2359
    %v4312 = vpack.c.b16 %v2376, %v2368
    %v4313 = vpack.c.b16 %v2377, %v2369
    %v4314 = vpack.c.b16 %v2378, %v2370
    %v4315 = vpack.c.b16 %v2379, %v2371
    %v4316 = vpack.c.b16 %v2380, %v2372
    %v4317 = vpack.c.b16 %v2381, %v2373
    %v4318 = vpack.c.b16 %v2382, %v2374
    %v4319 = vpack.c.b16 %v2383, %v2375
    %v4320 = vpack.c.b16 %v2392, %v2384
    %v4321 = vpack.c.b16 %v2393, %v2385
    %v4322 = vpack.c.b16 %v2394, %v2386
    %v4323 = vpack.c.b16 %v2395, %v2387
    %v4324 = vpack.c.b16 %v2396, %v2388
    %v4325 = vpack.c.b16 %v2397, %v2389
    %v4326 = vpack.c.b16 %v2398, %v2390
    %v4327 = vpack.c.b16 %v2399, %v2391
    %v4328 = vpack.c.b16 %v2408, %v2400
    %v4329 = vpack.c.b16 %v2409, %v2401
    %v4330 = vpack.c.b16 %v2410, %v2402
    %v4331 = vpack.c.b16 %v2411, %v2403
    %v4332 = vpack.c.b16 %v2412, %v2404
    %v4333 = vpack.c.b16 %v2413, %v2405
    %v4334 = vpack.c.b16 %v2414, %v2406
    %v4335 = vpack.c.b16 %v2415, %v2407
    %v4336 = vpack.c.b16 %v2424, %v2416
    %v4337 = vpack.c.b16 %v2425, %v2417
    %v4338 = vpack.c.b16 %v2426, %v2418
    %v4339 = vpack.c.b16 %v2427, %v2419
    %v4340 = vpack.c.b16 %v2428, %v2420
    %v4341 = vpack.c.b16 %v2429, %v2421
    %v4342 = vpack.c.b16 %v2430, %v2422
    %v4343 = vpack.c.b16 %v2431, %v2423
    %v4344 = vpack.c.b16 %v2440, %v2432
    %v4345 = vpack.c.b16 %v2441, %v2433
    %v4346 = vpack.c.b16 %v2442, %v2434
    %v4347 = vpack.c.b16 %v2443, %v2435
    %v4348 = vpack.c.b16 %v2444, %v2436
    %v4349 = vpack.c.b16 %v2445, %v2437
    %v4350 = vpack.c.b16 %v2446, %v2438
    %v4351 = vpack.c.b16 %v2447, %v2439
    %v4352 = vpack.c.b16 %v2456, %v2448
    %v4353 = vpack.c.b16 %v2457, %v2449
    %v4354 = vpack.c.b16 %v2458, %v2450
    %v4355 = vpack.c.b16 %v2459, %v2451
    %v4356 = vpack.c.b16 %v2460, %v2452
    %v4357 = vpack.c.b16 %v2461, %v2453
    %v4358 = vpack.c.b16 %v2462, %v2454
    %v4359 = vpack.c.b16 %v2463, %v2455
    %v4360 = vpack.c.b16 %v2472, %v2464
    %v4361 = vpack.c.b16 %v2473, %v2465
    %v4362 = vpack.c.b16 %v2474, %v2466
    %v4363 = vpack.c.b16 %v2475, %v2467
    %v4364 = vpack.c.b16 %v2476, %v2468
    %v4365 = vpack.c.b16 %v2477, %v2469
    %v4366 = vpack.c.b16 %v2478, %v2470
    %v4367 = vpack.c.b16 %v2479, %v2471
    %v4368 = vpack.c.b16 %v2488, %v2480
    %v4369 = vpack.c.b16 %v2489, %v2481
    %v4370 = vpack.c.b16 %v2490, %v2482
    %v4371 = vpack.c.b16 %v2491, %v2483
    %v4372 = vpack.c.b16 %v2492, %v2484
    %v4373 = vpack.c.b16 %v2493, %v2485
    %v4374 = vpack.c.b16 %v2494, %v2486
    %v4375 = vpack.c.b16 %v2495, %v2487
    %v4376 = vpack.c.b16 %v2504, %v2496
    %v4377 = vpack.c.b16 %v2505, %v2497
    %v4378 = vpack.c.b16 %v2506, %v2498
    %v4379 = vpack.c.b16 %v2507, %v2499
    %v4380 = vpack.c.b16 %v2508, %v2500
    %v4381 = vpack.c.b16 %v2509, %v2501
    %v4382 = vpack.c.b16 %v2510, %v2502
    %v4383 = vpack.c.b16 %v2511, %v2503
    %v4384 = vpack.c.b16 %v2520, %v2512
    %v4385 = vpack.c.b16 %v2521, %v2513
    %v4386 = vpack.c.b16 %v2522, %v2514
    %v4387 = vpack.c.b16 %v2523, %v2515
    %v4388 = vpack.c.b16 %v2524, %v2516
    %v4389 = vpack.c.b16 %v2525, %v2517
    %v4390 = vpack.c.b16 %v2526, %v2518
    %v4391 = vpack.c.b16 %v2527, %v2519
    %v4392 = vpack.c.b16 %v2536, %v2528
    %v4393 = vpack.c.b16 %v2537, %v2529
    %v4394 = vpack.c.b16 %v2538, %v2530
    %v4395 = vpack.c.b16 %v2539, %v2531
    %v4396 = vpack.c.b16 %v2540, %v2532
    %v4397 = vpack.c.b16 %v2541, %v2533
    %v4398 = vpack.c.b16 %v2542, %v2534
    %v4399 = vpack.c.b16 %v2543, %v2535
    %v4400 = vpack.c.b16 %v2552, %v2544
    %v4401 = vpack.c.b16 %v2553, %v2545
    %v4402 = vpack.c.b16 %v2554, %v2546
    %v4403 = vpack.c.b16 %v2555, %v2547
    %v4404 = vpack.c.b16 %v2556, %v2548
    %v4405 = vpack.c.b16 %v2557, %v2549
    %v4406 = vpack.c.b16 %v2558, %v2550
    %v4407 = vpack.c.b16 %v2559, %v2551
    %v4408 = vpack.c.b16 %v2568, %v2560
    %v4409 = vpack.c.b16 %v2569, %v2561
    %v4410 = vpack.c.b16 %v2570, %v2562
    %v4411 = vpack.c.b16 %v2571, %v2563
    %v4412 = vpack.c.b16 %v2572, %v2564
    %v4413 = vpack.c.b16 %v2573, %v2565
    %v4414 = vpack.c.b16 %v2574, %v2566
    %v4415 = vpack.c.b16 %v2575, %v2567
    %v4416 = vpack.c.b16 %v2584, %v2576
    %v4417 = vpack.c.b16 %v2585, %v2577
    %v4418 = vpack.c.b16 %v2586, %v2578
    %v4419 = vpack.c.b16 %v2587, %v2579
    %v4420 = vpack.c.b16 %v2588, %v2580
    %v4421 = vpack.c.b16 %v2589, %v2581
    %v4422 = vpack.c.b16 %v2590, %v2582
    %v4423 = vpack.c.b16 %v2591, %v2583
    %v4424 = vpack.c.b16 %v2600, %v2592
    %v4425 = vpack.c.b16 %v2601, %v2593
    %v4426 = vpack.c.b16 %v2602, %v2594
    %v4427 = vpack.c.b16 %v2603, %v2595
    %v4428 = vpack.c.b16 %v2604, %v2596
    %v4429 = vpack.c.b16 %v2605, %v2597
    %v4430 = vpack.c.b16 %v2606, %v2598
    %v4431 = vpack.c.b16 %v2607, %v2599
    %v4432 = vpack.c.b16 %v2616, %v2608
    %v4433 = vpack.c.b16 %v2617, %v2609
    %v4434 = vpack.c.b16 %v2618, %v2610
    %v4435 = vpack.c.b16 %v2619, %v2611
    %v4436 = vpack.c.b16 %v2620, %v2612
    %v4437 = vpack.c.b16 %v2621, %v2613
    %v4438 = vpack.c.b16 %v2622, %v2614
    %v4439 = vpack.c.b16 %v2623, %v2615
    %v4440 = vpack.c.b16 %v2632, %v2624
    %v4441 = vpack.c.b16 %v2633, %v2625
    %v4442 = vpack.c.b16 %v2634, %v2626
    %v4443 = vpack.c.b16 %v2635, %v2627
    %v4444 = vpack.c.b16 %v2636, %v2628
    %v4445 = vpack.c.b16 %v2637, %v2629
    %v4446 = vpack.c.b16 %v2638, %v2630
    %v4447 = vpack.c.b16 %v2639, %v2631
    %v4448 = vpack.c.b16 %v2648, %v2640
    %v4449 = vpack.c.b16 %v2649, %v2641
    %v4450 = vpack.c.b16 %v2650, %v2642
    %v4451 = vpack.c.b16 %v2651, %v2643
    %v4452 = vpack.c.b16 %v2652, %v2644
    %v4453 = vpack.c.b16 %v2653, %v2645
    %v4454 = vpack.c.b16 %v2654, %v2646
    %v4455 = vpack.c.b16 %v2655, %v2647
    %v4456 = vpack.c.b16 %v2664, %v2656
    %v4457 = vpack.c.b16 %v2665, %v2657
    %v4458 = vpack.c.b16 %v2666, %v2658
    %v4459 = vpack.c.b16 %v2667, %v2659
    %v4460 = vpack.c.b16 %v2668, %v2660
    %v4461 = vpack.c.b16 %v2669, %v2661
    %v4462 = vpack.c.b16 %v2670, %v2662
    %v4463 = vpack.c.b16 %v2671, %v2663
    %v4464 = vpack.c.b16 %v2680, %v2672
    %v4465 = vpack.c.b16 %v2681, %v2673
    %v4466 = vpack.c.b16 %v2682, %v2674
    %v4467 = vpack.c.b16 %v2683, %v2675
    %v4468 = vpack.c.b16 %v2684, %v2676
    %v4469 = vpack.c.b16 %v2685, %v2677
    %v4470 = vpack.c.b16 %v2686, %v2678
    %v4471 = vpack.c.b16 %v2687, %v2679
    %v4472 = vpack.c.b16 %v2696, %v2688
    %v4473 = vpack.c.b16 %v2697, %v2689
    %v4474 = vpack.c.b16 %v2698, %v2690
    %v4475 = vpack.c.b16 %v2699, %v2691
    %v4476 = vpack.c.b16 %v2700, %v2692
    %v4477 = vpack.c.b16 %v2701, %v2693
    %v4478 = vpack.c.b16 %v2702, %v2694
    %v4479 = vpack.c.b16 %v2703, %v2695
    %v4480 = vpack.c.b16 %v2712, %v2704
    %v4481 = vpack.c.b16 %v2713, %v2705
    %v4482 = vpack.c.b16 %v2714, %v2706
    %v4483 = vpack.c.b16 %v2715, %v2707
    %v4484 = vpack.c.b16 %v2716, %v2708
    %v4485 = vpack.c.b16 %v2717, %v2709
    %v4486 = vpack.c.b16 %v2718, %v2710
    %v4487 = vpack.c.b16 %v2719, %v2711
    %v4488 = vpack.c.b16 %v2728, %v2720
    %v4489 = vpack.c.b16 %v2729, %v2721
    %v4490 = vpack.c.b16 %v2730, %v2722
    %v4491 = vpack.c.b16 %v2731, %v2723
    %v4492 = vpack.c.b16 %v2732, %v2724
    %v4493 = vpack.c.b16 %v2733, %v2725
    %v4494 = vpack.c.b16 %v2734, %v2726
    %v4495 = vpack.c.b16 %v2735, %v2727
    %v4496 = vpack.c.b16 %v2744, %v2736
    %v4497 = vpack.c.b16 %v2745, %v2737
    %v4498 = vpack.c.b16 %v2746, %v2738
    %v4499 = vpack.c.b16 %v2747, %v2739
    %v4500 = vpack.c.b16 %v2748, %v2740
    %v4501 = vpack.c.b16 %v2749, %v2741
    %v4502 = vpack.c.b16 %v2750, %v2742
    %v4503 = vpack.c.b16 %v2751, %v2743
    %v4504 = vpack.c.b16 %v2760, %v2752
    %v4505 = vpack.c.b16 %v2761, %v2753
    %v4506 = vpack.c.b16 %v2762, %v2754
    %v4507 = vpack.c.b16 %v2763, %v2755
    %v4508 = vpack.c.b16 %v2764, %v2756
    %v4509 = vpack.c.b16 %v2765, %v2757
    %v4510 = vpack.c.b16 %v2766, %v2758
    %v4511 = vpack.c.b16 %v2767, %v2759
    %v4512 = vpack.c.b16 %v2776, %v2768
    %v4513 = vpack.c.b16 %v2777, %v2769
    %v4514 = vpack.c.b16 %v2778, %v2770
    %v4515 = vpack.c.b16 %v2779, %v2771
    %v4516 = vpack.c.b16 %v2780, %v2772
    %v4517 = vpack.c.b16 %v2781, %v2773
    %v4518 = vpack.c.b16 %v2782, %v2774
    %v4519 = vpack.c.b16 %v2783, %v2775
    %v4520 = vpack.c.b16 %v2792, %v2784
    %v4521 = vpack.c.b16 %v2793, %v2785
    %v4522 = vpack.c.b16 %v2794, %v2786
    %v4523 = vpack.c.b16 %v2795, %v2787
    %v4524 = vpack.c.b16 %v2796, %v2788
    %v4525 = vpack.c.b16 %v2797, %v2789
    %v4526 = vpack.c.b16 %v2798, %v2790
    %v4527 = vpack.c.b16 %v2799, %v2791
    %v4528 = vpack.c.b16 %v2808, %v2800
    %v4529 = vpack.c.b16 %v2809, %v2801
    %v4530 = vpack.c.b16 %v2810, %v2802
    %v4531 = vpack.c.b16 %v2811, %v2803
    %v4532 = vpack.c.b16 %v2812, %v2804
    %v4533 = vpack.c.b16 %v2813, %v2805
    %v4534 = vpack.c.b16 %v2814, %v2806
    %v4535 = vpack.c.b16 %v2815, %v2807
    %v4536 = vpack.c.b16 %v2824, %v2816
    %v4537 = vpack.c.b16 %v2825, %v2817
    %v4538 = vpack.c.b16 %v2826, %v2818
    %v4539 = vpack.c.b16 %v2827, %v2819
    %v4540 = vpack.c.b16 %v2828, %v2820
    %v4541 = vpack.c.b16 %v2829, %v2821
    %v4542 = vpack.c.b16 %v2830, %v2822
    %v4543 = vpack.c.b16 %v2831, %v2823
    %v4544 = vpack.c.b16 %v2840, %v2832
    %v4545 = vpack.c.b16 %v2841, %v2833
    %v4546 = vpack.c.b16 %v2842, %v2834
    %v4547 = vpack.c.b16 %v2843, %v2835
    %v4548 = vpack.c.b16 %v2844, %v2836
    %v4549 = vpack.c.b16 %v2845, %v2837
    %v4550 = vpack.c.b16 %v2846, %v2838
    %v4551 = vpack.c.b16 %v2847, %v2839
    %v4552 = vpack.c.b16 %v2856, %v2848
    %v4553 = vpack.c.b16 %v2857, %v2849
    %v4554 = vpack.c.b16 %v2858, %v2850
    %v4555 = vpack.c.b16 %v2859, %v2851
    %v4556 = vpack.c.b16 %v2860, %v2852
    %v4557 = vpack.c.b16 %v2861, %v2853
    %v4558 = vpack.c.b16 %v2862, %v2854
    %v4559 = vpack.c.b16 %v2863, %v2855
    %v4560 = vpack.c.b16 %v2872, %v2864
    %v4561 = vpack.c.b16 %v2873, %v2865
    %v4562 = vpack.c.b16 %v2874, %v2866
    %v4563 = vpack.c.b16 %v2875, %v2867
    %v4564 = vpack.c.b16 %v2876, %v2868
    %v4565 = vpack.c.b16 %v2877, %v2869
    %v4566 = vpack.c.b16 %v2878, %v2870
    %v4567 = vpack.c.b16 %v2879, %v2871
    %v4568 = vpack.c.b16 %v2888, %v2880
    %v4569 = vpack.c.b16 %v2889, %v2881
    %v4570 = vpack.c.b16 %v2890, %v2882
    %v4571 = vpack.c.b16 %v2891, %v2883
    %v4572 = vpack.c.b16 %v2892, %v2884
    %v4573 = vpack.c.b16 %v2893, %v2885
    %v4574 = vpack.c.b16 %v2894, %v2886
    %v4575 = vpack.c.b16 %v2895, %v2887
    %v4576 = vpack.c.b16 %v2904, %v2896
    %v4577 = vpack.c.b16 %v2905, %v2897
    %v4578 = vpack.c.b16 %v2906, %v2898
    %v4579 = vpack.c.b16 %v2907, %v2899
    %v4580 = vpack.c.b16 %v2908, %v2900
    %v4581 = vpack.c.b16 %v2909, %v2901
    %v4582 = vpack.c.b16 %v2910, %v2902
    %v4583 = vpack.c.b16 %v2911, %v2903
    %v4584 = vpack.c.b16 %v2920, %v2912
    %v4585 = vpack.c.b16 %v2921, %v2913
    %v4586 = vpack.c.b16 %v2922, %v2914
    %v4587 = vpack.c.b16 %v2923, %v2915
    %v4588 = vpack.c.b16 %v2924, %v2916
    %v4589 = vpack.c.b16 %v2925, %v2917
    %v4590 = vpack.c.b16 %v2926, %v2918
    %v4591 = vpack.c.b16 %v2927, %v2919
    %v4592 = vpack.c.b16 %v2936, %v2928
    %v4593 = vpack.c.b16 %v2937, %v2929
    %v4594 = vpack.c.b16 %v2938, %v2930
    %v4595 = vpack.c.b16 %v2939, %v2931
    %v4596 = vpack.c.b16 %v2940, %v2932
    %v4597 = vpack.c.b16 %v2941, %v2933
    %v4598 = vpack.c.b16 %v2942, %v2934
    %v4599 = vpack.c.b16 %v2943, %v2935
    %v4600 = vpack.c.b16 %v2952, %v2944
    %v4601 = vpack.c.b16 %v2953, %v2945
    %v4602 = vpack.c.b16 %v2954, %v2946
    %v4603 = vpack.c.b16 %v2955, %v2947
    %v4604 = vpack.c.b16 %v2956, %v2948
    %v4605 = vpack.c.b16 %v2957, %v2949
    %v4606 = vpack.c.b16 %v2958, %v2950
    %v4607 = vpack.c.b16 %v2959, %v2951
    %v4608 = vpack.c.b16 %v2968, %v2960
    %v4609 = vpack.c.b16 %v2969, %v2961
    %v4610 = vpack.c.b16 %v2970, %v2962
    %v4611 = vpack.c.b16 %v2971, %v2963
    %v4612 = vpack.c.b16 %v2972, %v2964
    %v4613 = vpack.c.b16 %v2973, %v2965
    %v4614 = vpack.c.b16 %v2974, %v2966
    %v4615 = vpack.c.b16 %v2975, %v2967
    %v4616 = vpack.c.b16 %v2984, %v2976
    %v4617 = vpack.c.b16 %v2985, %v2977
    %v4618 = vpack.c.b16 %v2986, %v2978
    %v4619 = vpack.c.b16 %v2987, %v2979
    %v4620 = vpack.c.b16 %v2988, %v2980
    %v4621 = vpack.c.b16 %v2989, %v2981
    %v4622 = vpack.c.b16 %v2990, %v2982
    %v4623 = vpack.c.b16 %v2991, %v2983
    %v4624 = vpack.c.b16 %v3000, %v2992
    %v4625 = vpack.c.b16 %v3001, %v2993
    %v4626 = vpack.c.b16 %v3002, %v2994
    %v4627 = vpack.c.b16 %v3003, %v2995
    %v4628 = vpack.c.b16 %v3004, %v2996
    %v4629 = vpack.c.b16 %v3005, %v2997
    %v4630 = vpack.c.b16 %v3006, %v2998
    %v4631 = vpack.c.b16 %v3007, %v2999
    %v4632 = vpack.c.b16 %v3016, %v3008
    %v4633 = vpack.c.b16 %v3017, %v3009
    %v4634 = vpack.c.b16 %v3018, %v3010
    %v4635 = vpack.c.b16 %v3019, %v3011
    %v4636 = vpack.c.b16 %v3020, %v3012
    %v4637 = vpack.c.b16 %v3021, %v3013
    %v4638 = vpack.c.b16 %v3022, %v3014
    %v4639 = vpack.c.b16 %v3023, %v3015
    %v4640 = vpack.c.b16 %v3032, %v3024
    %v4641 = vpack.c.b16 %v3033, %v3025
    %v4642 = vpack.c.b16 %v3034, %v3026
    %v4643 = vpack.c.b16 %v3035, %v3027
    %v4644 = vpack.c.b16 %v3036, %v3028
    %v4645 = vpack.c.b16 %v3037, %v3029
    %v4646 = vpack.c.b16 %v3038, %v3030
    %v4647 = vpack.c.b16 %v3039, %v3031
    %v4648 = vpack.c.b16 %v3048, %v3040
    %v4649 = vpack.c.b16 %v3049, %v3041
    %v4650 = vpack.c.b16 %v3050, %v3042
    %v4651 = vpack.c.b16 %v3051, %v3043
    %v4652 = vpack.c.b16 %v3052, %v3044
    %v4653 = vpack.c.b16 %v3053, %v3045
    %v4654 = vpack.c.b16 %v3054, %v3046
    %v4655 = vpack.c.b16 %v3055, %v3047
    %v4656 = vpack.c.b16 %v3064, %v3056
    %v4657 = vpack.c.b16 %v3065, %v3057
    %v4658 = vpack.c.b16 %v3066, %v3058
    %v4659 = vpack.c.b16 %v3067, %v3059
    %v4660 = vpack.c.b16 %v3068, %v3060
    %v4661 = vpack.c.b16 %v3069, %v3061
    %v4662 = vpack.c.b16 %v3070, %v3062
    %v4663 = vpack.c.b16 %v3071, %v3063
    %v4664 = vpack.c.b16 %v3080, %v3072
    %v4665 = vpack.c.b16 %v3081, %v3073
    %v4666 = vpack.c.b16 %v3082, %v3074
    %v4667 = vpack.c.b16 %v3083, %v3075
    %v4668 = vpack.c.b16 %v3084, %v3076
    %v4669 = vpack.c.b16 %v3085, %v3077
    %v4670 = vpack.c.b16 %v3086, %v3078
    %v4671 = vpack.c.b16 %v3087, %v3079
    %v4672 = vpack.c.b16 %v3096, %v3088
    %v4673 = vpack.c.b16 %v3097, %v3089
    %v4674 = vpack.c.b16 %v3098, %v3090
    %v4675 = vpack.c.b16 %v3099, %v3091
    %v4676 = vpack.c.b16 %v3100, %v3092
    %v4677 = vpack.c.b16 %v3101, %v3093
    %v4678 = vpack.c.b16 %v3102, %v3094
    %v4679 = vpack.c.b16 %v3103, %v3095
    %v4680 = vpack.c.b16 %v3112, %v3104
    %v4681 = vpack.c.b16 %v3113, %v3105
    %v4682 = vpack.c.b16 %v3114, %v3106
    %v4683 = vpack.c.b16 %v3115, %v3107
    %v4684 = vpack.c.b16 %v3116, %v3108
    %v4685 = vpack.c.b16 %v3117, %v3109
    %v4686 = vpack.c.b16 %v3118, %v3110
    %v4687 = vpack.c.b16 %v3119, %v3111
    %v4688 = vpack.c.b16 %v3128, %v3120
    %v4689 = vpack.c.b16 %v3129, %v3121
    %v4690 = vpack.c.b16 %v3130, %v3122
    %v4691 = vpack.c.b16 %v3131, %v3123
    %v4692 = vpack.c.b16 %v3132, %v3124
    %v4693 = vpack.c.b16 %v3133, %v3125
    %v4694 = vpack.c.b16 %v3134, %v3126
    %v4695 = vpack.c.b16 %v3135, %v3127
    %v4696 = vpack.c.b16 %v3144, %v3136
    %v4697 = vpack.c.b16 %v3145, %v3137
    %v4698 = vpack.c.b16 %v3146, %v3138
    %v4699 = vpack.c.b16 %v3147, %v3139
    %v4700 = vpack.c.b16 %v3148, %v3140
    %v4701 = vpack.c.b16 %v3149, %v3141
    %v4702 = vpack.c.b16 %v3150, %v3142
    %v4703 = vpack.c.b16 %v3151, %v3143
    %v4704 = vpack.c.b16 %v3160, %v3152
    %v4705 = vpack.c.b16 %v3161, %v3153
    %v4706 = vpack.c.b16 %v3162, %v3154
    %v4707 = vpack.c.b16 %v3163, %v3155
    %v4708 = vpack.c.b16 %v3164, %v3156
    %v4709 = vpack.c.b16 %v3165, %v3157
    %v4710 = vpack.c.b16 %v3166, %v3158
    %v4711 = vpack.c.b16 %v3167, %v3159
    %v4712 = vpack.c.b16 %v3176, %v3168
    %v4713 = vpack.c.b16 %v3177, %v3169
    %v4714 = vpack.c.b16 %v3178, %v3170
    %v4715 = vpack.c.b16 %v3179, %v3171
    %v4716 = vpack.c.b16 %v3180, %v3172
    %v4717 = vpack.c.b16 %v3181, %v3173
    %v4718 = vpack.c.b16 %v3182, %v3174
    %v4719 = vpack.c.b16 %v3183, %v3175
    %v4720 = vpack.c.b16 %v3192, %v3184
    %v4721 = vpack.c.b16 %v3193, %v3185
    %v4722 = vpack.c.b16 %v3194, %v3186
    %v4723 = vpack.c.b16 %v3195, %v3187
    %v4724 = vpack.c.b16 %v3196, %v3188
    %v4725 = vpack.c.b16 %v3197, %v3189
    %v4726 = vpack.c.b16 %v3198, %v3190
    %v4727 = vpack.c.b16 %v3199, %v3191
    %v4728 = vpack.c.b16 %v3208, %v3200
    %v4729 = vpack.c.b16 %v3209, %v3201
    %v4730 = vpack.c.b16 %v3210, %v3202
    %v4731 = vpack.c.b16 %v3211, %v3203
    %v4732 = vpack.c.b16 %v3212, %v3204
    %v4733 = vpack.c.b16 %v3213, %v3205
    %v4734 = vpack.c.b16 %v3214, %v3206
    %v4735 = vpack.c.b16 %v3215, %v3207
    %v4736 = vpack.c.b16 %v3224, %v3216
    %v4737 = vpack.c.b16 %v3225, %v3217
    %v4738 = vpack.c.b16 %v3226, %v3218
    %v4739 = vpack.c.b16 %v3227, %v3219
    %v4740 = vpack.c.b16 %v3228, %v3220
    %v4741 = vpack.c.b16 %v3229, %v3221
    %v4742 = vpack.c.b16 %v3230, %v3222
    %v4743 = vpack.c.b16 %v3231, %v3223
    %v4744 = vpack.c.b16 %v3240, %v3232
    %v4745 = vpack.c.b16 %v3241, %v3233
    %v4746 = vpack.c.b16 %v3242, %v3234
    %v4747 = vpack.c.b16 %v3243, %v3235
    %v4748 = vpack.c.b16 %v3244, %v3236
    %v4749 = vpack.c.b16 %v3245, %v3237
    %v4750 = vpack.c.b16 %v3246, %v3238
    %v4751 = vpack.c.b16 %v3247, %v3239
    %v4752 = vpack.c.b16 %v3256, %v3248
    %v4753 = vpack.c.b16 %v3257, %v3249
    %v4754 = vpack.c.b16 %v3258, %v3250
    %v4755 = vpack.c.b16 %v3259, %v3251
    %v4756 = vpack.c.b16 %v3260, %v3252
    %v4757 = vpack.c.b16 %v3261, %v3253
    %v4758 = vpack.c.b16 %v3262, %v3254
    %v4759 = vpack.c.b16 %v3263, %v3255
    %v4760 = vpack.c.b16 %v3272, %v3264
    %v4761 = vpack.c.b16 %v3273, %v3265
    %v4762 = vpack.c.b16 %v3274, %v3266
    %v4763 = vpack.c.b16 %v3275, %v3267
    %v4764 = vpack.c.b16 %v3276, %v3268
    %v4765 = vpack.c.b16 %v3277, %v3269
    %v4766 = vpack.c.b16 %v3278, %v3270
    %v4767 = vpack.c.b16 %v3279, %v3271
    %v4768 = vpack.c.b16 %v3288, %v3280
    %v4769 = vpack.c.b16 %v3289, %v3281
    %v4770 = vpack.c.b16 %v3290, %v3282
    %v4771 = vpack.c.b16 %v3291, %v3283
    %v4772 = vpack.c.b16 %v3292, %v3284
    %v4773 = vpack.c.b16 %v3293, %v3285
    %v4774 = vpack.c.b16 %v3294, %v3286
    %v4775 = vpack.c.b16 %v3295, %v3287
    %v4776 = vpack.c.b16 %v3304, %v3296
    %v4777 = vpack.c.b16 %v3305, %v3297
    %v4778 = vpack.c.b16 %v3306, %v3298
    %v4779 = vpack.c.b16 %v3307, %v3299
    %v4780 = vpack.c.b16 %v3308, %v3300
    %v4781 = vpack.c.b16 %v3309, %v3301
    %v4782 = vpack.c.b16 %v3310, %v3302
    %v4783 = vpack.c.b16 %v3311, %v3303
    %v4784 = vpack.c.b16 %v3320, %v3312
    %v4785 = vpack.c.b16 %v3321, %v3313
    %v4786 = vpack.c.b16 %v3322, %v3314
    %v4787 = vpack.c.b16 %v3323, %v3315
    %v4788 = vpack.c.b16 %v3324, %v3316
    %v4789 = vpack.c.b16 %v3325, %v3317
    %v4790 = vpack.c.b16 %v3326, %v3318
    %v4791 = vpack.c.b16 %v3327, %v3319
    %v4792 = vpack.c.b16 %v3336, %v3328
    %v4793 = vpack.c.b16 %v3337, %v3329
    %v4794 = vpack.c.b16 %v3338, %v3330
    %v4795 = vpack.c.b16 %v3339, %v3331
    %v4796 = vpack.c.b16 %v3340, %v3332
    %v4797 = vpack.c.b16 %v3341, %v3333
    %v4798 = vpack.c.b16 %v3342, %v3334
    %v4799 = vpack.c.b16 %v3343, %v3335
    %v4800 = vpack.c.b16 %v3352, %v3344
    %v4801 = vpack.c.b16 %v3353, %v3345
    %v4802 = vpack.c.b16 %v3354, %v3346
    %v4803 = vpack.c.b16 %v3355, %v3347
    %v4804 = vpack.c.b16 %v3356, %v3348
    %v4805 = vpack.c.b16 %v3357, %v3349
    %v4806 = vpack.c.b16 %v3358, %v3350
    %v4807 = vpack.c.b16 %v3359, %v3351
    %v4808 = vpack.c.b16 %v3368, %v3360
    %v4809 = vpack.c.b16 %v3369, %v3361
    %v4810 = vpack.c.b16 %v3370, %v3362
    %v4811 = vpack.c.b16 %v3371, %v3363
    %v4812 = vpack.c.b16 %v3372, %v3364
    %v4813 = vpack.c.b16 %v3373, %v3365
    %v4814 = vpack.c.b16 %v3374, %v3366
    %v4815 = vpack.c.b16 %v3375, %v3367
    %v4816 = vpack.c.b16 %v3384, %v3376
    %v4817 = vpack.c.b16 %v3385, %v3377
    %v4818 = vpack.c.b16 %v3386, %v3378
    %v4819 = vpack.c.b16 %v3387, %v3379
    %v4820 = vpack.c.b16 %v3388, %v3380
    %v4821 = vpack.c.b16 %v3389, %v3381
    %v4822 = vpack.c.b16 %v3390, %v3382
    %v4823 = vpack.c.b16 %v3391, %v3383
    %v4824 = vpack.c.b16 %v3400, %v3392
    %v4825 = vpack.c.b16 %v3401, %v3393
    %v4826 = vpack.c.b16 %v3402, %v3394
    %v4827 = vpack.c.b16 %v3403, %v3395
    %v4828 = vpack.c.b16 %v3404, %v3396
    %v4829 = vpack.c.b16 %v3405, %v3397
    %v4830 = vpack.c.b16 %v3406, %v3398
    %v4831 = vpack.c.b16 %v3407, %v3399
    %v4832 = vpack.c.b16 %v3416, %v3408
    %v4833 = vpack.c.b16 %v3417, %v3409
    %v4834 = vpack.c.b16 %v3418, %v3410
    %v4835 = vpack.c.b16 %v3419, %v3411
    %v4836 = vpack.c.b16 %v3420, %v3412
    %v4837 = vpack.c.b16 %v3421, %v3413
    %v4838 = vpack.c.b16 %v3422, %v3414
    %v4839 = vpack.c.b16 %v3423, %v3415
    %v4840 = vpack.c.b16 %v3432, %v3424
    %v4841 = vpack.c.b16 %v3433, %v3425
    %v4842 = vpack.c.b16 %v3434, %v3426
    %v4843 = vpack.c.b16 %v3435, %v3427
    %v4844 = vpack.c.b16 %v3436, %v3428
    %v4845 = vpack.c.b16 %v3437, %v3429
    %v4846 = vpack.c.b16 %v3438, %v3430
    %v4847 = vpack.c.b16 %v3439, %v3431
    %v4848 = vpack.c.b16 %v3448, %v3440
    %v4849 = vpack.c.b16 %v3449, %v3441
    %v4850 = vpack.c.b16 %v3450, %v3442
    %v4851 = vpack.c.b16 %v3451, %v3443
    %v4852 = vpack.c.b16 %v3452, %v3444
    %v4853 = vpack.c.b16 %v3453, %v3445
    %v4854 = vpack.c.b16 %v3454, %v3446
    %v4855 = vpack.c.b16 %v3455, %v3447
    %v4856 = vpack.c.b16 %v3464, %v3456
    %v4857 = vpack.c.b16 %v3465, %v3457
    %v4858 = vpack.c.b16 %v3466, %v3458
    %v4859 = vpack.c.b16 %v3467, %v3459
    %v4860 = vpack.c.b16 %v3468, %v3460
    %v4861 = vpack.c.b16 %v3469, %v3461
    %v4862 = vpack.c.b16 %v3470, %v3462
    %v4863 = vpack.c.b16 %v3471, %v3463
    %v4864 = vpack.c.b16 %v3480, %v3472
    %v4865 = vpack.c.b16 %v3481, %v3473
    %v4866 = vpack.c.b16 %v3482, %v3474
    %v4867 = vpack.c.b16 %v3483, %v3475
    %v4868 = vpack.c.b16 %v3484, %v3476
    %v4869 = vpack.c.b16 %v3485, %v3477
    %v4870 = vpack.c.b16 %v3486, %v3478
    %v4871 = vpack.c.b16 %v3487, %v3479
    %v4872 = vpack.c.b16 %v3496, %v3488
    %v4873 = vpack.c.b16 %v3497, %v3489
    %v4874 = vpack.c.b16 %v3498, %v3490
    %v4875 = vpack.c.b16 %v3499, %v3491
    %v4876 = vpack.c.b16 %v3500, %v3492
    %v4877 = vpack.c.b16 %v3501, %v3493
    %v4878 = vpack.c.b16 %v3502, %v3494
    %v4879 = vpack.c.b16 %v3503, %v3495
    %v4880 = vpack.c.b16 %v3512, %v3504
    %v4881 = vpack.c.b16 %v3513, %v3505
    %v4882 = vpack.c.b16 %v3514, %v3506
    %v4883 = vpack.c.b16 %v3515, %v3507
    %v4884 = vpack.c.b16 %v3516, %v3508
    %v4885 = vpack.c.b16 %v3517, %v3509
    %v4886 = vpack.c.b16 %v3518, %v3510
    %v4887 = vpack.c.b16 %v3519, %v3511
    %v4888 = vpack.c.b16 %v3528, %v3520
    %v4889 = vpack.c.b16 %v3529, %v3521
    %v4890 = vpack.c.b16 %v3530, %v3522
    %v4891 = vpack.c.b16 %v3531, %v3523
    %v4892 = vpack.c.b16 %v3532, %v3524
    %v4893 = vpack.c.b16 %v3533, %v3525
    %v4894 = vpack.c.b16 %v3534, %v3526
    %v4895 = vpack.c.b16 %v3535, %v3527
    %v4896 = vpack.c.b16 %v3544, %v3536
    %v4897 = vpack.c.b16 %v3545, %v3537
    %v4898 = vpack.c.b16 %v3546, %v3538
    %v4899 = vpack.c.b16 %v3547, %v3539
    %v4900 = vpack.c.b16 %v3548, %v3540
    %v4901 = vpack.c.b16 %v3549, %v3541
    %v4902 = vpack.c.b16 %v3550, %v3542
    %v4903 = vpack.c.b16 %v3551, %v3543
    %v4904 = vpack.c.b16 %v3560, %v3552
    %v4905 = vpack.c.b16 %v3561, %v3553
    %v4906 = vpack.c.b16 %v3562, %v3554
    %v4907 = vpack.c.b16 %v3563, %v3555
    %v4908 = vpack.c.b16 %v3564, %v3556
    %v4909 = vpack.c.b16 %v3565, %v3557
    %v4910 = vpack.c.b16 %v3566, %v3558
    %v4911 = vpack.c.b16 %v3567, %v3559
    %v4912 = vpack.c.b16 %v3576, %v3568
    %v4913 = vpack.c.b16 %v3577, %v3569
    %v4914 = vpack.c.b16 %v3578, %v3570
    %v4915 = vpack.c.b16 %v3579, %v3571
    %v4916 = vpack.c.b16 %v3580, %v3572
    %v4917 = vpack.c.b16 %v3581, %v3573
    %v4918 = vpack.c.b16 %v3582, %v3574
    %v4919 = vpack.c.b16 %v3583, %v3575
    %v4920 = vpack.c.b16 %v3592, %v3584
    %v4921 = vpack.c.b16 %v3593, %v3585
    %v4922 = vpack.c.b16 %v3594, %v3586
    %v4923 = vpack.c.b16 %v3595, %v3587
    %v4924 = vpack.c.b16 %v3596, %v3588
    %v4925 = vpack.c.b16 %v3597, %v3589
    %v4926 = vpack.c.b16 %v3598, %v3590
    %v4927 = vpack.c.b16 %v3599, %v3591
    %v4928 = vpack.c.b16 %v3608, %v3600
    %v4929 = vpack.c.b16 %v3609, %v3601
    %v4930 = vpack.c.b16 %v3610, %v3602
    %v4931 = vpack.c.b16 %v3611, %v3603
    %v4932 = vpack.c.b16 %v3612, %v3604
    %v4933 = vpack.c.b16 %v3613, %v3605
    %v4934 = vpack.c.b16 %v3614, %v3606
    %v4935 = vpack.c.b16 %v3615, %v3607
    %v4936 = vpack.c.b16 %v3624, %v3616
    %v4937 = vpack.c.b16 %v3625, %v3617
    %v4938 = vpack.c.b16 %v3626, %v3618
    %v4939 = vpack.c.b16 %v3627, %v3619
    %v4940 = vpack.c.b16 %v3628, %v3620
    %v4941 = vpack.c.b16 %v3629, %v3621
    %v4942 = vpack.c.b16 %v3630, %v3622
    %v4943 = vpack.c.b16 %v3631, %v3623
    %v4944 = vpack.c.b16 %v3640, %v3632
    %v4945 = vpack.c.b16 %v3641, %v3633
    %v4946 = vpack.c.b16 %v3642, %v3634
    %v4947 = vpack.c.b16 %v3643, %v3635
    %v4948 = vpack.c.b16 %v3644, %v3636
    %v4949 = vpack.c.b16 %v3645, %v3637
    %v4950 = vpack.c.b16 %v3646, %v3638
    %v4951 = vpack.c.b16 %v3647, %v3639
    %v4952 = vpack.c.b16 %v3656, %v3648
    %v4953 = vpack.c.b16 %v3657, %v3649
    %v4954 = vpack.c.b16 %v3658, %v3650
    %v4955 = vpack.c.b16 %v3659, %v3651
    %v4956 = vpack.c.b16 %v3660, %v3652
    %v4957 = vpack.c.b16 %v3661, %v3653
    %v4958 = vpack.c.b16 %v3662, %v3654
    %v4959 = vpack.c.b16 %v3663, %v3655
    %v4960 = vpack.c.b16 %v3672, %v3664
    %v4961 = vpack.c.b16 %v3673, %v3665
    %v4962 = vpack.c.b16 %v3674, %v3666
    %v4963 = vpack.c.b16 %v3675, %v3667
    %v4964 = vpack.c.b16 %v3676, %v3668
    %v4965 = vpack.c.b16 %v3677, %v3669
    %v4966 = vpack.c.b16 %v3678, %v3670
    %v4967 = vpack.c.b16 %v3679, %v3671
    %v4968 = vpack.c.b16 %v3688, %v3680
    %v4969 = vpack.c.b16 %v3689, %v3681
    %v4970 = vpack.c.b16 %v3690, %v3682
    %v4971 = vpack.c.b16 %v3691, %v3683
    %v4972 = vpack.c.b16 %v3692, %v3684
    %v4973 = vpack.c.b16 %v3693, %v3685
    %v4974 = vpack.c.b16 %v3694, %v3686
    %v4975 = vpack.c.b16 %v3695, %v3687
    %v4976 = vpack.c.b16 %v3704, %v3696
    %v4977 = vpack.c.b16 %v3705, %v3697
    %v4978 = vpack.c.b16 %v3706, %v3698
    %v4979 = vpack.c.b16 %v3707, %v3699
    %v4980 = vpack.c.b16 %v3708, %v3700
    %v4981 = vpack.c.b16 %v3709, %v3701
    %v4982 = vpack.c.b16 %v3710, %v3702
    %v4983 = vpack.c.b16 %v3711, %v3703
    %v4984 = vpack.c.b16 %v3720, %v3712
    %v4985 = vpack.c.b16 %v3721, %v3713
    %v4986 = vpack.c.b16 %v3722, %v3714
    %v4987 = vpack.c.b16 %v3723, %v3715
    %v4988 = vpack.c.b16 %v3724, %v3716
    %v4989 = vpack.c.b16 %v3725, %v3717
    %v4990 = vpack.c.b16 %v3726, %v3718
    %v4991 = vpack.c.b16 %v3727, %v3719
    %v4992 = vpack.c.b16 %v3736, %v3728
    %v4993 = vpack.c.b16 %v3737, %v3729
    %v4994 = vpack.c.b16 %v3738, %v3730
    %v4995 = vpack.c.b16 %v3739, %v3731
    %v4996 = vpack.c.b16 %v3740, %v3732
    %v4997 = vpack.c.b16 %v3741, %v3733
    %v4998 = vpack.c.b16 %v3742, %v3734
    %v4999 = vpack.c.b16 %v3743, %v3735
    %v5000 = vpack.c.b16 %v3752, %v3744
    %v5001 = vpack.c.b16 %v3753, %v3745
    %v5002 = vpack.c.b16 %v3754, %v3746
    %v5003 = vpack.c.b16 %v3755, %v3747
    %v5004 = vpack.c.b16 %v3756, %v3748
    %v5005 = vpack.c.b16 %v3757, %v3749
    %v5006 = vpack.c.b16 %v3758, %v3750
    %v5007 = vpack.c.b16 %v3759, %v3751
    %v5008 = vpack.c.b16 %v3768, %v3760
    %v5009 = vpack.c.b16 %v3769, %v3761
    %v5010 = vpack.c.b16 %v3770, %v3762
    %v5011 = vpack.c.b16 %v3771, %v3763
    %v5012 = vpack.c.b16 %v3772, %v3764
    %v5013 = vpack.c.b16 %v3773, %v3765
    %v5014 = vpack.c.b16 %v3774, %v3766
    %v5015 = vpack.c.b16 %v3775, %v3767
    %v5016 = vpack.c.b16 %v3784, %v3776
    %v5017 = vpack.c.b16 %v3785, %v3777
    %v5018 = vpack.c.b16 %v3786, %v3778
    %v5019 = vpack.c.b16 %v3787, %v3779
    %v5020 = vpack.c.b16 %v3788, %v3780
    %v5021 = vpack.c.b16 %v3789, %v3781
    %v5022 = vpack.c.b16 %v3790, %v3782
    %v5023 = vpack.c.b16 %v3791, %v3783
    %v5024 = vpack.c.b16 %v3800, %v3792
    %v5025 = vpack.c.b16 %v3801, %v3793
    %v5026 = vpack.c.b16 %v3802, %v3794
    %v5027 = vpack.c.b16 %v3803, %v3795
    %v5028 = vpack.c.b16 %v3804, %v3796
    %v5029 = vpack.c.b16 %v3805, %v3797
    %v5030 = vpack.c.b16 %v3806, %v3798
    %v5031 = vpack.c.b16 %v3807, %v3799
    %v5032 = vpack.c.b16 %v3816, %v3808
    %v5033 = vpack.c.b16 %v3817, %v3809
    %v5034 = vpack.c.b16 %v3818, %v3810
    %v5035 = vpack.c.b16 %v3819, %v3811
    %v5036 = vpack.c.b16 %v3820, %v3812
    %v5037 = vpack.c.b16 %v3821, %v3813
    %v5038 = vpack.c.b16 %v3822, %v3814
    %v5039 = vpack.c.b16 %v3823, %v3815
    %v5040 = vpack.c.b16 %v3832, %v3824
    %v5041 = vpack.c.b16 %v3833, %v3825
    %v5042 = vpack.c.b16 %v3834, %v3826
    %v5043 = vpack.c.b16 %v3835, %v3827
    %v5044 = vpack.c.b16 %v3836, %v3828
    %v5045 = vpack.c.b16 %v3837, %v3829
    %v5046 = vpack.c.b16 %v3838, %v3830
    %v5047 = vpack.c.b16 %v3839, %v3831
    %v5048 = vpack.c.b16 %v3848, %v3840
    %v5049 = vpack.c.b16 %v3849, %v3841
    %v5050 = vpack.c.b16 %v3850, %v3842
    %v5051 = vpack.c.b16 %v3851, %v3843
    %v5052 = vpack.c.b16 %v3852, %v3844
    %v5053 = vpack.c.b16 %v3853, %v3845
    %v5054 = vpack.c.b16 %v3854, %v3846
    %v5055 = vpack.c.b16 %v3855, %v3847
    %v5056 = vpack.c.b16 %v3864, %v3856
    %v5057 = vpack.c.b16 %v3865, %v3857
    %v5058 = vpack.c.b16 %v3866, %v3858
    %v5059 = vpack.c.b16 %v3867, %v3859
    %v5060 = vpack.c.b16 %v3868, %v3860
    %v5061 = vpack.c.b16 %v3869, %v3861
    %v5062 = vpack.c.b16 %v3870, %v3862
    %v5063 = vpack.c.b16 %v3871, %v3863
    %v5064 = vpack.c.b16 %v3880, %v3872
    %v5065 = vpack.c.b16 %v3881, %v3873
    %v5066 = vpack.c.b16 %v3882, %v3874
    %v5067 = vpack.c.b16 %v3883, %v3875
    %v5068 = vpack.c.b16 %v3884, %v3876
    %v5069 = vpack.c.b16 %v3885, %v3877
    %v5070 = vpack.c.b16 %v3886, %v3878
    %v5071 = vpack.c.b16 %v3887, %v3879
    %v5072 = vpack.c.b16 %v3896, %v3888
    %v5073 = vpack.c.b16 %v3897, %v3889
    %v5074 = vpack.c.b16 %v3898, %v3890
    %v5075 = vpack.c.b16 %v3899, %v3891
    %v5076 = vpack.c.b16 %v3900, %v3892
    %v5077 = vpack.c.b16 %v3901, %v3893
    %v5078 = vpack.c.b16 %v3902, %v3894
    %v5079 = vpack.c.b16 %v3903, %v3895
    %v5080 = vpack.c.b16 %v3912, %v3904
    %v5081 = vpack.c.b16 %v3913, %v3905
    %v5082 = vpack.c.b16 %v3914, %v3906
    %v5083 = vpack.c.b16 %v3915, %v3907
    %v5084 = vpack.c.b16 %v3916, %v3908
    %v5085 = vpack.c.b16 %v3917, %v3909
    %v5086 = vpack.c.b16 %v3918, %v3910
    %v5087 = vpack.c.b16 %v3919, %v3911
    %v5088 = vpack.c.b16 %v3928, %v3920
    %v5089 = vpack.c.b16 %v3929, %v3921
    %v5090 = vpack.c.b16 %v3930, %v3922
    %v5091 = vpack.c.b16 %v3931, %v3923
    %v5092 = vpack.c.b16 %v3932, %v3924
    %v5093 = vpack.c.b16 %v3933, %v3925
    %v5094 = vpack.c.b16 %v3934, %v3926
    %v5095 = vpack.c.b16 %v3935, %v3927
    %v5096 = vpack.c.b16 %v3944, %v3936
    %v5097 = vpack.c.b16 %v3945, %v3937
    %v5098 = vpack.c.b16 %v3946, %v3938
    %v5099 = vpack.c.b16 %v3947, %v3939
    %v5100 = vpack.c.b16 %v3948, %v3940
    %v5101 = vpack.c.b16 %v3949, %v3941
    %v5102 = vpack.c.b16 %v3950, %v3942
    %v5103 = vpack.c.b16 %v3951, %v3943
    %v5104 = vpack.c.b16 %v3960, %v3952
    %v5105 = vpack.c.b16 %v3961, %v3953
    %v5106 = vpack.c.b16 %v3962, %v3954
    %v5107 = vpack.c.b16 %v3963, %v3955
    %v5108 = vpack.c.b16 %v3964, %v3956
    %v5109 = vpack.c.b16 %v3965, %v3957
    %v5110 = vpack.c.b16 %v3966, %v3958
    %v5111 = vpack.c.b16 %v3967, %v3959
    %v5112 = vpack.c.b16 %v3976, %v3968
    %v5113 = vpack.c.b16 %v3977, %v3969
    %v5114 = vpack.c.b16 %v3978, %v3970
    %v5115 = vpack.c.b16 %v3979, %v3971
    %v5116 = vpack.c.b16 %v3980, %v3972
    %v5117 = vpack.c.b16 %v3981, %v3973
    %v5118 = vpack.c.b16 %v3982, %v3974
    %v5119 = vpack.c.b16 %v3983, %v3975
    %v5120 = vpack.c.b16 %v3992, %v3984
    %v5121 = vpack.c.b16 %v3993, %v3985
    %v5122 = vpack.c.b16 %v3994, %v3986
    %v5123 = vpack.c.b16 %v3995, %v3987
    %v5124 = vpack.c.b16 %v3996, %v3988
    %v5125 = vpack.c.b16 %v3997, %v3989
    %v5126 = vpack.c.b16 %v3998, %v3990
    %v5127 = vpack.c.b16 %v3999, %v3991
    %v5128 = vpack.c.b16 %v4008, %v4000
    %v5129 = vpack.c.b16 %v4009, %v4001
    %v5130 = vpack.c.b16 %v4010, %v4002
    %v5131 = vpack.c.b16 %v4011, %v4003
    %v5132 = vpack.c.b16 %v4012, %v4004
    %v5133 = vpack.c.b16 %v4013, %v4005
    %v5134 = vpack.c.b16 %v4014, %v4006
    %v5135 = vpack.c.b16 %v4015, %v4007
    %v5136 = vpack.c.b16 %v4024, %v4016
    %v5137 = vpack.c.b16 %v4025, %v4017
    %v5138 = vpack.c.b16 %v4026, %v4018
    %v5139 = vpack.c.b16 %v4027, %v4019
    %v5140 = vpack.c.b16 %v4028, %v4020
    %v5141 = vpack.c.b16 %v4029, %v4021
    %v5142 = vpack.c.b16 %v4030, %v4022
    %v5143 = vpack.c.b16 %v4031, %v4023
    %v5144 = vpack.c.b16 %v4040, %v4032
    %v5145 = vpack.c.b16 %v4041, %v4033
    %v5146 = vpack.c.b16 %v4042, %v4034
    %v5147 = vpack.c.b16 %v4043, %v4035
    %v5148 = vpack.c.b16 %v4044, %v4036
    %v5149 = vpack.c.b16 %v4045, %v4037
    %v5150 = vpack.c.b16 %v4046, %v4038
    %v5151 = vpack.c.b16 %v4047, %v4039
    %v5152 = vpack.c.b16 %v4056, %v4048
    %v5153 = vpack.c.b16 %v4057, %v4049
    %v5154 = vpack.c.b16 %v4058, %v4050
    %v5155 = vpack.c.b16 %v4059, %v4051
    %v5156 = vpack.c.b16 %v4060, %v4052
    %v5157 = vpack.c.b16 %v4061, %v4053
    %v5158 = vpack.c.b16 %v4062, %v4054
    %v5159 = vpack.c.b16 %v4063, %v4055
    %v5160 = vpack.c.b16 %v4072, %v4064
    %v5161 = vpack.c.b16 %v4073, %v4065
    %v5162 = vpack.c.b16 %v4074, %v4066
    %v5163 = vpack.c.b16 %v4075, %v4067
    %v5164 = vpack.c.b16 %v4076, %v4068
    %v5165 = vpack.c.b16 %v4077, %v4069
    %v5166 = vpack.c.b16 %v4078, %v4070
    %v5167 = vpack.c.b16 %v4079, %v4071
    %v5168 = vpack.c.b16 %v4088, %v4080
    %v5169 = vpack.c.b16 %v4089, %v4081
    %v5170 = vpack.c.b16 %v4090, %v4082
    %v5171 = vpack.c.b16 %v4091, %v4083
    %v5172 = vpack.c.b16 %v4092, %v4084
    %v5173 = vpack.c.b16 %v4093, %v4085
    %v5174 = vpack.c.b16 %v4094, %v4086
    %v5175 = vpack.c.b16 %v4095, %v4087
    %v5176 = vpack.c.b16 %v4104, %v4096
    %v5177 = vpack.c.b16 %v4105, %v4097
    %v5178 = vpack.c.b16 %v4106, %v4098
    %v5179 = vpack.c.b16 %v4107, %v4099
    %v5180 = vpack.c.b16 %v4108, %v4100
    %v5181 = vpack.c.b16 %v4109, %v4101
    %v5182 = vpack.c.b16 %v4110, %v4102
    %v5183 = vpack.c.b16 %v4111, %v4103
    %v5184 = vpack.c.b16 %v4120, %v4112
    %v5185 = vpack.c.b16 %v4121, %v4113
    %v5186 = vpack.c.b16 %v4122, %v4114
    %v5187 = vpack.c.b16 %v4123, %v4115
    %v5188 = vpack.c.b16 %v4124, %v4116
    %v5189 = vpack.c.b16 %v4125, %v4117
    %v5190 = vpack.c.b16 %v4126, %v4118
    %v5191 = vpack.c.b16 %v4127, %v4119
    %v5192 = vpack.c.b16 %v4136, %v4128
    %v5193 = vpack.c.b16 %v4137, %v4129
    %v5194 = vpack.c.b16 %v4138, %v4130
    %v5195 = vpack.c.b16 %v4139, %v4131
    %v5196 = vpack.c.b16 %v4140, %v4132
    %v5197 = vpack.c.b16 %v4141, %v4133
    %v5198 = vpack.c.b16 %v4142, %v4134
    %v5199 = vpack.c.b16 %v4143, %v4135
    %v5200 = vpack.c.b16 %v4152, %v4144
    %v5201 = vpack.c.b16 %v4153, %v4145
    %v5202 = vpack.c.b16 %v4154, %v4146
    %v5203 = vpack.c.b16 %v4155, %v4147
    %v5204 = vpack.c.b16 %v4156, %v4148
    %v5205 = vpack.c.b16 %v4157, %v4149
    %v5206 = vpack.c.b16 %v4158, %v4150
    %v5207 = vpack.c.b16 %v4159, %v4151
    %v5208 = vpack.c.b16 %v4168, %v4160
    %v5209 = vpack.c.b16 %v4169, %v4161
    %v5210 = vpack.c.b16 %v4170, %v4162
    %v5211 = vpack.c.b16 %v4171, %v4163
    %v5212 = vpack.c.b16 %v4172, %v4164
    %v5213 = vpack.c.b16 %v4173, %v4165
    %v5214 = vpack.c.b16 %v4174, %v4166
    %v5215 = vpack.c.b16 %v4175, %v4167
    %v5216 = vpack.c.b16 %v4184, %v4176
    %v5217 = vpack.c.b16 %v4185, %v4177
    %v5218 = vpack.c.b16 %v4186, %v4178
    %v5219 = vpack.c.b16 %v4187, %v4179
    %v5220 = vpack.c.b16 %v4188, %v4180
    %v5221 = vpack.c.b16 %v4189, %v4181
    %v5222 = vpack.c.b16 %v4190, %v4182
    %v5223 = vpack.c.b16 %v4191, %v4183
    %v5224 = vpack.c.b16 %v4200, %v4192
    %v5225 = vpack.c.b16 %v4201, %v4193
    %v5226 = vpack.c.b16 %v4202, %v4194
    %v5227 = vpack.c.b16 %v4203, %v4195
    %v5228 = vpack.c.b16 %v4204, %v4196
    %v5229 = vpack.c.b16 %v4205, %v4197
    %v5230 = vpack.c.b16 %v4206, %v4198
    %v5231 = vpack.c.b16 %v4207, %v4199
    %6256 = vmatpush.bf16.msra.mxu0 %v4264
    %6257 = vmatpush.bf16.msra.mxu0 %v4256
    %6258 = vmatpush.bf16.msra.mxu0 %v4248
    %6259 = vmatpush.bf16.msra.mxu0 %v4240
    %6260 = vmatpush.bf16.msra.mxu0 %v4232
    %6261 = vmatpush.bf16.msra.mxu0 %v4224
    %6262 = vmatpush.bf16.msra.mxu0 %v4216
    %6263 = vmatpush.bf16.msra.mxu0 %v4208
    %6264 = vmatmul.bf16.gmra.mxu0 %v1104
    %v6265 = vpop.f32.mrf.mxu0
    %v6266 = vadd.f32 %v1064, %v6265
    %v6267 = vpop.f32.mrf.mxu0
    %6268 = vdwg.mxu0
    %6269 = vmatpush.bf16.msra.mxu0 %v4328
    %6270 = vmatpush.bf16.msra.mxu0 %v4320
    %6271 = vmatpush.bf16.msra.mxu0 %v4312
    %6272 = vmatpush.bf16.msra.mxu0 %v4304
    %6273 = vmatpush.bf16.msra.mxu0 %v4296
    %6274 = vmatpush.bf16.msra.mxu0 %v4288
    %6275 = vmatpush.bf16.msra.mxu0 %v4280
    %6276 = vmatpush.bf16.msra.mxu0 %v4272
    %6277 = vmatmul.bf16.gmra.mxu0 %v1105
    %v6278 = vpop.f32.mrf.mxu0
    %v6279 = vadd.f32 %v6266, %v6278
    %v6280 = vpop.f32.mrf.mxu0
    %6281 = vdwg.mxu0
    %6282 = vmatpush.bf16.msra.mxu0 %v4392
    %6283 = vmatpush.bf16.msra.mxu0 %v4384
    %6284 = vmatpush.bf16.msra.mxu0 %v4376
    %6285 = vmatpush.bf16.msra.mxu0 %v4368
    %6286 = vmatpush.bf16.msra.mxu0 %v4360
    %6287 = vmatpush.bf16.msra.mxu0 %v4352
    %6288 = vmatpush.bf16.msra.mxu0 %v4344
    %6289 = vmatpush.bf16.msra.mxu0 %v4336
    %6290 = vmatmul.bf16.gmra.mxu0 %v1106
    %v6291 = vpop.f32.mrf.mxu0
    %v6292 = vadd.f32 %v6279, %v6291
    %v6293 = vpop.f32.mrf.mxu0
    %6294 = vdwg.mxu0
    %6295 = vmatpush.bf16.msra.mxu0 %v4456
    %6296 = vmatpush.bf16.msra.mxu0 %v4448
    %6297 = vmatpush.bf16.msra.mxu0 %v4440
    %6298 = vmatpush.bf16.msra.mxu0 %v4432
    %6299 = vmatpush.bf16.msra.mxu0 %v4424
    %6300 = vmatpush.bf16.msra.mxu0 %v4416
    %6301 = vmatpush.bf16.msra.mxu0 %v4408
    %6302 = vmatpush.bf16.msra.mxu0 %v4400
    %6303 = vmatmul.bf16.gmra.mxu0 %v1107
    %v6304 = vpop.f32.mrf.mxu0
    %v6305 = vadd.f32 %v6292, %v6304
    %v6306 = vpop.f32.mrf.mxu0
    %6307 = vdwg.mxu0
    %6308 = vmatpush.bf16.msra.mxu0 %v4520
    %6309 = vmatpush.bf16.msra.mxu0 %v4512
    %6310 = vmatpush.bf16.msra.mxu0 %v4504
    %6311 = vmatpush.bf16.msra.mxu0 %v4496
    %6312 = vmatpush.bf16.msra.mxu0 %v4488
    %6313 = vmatpush.bf16.msra.mxu0 %v4480
    %6314 = vmatpush.bf16.msra.mxu0 %v4472
    %6315 = vmatpush.bf16.msra.mxu0 %v4464
    %6316 = vmatmul.bf16.gmra.mxu0 %v1108
    %v6317 = vpop.f32.mrf.mxu0
    %v6318 = vadd.f32 %v6305, %v6317
    %v6319 = vpop.f32.mrf.mxu0
    %6320 = vdwg.mxu0
    %6321 = vmatpush.bf16.msra.mxu0 %v4584
    %6322 = vmatpush.bf16.msra.mxu0 %v4576
    %6323 = vmatpush.bf16.msra.mxu0 %v4568
    %6324 = vmatpush.bf16.msra.mxu0 %v4560
    %6325 = vmatpush.bf16.msra.mxu0 %v4552
    %6326 = vmatpush.bf16.msra.mxu0 %v4544
    %6327 = vmatpush.bf16.msra.mxu0 %v4536
    %6328 = vmatpush.bf16.msra.mxu0 %v4528
    %6329 = vmatmul.bf16.gmra.mxu0 %v1109
    %v6330 = vpop.f32.mrf.mxu0
    %v6331 = vadd.f32 %v6318, %v6330
    %v6332 = vpop.f32.mrf.mxu0
    %6333 = vdwg.mxu0
    %6334 = vmatpush.bf16.msra.mxu0 %v4648
    %6335 = vmatpush.bf16.msra.mxu0 %v4640
    %6336 = vmatpush.bf16.msra.mxu0 %v4632
    %6337 = vmatpush.bf16.msra.mxu0 %v4624
    %6338 = vmatpush.bf16.msra.mxu0 %v4616
    %6339 = vmatpush.bf16.msra.mxu0 %v4608
    %6340 = vmatpush.bf16.msra.mxu0 %v4600
    %6341 = vmatpush.bf16.msra.mxu0 %v4592
    %6342 = vmatmul.bf16.gmra.mxu0 %v1110
    %v6343 = vpop.f32.mrf.mxu0
    %v6344 = vadd.f32 %v6331, %v6343
    %v6345 = vpop.f32.mrf.mxu0
    %6346 = vdwg.mxu0
    %6347 = vmatpush.bf16.msra.mxu0 %v4712
    %6348 = vmatpush.bf16.msra.mxu0 %v4704
    %6349 = vmatpush.bf16.msra.mxu0 %v4696
    %6350 = vmatpush.bf16.msra.mxu0 %v4688
    %6351 = vmatpush.bf16.msra.mxu0 %v4680
    %6352 = vmatpush.bf16.msra.mxu0 %v4672
    %6353 = vmatpush.bf16.msra.mxu0 %v4664
    %6354 = vmatpush.bf16.msra.mxu0 %v4656
    %6355 = vmatmul.bf16.gmra.mxu0 %v1111
    %v6356 = vpop.f32.mrf.mxu0
    %v6357 = vadd.f32 %v6344, %v6356
    %v6358 = vpop.f32.mrf.mxu0
    %6359 = vdwg.mxu0
    %6360 = vmatpush.bf16.msra.mxu0 %v4776
    %6361 = vmatpush.bf16.msra.mxu0 %v4768
    %6362 = vmatpush.bf16.msra.mxu0 %v4760
    %6363 = vmatpush.bf16.msra.mxu0 %v4752
    %6364 = vmatpush.bf16.msra.mxu0 %v4744
    %6365 = vmatpush.bf16.msra.mxu0 %v4736
    %6366 = vmatpush.bf16.msra.mxu0 %v4728
    %6367 = vmatpush.bf16.msra.mxu0 %v4720
    %6368 = vmatmul.bf16.gmra.mxu0 %v1112
    %v6369 = vpop.f32.mrf.mxu0
    %v6370 = vadd.f32 %v6357, %v6369
    %v6371 = vpop.f32.mrf.mxu0
    %6372 = vdwg.mxu0
    %6373 = vmatpush.bf16.msra.mxu0 %v4840
    %6374 = vmatpush.bf16.msra.mxu0 %v4832
    %6375 = vmatpush.bf16.msra.mxu0 %v4824
    %6376 = vmatpush.bf16.msra.mxu0 %v4816
    %6377 = vmatpush.bf16.msra.mxu0 %v4808
    %6378 = vmatpush.bf16.msra.mxu0 %v4800
    %6379 = vmatpush.bf16.msra.mxu0 %v4792
    %6380 = vmatpush.bf16.msra.mxu0 %v4784
    %6381 = vmatmul.bf16.gmra.mxu0 %v1113
    %v6382 = vpop.f32.mrf.mxu0
    %v6383 = vadd.f32 %v6370, %v6382
    %v6384 = vpop.f32.mrf.mxu0
    %6385 = vdwg.mxu0
    %6386 = vmatpush.bf16.msra.mxu0 %v4904
    %6387 = vmatpush.bf16.msra.mxu0 %v4896
    %6388 = vmatpush.bf16.msra.mxu0 %v4888
    %6389 = vmatpush.bf16.msra.mxu0 %v4880
    %6390 = vmatpush.bf16.msra.mxu0 %v4872
    %6391 = vmatpush.bf16.msra.mxu0 %v4864
    %6392 = vmatpush.bf16.msra.mxu0 %v4856
    %6393 = vmatpush.bf16.msra.mxu0 %v4848
    %6394 = vmatmul.bf16.gmra.mxu0 %v1114
    %v6395 = vpop.f32.mrf.mxu0
    %v6396 = vadd.f32 %v6383, %v6395
    %v6397 = vpop.f32.mrf.mxu0
    %6398 = vdwg.mxu0
    %6399 = vmatpush.bf16.msra.mxu0 %v4968
    %6400 = vmatpush.bf16.msra.mxu0 %v4960
    %6401 = vmatpush.bf16.msra.mxu0 %v4952
    %6402 = vmatpush.bf16.msra.mxu0 %v4944
    %6403 = vmatpush.bf16.msra.mxu0 %v4936
    %6404 = vmatpush.bf16.msra.mxu0 %v4928
    %6405 = vmatpush.bf16.msra.mxu0 %v4920
    %6406 = vmatpush.bf16.msra.mxu0 %v4912
    %6407 = vmatmul.bf16.gmra.mxu0 %v1115
    %v6408 = vpop.f32.mrf.mxu0
    %v6409 = vadd.f32 %v6396, %v6408
    %v6410 = vpop.f32.mrf.mxu0
    %6411 = vdwg.mxu0
    %6412 = vmatpush.bf16.msra.mxu0 %v5032
    %6413 = vmatpush.bf16.msra.mxu0 %v5024
    %6414 = vmatpush.bf16.msra.mxu0 %v5016
    %6415 = vmatpush.bf16.msra.mxu0 %v5008
    %6416 = vmatpush.bf16.msra.mxu0 %v5000
    %6417 = vmatpush.bf16.msra.mxu0 %v4992
    %6418 = vmatpush.bf16.msra.mxu0 %v4984
    %6419 = vmatpush.bf16.msra.mxu0 %v4976
    %6420 = vmatmul.bf16.gmra.mxu0 %v1116
    %v6421 = vpop.f32.mrf.mxu0
    %v6422 = vadd.f32 %v6409, %v6421
    %v6423 = vpop.f32.mrf.mxu0
    %6424 = vdwg.mxu0
    %6425 = vmatpush.bf16.msra.mxu0 %v5096
    %6426 = vmatpush.bf16.msra.mxu0 %v5088
    %6427 = vmatpush.bf16.msra.mxu0 %v5080
    %6428 = vmatpush.bf16.msra.mxu0 %v5072
    %6429 = vmatpush.bf16.msra.mxu0 %v5064
    %6430 = vmatpush.bf16.msra.mxu0 %v5056
    %6431 = vmatpush.bf16.msra.mxu0 %v5048
    %6432 = vmatpush.bf16.msra.mxu0 %v5040
    %6433 = vmatmul.bf16.gmra.mxu0 %v1117
    %v6434 = vpop.f32.mrf.mxu0
    %v6435 = vadd.f32 %v6422, %v6434
    %v6436 = vpop.f32.mrf.mxu0
    %6437 = vdwg.mxu0
    %6438 = vmatpush.bf16.msra.mxu0 %v5160
    %6439 = vmatpush.bf16.msra.mxu0 %v5152
    %6440 = vmatpush.bf16.msra.mxu0 %v5144
    %6441 = vmatpush.bf16.msra.mxu0 %v5136
    %6442 = vmatpush.bf16.msra.mxu0 %v5128
    %6443 = vmatpush.bf16.msra.mxu0 %v5120
    %6444 = vmatpush.bf16.msra.mxu0 %v5112
    %6445 = vmatpush.bf16.msra.mxu0 %v5104
    %6446 = vmatmul.bf16.gmra.mxu0 %v1118
    %v6447 = vpop.f32.mrf.mxu0
    %v6448 = vadd.f32 %v6435, %v6447
    %v6449 = vpop.f32.mrf.mxu0
    %6450 = vdwg.mxu0
    %6451 = vmatpush.bf16.msra.mxu0 %v5224
    %6452 = vmatpush.bf16.msra.mxu0 %v5216
    %6453 = vmatpush.bf16.msra.mxu0 %v5208
    %6454 = vmatpush.bf16.msra.mxu0 %v5200
    %6455 = vmatpush.bf16.msra.mxu0 %v5192
    %6456 = vmatpush.bf16.msra.mxu0 %v5184
    %6457 = vmatpush.bf16.msra.mxu0 %v5176
    %6458 = vmatpush.bf16.msra.mxu0 %v5168
    %6459 = vmatmul.bf16.gmra.mxu0 %v1119
    %v6460 = vpop.f32.mrf.mxu0
    %v6461 = vadd.f32 %v6448, %v6460
    %v6462 = vpop.f32.mrf.mxu0
    %6463 = vdwg.mxu0
    %6464 = vmatpush.bf16.msra.mxu0 %v4265
    %6465 = vmatpush.bf16.msra.mxu0 %v4257
    %6466 = vmatpush.bf16.msra.mxu0 %v4249
    %6467 = vmatpush.bf16.msra.mxu0 %v4241
    %6468 = vmatpush.bf16.msra.mxu0 %v4233
    %6469 = vmatpush.bf16.msra.mxu0 %v4225
    %6470 = vmatpush.bf16.msra.mxu0 %v4217
    %6471 = vmatpush.bf16.msra.mxu0 %v4209
    %6472 = vmatmul.bf16.gmra.mxu0 %v1104
    %v6473 = vpop.f32.mrf.mxu0
    %v6474 = vadd.f32 %v1065, %v6473
    %v6475 = vpop.f32.mrf.mxu0
    %6476 = vdwg.mxu0
    %6477 = vmatpush.bf16.msra.mxu0 %v4329
    %6478 = vmatpush.bf16.msra.mxu0 %v4321
    %6479 = vmatpush.bf16.msra.mxu0 %v4313
    %6480 = vmatpush.bf16.msra.mxu0 %v4305
    %6481 = vmatpush.bf16.msra.mxu0 %v4297
    %6482 = vmatpush.bf16.msra.mxu0 %v4289
    %6483 = vmatpush.bf16.msra.mxu0 %v4281
    %6484 = vmatpush.bf16.msra.mxu0 %v4273
    %6485 = vmatmul.bf16.gmra.mxu0 %v1105
    %v6486 = vpop.f32.mrf.mxu0
    %v6487 = vadd.f32 %v6474, %v6486
    %v6488 = vpop.f32.mrf.mxu0
    %6489 = vdwg.mxu0
    %6490 = vmatpush.bf16.msra.mxu0 %v4393
    %6491 = vmatpush.bf16.msra.mxu0 %v4385
    %6492 = vmatpush.bf16.msra.mxu0 %v4377
    %6493 = vmatpush.bf16.msra.mxu0 %v4369
    %6494 = vmatpush.bf16.msra.mxu0 %v4361
    %6495 = vmatpush.bf16.msra.mxu0 %v4353
    %6496 = vmatpush.bf16.msra.mxu0 %v4345
    %6497 = vmatpush.bf16.msra.mxu0 %v4337
    %6498 = vmatmul.bf16.gmra.mxu0 %v1106
    %v6499 = vpop.f32.mrf.mxu0
    %v6500 = vadd.f32 %v6487, %v6499
    %v6501 = vpop.f32.mrf.mxu0
    %6502 = vdwg.mxu0
    %6503 = vmatpush.bf16.msra.mxu0 %v4457
    %6504 = vmatpush.bf16.msra.mxu0 %v4449
    %6505 = vmatpush.bf16.msra.mxu0 %v4441
    %6506 = vmatpush.bf16.msra.mxu0 %v4433
    %6507 = vmatpush.bf16.msra.mxu0 %v4425
    %6508 = vmatpush.bf16.msra.mxu0 %v4417
    %6509 = vmatpush.bf16.msra.mxu0 %v4409
    %6510 = vmatpush.bf16.msra.mxu0 %v4401
    %6511 = vmatmul.bf16.gmra.mxu0 %v1107
    %v6512 = vpop.f32.mrf.mxu0
    %v6513 = vadd.f32 %v6500, %v6512
    %v6514 = vpop.f32.mrf.mxu0
    %6515 = vdwg.mxu0
    %6516 = vmatpush.bf16.msra.mxu0 %v4521
    %6517 = vmatpush.bf16.msra.mxu0 %v4513
    %6518 = vmatpush.bf16.msra.mxu0 %v4505
    %6519 = vmatpush.bf16.msra.mxu0 %v4497
    %6520 = vmatpush.bf16.msra.mxu0 %v4489
    %6521 = vmatpush.bf16.msra.mxu0 %v4481
    %6522 = vmatpush.bf16.msra.mxu0 %v4473
    %6523 = vmatpush.bf16.msra.mxu0 %v4465
    %6524 = vmatmul.bf16.gmra.mxu0 %v1108
    %v6525 = vpop.f32.mrf.mxu0
    %v6526 = vadd.f32 %v6513, %v6525
    %v6527 = vpop.f32.mrf.mxu0
    %6528 = vdwg.mxu0
    %6529 = vmatpush.bf16.msra.mxu0 %v4585
    %6530 = vmatpush.bf16.msra.mxu0 %v4577
    %6531 = vmatpush.bf16.msra.mxu0 %v4569
    %6532 = vmatpush.bf16.msra.mxu0 %v4561
    %6533 = vmatpush.bf16.msra.mxu0 %v4553
    %6534 = vmatpush.bf16.msra.mxu0 %v4545
    %6535 = vmatpush.bf16.msra.mxu0 %v4537
    %6536 = vmatpush.bf16.msra.mxu0 %v4529
    %6537 = vmatmul.bf16.gmra.mxu0 %v1109
    %v6538 = vpop.f32.mrf.mxu0
    %v6539 = vadd.f32 %v6526, %v6538
    %v6540 = vpop.f32.mrf.mxu0
    %6541 = vdwg.mxu0
    %6542 = vmatpush.bf16.msra.mxu0 %v4649
    %6543 = vmatpush.bf16.msra.mxu0 %v4641
    %6544 = vmatpush.bf16.msra.mxu0 %v4633
    %6545 = vmatpush.bf16.msra.mxu0 %v4625
    %6546 = vmatpush.bf16.msra.mxu0 %v4617
    %6547 = vmatpush.bf16.msra.mxu0 %v4609
    %6548 = vmatpush.bf16.msra.mxu0 %v4601
    %6549 = vmatpush.bf16.msra.mxu0 %v4593
    %6550 = vmatmul.bf16.gmra.mxu0 %v1110
    %v6551 = vpop.f32.mrf.mxu0
    %v6552 = vadd.f32 %v6539, %v6551
    %v6553 = vpop.f32.mrf.mxu0
    %6554 = vdwg.mxu0
    %6555 = vmatpush.bf16.msra.mxu0 %v4713
    %6556 = vmatpush.bf16.msra.mxu0 %v4705
    %6557 = vmatpush.bf16.msra.mxu0 %v4697
    %6558 = vmatpush.bf16.msra.mxu0 %v4689
    %6559 = vmatpush.bf16.msra.mxu0 %v4681
    %6560 = vmatpush.bf16.msra.mxu0 %v4673
    %6561 = vmatpush.bf16.msra.mxu0 %v4665
    %6562 = vmatpush.bf16.msra.mxu0 %v4657
    %6563 = vmatmul.bf16.gmra.mxu0 %v1111
    %v6564 = vpop.f32.mrf.mxu0
    %v6565 = vadd.f32 %v6552, %v6564
    %v6566 = vpop.f32.mrf.mxu0
    %6567 = vdwg.mxu0
    %6568 = vmatpush.bf16.msra.mxu0 %v4777
    %6569 = vmatpush.bf16.msra.mxu0 %v4769
    %6570 = vmatpush.bf16.msra.mxu0 %v4761
    %6571 = vmatpush.bf16.msra.mxu0 %v4753
    %6572 = vmatpush.bf16.msra.mxu0 %v4745
    %6573 = vmatpush.bf16.msra.mxu0 %v4737
    %6574 = vmatpush.bf16.msra.mxu0 %v4729
    %6575 = vmatpush.bf16.msra.mxu0 %v4721
    %6576 = vmatmul.bf16.gmra.mxu0 %v1112
    %v6577 = vpop.f32.mrf.mxu0
    %v6578 = vadd.f32 %v6565, %v6577
    %v6579 = vpop.f32.mrf.mxu0
    %6580 = vdwg.mxu0
    %6581 = vmatpush.bf16.msra.mxu0 %v4841
    %6582 = vmatpush.bf16.msra.mxu0 %v4833
    %6583 = vmatpush.bf16.msra.mxu0 %v4825
    %6584 = vmatpush.bf16.msra.mxu0 %v4817
    %6585 = vmatpush.bf16.msra.mxu0 %v4809
    %6586 = vmatpush.bf16.msra.mxu0 %v4801
    %6587 = vmatpush.bf16.msra.mxu0 %v4793
    %6588 = vmatpush.bf16.msra.mxu0 %v4785
    %6589 = vmatmul.bf16.gmra.mxu0 %v1113
    %v6590 = vpop.f32.mrf.mxu0
    %v6591 = vadd.f32 %v6578, %v6590
    %v6592 = vpop.f32.mrf.mxu0
    %6593 = vdwg.mxu0
    %6594 = vmatpush.bf16.msra.mxu0 %v4905
    %6595 = vmatpush.bf16.msra.mxu0 %v4897
    %6596 = vmatpush.bf16.msra.mxu0 %v4889
    %6597 = vmatpush.bf16.msra.mxu0 %v4881
    %6598 = vmatpush.bf16.msra.mxu0 %v4873
    %6599 = vmatpush.bf16.msra.mxu0 %v4865
    %6600 = vmatpush.bf16.msra.mxu0 %v4857
    %6601 = vmatpush.bf16.msra.mxu0 %v4849
    %6602 = vmatmul.bf16.gmra.mxu0 %v1114
    %v6603 = vpop.f32.mrf.mxu0
    %v6604 = vadd.f32 %v6591, %v6603
    %v6605 = vpop.f32.mrf.mxu0
    %6606 = vdwg.mxu0
    %6607 = vmatpush.bf16.msra.mxu0 %v4969
    %6608 = vmatpush.bf16.msra.mxu0 %v4961
    %6609 = vmatpush.bf16.msra.mxu0 %v4953
    %6610 = vmatpush.bf16.msra.mxu0 %v4945
    %6611 = vmatpush.bf16.msra.mxu0 %v4937
    %6612 = vmatpush.bf16.msra.mxu0 %v4929
    %6613 = vmatpush.bf16.msra.mxu0 %v4921
    %6614 = vmatpush.bf16.msra.mxu0 %v4913
    %6615 = vmatmul.bf16.gmra.mxu0 %v1115
    %v6616 = vpop.f32.mrf.mxu0
    %v6617 = vadd.f32 %v6604, %v6616
    %v6618 = vpop.f32.mrf.mxu0
    %6619 = vdwg.mxu0
    %6620 = vmatpush.bf16.msra.mxu0 %v5033
    %6621 = vmatpush.bf16.msra.mxu0 %v5025
    %6622 = vmatpush.bf16.msra.mxu0 %v5017
    %6623 = vmatpush.bf16.msra.mxu0 %v5009
    %6624 = vmatpush.bf16.msra.mxu0 %v5001
    %6625 = vmatpush.bf16.msra.mxu0 %v4993
    %6626 = vmatpush.bf16.msra.mxu0 %v4985
    %6627 = vmatpush.bf16.msra.mxu0 %v4977
    %6628 = vmatmul.bf16.gmra.mxu0 %v1116
    %v6629 = vpop.f32.mrf.mxu0
    %v6630 = vadd.f32 %v6617, %v6629
    %v6631 = vpop.f32.mrf.mxu0
    %6632 = vdwg.mxu0
    %6633 = vmatpush.bf16.msra.mxu0 %v5097
    %6634 = vmatpush.bf16.msra.mxu0 %v5089
    %6635 = vmatpush.bf16.msra.mxu0 %v5081
    %6636 = vmatpush.bf16.msra.mxu0 %v5073
    %6637 = vmatpush.bf16.msra.mxu0 %v5065
    %6638 = vmatpush.bf16.msra.mxu0 %v5057
    %6639 = vmatpush.bf16.msra.mxu0 %v5049
    %6640 = vmatpush.bf16.msra.mxu0 %v5041
    %6641 = vmatmul.bf16.gmra.mxu0 %v1117
    %v6642 = vpop.f32.mrf.mxu0
    %v6643 = vadd.f32 %v6630, %v6642
    %v6644 = vpop.f32.mrf.mxu0
    %6645 = vdwg.mxu0
    %6646 = vmatpush.bf16.msra.mxu0 %v5161
    %6647 = vmatpush.bf16.msra.mxu0 %v5153
    %6648 = vmatpush.bf16.msra.mxu0 %v5145
    %6649 = vmatpush.bf16.msra.mxu0 %v5137
    %6650 = vmatpush.bf16.msra.mxu0 %v5129
    %6651 = vmatpush.bf16.msra.mxu0 %v5121
    %6652 = vmatpush.bf16.msra.mxu0 %v5113
    %6653 = vmatpush.bf16.msra.mxu0 %v5105
    %6654 = vmatmul.bf16.gmra.mxu0 %v1118
    %v6655 = vpop.f32.mrf.mxu0
    %v6656 = vadd.f32 %v6643, %v6655
    %v6657 = vpop.f32.mrf.mxu0
    %6658 = vdwg.mxu0
    %6659 = vmatpush.bf16.msra.mxu0 %v5225
    %6660 = vmatpush.bf16.msra.mxu0 %v5217
    %6661 = vmatpush.bf16.msra.mxu0 %v5209
    %6662 = vmatpush.bf16.msra.mxu0 %v5201
    %6663 = vmatpush.bf16.msra.mxu0 %v5193
    %6664 = vmatpush.bf16.msra.mxu0 %v5185
    %6665 = vmatpush.bf16.msra.mxu0 %v5177
    %6666 = vmatpush.bf16.msra.mxu0 %v5169
    %6667 = vmatmul.bf16.gmra.mxu0 %v1119
    %v6668 = vpop.f32.mrf.mxu0
    %v6669 = vadd.f32 %v6656, %v6668
    %v6670 = vpop.f32.mrf.mxu0
    %6671 = vdwg.mxu0
    %6672 = vmatpush.bf16.msra.mxu0 %v4266
    %6673 = vmatpush.bf16.msra.mxu0 %v4258
    %6674 = vmatpush.bf16.msra.mxu0 %v4250
    %6675 = vmatpush.bf16.msra.mxu0 %v4242
    %6676 = vmatpush.bf16.msra.mxu0 %v4234
    %6677 = vmatpush.bf16.msra.mxu0 %v4226
    %6678 = vmatpush.bf16.msra.mxu0 %v4218
    %6679 = vmatpush.bf16.msra.mxu0 %v4210
    %6680 = vmatmul.bf16.gmra.mxu0 %v1104
    %v6681 = vpop.f32.mrf.mxu0
    %v6682 = vadd.f32 %v1066, %v6681
    %v6683 = vpop.f32.mrf.mxu0
    %6684 = vdwg.mxu0
    %6685 = vmatpush.bf16.msra.mxu0 %v4330
    %6686 = vmatpush.bf16.msra.mxu0 %v4322
    %6687 = vmatpush.bf16.msra.mxu0 %v4314
    %6688 = vmatpush.bf16.msra.mxu0 %v4306
    %6689 = vmatpush.bf16.msra.mxu0 %v4298
    %6690 = vmatpush.bf16.msra.mxu0 %v4290
    %6691 = vmatpush.bf16.msra.mxu0 %v4282
    %6692 = vmatpush.bf16.msra.mxu0 %v4274
    %6693 = vmatmul.bf16.gmra.mxu0 %v1105
    %v6694 = vpop.f32.mrf.mxu0
    %v6695 = vadd.f32 %v6682, %v6694
    %v6696 = vpop.f32.mrf.mxu0
    %6697 = vdwg.mxu0
    %6698 = vmatpush.bf16.msra.mxu0 %v4394
    %6699 = vmatpush.bf16.msra.mxu0 %v4386
    %6700 = vmatpush.bf16.msra.mxu0 %v4378
    %6701 = vmatpush.bf16.msra.mxu0 %v4370
    %6702 = vmatpush.bf16.msra.mxu0 %v4362
    %6703 = vmatpush.bf16.msra.mxu0 %v4354
    %6704 = vmatpush.bf16.msra.mxu0 %v4346
    %6705 = vmatpush.bf16.msra.mxu0 %v4338
    %6706 = vmatmul.bf16.gmra.mxu0 %v1106
    %v6707 = vpop.f32.mrf.mxu0
    %v6708 = vadd.f32 %v6695, %v6707
    %v6709 = vpop.f32.mrf.mxu0
    %6710 = vdwg.mxu0
    %6711 = vmatpush.bf16.msra.mxu0 %v4458
    %6712 = vmatpush.bf16.msra.mxu0 %v4450
    %6713 = vmatpush.bf16.msra.mxu0 %v4442
    %6714 = vmatpush.bf16.msra.mxu0 %v4434
    %6715 = vmatpush.bf16.msra.mxu0 %v4426
    %6716 = vmatpush.bf16.msra.mxu0 %v4418
    %6717 = vmatpush.bf16.msra.mxu0 %v4410
    %6718 = vmatpush.bf16.msra.mxu0 %v4402
    %6719 = vmatmul.bf16.gmra.mxu0 %v1107
    %v6720 = vpop.f32.mrf.mxu0
    %v6721 = vadd.f32 %v6708, %v6720
    %v6722 = vpop.f32.mrf.mxu0
    %6723 = vdwg.mxu0
    %6724 = vmatpush.bf16.msra.mxu0 %v4522
    %6725 = vmatpush.bf16.msra.mxu0 %v4514
    %6726 = vmatpush.bf16.msra.mxu0 %v4506
    %6727 = vmatpush.bf16.msra.mxu0 %v4498
    %6728 = vmatpush.bf16.msra.mxu0 %v4490
    %6729 = vmatpush.bf16.msra.mxu0 %v4482
    %6730 = vmatpush.bf16.msra.mxu0 %v4474
    %6731 = vmatpush.bf16.msra.mxu0 %v4466
    %6732 = vmatmul.bf16.gmra.mxu0 %v1108
    %v6733 = vpop.f32.mrf.mxu0
    %v6734 = vadd.f32 %v6721, %v6733
    %v6735 = vpop.f32.mrf.mxu0
    %6736 = vdwg.mxu0
    %6737 = vmatpush.bf16.msra.mxu0 %v4586
    %6738 = vmatpush.bf16.msra.mxu0 %v4578
    %6739 = vmatpush.bf16.msra.mxu0 %v4570
    %6740 = vmatpush.bf16.msra.mxu0 %v4562
    %6741 = vmatpush.bf16.msra.mxu0 %v4554
    %6742 = vmatpush.bf16.msra.mxu0 %v4546
    %6743 = vmatpush.bf16.msra.mxu0 %v4538
    %6744 = vmatpush.bf16.msra.mxu0 %v4530
    %6745 = vmatmul.bf16.gmra.mxu0 %v1109
    %v6746 = vpop.f32.mrf.mxu0
    %v6747 = vadd.f32 %v6734, %v6746
    %v6748 = vpop.f32.mrf.mxu0
    %6749 = vdwg.mxu0
    %6750 = vmatpush.bf16.msra.mxu0 %v4650
    %6751 = vmatpush.bf16.msra.mxu0 %v4642
    %6752 = vmatpush.bf16.msra.mxu0 %v4634
    %6753 = vmatpush.bf16.msra.mxu0 %v4626
    %6754 = vmatpush.bf16.msra.mxu0 %v4618
    %6755 = vmatpush.bf16.msra.mxu0 %v4610
    %6756 = vmatpush.bf16.msra.mxu0 %v4602
    %6757 = vmatpush.bf16.msra.mxu0 %v4594
    %6758 = vmatmul.bf16.gmra.mxu0 %v1110
    %v6759 = vpop.f32.mrf.mxu0
    %v6760 = vadd.f32 %v6747, %v6759
    %v6761 = vpop.f32.mrf.mxu0
    %6762 = vdwg.mxu0
    %6763 = vmatpush.bf16.msra.mxu0 %v4714
    %6764 = vmatpush.bf16.msra.mxu0 %v4706
    %6765 = vmatpush.bf16.msra.mxu0 %v4698
    %6766 = vmatpush.bf16.msra.mxu0 %v4690
    %6767 = vmatpush.bf16.msra.mxu0 %v4682
    %6768 = vmatpush.bf16.msra.mxu0 %v4674
    %6769 = vmatpush.bf16.msra.mxu0 %v4666
    %6770 = vmatpush.bf16.msra.mxu0 %v4658
    %6771 = vmatmul.bf16.gmra.mxu0 %v1111
    %v6772 = vpop.f32.mrf.mxu0
    %v6773 = vadd.f32 %v6760, %v6772
    %v6774 = vpop.f32.mrf.mxu0
    %6775 = vdwg.mxu0
    %6776 = vmatpush.bf16.msra.mxu0 %v4778
    %6777 = vmatpush.bf16.msra.mxu0 %v4770
    %6778 = vmatpush.bf16.msra.mxu0 %v4762
    %6779 = vmatpush.bf16.msra.mxu0 %v4754
    %6780 = vmatpush.bf16.msra.mxu0 %v4746
    %6781 = vmatpush.bf16.msra.mxu0 %v4738
    %6782 = vmatpush.bf16.msra.mxu0 %v4730
    %6783 = vmatpush.bf16.msra.mxu0 %v4722
    %6784 = vmatmul.bf16.gmra.mxu0 %v1112
    %v6785 = vpop.f32.mrf.mxu0
    %v6786 = vadd.f32 %v6773, %v6785
    %v6787 = vpop.f32.mrf.mxu0
    %6788 = vdwg.mxu0
    %6789 = vmatpush.bf16.msra.mxu0 %v4842
    %6790 = vmatpush.bf16.msra.mxu0 %v4834
    %6791 = vmatpush.bf16.msra.mxu0 %v4826
    %6792 = vmatpush.bf16.msra.mxu0 %v4818
    %6793 = vmatpush.bf16.msra.mxu0 %v4810
    %6794 = vmatpush.bf16.msra.mxu0 %v4802
    %6795 = vmatpush.bf16.msra.mxu0 %v4794
    %6796 = vmatpush.bf16.msra.mxu0 %v4786
    %6797 = vmatmul.bf16.gmra.mxu0 %v1113
    %v6798 = vpop.f32.mrf.mxu0
    %v6799 = vadd.f32 %v6786, %v6798
    %v6800 = vpop.f32.mrf.mxu0
    %6801 = vdwg.mxu0
    %6802 = vmatpush.bf16.msra.mxu0 %v4906
    %6803 = vmatpush.bf16.msra.mxu0 %v4898
    %6804 = vmatpush.bf16.msra.mxu0 %v4890
    %6805 = vmatpush.bf16.msra.mxu0 %v4882
    %6806 = vmatpush.bf16.msra.mxu0 %v4874
    %6807 = vmatpush.bf16.msra.mxu0 %v4866
    %6808 = vmatpush.bf16.msra.mxu0 %v4858
    %6809 = vmatpush.bf16.msra.mxu0 %v4850
    %6810 = vmatmul.bf16.gmra.mxu0 %v1114
    %v6811 = vpop.f32.mrf.mxu0
    %v6812 = vadd.f32 %v6799, %v6811
    %v6813 = vpop.f32.mrf.mxu0
    %6814 = vdwg.mxu0
    %6815 = vmatpush.bf16.msra.mxu0 %v4970
    %6816 = vmatpush.bf16.msra.mxu0 %v4962
    %6817 = vmatpush.bf16.msra.mxu0 %v4954
    %6818 = vmatpush.bf16.msra.mxu0 %v4946
    %6819 = vmatpush.bf16.msra.mxu0 %v4938
    %6820 = vmatpush.bf16.msra.mxu0 %v4930
    %6821 = vmatpush.bf16.msra.mxu0 %v4922
    %6822 = vmatpush.bf16.msra.mxu0 %v4914
    %6823 = vmatmul.bf16.gmra.mxu0 %v1115
    %v6824 = vpop.f32.mrf.mxu0
    %v6825 = vadd.f32 %v6812, %v6824
    %v6826 = vpop.f32.mrf.mxu0
    %6827 = vdwg.mxu0
    %6828 = vmatpush.bf16.msra.mxu0 %v5034
    %6829 = vmatpush.bf16.msra.mxu0 %v5026
    %6830 = vmatpush.bf16.msra.mxu0 %v5018
    %6831 = vmatpush.bf16.msra.mxu0 %v5010
    %6832 = vmatpush.bf16.msra.mxu0 %v5002
    %6833 = vmatpush.bf16.msra.mxu0 %v4994
    %6834 = vmatpush.bf16.msra.mxu0 %v4986
    %6835 = vmatpush.bf16.msra.mxu0 %v4978
    %6836 = vmatmul.bf16.gmra.mxu0 %v1116
    %v6837 = vpop.f32.mrf.mxu0
    %v6838 = vadd.f32 %v6825, %v6837
    %v6839 = vpop.f32.mrf.mxu0
    %6840 = vdwg.mxu0
    %6841 = vmatpush.bf16.msra.mxu0 %v5098
    %6842 = vmatpush.bf16.msra.mxu0 %v5090
    %6843 = vmatpush.bf16.msra.mxu0 %v5082
    %6844 = vmatpush.bf16.msra.mxu0 %v5074
    %6845 = vmatpush.bf16.msra.mxu0 %v5066
    %6846 = vmatpush.bf16.msra.mxu0 %v5058
    %6847 = vmatpush.bf16.msra.mxu0 %v5050
    %6848 = vmatpush.bf16.msra.mxu0 %v5042
    %6849 = vmatmul.bf16.gmra.mxu0 %v1117
    %v6850 = vpop.f32.mrf.mxu0
    %v6851 = vadd.f32 %v6838, %v6850
    %v6852 = vpop.f32.mrf.mxu0
    %6853 = vdwg.mxu0
    %6854 = vmatpush.bf16.msra.mxu0 %v5162
    %6855 = vmatpush.bf16.msra.mxu0 %v5154
    %6856 = vmatpush.bf16.msra.mxu0 %v5146
    %6857 = vmatpush.bf16.msra.mxu0 %v5138
    %6858 = vmatpush.bf16.msra.mxu0 %v5130
    %6859 = vmatpush.bf16.msra.mxu0 %v5122
    %6860 = vmatpush.bf16.msra.mxu0 %v5114
    %6861 = vmatpush.bf16.msra.mxu0 %v5106
    %6862 = vmatmul.bf16.gmra.mxu0 %v1118
    %v6863 = vpop.f32.mrf.mxu0
    %v6864 = vadd.f32 %v6851, %v6863
    %v6865 = vpop.f32.mrf.mxu0
    %6866 = vdwg.mxu0
    %6867 = vmatpush.bf16.msra.mxu0 %v5226
    %6868 = vmatpush.bf16.msra.mxu0 %v5218
    %6869 = vmatpush.bf16.msra.mxu0 %v5210
    %6870 = vmatpush.bf16.msra.mxu0 %v5202
    %6871 = vmatpush.bf16.msra.mxu0 %v5194
    %6872 = vmatpush.bf16.msra.mxu0 %v5186
    %6873 = vmatpush.bf16.msra.mxu0 %v5178
    %6874 = vmatpush.bf16.msra.mxu0 %v5170
    %6875 = vmatmul.bf16.gmra.mxu0 %v1119
    %v6876 = vpop.f32.mrf.mxu0
    %v6877 = vadd.f32 %v6864, %v6876
    %v6878 = vpop.f32.mrf.mxu0
    %6879 = vdwg.mxu0
    %6880 = vmatpush.bf16.msra.mxu0 %v4267
    %6881 = vmatpush.bf16.msra.mxu0 %v4259
    %6882 = vmatpush.bf16.msra.mxu0 %v4251
    %6883 = vmatpush.bf16.msra.mxu0 %v4243
    %6884 = vmatpush.bf16.msra.mxu0 %v4235
    %6885 = vmatpush.bf16.msra.mxu0 %v4227
    %6886 = vmatpush.bf16.msra.mxu0 %v4219
    %6887 = vmatpush.bf16.msra.mxu0 %v4211
    %6888 = vmatmul.bf16.gmra.mxu0 %v1104
    %v6889 = vpop.f32.mrf.mxu0
    %v6890 = vadd.f32 %v1067, %v6889
    %v6891 = vpop.f32.mrf.mxu0
    %6892 = vdwg.mxu0
    %6893 = vmatpush.bf16.msra.mxu0 %v4331
    %6894 = vmatpush.bf16.msra.mxu0 %v4323
    %6895 = vmatpush.bf16.msra.mxu0 %v4315
    %6896 = vmatpush.bf16.msra.mxu0 %v4307
    %6897 = vmatpush.bf16.msra.mxu0 %v4299
    %6898 = vmatpush.bf16.msra.mxu0 %v4291
    %6899 = vmatpush.bf16.msra.mxu0 %v4283
    %6900 = vmatpush.bf16.msra.mxu0 %v4275
    %6901 = vmatmul.bf16.gmra.mxu0 %v1105
    %v6902 = vpop.f32.mrf.mxu0
    %v6903 = vadd.f32 %v6890, %v6902
    %v6904 = vpop.f32.mrf.mxu0
    %6905 = vdwg.mxu0
    %6906 = vmatpush.bf16.msra.mxu0 %v4395
    %6907 = vmatpush.bf16.msra.mxu0 %v4387
    %6908 = vmatpush.bf16.msra.mxu0 %v4379
    %6909 = vmatpush.bf16.msra.mxu0 %v4371
    %6910 = vmatpush.bf16.msra.mxu0 %v4363
    %6911 = vmatpush.bf16.msra.mxu0 %v4355
    %6912 = vmatpush.bf16.msra.mxu0 %v4347
    %6913 = vmatpush.bf16.msra.mxu0 %v4339
    %6914 = vmatmul.bf16.gmra.mxu0 %v1106
    %v6915 = vpop.f32.mrf.mxu0
    %v6916 = vadd.f32 %v6903, %v6915
    %v6917 = vpop.f32.mrf.mxu0
    %6918 = vdwg.mxu0
    %6919 = vmatpush.bf16.msra.mxu0 %v4459
    %6920 = vmatpush.bf16.msra.mxu0 %v4451
    %6921 = vmatpush.bf16.msra.mxu0 %v4443
    %6922 = vmatpush.bf16.msra.mxu0 %v4435
    %6923 = vmatpush.bf16.msra.mxu0 %v4427
    %6924 = vmatpush.bf16.msra.mxu0 %v4419
    %6925 = vmatpush.bf16.msra.mxu0 %v4411
    %6926 = vmatpush.bf16.msra.mxu0 %v4403
    %6927 = vmatmul.bf16.gmra.mxu0 %v1107
    %v6928 = vpop.f32.mrf.mxu0
    %v6929 = vadd.f32 %v6916, %v6928
    %v6930 = vpop.f32.mrf.mxu0
    %6931 = vdwg.mxu0
    %6932 = vmatpush.bf16.msra.mxu0 %v4523
    %6933 = vmatpush.bf16.msra.mxu0 %v4515
    %6934 = vmatpush.bf16.msra.mxu0 %v4507
    %6935 = vmatpush.bf16.msra.mxu0 %v4499
    %6936 = vmatpush.bf16.msra.mxu0 %v4491
    %6937 = vmatpush.bf16.msra.mxu0 %v4483
    %6938 = vmatpush.bf16.msra.mxu0 %v4475
    %6939 = vmatpush.bf16.msra.mxu0 %v4467
    %6940 = vmatmul.bf16.gmra.mxu0 %v1108
    %v6941 = vpop.f32.mrf.mxu0
    %v6942 = vadd.f32 %v6929, %v6941
    %v6943 = vpop.f32.mrf.mxu0
    %6944 = vdwg.mxu0
    %6945 = vmatpush.bf16.msra.mxu0 %v4587
    %6946 = vmatpush.bf16.msra.mxu0 %v4579
    %6947 = vmatpush.bf16.msra.mxu0 %v4571
    %6948 = vmatpush.bf16.msra.mxu0 %v4563
    %6949 = vmatpush.bf16.msra.mxu0 %v4555
    %6950 = vmatpush.bf16.msra.mxu0 %v4547
    %6951 = vmatpush.bf16.msra.mxu0 %v4539
    %6952 = vmatpush.bf16.msra.mxu0 %v4531
    %6953 = vmatmul.bf16.gmra.mxu0 %v1109
    %v6954 = vpop.f32.mrf.mxu0
    %v6955 = vadd.f32 %v6942, %v6954
    %v6956 = vpop.f32.mrf.mxu0
    %6957 = vdwg.mxu0
    %6958 = vmatpush.bf16.msra.mxu0 %v4651
    %6959 = vmatpush.bf16.msra.mxu0 %v4643
    %6960 = vmatpush.bf16.msra.mxu0 %v4635
    %6961 = vmatpush.bf16.msra.mxu0 %v4627
    %6962 = vmatpush.bf16.msra.mxu0 %v4619
    %6963 = vmatpush.bf16.msra.mxu0 %v4611
    %6964 = vmatpush.bf16.msra.mxu0 %v4603
    %6965 = vmatpush.bf16.msra.mxu0 %v4595
    %6966 = vmatmul.bf16.gmra.mxu0 %v1110
    %v6967 = vpop.f32.mrf.mxu0
    %v6968 = vadd.f32 %v6955, %v6967
    %v6969 = vpop.f32.mrf.mxu0
    %6970 = vdwg.mxu0
    %6971 = vmatpush.bf16.msra.mxu0 %v4715
    %6972 = vmatpush.bf16.msra.mxu0 %v4707
    %6973 = vmatpush.bf16.msra.mxu0 %v4699
    %6974 = vmatpush.bf16.msra.mxu0 %v4691
    %6975 = vmatpush.bf16.msra.mxu0 %v4683
    %6976 = vmatpush.bf16.msra.mxu0 %v4675
    %6977 = vmatpush.bf16.msra.mxu0 %v4667
    %6978 = vmatpush.bf16.msra.mxu0 %v4659
    %6979 = vmatmul.bf16.gmra.mxu0 %v1111
    %v6980 = vpop.f32.mrf.mxu0
    %v6981 = vadd.f32 %v6968, %v6980
    %v6982 = vpop.f32.mrf.mxu0
    %6983 = vdwg.mxu0
    %6984 = vmatpush.bf16.msra.mxu0 %v4779
    %6985 = vmatpush.bf16.msra.mxu0 %v4771
    %6986 = vmatpush.bf16.msra.mxu0 %v4763
    %6987 = vmatpush.bf16.msra.mxu0 %v4755
    %6988 = vmatpush.bf16.msra.mxu0 %v4747
    %6989 = vmatpush.bf16.msra.mxu0 %v4739
    %6990 = vmatpush.bf16.msra.mxu0 %v4731
    %6991 = vmatpush.bf16.msra.mxu0 %v4723
    %6992 = vmatmul.bf16.gmra.mxu0 %v1112
    %v6993 = vpop.f32.mrf.mxu0
    %v6994 = vadd.f32 %v6981, %v6993
    %v6995 = vpop.f32.mrf.mxu0
    %6996 = vdwg.mxu0
    %6997 = vmatpush.bf16.msra.mxu0 %v4843
    %6998 = vmatpush.bf16.msra.mxu0 %v4835
    %6999 = vmatpush.bf16.msra.mxu0 %v4827
    %7000 = vmatpush.bf16.msra.mxu0 %v4819
    %7001 = vmatpush.bf16.msra.mxu0 %v4811
    %7002 = vmatpush.bf16.msra.mxu0 %v4803
    %7003 = vmatpush.bf16.msra.mxu0 %v4795
    %7004 = vmatpush.bf16.msra.mxu0 %v4787
    %7005 = vmatmul.bf16.gmra.mxu0 %v1113
    %v7006 = vpop.f32.mrf.mxu0
    %v7007 = vadd.f32 %v6994, %v7006
    %v7008 = vpop.f32.mrf.mxu0
    %7009 = vdwg.mxu0
    %7010 = vmatpush.bf16.msra.mxu0 %v4907
    %7011 = vmatpush.bf16.msra.mxu0 %v4899
    %7012 = vmatpush.bf16.msra.mxu0 %v4891
    %7013 = vmatpush.bf16.msra.mxu0 %v4883
    %7014 = vmatpush.bf16.msra.mxu0 %v4875
    %7015 = vmatpush.bf16.msra.mxu0 %v4867
    %7016 = vmatpush.bf16.msra.mxu0 %v4859
    %7017 = vmatpush.bf16.msra.mxu0 %v4851
    %7018 = vmatmul.bf16.gmra.mxu0 %v1114
    %v7019 = vpop.f32.mrf.mxu0
    %v7020 = vadd.f32 %v7007, %v7019
    %v7021 = vpop.f32.mrf.mxu0
    %7022 = vdwg.mxu0
    %7023 = vmatpush.bf16.msra.mxu0 %v4971
    %7024 = vmatpush.bf16.msra.mxu0 %v4963
    %7025 = vmatpush.bf16.msra.mxu0 %v4955
    %7026 = vmatpush.bf16.msra.mxu0 %v4947
    %7027 = vmatpush.bf16.msra.mxu0 %v4939
    %7028 = vmatpush.bf16.msra.mxu0 %v4931
    %7029 = vmatpush.bf16.msra.mxu0 %v4923
    %7030 = vmatpush.bf16.msra.mxu0 %v4915
    %7031 = vmatmul.bf16.gmra.mxu0 %v1115
    %v7032 = vpop.f32.mrf.mxu0
    %v7033 = vadd.f32 %v7020, %v7032
    %v7034 = vpop.f32.mrf.mxu0
    %7035 = vdwg.mxu0
    %7036 = vmatpush.bf16.msra.mxu0 %v5035
    %7037 = vmatpush.bf16.msra.mxu0 %v5027
    %7038 = vmatpush.bf16.msra.mxu0 %v5019
    %7039 = vmatpush.bf16.msra.mxu0 %v5011
    %7040 = vmatpush.bf16.msra.mxu0 %v5003
    %7041 = vmatpush.bf16.msra.mxu0 %v4995
    %7042 = vmatpush.bf16.msra.mxu0 %v4987
    %7043 = vmatpush.bf16.msra.mxu0 %v4979
    %7044 = vmatmul.bf16.gmra.mxu0 %v1116
    %v7045 = vpop.f32.mrf.mxu0
    %v7046 = vadd.f32 %v7033, %v7045
    %v7047 = vpop.f32.mrf.mxu0
    %7048 = vdwg.mxu0
    %7049 = vmatpush.bf16.msra.mxu0 %v5099
    %7050 = vmatpush.bf16.msra.mxu0 %v5091
    %7051 = vmatpush.bf16.msra.mxu0 %v5083
    %7052 = vmatpush.bf16.msra.mxu0 %v5075
    %7053 = vmatpush.bf16.msra.mxu0 %v5067
    %7054 = vmatpush.bf16.msra.mxu0 %v5059
    %7055 = vmatpush.bf16.msra.mxu0 %v5051
    %7056 = vmatpush.bf16.msra.mxu0 %v5043
    %7057 = vmatmul.bf16.gmra.mxu0 %v1117
    %v7058 = vpop.f32.mrf.mxu0
    %v7059 = vadd.f32 %v7046, %v7058
    %v7060 = vpop.f32.mrf.mxu0
    %7061 = vdwg.mxu0
    %7062 = vmatpush.bf16.msra.mxu0 %v5163
    %7063 = vmatpush.bf16.msra.mxu0 %v5155
    %7064 = vmatpush.bf16.msra.mxu0 %v5147
    %7065 = vmatpush.bf16.msra.mxu0 %v5139
    %7066 = vmatpush.bf16.msra.mxu0 %v5131
    %7067 = vmatpush.bf16.msra.mxu0 %v5123
    %7068 = vmatpush.bf16.msra.mxu0 %v5115
    %7069 = vmatpush.bf16.msra.mxu0 %v5107
    %7070 = vmatmul.bf16.gmra.mxu0 %v1118
    %v7071 = vpop.f32.mrf.mxu0
    %v7072 = vadd.f32 %v7059, %v7071
    %v7073 = vpop.f32.mrf.mxu0
    %7074 = vdwg.mxu0
    %7075 = vmatpush.bf16.msra.mxu0 %v5227
    %7076 = vmatpush.bf16.msra.mxu0 %v5219
    %7077 = vmatpush.bf16.msra.mxu0 %v5211
    %7078 = vmatpush.bf16.msra.mxu0 %v5203
    %7079 = vmatpush.bf16.msra.mxu0 %v5195
    %7080 = vmatpush.bf16.msra.mxu0 %v5187
    %7081 = vmatpush.bf16.msra.mxu0 %v5179
    %7082 = vmatpush.bf16.msra.mxu0 %v5171
    %7083 = vmatmul.bf16.gmra.mxu0 %v1119
    %v7084 = vpop.f32.mrf.mxu0
    %v7085 = vadd.f32 %v7072, %v7084
    %v7086 = vpop.f32.mrf.mxu0
    %7087 = vdwg.mxu0
    %7088 = vmatpush.bf16.msra.mxu0 %v4268
    %7089 = vmatpush.bf16.msra.mxu0 %v4260
    %7090 = vmatpush.bf16.msra.mxu0 %v4252
    %7091 = vmatpush.bf16.msra.mxu0 %v4244
    %7092 = vmatpush.bf16.msra.mxu0 %v4236
    %7093 = vmatpush.bf16.msra.mxu0 %v4228
    %7094 = vmatpush.bf16.msra.mxu0 %v4220
    %7095 = vmatpush.bf16.msra.mxu0 %v4212
    %7096 = vmatmul.bf16.gmra.mxu0 %v1104
    %v7097 = vpop.f32.mrf.mxu0
    %v7098 = vadd.f32 %v1068, %v7097
    %v7099 = vpop.f32.mrf.mxu0
    %7100 = vdwg.mxu0
    %7101 = vmatpush.bf16.msra.mxu0 %v4332
    %7102 = vmatpush.bf16.msra.mxu0 %v4324
    %7103 = vmatpush.bf16.msra.mxu0 %v4316
    %7104 = vmatpush.bf16.msra.mxu0 %v4308
    %7105 = vmatpush.bf16.msra.mxu0 %v4300
    %7106 = vmatpush.bf16.msra.mxu0 %v4292
    %7107 = vmatpush.bf16.msra.mxu0 %v4284
    %7108 = vmatpush.bf16.msra.mxu0 %v4276
    %7109 = vmatmul.bf16.gmra.mxu0 %v1105
    %v7110 = vpop.f32.mrf.mxu0
    %v7111 = vadd.f32 %v7098, %v7110
    %v7112 = vpop.f32.mrf.mxu0
    %7113 = vdwg.mxu0
    %7114 = vmatpush.bf16.msra.mxu0 %v4396
    %7115 = vmatpush.bf16.msra.mxu0 %v4388
    %7116 = vmatpush.bf16.msra.mxu0 %v4380
    %7117 = vmatpush.bf16.msra.mxu0 %v4372
    %7118 = vmatpush.bf16.msra.mxu0 %v4364
    %7119 = vmatpush.bf16.msra.mxu0 %v4356
    %7120 = vmatpush.bf16.msra.mxu0 %v4348
    %7121 = vmatpush.bf16.msra.mxu0 %v4340
    %7122 = vmatmul.bf16.gmra.mxu0 %v1106
    %v7123 = vpop.f32.mrf.mxu0
    %v7124 = vadd.f32 %v7111, %v7123
    %v7125 = vpop.f32.mrf.mxu0
    %7126 = vdwg.mxu0
    %7127 = vmatpush.bf16.msra.mxu0 %v4460
    %7128 = vmatpush.bf16.msra.mxu0 %v4452
    %7129 = vmatpush.bf16.msra.mxu0 %v4444
    %7130 = vmatpush.bf16.msra.mxu0 %v4436
    %7131 = vmatpush.bf16.msra.mxu0 %v4428
    %7132 = vmatpush.bf16.msra.mxu0 %v4420
    %7133 = vmatpush.bf16.msra.mxu0 %v4412
    %7134 = vmatpush.bf16.msra.mxu0 %v4404
    %7135 = vmatmul.bf16.gmra.mxu0 %v1107
    %v7136 = vpop.f32.mrf.mxu0
    %v7137 = vadd.f32 %v7124, %v7136
    %v7138 = vpop.f32.mrf.mxu0
    %7139 = vdwg.mxu0
    %7140 = vmatpush.bf16.msra.mxu0 %v4524
    %7141 = vmatpush.bf16.msra.mxu0 %v4516
    %7142 = vmatpush.bf16.msra.mxu0 %v4508
    %7143 = vmatpush.bf16.msra.mxu0 %v4500
    %7144 = vmatpush.bf16.msra.mxu0 %v4492
    %7145 = vmatpush.bf16.msra.mxu0 %v4484
    %7146 = vmatpush.bf16.msra.mxu0 %v4476
    %7147 = vmatpush.bf16.msra.mxu0 %v4468
    %7148 = vmatmul.bf16.gmra.mxu0 %v1108
    %v7149 = vpop.f32.mrf.mxu0
    %v7150 = vadd.f32 %v7137, %v7149
    %v7151 = vpop.f32.mrf.mxu0
    %7152 = vdwg.mxu0
    %7153 = vmatpush.bf16.msra.mxu0 %v4588
    %7154 = vmatpush.bf16.msra.mxu0 %v4580
    %7155 = vmatpush.bf16.msra.mxu0 %v4572
    %7156 = vmatpush.bf16.msra.mxu0 %v4564
    %7157 = vmatpush.bf16.msra.mxu0 %v4556
    %7158 = vmatpush.bf16.msra.mxu0 %v4548
    %7159 = vmatpush.bf16.msra.mxu0 %v4540
    %7160 = vmatpush.bf16.msra.mxu0 %v4532
    %7161 = vmatmul.bf16.gmra.mxu0 %v1109
    %v7162 = vpop.f32.mrf.mxu0
    %v7163 = vadd.f32 %v7150, %v7162
    %v7164 = vpop.f32.mrf.mxu0
    %7165 = vdwg.mxu0
    %7166 = vmatpush.bf16.msra.mxu0 %v4652
    %7167 = vmatpush.bf16.msra.mxu0 %v4644
    %7168 = vmatpush.bf16.msra.mxu0 %v4636
    %7169 = vmatpush.bf16.msra.mxu0 %v4628
    %7170 = vmatpush.bf16.msra.mxu0 %v4620
    %7171 = vmatpush.bf16.msra.mxu0 %v4612
    %7172 = vmatpush.bf16.msra.mxu0 %v4604
    %7173 = vmatpush.bf16.msra.mxu0 %v4596
    %7174 = vmatmul.bf16.gmra.mxu0 %v1110
    %v7175 = vpop.f32.mrf.mxu0
    %v7176 = vadd.f32 %v7163, %v7175
    %v7177 = vpop.f32.mrf.mxu0
    %7178 = vdwg.mxu0
    %7179 = vmatpush.bf16.msra.mxu0 %v4716
    %7180 = vmatpush.bf16.msra.mxu0 %v4708
    %7181 = vmatpush.bf16.msra.mxu0 %v4700
    %7182 = vmatpush.bf16.msra.mxu0 %v4692
    %7183 = vmatpush.bf16.msra.mxu0 %v4684
    %7184 = vmatpush.bf16.msra.mxu0 %v4676
    %7185 = vmatpush.bf16.msra.mxu0 %v4668
    %7186 = vmatpush.bf16.msra.mxu0 %v4660
    %7187 = vmatmul.bf16.gmra.mxu0 %v1111
    %v7188 = vpop.f32.mrf.mxu0
    %v7189 = vadd.f32 %v7176, %v7188
    %v7190 = vpop.f32.mrf.mxu0
    %7191 = vdwg.mxu0
    %7192 = vmatpush.bf16.msra.mxu0 %v4780
    %7193 = vmatpush.bf16.msra.mxu0 %v4772
    %7194 = vmatpush.bf16.msra.mxu0 %v4764
    %7195 = vmatpush.bf16.msra.mxu0 %v4756
    %7196 = vmatpush.bf16.msra.mxu0 %v4748
    %7197 = vmatpush.bf16.msra.mxu0 %v4740
    %7198 = vmatpush.bf16.msra.mxu0 %v4732
    %7199 = vmatpush.bf16.msra.mxu0 %v4724
    %7200 = vmatmul.bf16.gmra.mxu0 %v1112
    %v7201 = vpop.f32.mrf.mxu0
    %v7202 = vadd.f32 %v7189, %v7201
    %v7203 = vpop.f32.mrf.mxu0
    %7204 = vdwg.mxu0
    %7205 = vmatpush.bf16.msra.mxu0 %v4844
    %7206 = vmatpush.bf16.msra.mxu0 %v4836
    %7207 = vmatpush.bf16.msra.mxu0 %v4828
    %7208 = vmatpush.bf16.msra.mxu0 %v4820
    %7209 = vmatpush.bf16.msra.mxu0 %v4812
    %7210 = vmatpush.bf16.msra.mxu0 %v4804
    %7211 = vmatpush.bf16.msra.mxu0 %v4796
    %7212 = vmatpush.bf16.msra.mxu0 %v4788
    %7213 = vmatmul.bf16.gmra.mxu0 %v1113
    %v7214 = vpop.f32.mrf.mxu0
    %v7215 = vadd.f32 %v7202, %v7214
    %v7216 = vpop.f32.mrf.mxu0
    %7217 = vdwg.mxu0
    %7218 = vmatpush.bf16.msra.mxu0 %v4908
    %7219 = vmatpush.bf16.msra.mxu0 %v4900
    %7220 = vmatpush.bf16.msra.mxu0 %v4892
    %7221 = vmatpush.bf16.msra.mxu0 %v4884
    %7222 = vmatpush.bf16.msra.mxu0 %v4876
    %7223 = vmatpush.bf16.msra.mxu0 %v4868
    %7224 = vmatpush.bf16.msra.mxu0 %v4860
    %7225 = vmatpush.bf16.msra.mxu0 %v4852
    %7226 = vmatmul.bf16.gmra.mxu0 %v1114
    %v7227 = vpop.f32.mrf.mxu0
    %v7228 = vadd.f32 %v7215, %v7227
    %v7229 = vpop.f32.mrf.mxu0
    %7230 = vdwg.mxu0
    %7231 = vmatpush.bf16.msra.mxu0 %v4972
    %7232 = vmatpush.bf16.msra.mxu0 %v4964
    %7233 = vmatpush.bf16.msra.mxu0 %v4956
    %7234 = vmatpush.bf16.msra.mxu0 %v4948
    %7235 = vmatpush.bf16.msra.mxu0 %v4940
    %7236 = vmatpush.bf16.msra.mxu0 %v4932
    %7237 = vmatpush.bf16.msra.mxu0 %v4924
    %7238 = vmatpush.bf16.msra.mxu0 %v4916
    %7239 = vmatmul.bf16.gmra.mxu0 %v1115
    %v7240 = vpop.f32.mrf.mxu0
    %v7241 = vadd.f32 %v7228, %v7240
    %v7242 = vpop.f32.mrf.mxu0
    %7243 = vdwg.mxu0
    %7244 = vmatpush.bf16.msra.mxu0 %v5036
    %7245 = vmatpush.bf16.msra.mxu0 %v5028
    %7246 = vmatpush.bf16.msra.mxu0 %v5020
    %7247 = vmatpush.bf16.msra.mxu0 %v5012
    %7248 = vmatpush.bf16.msra.mxu0 %v5004
    %7249 = vmatpush.bf16.msra.mxu0 %v4996
    %7250 = vmatpush.bf16.msra.mxu0 %v4988
    %7251 = vmatpush.bf16.msra.mxu0 %v4980
    %7252 = vmatmul.bf16.gmra.mxu0 %v1116
    %v7253 = vpop.f32.mrf.mxu0
    %v7254 = vadd.f32 %v7241, %v7253
    %v7255 = vpop.f32.mrf.mxu0
    %7256 = vdwg.mxu0
    %7257 = vmatpush.bf16.msra.mxu0 %v5100
    %7258 = vmatpush.bf16.msra.mxu0 %v5092
    %7259 = vmatpush.bf16.msra.mxu0 %v5084
    %7260 = vmatpush.bf16.msra.mxu0 %v5076
    %7261 = vmatpush.bf16.msra.mxu0 %v5068
    %7262 = vmatpush.bf16.msra.mxu0 %v5060
    %7263 = vmatpush.bf16.msra.mxu0 %v5052
    %7264 = vmatpush.bf16.msra.mxu0 %v5044
    %7265 = vmatmul.bf16.gmra.mxu0 %v1117
    %v7266 = vpop.f32.mrf.mxu0
    %v7267 = vadd.f32 %v7254, %v7266
    %v7268 = vpop.f32.mrf.mxu0
    %7269 = vdwg.mxu0
    %7270 = vmatpush.bf16.msra.mxu0 %v5164
    %7271 = vmatpush.bf16.msra.mxu0 %v5156
    %7272 = vmatpush.bf16.msra.mxu0 %v5148
    %7273 = vmatpush.bf16.msra.mxu0 %v5140
    %7274 = vmatpush.bf16.msra.mxu0 %v5132
    %7275 = vmatpush.bf16.msra.mxu0 %v5124
    %7276 = vmatpush.bf16.msra.mxu0 %v5116
    %7277 = vmatpush.bf16.msra.mxu0 %v5108
    %7278 = vmatmul.bf16.gmra.mxu0 %v1118
    %v7279 = vpop.f32.mrf.mxu0
    %v7280 = vadd.f32 %v7267, %v7279
    %v7281 = vpop.f32.mrf.mxu0
    %7282 = vdwg.mxu0
    %7283 = vmatpush.bf16.msra.mxu0 %v5228
    %7284 = vmatpush.bf16.msra.mxu0 %v5220
    %7285 = vmatpush.bf16.msra.mxu0 %v5212
    %7286 = vmatpush.bf16.msra.mxu0 %v5204
    %7287 = vmatpush.bf16.msra.mxu0 %v5196
    %7288 = vmatpush.bf16.msra.mxu0 %v5188
    %7289 = vmatpush.bf16.msra.mxu0 %v5180
    %7290 = vmatpush.bf16.msra.mxu0 %v5172
    %7291 = vmatmul.bf16.gmra.mxu0 %v1119
    %v7292 = vpop.f32.mrf.mxu0
    %v7293 = vadd.f32 %v7280, %v7292
    %v7294 = vpop.f32.mrf.mxu0
    %7295 = vdwg.mxu0
    %7296 = vmatpush.bf16.msra.mxu0 %v4269
    %7297 = vmatpush.bf16.msra.mxu0 %v4261
    %7298 = vmatpush.bf16.msra.mxu0 %v4253
    %7299 = vmatpush.bf16.msra.mxu0 %v4245
    %7300 = vmatpush.bf16.msra.mxu0 %v4237
    %7301 = vmatpush.bf16.msra.mxu0 %v4229
    %7302 = vmatpush.bf16.msra.mxu0 %v4221
    %7303 = vmatpush.bf16.msra.mxu0 %v4213
    %7304 = vmatmul.bf16.gmra.mxu0 %v1104
    %v7305 = vpop.f32.mrf.mxu0
    %v7306 = vadd.f32 %v1069, %v7305
    %v7307 = vpop.f32.mrf.mxu0
    %7308 = vdwg.mxu0
    %7309 = vmatpush.bf16.msra.mxu0 %v4333
    %7310 = vmatpush.bf16.msra.mxu0 %v4325
    %7311 = vmatpush.bf16.msra.mxu0 %v4317
    %7312 = vmatpush.bf16.msra.mxu0 %v4309
    %7313 = vmatpush.bf16.msra.mxu0 %v4301
    %7314 = vmatpush.bf16.msra.mxu0 %v4293
    %7315 = vmatpush.bf16.msra.mxu0 %v4285
    %7316 = vmatpush.bf16.msra.mxu0 %v4277
    %7317 = vmatmul.bf16.gmra.mxu0 %v1105
    %v7318 = vpop.f32.mrf.mxu0
    %v7319 = vadd.f32 %v7306, %v7318
    %v7320 = vpop.f32.mrf.mxu0
    %7321 = vdwg.mxu0
    %7322 = vmatpush.bf16.msra.mxu0 %v4397
    %7323 = vmatpush.bf16.msra.mxu0 %v4389
    %7324 = vmatpush.bf16.msra.mxu0 %v4381
    %7325 = vmatpush.bf16.msra.mxu0 %v4373
    %7326 = vmatpush.bf16.msra.mxu0 %v4365
    %7327 = vmatpush.bf16.msra.mxu0 %v4357
    %7328 = vmatpush.bf16.msra.mxu0 %v4349
    %7329 = vmatpush.bf16.msra.mxu0 %v4341
    %7330 = vmatmul.bf16.gmra.mxu0 %v1106
    %v7331 = vpop.f32.mrf.mxu0
    %v7332 = vadd.f32 %v7319, %v7331
    %v7333 = vpop.f32.mrf.mxu0
    %7334 = vdwg.mxu0
    %7335 = vmatpush.bf16.msra.mxu0 %v4461
    %7336 = vmatpush.bf16.msra.mxu0 %v4453
    %7337 = vmatpush.bf16.msra.mxu0 %v4445
    %7338 = vmatpush.bf16.msra.mxu0 %v4437
    %7339 = vmatpush.bf16.msra.mxu0 %v4429
    %7340 = vmatpush.bf16.msra.mxu0 %v4421
    %7341 = vmatpush.bf16.msra.mxu0 %v4413
    %7342 = vmatpush.bf16.msra.mxu0 %v4405
    %7343 = vmatmul.bf16.gmra.mxu0 %v1107
    %v7344 = vpop.f32.mrf.mxu0
    %v7345 = vadd.f32 %v7332, %v7344
    %v7346 = vpop.f32.mrf.mxu0
    %7347 = vdwg.mxu0
    %7348 = vmatpush.bf16.msra.mxu0 %v4525
    %7349 = vmatpush.bf16.msra.mxu0 %v4517
    %7350 = vmatpush.bf16.msra.mxu0 %v4509
    %7351 = vmatpush.bf16.msra.mxu0 %v4501
    %7352 = vmatpush.bf16.msra.mxu0 %v4493
    %7353 = vmatpush.bf16.msra.mxu0 %v4485
    %7354 = vmatpush.bf16.msra.mxu0 %v4477
    %7355 = vmatpush.bf16.msra.mxu0 %v4469
    %7356 = vmatmul.bf16.gmra.mxu0 %v1108
    %v7357 = vpop.f32.mrf.mxu0
    %v7358 = vadd.f32 %v7345, %v7357
    %v7359 = vpop.f32.mrf.mxu0
    %7360 = vdwg.mxu0
    %7361 = vmatpush.bf16.msra.mxu0 %v4589
    %7362 = vmatpush.bf16.msra.mxu0 %v4581
    %7363 = vmatpush.bf16.msra.mxu0 %v4573
    %7364 = vmatpush.bf16.msra.mxu0 %v4565
    %7365 = vmatpush.bf16.msra.mxu0 %v4557
    %7366 = vmatpush.bf16.msra.mxu0 %v4549
    %7367 = vmatpush.bf16.msra.mxu0 %v4541
    %7368 = vmatpush.bf16.msra.mxu0 %v4533
    %7369 = vmatmul.bf16.gmra.mxu0 %v1109
    %v7370 = vpop.f32.mrf.mxu0
    %v7371 = vadd.f32 %v7358, %v7370
    %v7372 = vpop.f32.mrf.mxu0
    %7373 = vdwg.mxu0
    %7374 = vmatpush.bf16.msra.mxu0 %v4653
    %7375 = vmatpush.bf16.msra.mxu0 %v4645
    %7376 = vmatpush.bf16.msra.mxu0 %v4637
    %7377 = vmatpush.bf16.msra.mxu0 %v4629
    %7378 = vmatpush.bf16.msra.mxu0 %v4621
    %7379 = vmatpush.bf16.msra.mxu0 %v4613
    %7380 = vmatpush.bf16.msra.mxu0 %v4605
    %7381 = vmatpush.bf16.msra.mxu0 %v4597
    %7382 = vmatmul.bf16.gmra.mxu0 %v1110
    %v7383 = vpop.f32.mrf.mxu0
    %v7384 = vadd.f32 %v7371, %v7383
    %v7385 = vpop.f32.mrf.mxu0
    %7386 = vdwg.mxu0
    %7387 = vmatpush.bf16.msra.mxu0 %v4717
    %7388 = vmatpush.bf16.msra.mxu0 %v4709
    %7389 = vmatpush.bf16.msra.mxu0 %v4701
    %7390 = vmatpush.bf16.msra.mxu0 %v4693
    %7391 = vmatpush.bf16.msra.mxu0 %v4685
    %7392 = vmatpush.bf16.msra.mxu0 %v4677
    %7393 = vmatpush.bf16.msra.mxu0 %v4669
    %7394 = vmatpush.bf16.msra.mxu0 %v4661
    %7395 = vmatmul.bf16.gmra.mxu0 %v1111
    %v7396 = vpop.f32.mrf.mxu0
    %v7397 = vadd.f32 %v7384, %v7396
    %v7398 = vpop.f32.mrf.mxu0
    %7399 = vdwg.mxu0
    %7400 = vmatpush.bf16.msra.mxu0 %v4781
    %7401 = vmatpush.bf16.msra.mxu0 %v4773
    %7402 = vmatpush.bf16.msra.mxu0 %v4765
    %7403 = vmatpush.bf16.msra.mxu0 %v4757
    %7404 = vmatpush.bf16.msra.mxu0 %v4749
    %7405 = vmatpush.bf16.msra.mxu0 %v4741
    %7406 = vmatpush.bf16.msra.mxu0 %v4733
    %7407 = vmatpush.bf16.msra.mxu0 %v4725
    %7408 = vmatmul.bf16.gmra.mxu0 %v1112
    %v7409 = vpop.f32.mrf.mxu0
    %v7410 = vadd.f32 %v7397, %v7409
    %v7411 = vpop.f32.mrf.mxu0
    %7412 = vdwg.mxu0
    %7413 = vmatpush.bf16.msra.mxu0 %v4845
    %7414 = vmatpush.bf16.msra.mxu0 %v4837
    %7415 = vmatpush.bf16.msra.mxu0 %v4829
    %7416 = vmatpush.bf16.msra.mxu0 %v4821
    %7417 = vmatpush.bf16.msra.mxu0 %v4813
    %7418 = vmatpush.bf16.msra.mxu0 %v4805
    %7419 = vmatpush.bf16.msra.mxu0 %v4797
    %7420 = vmatpush.bf16.msra.mxu0 %v4789
    %7421 = vmatmul.bf16.gmra.mxu0 %v1113
    %v7422 = vpop.f32.mrf.mxu0
    %v7423 = vadd.f32 %v7410, %v7422
    %v7424 = vpop.f32.mrf.mxu0
    %7425 = vdwg.mxu0
    %7426 = vmatpush.bf16.msra.mxu0 %v4909
    %7427 = vmatpush.bf16.msra.mxu0 %v4901
    %7428 = vmatpush.bf16.msra.mxu0 %v4893
    %7429 = vmatpush.bf16.msra.mxu0 %v4885
    %7430 = vmatpush.bf16.msra.mxu0 %v4877
    %7431 = vmatpush.bf16.msra.mxu0 %v4869
    %7432 = vmatpush.bf16.msra.mxu0 %v4861
    %7433 = vmatpush.bf16.msra.mxu0 %v4853
    %7434 = vmatmul.bf16.gmra.mxu0 %v1114
    %v7435 = vpop.f32.mrf.mxu0
    %v7436 = vadd.f32 %v7423, %v7435
    %v7437 = vpop.f32.mrf.mxu0
    %7438 = vdwg.mxu0
    %7439 = vmatpush.bf16.msra.mxu0 %v4973
    %7440 = vmatpush.bf16.msra.mxu0 %v4965
    %7441 = vmatpush.bf16.msra.mxu0 %v4957
    %7442 = vmatpush.bf16.msra.mxu0 %v4949
    %7443 = vmatpush.bf16.msra.mxu0 %v4941
    %7444 = vmatpush.bf16.msra.mxu0 %v4933
    %7445 = vmatpush.bf16.msra.mxu0 %v4925
    %7446 = vmatpush.bf16.msra.mxu0 %v4917
    %7447 = vmatmul.bf16.gmra.mxu0 %v1115
    %v7448 = vpop.f32.mrf.mxu0
    %v7449 = vadd.f32 %v7436, %v7448
    %v7450 = vpop.f32.mrf.mxu0
    %7451 = vdwg.mxu0
    %7452 = vmatpush.bf16.msra.mxu0 %v5037
    %7453 = vmatpush.bf16.msra.mxu0 %v5029
    %7454 = vmatpush.bf16.msra.mxu0 %v5021
    %7455 = vmatpush.bf16.msra.mxu0 %v5013
    %7456 = vmatpush.bf16.msra.mxu0 %v5005
    %7457 = vmatpush.bf16.msra.mxu0 %v4997
    %7458 = vmatpush.bf16.msra.mxu0 %v4989
    %7459 = vmatpush.bf16.msra.mxu0 %v4981
    %7460 = vmatmul.bf16.gmra.mxu0 %v1116
    %v7461 = vpop.f32.mrf.mxu0
    %v7462 = vadd.f32 %v7449, %v7461
    %v7463 = vpop.f32.mrf.mxu0
    %7464 = vdwg.mxu0
    %7465 = vmatpush.bf16.msra.mxu0 %v5101
    %7466 = vmatpush.bf16.msra.mxu0 %v5093
    %7467 = vmatpush.bf16.msra.mxu0 %v5085
    %7468 = vmatpush.bf16.msra.mxu0 %v5077
    %7469 = vmatpush.bf16.msra.mxu0 %v5069
    %7470 = vmatpush.bf16.msra.mxu0 %v5061
    %7471 = vmatpush.bf16.msra.mxu0 %v5053
    %7472 = vmatpush.bf16.msra.mxu0 %v5045
    %7473 = vmatmul.bf16.gmra.mxu0 %v1117
    %v7474 = vpop.f32.mrf.mxu0
    %v7475 = vadd.f32 %v7462, %v7474
    %v7476 = vpop.f32.mrf.mxu0
    %7477 = vdwg.mxu0
    %7478 = vmatpush.bf16.msra.mxu0 %v5165
    %7479 = vmatpush.bf16.msra.mxu0 %v5157
    %7480 = vmatpush.bf16.msra.mxu0 %v5149
    %7481 = vmatpush.bf16.msra.mxu0 %v5141
    %7482 = vmatpush.bf16.msra.mxu0 %v5133
    %7483 = vmatpush.bf16.msra.mxu0 %v5125
    %7484 = vmatpush.bf16.msra.mxu0 %v5117
    %7485 = vmatpush.bf16.msra.mxu0 %v5109
    %7486 = vmatmul.bf16.gmra.mxu0 %v1118
    %v7487 = vpop.f32.mrf.mxu0
    %v7488 = vadd.f32 %v7475, %v7487
    %v7489 = vpop.f32.mrf.mxu0
    %7490 = vdwg.mxu0
    %7491 = vmatpush.bf16.msra.mxu0 %v5229
    %7492 = vmatpush.bf16.msra.mxu0 %v5221
    %7493 = vmatpush.bf16.msra.mxu0 %v5213
    %7494 = vmatpush.bf16.msra.mxu0 %v5205
    %7495 = vmatpush.bf16.msra.mxu0 %v5197
    %7496 = vmatpush.bf16.msra.mxu0 %v5189
    %7497 = vmatpush.bf16.msra.mxu0 %v5181
    %7498 = vmatpush.bf16.msra.mxu0 %v5173
    %7499 = vmatmul.bf16.gmra.mxu0 %v1119
    %v7500 = vpop.f32.mrf.mxu0
    %v7501 = vadd.f32 %v7488, %v7500
    %v7502 = vpop.f32.mrf.mxu0
    %7503 = vdwg.mxu0
    %7504 = vmatpush.bf16.msra.mxu0 %v4270
    %7505 = vmatpush.bf16.msra.mxu0 %v4262
    %7506 = vmatpush.bf16.msra.mxu0 %v4254
    %7507 = vmatpush.bf16.msra.mxu0 %v4246
    %7508 = vmatpush.bf16.msra.mxu0 %v4238
    %7509 = vmatpush.bf16.msra.mxu0 %v4230
    %7510 = vmatpush.bf16.msra.mxu0 %v4222
    %7511 = vmatpush.bf16.msra.mxu0 %v4214
    %7512 = vmatmul.bf16.gmra.mxu0 %v1104
    %v7513 = vpop.f32.mrf.mxu0
    %v7514 = vadd.f32 %v1070, %v7513
    %v7515 = vpop.f32.mrf.mxu0
    %7516 = vdwg.mxu0
    %7517 = vmatpush.bf16.msra.mxu0 %v4334
    %7518 = vmatpush.bf16.msra.mxu0 %v4326
    %7519 = vmatpush.bf16.msra.mxu0 %v4318
    %7520 = vmatpush.bf16.msra.mxu0 %v4310
    %7521 = vmatpush.bf16.msra.mxu0 %v4302
    %7522 = vmatpush.bf16.msra.mxu0 %v4294
    %7523 = vmatpush.bf16.msra.mxu0 %v4286
    %7524 = vmatpush.bf16.msra.mxu0 %v4278
    %7525 = vmatmul.bf16.gmra.mxu0 %v1105
    %v7526 = vpop.f32.mrf.mxu0
    %v7527 = vadd.f32 %v7514, %v7526
    %v7528 = vpop.f32.mrf.mxu0
    %7529 = vdwg.mxu0
    %7530 = vmatpush.bf16.msra.mxu0 %v4398
    %7531 = vmatpush.bf16.msra.mxu0 %v4390
    %7532 = vmatpush.bf16.msra.mxu0 %v4382
    %7533 = vmatpush.bf16.msra.mxu0 %v4374
    %7534 = vmatpush.bf16.msra.mxu0 %v4366
    %7535 = vmatpush.bf16.msra.mxu0 %v4358
    %7536 = vmatpush.bf16.msra.mxu0 %v4350
    %7537 = vmatpush.bf16.msra.mxu0 %v4342
    %7538 = vmatmul.bf16.gmra.mxu0 %v1106
    %v7539 = vpop.f32.mrf.mxu0
    %v7540 = vadd.f32 %v7527, %v7539
    %v7541 = vpop.f32.mrf.mxu0
    %7542 = vdwg.mxu0
    %7543 = vmatpush.bf16.msra.mxu0 %v4462
    %7544 = vmatpush.bf16.msra.mxu0 %v4454
    %7545 = vmatpush.bf16.msra.mxu0 %v4446
    %7546 = vmatpush.bf16.msra.mxu0 %v4438
    %7547 = vmatpush.bf16.msra.mxu0 %v4430
    %7548 = vmatpush.bf16.msra.mxu0 %v4422
    %7549 = vmatpush.bf16.msra.mxu0 %v4414
    %7550 = vmatpush.bf16.msra.mxu0 %v4406
    %7551 = vmatmul.bf16.gmra.mxu0 %v1107
    %v7552 = vpop.f32.mrf.mxu0
    %v7553 = vadd.f32 %v7540, %v7552
    %v7554 = vpop.f32.mrf.mxu0
    %7555 = vdwg.mxu0
    %7556 = vmatpush.bf16.msra.mxu0 %v4526
    %7557 = vmatpush.bf16.msra.mxu0 %v4518
    %7558 = vmatpush.bf16.msra.mxu0 %v4510
    %7559 = vmatpush.bf16.msra.mxu0 %v4502
    %7560 = vmatpush.bf16.msra.mxu0 %v4494
    %7561 = vmatpush.bf16.msra.mxu0 %v4486
    %7562 = vmatpush.bf16.msra.mxu0 %v4478
    %7563 = vmatpush.bf16.msra.mxu0 %v4470
    %7564 = vmatmul.bf16.gmra.mxu0 %v1108
    %v7565 = vpop.f32.mrf.mxu0
    %v7566 = vadd.f32 %v7553, %v7565
    %v7567 = vpop.f32.mrf.mxu0
    %7568 = vdwg.mxu0
    %7569 = vmatpush.bf16.msra.mxu0 %v4590
    %7570 = vmatpush.bf16.msra.mxu0 %v4582
    %7571 = vmatpush.bf16.msra.mxu0 %v4574
    %7572 = vmatpush.bf16.msra.mxu0 %v4566
    %7573 = vmatpush.bf16.msra.mxu0 %v4558
    %7574 = vmatpush.bf16.msra.mxu0 %v4550
    %7575 = vmatpush.bf16.msra.mxu0 %v4542
    %7576 = vmatpush.bf16.msra.mxu0 %v4534
    %7577 = vmatmul.bf16.gmra.mxu0 %v1109
    %v7578 = vpop.f32.mrf.mxu0
    %v7579 = vadd.f32 %v7566, %v7578
    %v7580 = vpop.f32.mrf.mxu0
    %7581 = vdwg.mxu0
    %7582 = vmatpush.bf16.msra.mxu0 %v4654
    %7583 = vmatpush.bf16.msra.mxu0 %v4646
    %7584 = vmatpush.bf16.msra.mxu0 %v4638
    %7585 = vmatpush.bf16.msra.mxu0 %v4630
    %7586 = vmatpush.bf16.msra.mxu0 %v4622
    %7587 = vmatpush.bf16.msra.mxu0 %v4614
    %7588 = vmatpush.bf16.msra.mxu0 %v4606
    %7589 = vmatpush.bf16.msra.mxu0 %v4598
    %7590 = vmatmul.bf16.gmra.mxu0 %v1110
    %v7591 = vpop.f32.mrf.mxu0
    %v7592 = vadd.f32 %v7579, %v7591
    %v7593 = vpop.f32.mrf.mxu0
    %7594 = vdwg.mxu0
    %7595 = vmatpush.bf16.msra.mxu0 %v4718
    %7596 = vmatpush.bf16.msra.mxu0 %v4710
    %7597 = vmatpush.bf16.msra.mxu0 %v4702
    %7598 = vmatpush.bf16.msra.mxu0 %v4694
    %7599 = vmatpush.bf16.msra.mxu0 %v4686
    %7600 = vmatpush.bf16.msra.mxu0 %v4678
    %7601 = vmatpush.bf16.msra.mxu0 %v4670
    %7602 = vmatpush.bf16.msra.mxu0 %v4662
    %7603 = vmatmul.bf16.gmra.mxu0 %v1111
    %v7604 = vpop.f32.mrf.mxu0
    %v7605 = vadd.f32 %v7592, %v7604
    %v7606 = vpop.f32.mrf.mxu0
    %7607 = vdwg.mxu0
    %7608 = vmatpush.bf16.msra.mxu0 %v4782
    %7609 = vmatpush.bf16.msra.mxu0 %v4774
    %7610 = vmatpush.bf16.msra.mxu0 %v4766
    %7611 = vmatpush.bf16.msra.mxu0 %v4758
    %7612 = vmatpush.bf16.msra.mxu0 %v4750
    %7613 = vmatpush.bf16.msra.mxu0 %v4742
    %7614 = vmatpush.bf16.msra.mxu0 %v4734
    %7615 = vmatpush.bf16.msra.mxu0 %v4726
    %7616 = vmatmul.bf16.gmra.mxu0 %v1112
    %v7617 = vpop.f32.mrf.mxu0
    %v7618 = vadd.f32 %v7605, %v7617
    %v7619 = vpop.f32.mrf.mxu0
    %7620 = vdwg.mxu0
    %7621 = vmatpush.bf16.msra.mxu0 %v4846
    %7622 = vmatpush.bf16.msra.mxu0 %v4838
    %7623 = vmatpush.bf16.msra.mxu0 %v4830
    %7624 = vmatpush.bf16.msra.mxu0 %v4822
    %7625 = vmatpush.bf16.msra.mxu0 %v4814
    %7626 = vmatpush.bf16.msra.mxu0 %v4806
    %7627 = vmatpush.bf16.msra.mxu0 %v4798
    %7628 = vmatpush.bf16.msra.mxu0 %v4790
    %7629 = vmatmul.bf16.gmra.mxu0 %v1113
    %v7630 = vpop.f32.mrf.mxu0
    %v7631 = vadd.f32 %v7618, %v7630
    %v7632 = vpop.f32.mrf.mxu0
    %7633 = vdwg.mxu0
    %7634 = vmatpush.bf16.msra.mxu0 %v4910
    %7635 = vmatpush.bf16.msra.mxu0 %v4902
    %7636 = vmatpush.bf16.msra.mxu0 %v4894
    %7637 = vmatpush.bf16.msra.mxu0 %v4886
    %7638 = vmatpush.bf16.msra.mxu0 %v4878
    %7639 = vmatpush.bf16.msra.mxu0 %v4870
    %7640 = vmatpush.bf16.msra.mxu0 %v4862
    %7641 = vmatpush.bf16.msra.mxu0 %v4854
    %7642 = vmatmul.bf16.gmra.mxu0 %v1114
    %v7643 = vpop.f32.mrf.mxu0
    %v7644 = vadd.f32 %v7631, %v7643
    %v7645 = vpop.f32.mrf.mxu0
    %7646 = vdwg.mxu0
    %7647 = vmatpush.bf16.msra.mxu0 %v4974
    %7648 = vmatpush.bf16.msra.mxu0 %v4966
    %7649 = vmatpush.bf16.msra.mxu0 %v4958
    %7650 = vmatpush.bf16.msra.mxu0 %v4950
    %7651 = vmatpush.bf16.msra.mxu0 %v4942
    %7652 = vmatpush.bf16.msra.mxu0 %v4934
    %7653 = vmatpush.bf16.msra.mxu0 %v4926
    %7654 = vmatpush.bf16.msra.mxu0 %v4918
    %7655 = vmatmul.bf16.gmra.mxu0 %v1115
    %v7656 = vpop.f32.mrf.mxu0
    %v7657 = vadd.f32 %v7644, %v7656
    %v7658 = vpop.f32.mrf.mxu0
    %7659 = vdwg.mxu0
    %7660 = vmatpush.bf16.msra.mxu0 %v5038
    %7661 = vmatpush.bf16.msra.mxu0 %v5030
    %7662 = vmatpush.bf16.msra.mxu0 %v5022
    %7663 = vmatpush.bf16.msra.mxu0 %v5014
    %7664 = vmatpush.bf16.msra.mxu0 %v5006
    %7665 = vmatpush.bf16.msra.mxu0 %v4998
    %7666 = vmatpush.bf16.msra.mxu0 %v4990
    %7667 = vmatpush.bf16.msra.mxu0 %v4982
    %7668 = vmatmul.bf16.gmra.mxu0 %v1116
    %v7669 = vpop.f32.mrf.mxu0
    %v7670 = vadd.f32 %v7657, %v7669
    %v7671 = vpop.f32.mrf.mxu0
    %7672 = vdwg.mxu0
    %7673 = vmatpush.bf16.msra.mxu0 %v5102
    %7674 = vmatpush.bf16.msra.mxu0 %v5094
    %7675 = vmatpush.bf16.msra.mxu0 %v5086
    %7676 = vmatpush.bf16.msra.mxu0 %v5078
    %7677 = vmatpush.bf16.msra.mxu0 %v5070
    %7678 = vmatpush.bf16.msra.mxu0 %v5062
    %7679 = vmatpush.bf16.msra.mxu0 %v5054
    %7680 = vmatpush.bf16.msra.mxu0 %v5046
    %7681 = vmatmul.bf16.gmra.mxu0 %v1117
    %v7682 = vpop.f32.mrf.mxu0
    %v7683 = vadd.f32 %v7670, %v7682
    %v7684 = vpop.f32.mrf.mxu0
    %7685 = vdwg.mxu0
    %7686 = vmatpush.bf16.msra.mxu0 %v5166
    %7687 = vmatpush.bf16.msra.mxu0 %v5158
    %7688 = vmatpush.bf16.msra.mxu0 %v5150
    %7689 = vmatpush.bf16.msra.mxu0 %v5142
    %7690 = vmatpush.bf16.msra.mxu0 %v5134
    %7691 = vmatpush.bf16.msra.mxu0 %v5126
    %7692 = vmatpush.bf16.msra.mxu0 %v5118
    %7693 = vmatpush.bf16.msra.mxu0 %v5110
    %7694 = vmatmul.bf16.gmra.mxu0 %v1118
    %v7695 = vpop.f32.mrf.mxu0
    %v7696 = vadd.f32 %v7683, %v7695
    %v7697 = vpop.f32.mrf.mxu0
    %7698 = vdwg.mxu0
    %7699 = vmatpush.bf16.msra.mxu0 %v5230
    %7700 = vmatpush.bf16.msra.mxu0 %v5222
    %7701 = vmatpush.bf16.msra.mxu0 %v5214
    %7702 = vmatpush.bf16.msra.mxu0 %v5206
    %7703 = vmatpush.bf16.msra.mxu0 %v5198
    %7704 = vmatpush.bf16.msra.mxu0 %v5190
    %7705 = vmatpush.bf16.msra.mxu0 %v5182
    %7706 = vmatpush.bf16.msra.mxu0 %v5174
    %7707 = vmatmul.bf16.gmra.mxu0 %v1119
    %v7708 = vpop.f32.mrf.mxu0
    %v7709 = vadd.f32 %v7696, %v7708
    %v7710 = vpop.f32.mrf.mxu0
    %7711 = vdwg.mxu0
    %7712 = vmatpush.bf16.msra.mxu0 %v4271
    %7713 = vmatpush.bf16.msra.mxu0 %v4263
    %7714 = vmatpush.bf16.msra.mxu0 %v4255
    %7715 = vmatpush.bf16.msra.mxu0 %v4247
    %7716 = vmatpush.bf16.msra.mxu0 %v4239
    %7717 = vmatpush.bf16.msra.mxu0 %v4231
    %7718 = vmatpush.bf16.msra.mxu0 %v4223
    %7719 = vmatpush.bf16.msra.mxu0 %v4215
    %7720 = vmatmul.bf16.gmra.mxu0 %v1104
    %v7721 = vpop.f32.mrf.mxu0
    %v7722 = vadd.f32 %v1071, %v7721
    %v7723 = vpop.f32.mrf.mxu0
    %7724 = vdwg.mxu0
    %7725 = vmatpush.bf16.msra.mxu0 %v4335
    %7726 = vmatpush.bf16.msra.mxu0 %v4327
    %7727 = vmatpush.bf16.msra.mxu0 %v4319
    %7728 = vmatpush.bf16.msra.mxu0 %v4311
    %7729 = vmatpush.bf16.msra.mxu0 %v4303
    %7730 = vmatpush.bf16.msra.mxu0 %v4295
    %7731 = vmatpush.bf16.msra.mxu0 %v4287
    %7732 = vmatpush.bf16.msra.mxu0 %v4279
    %7733 = vmatmul.bf16.gmra.mxu0 %v1105
    %v7734 = vpop.f32.mrf.mxu0
    %v7735 = vadd.f32 %v7722, %v7734
    %v7736 = vpop.f32.mrf.mxu0
    %7737 = vdwg.mxu0
    %7738 = vmatpush.bf16.msra.mxu0 %v4399
    %7739 = vmatpush.bf16.msra.mxu0 %v4391
    %7740 = vmatpush.bf16.msra.mxu0 %v4383
    %7741 = vmatpush.bf16.msra.mxu0 %v4375
    %7742 = vmatpush.bf16.msra.mxu0 %v4367
    %7743 = vmatpush.bf16.msra.mxu0 %v4359
    %7744 = vmatpush.bf16.msra.mxu0 %v4351
    %7745 = vmatpush.bf16.msra.mxu0 %v4343
    %7746 = vmatmul.bf16.gmra.mxu0 %v1106
    %v7747 = vpop.f32.mrf.mxu0
    %v7748 = vadd.f32 %v7735, %v7747
    %v7749 = vpop.f32.mrf.mxu0
    %7750 = vdwg.mxu0
    %7751 = vmatpush.bf16.msra.mxu0 %v4463
    %7752 = vmatpush.bf16.msra.mxu0 %v4455
    %7753 = vmatpush.bf16.msra.mxu0 %v4447
    %7754 = vmatpush.bf16.msra.mxu0 %v4439
    %7755 = vmatpush.bf16.msra.mxu0 %v4431
    %7756 = vmatpush.bf16.msra.mxu0 %v4423
    %7757 = vmatpush.bf16.msra.mxu0 %v4415
    %7758 = vmatpush.bf16.msra.mxu0 %v4407
    %7759 = vmatmul.bf16.gmra.mxu0 %v1107
    %v7760 = vpop.f32.mrf.mxu0
    %v7761 = vadd.f32 %v7748, %v7760
    %v7762 = vpop.f32.mrf.mxu0
    %7763 = vdwg.mxu0
    %7764 = vmatpush.bf16.msra.mxu0 %v4527
    %7765 = vmatpush.bf16.msra.mxu0 %v4519
    %7766 = vmatpush.bf16.msra.mxu0 %v4511
    %7767 = vmatpush.bf16.msra.mxu0 %v4503
    %7768 = vmatpush.bf16.msra.mxu0 %v4495
    %7769 = vmatpush.bf16.msra.mxu0 %v4487
    %7770 = vmatpush.bf16.msra.mxu0 %v4479
    %7771 = vmatpush.bf16.msra.mxu0 %v4471
    %7772 = vmatmul.bf16.gmra.mxu0 %v1108
    %v7773 = vpop.f32.mrf.mxu0
    %v7774 = vadd.f32 %v7761, %v7773
    %v7775 = vpop.f32.mrf.mxu0
    %7776 = vdwg.mxu0
    %7777 = vmatpush.bf16.msra.mxu0 %v4591
    %7778 = vmatpush.bf16.msra.mxu0 %v4583
    %7779 = vmatpush.bf16.msra.mxu0 %v4575
    %7780 = vmatpush.bf16.msra.mxu0 %v4567
    %7781 = vmatpush.bf16.msra.mxu0 %v4559
    %7782 = vmatpush.bf16.msra.mxu0 %v4551
    %7783 = vmatpush.bf16.msra.mxu0 %v4543
    %7784 = vmatpush.bf16.msra.mxu0 %v4535
    %7785 = vmatmul.bf16.gmra.mxu0 %v1109
    %v7786 = vpop.f32.mrf.mxu0
    %v7787 = vadd.f32 %v7774, %v7786
    %v7788 = vpop.f32.mrf.mxu0
    %7789 = vdwg.mxu0
    %7790 = vmatpush.bf16.msra.mxu0 %v4655
    %7791 = vmatpush.bf16.msra.mxu0 %v4647
    %7792 = vmatpush.bf16.msra.mxu0 %v4639
    %7793 = vmatpush.bf16.msra.mxu0 %v4631
    %7794 = vmatpush.bf16.msra.mxu0 %v4623
    %7795 = vmatpush.bf16.msra.mxu0 %v4615
    %7796 = vmatpush.bf16.msra.mxu0 %v4607
    %7797 = vmatpush.bf16.msra.mxu0 %v4599
    %7798 = vmatmul.bf16.gmra.mxu0 %v1110
    %v7799 = vpop.f32.mrf.mxu0
    %v7800 = vadd.f32 %v7787, %v7799
    %v7801 = vpop.f32.mrf.mxu0
    %7802 = vdwg.mxu0
    %7803 = vmatpush.bf16.msra.mxu0 %v4719
    %7804 = vmatpush.bf16.msra.mxu0 %v4711
    %7805 = vmatpush.bf16.msra.mxu0 %v4703
    %7806 = vmatpush.bf16.msra.mxu0 %v4695
    %7807 = vmatpush.bf16.msra.mxu0 %v4687
    %7808 = vmatpush.bf16.msra.mxu0 %v4679
    %7809 = vmatpush.bf16.msra.mxu0 %v4671
    %7810 = vmatpush.bf16.msra.mxu0 %v4663
    %7811 = vmatmul.bf16.gmra.mxu0 %v1111
    %v7812 = vpop.f32.mrf.mxu0
    %v7813 = vadd.f32 %v7800, %v7812
    %v7814 = vpop.f32.mrf.mxu0
    %7815 = vdwg.mxu0
    %7816 = vmatpush.bf16.msra.mxu0 %v4783
    %7817 = vmatpush.bf16.msra.mxu0 %v4775
    %7818 = vmatpush.bf16.msra.mxu0 %v4767
    %7819 = vmatpush.bf16.msra.mxu0 %v4759
    %7820 = vmatpush.bf16.msra.mxu0 %v4751
    %7821 = vmatpush.bf16.msra.mxu0 %v4743
    %7822 = vmatpush.bf16.msra.mxu0 %v4735
    %7823 = vmatpush.bf16.msra.mxu0 %v4727
    %7824 = vmatmul.bf16.gmra.mxu0 %v1112
    %v7825 = vpop.f32.mrf.mxu0
    %v7826 = vadd.f32 %v7813, %v7825
    %v7827 = vpop.f32.mrf.mxu0
    %7828 = vdwg.mxu0
    %7829 = vmatpush.bf16.msra.mxu0 %v4847
    %7830 = vmatpush.bf16.msra.mxu0 %v4839
    %7831 = vmatpush.bf16.msra.mxu0 %v4831
    %7832 = vmatpush.bf16.msra.mxu0 %v4823
    %7833 = vmatpush.bf16.msra.mxu0 %v4815
    %7834 = vmatpush.bf16.msra.mxu0 %v4807
    %7835 = vmatpush.bf16.msra.mxu0 %v4799
    %7836 = vmatpush.bf16.msra.mxu0 %v4791
    %7837 = vmatmul.bf16.gmra.mxu0 %v1113
    %v7838 = vpop.f32.mrf.mxu0
    %v7839 = vadd.f32 %v7826, %v7838
    %v7840 = vpop.f32.mrf.mxu0
    %7841 = vdwg.mxu0
    %7842 = vmatpush.bf16.msra.mxu0 %v4911
    %7843 = vmatpush.bf16.msra.mxu0 %v4903
    %7844 = vmatpush.bf16.msra.mxu0 %v4895
    %7845 = vmatpush.bf16.msra.mxu0 %v4887
    %7846 = vmatpush.bf16.msra.mxu0 %v4879
    %7847 = vmatpush.bf16.msra.mxu0 %v4871
    %7848 = vmatpush.bf16.msra.mxu0 %v4863
    %7849 = vmatpush.bf16.msra.mxu0 %v4855
    %7850 = vmatmul.bf16.gmra.mxu0 %v1114
    %v7851 = vpop.f32.mrf.mxu0
    %v7852 = vadd.f32 %v7839, %v7851
    %v7853 = vpop.f32.mrf.mxu0
    %7854 = vdwg.mxu0
    %7855 = vmatpush.bf16.msra.mxu0 %v4975
    %7856 = vmatpush.bf16.msra.mxu0 %v4967
    %7857 = vmatpush.bf16.msra.mxu0 %v4959
    %7858 = vmatpush.bf16.msra.mxu0 %v4951
    %7859 = vmatpush.bf16.msra.mxu0 %v4943
    %7860 = vmatpush.bf16.msra.mxu0 %v4935
    %7861 = vmatpush.bf16.msra.mxu0 %v4927
    %7862 = vmatpush.bf16.msra.mxu0 %v4919
    %7863 = vmatmul.bf16.gmra.mxu0 %v1115
    %v7864 = vpop.f32.mrf.mxu0
    %v7865 = vadd.f32 %v7852, %v7864
    %v7866 = vpop.f32.mrf.mxu0
    %7867 = vdwg.mxu0
    %7868 = vmatpush.bf16.msra.mxu0 %v5039
    %7869 = vmatpush.bf16.msra.mxu0 %v5031
    %7870 = vmatpush.bf16.msra.mxu0 %v5023
    %7871 = vmatpush.bf16.msra.mxu0 %v5015
    %7872 = vmatpush.bf16.msra.mxu0 %v5007
    %7873 = vmatpush.bf16.msra.mxu0 %v4999
    %7874 = vmatpush.bf16.msra.mxu0 %v4991
    %7875 = vmatpush.bf16.msra.mxu0 %v4983
    %7876 = vmatmul.bf16.gmra.mxu0 %v1116
    %v7877 = vpop.f32.mrf.mxu0
    %v7878 = vadd.f32 %v7865, %v7877
    %v7879 = vpop.f32.mrf.mxu0
    %7880 = vdwg.mxu0
    %7881 = vmatpush.bf16.msra.mxu0 %v5103
    %7882 = vmatpush.bf16.msra.mxu0 %v5095
    %7883 = vmatpush.bf16.msra.mxu0 %v5087
    %7884 = vmatpush.bf16.msra.mxu0 %v5079
    %7885 = vmatpush.bf16.msra.mxu0 %v5071
    %7886 = vmatpush.bf16.msra.mxu0 %v5063
    %7887 = vmatpush.bf16.msra.mxu0 %v5055
    %7888 = vmatpush.bf16.msra.mxu0 %v5047
    %7889 = vmatmul.bf16.gmra.mxu0 %v1117
    %v7890 = vpop.f32.mrf.mxu0
    %v7891 = vadd.f32 %v7878, %v7890
    %v7892 = vpop.f32.mrf.mxu0
    %7893 = vdwg.mxu0
    %7894 = vmatpush.bf16.msra.mxu0 %v5167
    %7895 = vmatpush.bf16.msra.mxu0 %v5159
    %7896 = vmatpush.bf16.msra.mxu0 %v5151
    %7897 = vmatpush.bf16.msra.mxu0 %v5143
    %7898 = vmatpush.bf16.msra.mxu0 %v5135
    %7899 = vmatpush.bf16.msra.mxu0 %v5127
    %7900 = vmatpush.bf16.msra.mxu0 %v5119
    %7901 = vmatpush.bf16.msra.mxu0 %v5111
    %7902 = vmatmul.bf16.gmra.mxu0 %v1118
    %v7903 = vpop.f32.mrf.mxu0
    %v7904 = vadd.f32 %v7891, %v7903
    %v7905 = vpop.f32.mrf.mxu0
    %7906 = vdwg.mxu0
    %7907 = vmatpush.bf16.msra.mxu0 %v5231
    %7908 = vmatpush.bf16.msra.mxu0 %v5223
    %7909 = vmatpush.bf16.msra.mxu0 %v5215
    %7910 = vmatpush.bf16.msra.mxu0 %v5207
    %7911 = vmatpush.bf16.msra.mxu0 %v5199
    %7912 = vmatpush.bf16.msra.mxu0 %v5191
    %7913 = vmatpush.bf16.msra.mxu0 %v5183
    %7914 = vmatpush.bf16.msra.mxu0 %v5175
    %7915 = vmatmul.bf16.gmra.mxu0 %v1119
    %v7916 = vpop.f32.mrf.mxu0
    %v7917 = vadd.f32 %v7904, %v7916
    %v7918 = vpop.f32.mrf.mxu0
    %7919 = vdwg.mxu0
    %v7920 = vmax.f32 %v6461, 0.0
    %v7921 = vmax.f32 %v6669, 0.0
    %v7922 = vmax.f32 %v6877, 0.0
    %v7923 = vmax.f32 %v7085, 0.0
    %v7924 = vmax.f32 %v7293, 0.0
    %v7925 = vmax.f32 %v7501, 0.0
    %v7926 = vmax.f32 %v7709, 0.0
    %v7927 = vmax.f32 %v7917, 0.0
    %v7928 = vlaneseq
    %v7929 = vshrl.u32 %v7928, 7
    %v7930 = vlaneseq
    %v7931 = vand.u32 %v7930, 127
    %v7932 = vadd.s32 %v7931, 128
    %v7933 = vadd.s32 %v7931, 256
    %v7934 = vadd.s32 %v7931, 384
    %v7935 = vadd.s32 %v7931, 512
    %v7936 = vadd.s32 %v7931, 640
    %v7937 = vadd.s32 %v7931, 768
    %v7938 = vadd.s32 %v7931, 896
    %s7939 = smul.u32 %s29, 2654435761
    %s7940 = smul.u32 0, 2246822519
    %s7941 = sadd.s32 %s7939, %s7940
    %s7942 = sadd.s32 %s7941, 3266489917
    %v7943 = vmul.u32 %v7929, 668265263
    %v7944 = vstv %s7942
    %v7945 = vadd.s32 %v7944, %v7943
    %v7946 = vmul.u32 %v7931, 374761393
    %v7947 = vmul.u32 %v7932, 374761393
    %v7948 = vmul.u32 %v7933, 374761393
    %v7949 = vmul.u32 %v7934, 374761393
    %v7950 = vmul.u32 %v7935, 374761393
    %v7951 = vmul.u32 %v7936, 374761393
    %v7952 = vmul.u32 %v7937, 374761393
    %v7953 = vmul.u32 %v7938, 374761393
    %v7954 = vadd.s32 %v7945, %v7946
    %v7955 = vadd.s32 %v7945, %v7947
    %v7956 = vadd.s32 %v7945, %v7948
    %v7957 = vadd.s32 %v7945, %v7949
    %v7958 = vadd.s32 %v7945, %v7950
    %v7959 = vadd.s32 %v7945, %v7951
    %v7960 = vadd.s32 %v7945, %v7952
    %v7961 = vadd.s32 %v7945, %v7953
    %v7962 = vshrl.u32 %v7954, 16
    %v7963 = vshrl.u32 %v7955, 16
    %v7964 = vshrl.u32 %v7956, 16
    %v7965 = vshrl.u32 %v7957, 16
    %v7966 = vshrl.u32 %v7958, 16
    %v7967 = vshrl.u32 %v7959, 16
    %v7968 = vshrl.u32 %v7960, 16
    %v7969 = vshrl.u32 %v7961, 16
    %v7970 = vxor.u32 %v7954, %v7962
    %v7971 = vxor.u32 %v7955, %v7963
    %v7972 = vxor.u32 %v7956, %v7964
    %v7973 = vxor.u32 %v7957, %v7965
    %v7974 = vxor.u32 %v7958, %v7966
    %v7975 = vxor.u32 %v7959, %v7967
    %v7976 = vxor.u32 %v7960, %v7968
    %v7977 = vxor.u32 %v7961, %v7969
    %v7978 = vmul.u32 %v7970, 2246822507
    %v7979 = vmul.u32 %v7971, 2246822507
    %v7980 = vmul.u32 %v7972, 2246822507
    %v7981 = vmul.u32 %v7973, 2246822507
    %v7982 = vmul.u32 %v7974, 2246822507
    %v7983 = vmul.u32 %v7975, 2246822507
    %v7984 = vmul.u32 %v7976, 2246822507
    %v7985 = vmul.u32 %v7977, 2246822507
    %v7986 = vshrl.u32 %v7978, 13
    %v7987 = vshrl.u32 %v7979, 13
    %v7988 = vshrl.u32 %v7980, 13
    %v7989 = vshrl.u32 %v7981, 13
    %v7990 = vshrl.u32 %v7982, 13
    %v7991 = vshrl.u32 %v7983, 13
    %v7992 = vshrl.u32 %v7984, 13
    %v7993 = vshrl.u32 %v7985, 13
    %v7994 = vxor.u32 %v7978, %v7986
    %v7995 = vxor.u32 %v7979, %v7987
    %v7996 = vxor.u32 %v7980, %v7988
    %v7997 = vxor.u32 %v7981, %v7989
    %v7998 = vxor.u32 %v7982, %v7990
    %v7999 = vxor.u32 %v7983, %v7991
    %v8000 = vxor.u32 %v7984, %v7992
    %v8001 = vxor.u32 %v7985, %v7993
    %v8002 = vmul.u32 %v7994, 3266489909
    %v8003 = vmul.u32 %v7995, 3266489909
    %v8004 = vmul.u32 %v7996, 3266489909
    %v8005 = vmul.u32 %v7997, 3266489909
    %v8006 = vmul.u32 %v7998, 3266489909
    %v8007 = vmul.u32 %v7999, 3266489909
    %v8008 = vmul.u32 %v8000, 3266489909
    %v8009 = vmul.u32 %v8001, 3266489909
    %v8010 = vshrl.u32 %v8002, 16
    %v8011 = vshrl.u32 %v8003, 16
    %v8012 = vshrl.u32 %v8004, 16
    %v8013 = vshrl.u32 %v8005, 16
    %v8014 = vshrl.u32 %v8006, 16
    %v8015 = vshrl.u32 %v8007, 16
    %v8016 = vshrl.u32 %v8008, 16
    %v8017 = vshrl.u32 %v8009, 16
    %v8018 = vxor.u32 %v8002, %v8010
    %v8019 = vxor.u32 %v8003, %v8011
    %v8020 = vxor.u32 %v8004, %v8012
    %v8021 = vxor.u32 %v8005, %v8013
    %v8022 = vxor.u32 %v8006, %v8014
    %v8023 = vxor.u32 %v8007, %v8015
    %v8024 = vxor.u32 %v8008, %v8016
    %v8025 = vxor.u32 %v8009, %v8017
    %v8026 = vadd.s32 %v8018, 2147483648
    %vm8028 = vcmp.ge.s32.totalorder %v8026, 0
    %v8029 = vadd.s32 %v8019, 2147483648
    %vm8031 = vcmp.ge.s32.totalorder %v8029, 0
    %v8032 = vadd.s32 %v8020, 2147483648
    %vm8034 = vcmp.ge.s32.totalorder %v8032, 0
    %v8035 = vadd.s32 %v8021, 2147483648
    %vm8037 = vcmp.ge.s32.totalorder %v8035, 0
    %v8038 = vadd.s32 %v8022, 2147483648
    %vm8040 = vcmp.ge.s32.totalorder %v8038, 0
    %v8041 = vadd.s32 %v8023, 2147483648
    %vm8043 = vcmp.ge.s32.totalorder %v8041, 0
    %v8044 = vadd.s32 %v8024, 2147483648
    %vm8046 = vcmp.ge.s32.totalorder %v8044, 0
    %v8047 = vadd.s32 %v8025, 2147483648
    %vm8049 = vcmp.ge.s32.totalorder %v8047, 0
    %v8050 = vsel %vm8028, %v7920, 0.0
    %v8051 = vsel %vm8031, %v7921, 0.0
    %v8052 = vsel %vm8034, %v7922, 0.0
    %v8053 = vsel %vm8037, %v7923, 0.0
    %v8054 = vsel %vm8040, %v7924, 0.0
    %v8055 = vsel %vm8043, %v7925, 0.0
    %v8056 = vsel %vm8046, %v7926, 0.0
    %v8057 = vsel %vm8049, %v7927, 0.0
    %v8058 = vpack.c.bf16 %v8050, %v8050
    %v8059 = vpack.c.bf16 %v8051, %v8051
    %v8060 = vpack.c.bf16 %v8052, %v8052
    %v8061 = vpack.c.bf16 %v8053, %v8053
    %v8062 = vpack.c.bf16 %v8054, %v8054
    %v8063 = vpack.c.bf16 %v8055, %v8055
    %v8064 = vpack.c.bf16 %v8056, %v8056
    %v8065 = vpack.c.bf16 %v8057, %v8057
    %v8066 = vld [vmem:[%s4] sm:$0xf]
    %v8067 = vld [vmem:[%s4 + $0x4] sm:$0xf]
    %v8068 = vld [vmem:[%s4 + $0x8] sm:$0xf]
    %v8069 = vld [vmem:[%s4 + $0xc] sm:$0xf]
    %v8070 = vld [vmem:[%s4 + $0x10] sm:$0xf]
    %v8071 = vld [vmem:[%s4 + $0x14] sm:$0xf]
    %v8072 = vld [vmem:[%s4 + $0x18] sm:$0xf]
    %v8073 = vld [vmem:[%s4 + $0x1c] sm:$0xf]
    %v8074 = vld [vmem:[%s4 + $0x20] sm:$0xf]
    %v8075 = vld [vmem:[%s4 + $0x24] sm:$0xf]
    %v8076 = vld [vmem:[%s4 + $0x28] sm:$0xf]
    %v8077 = vld [vmem:[%s4 + $0x2c] sm:$0xf]
    %v8078 = vld [vmem:[%s4 + $0x30] sm:$0xf]
    %v8079 = vld [vmem:[%s4 + $0x34] sm:$0xf]
    %v8080 = vld [vmem:[%s4 + $0x38] sm:$0xf]
    %v8081 = vld [vmem:[%s4 + $0x3c] sm:$0xf]
    %v8082 = vld [vmem:[%s4 + $0x40] sm:$0xf]
    %v8083 = vld [vmem:[%s4 + $0x44] sm:$0xf]
    %v8084 = vld [vmem:[%s4 + $0x48] sm:$0xf]
    %v8085 = vld [vmem:[%s4 + $0x4c] sm:$0xf]
    %v8086 = vld [vmem:[%s4 + $0x50] sm:$0xf]
    %v8087 = vld [vmem:[%s4 + $0x54] sm:$0xf]
    %v8088 = vld [vmem:[%s4 + $0x58] sm:$0xf]
    %v8089 = vld [vmem:[%s4 + $0x5c] sm:$0xf]
    %v8090 = vld [vmem:[%s4 + $0x60] sm:$0xf]
    %v8091 = vld [vmem:[%s4 + $0x64] sm:$0xf]
    %v8092 = vld [vmem:[%s4 + $0x68] sm:$0xf]
    %v8093 = vld [vmem:[%s4 + $0x6c] sm:$0xf]
    %v8094 = vld [vmem:[%s4 + $0x70] sm:$0xf]
    %v8095 = vld [vmem:[%s4 + $0x74] sm:$0xf]
    %v8096 = vld [vmem:[%s4 + $0x78] sm:$0xf]
    %v8097 = vld [vmem:[%s4 + $0x7c] sm:$0xf]
    %v8098 = vld [vmem:[%s4 + $0x80] sm:$0xf]
    %v8099 = vld [vmem:[%s4 + $0x84] sm:$0xf]
    %v8100 = vld [vmem:[%s4 + $0x88] sm:$0xf]
    %v8101 = vld [vmem:[%s4 + $0x8c] sm:$0xf]
    %v8102 = vld [vmem:[%s4 + $0x90] sm:$0xf]
    %v8103 = vld [vmem:[%s4 + $0x94] sm:$0xf]
    %v8104 = vld [vmem:[%s4 + $0x98] sm:$0xf]
    %v8105 = vld [vmem:[%s4 + $0x9c] sm:$0xf]
    %v8106 = vld [vmem:[%s4 + $0xa0] sm:$0xf]
    %v8107 = vld [vmem:[%s4 + $0xa4] sm:$0xf]
    %v8108 = vld [vmem:[%s4 + $0xa8] sm:$0xf]
    %v8109 = vld [vmem:[%s4 + $0xac] sm:$0xf]
    %v8110 = vld [vmem:[%s4 + $0xb0] sm:$0xf]
    %v8111 = vld [vmem:[%s4 + $0xb4] sm:$0xf]
    %v8112 = vld [vmem:[%s4 + $0xb8] sm:$0xf]
    %v8113 = vld [vmem:[%s4 + $0xbc] sm:$0xf]
    %v8114 = vld [vmem:[%s4 + $0xc0] sm:$0xf]
    %v8115 = vld [vmem:[%s4 + $0xc4] sm:$0xf]
    %v8116 = vld [vmem:[%s4 + $0xc8] sm:$0xf]
    %v8117 = vld [vmem:[%s4 + $0xcc] sm:$0xf]
    %v8118 = vld [vmem:[%s4 + $0xd0] sm:$0xf]
    %v8119 = vld [vmem:[%s4 + $0xd4] sm:$0xf]
    %v8120 = vld [vmem:[%s4 + $0xd8] sm:$0xf]
    %v8121 = vld [vmem:[%s4 + $0xdc] sm:$0xf]
    %v8122 = vld [vmem:[%s4 + $0xe0] sm:$0xf]
    %v8123 = vld [vmem:[%s4 + $0xe4] sm:$0xf]
    %v8124 = vld [vmem:[%s4 + $0xe8] sm:$0xf]
    %v8125 = vld [vmem:[%s4 + $0xec] sm:$0xf]
    %v8126 = vld [vmem:[%s4 + $0xf0] sm:$0xf]
    %v8127 = vld [vmem:[%s4 + $0xf4] sm:$0xf]
    %v8128 = vld [vmem:[%s4 + $0xf8] sm:$0xf]
    %v8129 = vld [vmem:[%s4 + $0xfc] sm:$0xf]
    %v8130 = vld [vmem:[%s4 + $0x100] sm:$0xf]
    %v8131 = vld [vmem:[%s4 + $0x104] sm:$0xf]
    %v8132 = vld [vmem:[%s4 + $0x108] sm:$0xf]
    %v8133 = vld [vmem:[%s4 + $0x10c] sm:$0xf]
    %v8134 = vld [vmem:[%s4 + $0x110] sm:$0xf]
    %v8135 = vld [vmem:[%s4 + $0x114] sm:$0xf]
    %v8136 = vld [vmem:[%s4 + $0x118] sm:$0xf]
    %v8137 = vld [vmem:[%s4 + $0x11c] sm:$0xf]
    %v8138 = vld [vmem:[%s4 + $0x120] sm:$0xf]
    %v8139 = vld [vmem:[%s4 + $0x124] sm:$0xf]
    %v8140 = vld [vmem:[%s4 + $0x128] sm:$0xf]
    %v8141 = vld [vmem:[%s4 + $0x12c] sm:$0xf]
    %v8142 = vld [vmem:[%s4 + $0x130] sm:$0xf]
    %v8143 = vld [vmem:[%s4 + $0x134] sm:$0xf]
    %v8144 = vld [vmem:[%s4 + $0x138] sm:$0xf]
    %v8145 = vld [vmem:[%s4 + $0x13c] sm:$0xf]
    %v8146 = vld [vmem:[%s4 + $0x140] sm:$0xf]
    %v8147 = vld [vmem:[%s4 + $0x144] sm:$0xf]
    %v8148 = vld [vmem:[%s4 + $0x148] sm:$0xf]
    %v8149 = vld [vmem:[%s4 + $0x14c] sm:$0xf]
    %v8150 = vld [vmem:[%s4 + $0x150] sm:$0xf]
    %v8151 = vld [vmem:[%s4 + $0x154] sm:$0xf]
    %v8152 = vld [vmem:[%s4 + $0x158] sm:$0xf]
    %v8153 = vld [vmem:[%s4 + $0x15c] sm:$0xf]
    %v8154 = vld [vmem:[%s4 + $0x160] sm:$0xf]
    %v8155 = vld [vmem:[%s4 + $0x164] sm:$0xf]
    %v8156 = vld [vmem:[%s4 + $0x168] sm:$0xf]
    %v8157 = vld [vmem:[%s4 + $0x16c] sm:$0xf]
    %v8158 = vld [vmem:[%s4 + $0x170] sm:$0xf]
    %v8159 = vld [vmem:[%s4 + $0x174] sm:$0xf]
    %v8160 = vld [vmem:[%s4 + $0x178] sm:$0xf]
    %v8161 = vld [vmem:[%s4 + $0x17c] sm:$0xf]
    %v8162 = vld [vmem:[%s4 + $0x180] sm:$0xf]
    %v8163 = vld [vmem:[%s4 + $0x184] sm:$0xf]
    %v8164 = vld [vmem:[%s4 + $0x188] sm:$0xf]
    %v8165 = vld [vmem:[%s4 + $0x18c] sm:$0xf]
    %v8166 = vld [vmem:[%s4 + $0x190] sm:$0xf]
    %v8167 = vld [vmem:[%s4 + $0x194] sm:$0xf]
    %v8168 = vld [vmem:[%s4 + $0x198] sm:$0xf]
    %v8169 = vld [vmem:[%s4 + $0x19c] sm:$0xf]
    %v8170 = vld [vmem:[%s4 + $0x1a0] sm:$0xf]
    %v8171 = vld [vmem:[%s4 + $0x1a4] sm:$0xf]
    %v8172 = vld [vmem:[%s4 + $0x1a8] sm:$0xf]
    %v8173 = vld [vmem:[%s4 + $0x1ac] sm:$0xf]
    %v8174 = vld [vmem:[%s4 + $0x1b0] sm:$0xf]
    %v8175 = vld [vmem:[%s4 + $0x1b4] sm:$0xf]
    %v8176 = vld [vmem:[%s4 + $0x1b8] sm:$0xf]
    %v8177 = vld [vmem:[%s4 + $0x1bc] sm:$0xf]
    %v8178 = vld [vmem:[%s4 + $0x1c0] sm:$0xf]
    %v8179 = vld [vmem:[%s4 + $0x1c4] sm:$0xf]
    %v8180 = vld [vmem:[%s4 + $0x1c8] sm:$0xf]
    %v8181 = vld [vmem:[%s4 + $0x1cc] sm:$0xf]
    %v8182 = vld [vmem:[%s4 + $0x1d0] sm:$0xf]
    %v8183 = vld [vmem:[%s4 + $0x1d4] sm:$0xf]
    %v8184 = vld [vmem:[%s4 + $0x1d8] sm:$0xf]
    %v8185 = vld [vmem:[%s4 + $0x1dc] sm:$0xf]
    %v8186 = vld [vmem:[%s4 + $0x1e0] sm:$0xf]
    %v8187 = vld [vmem:[%s4 + $0x1e4] sm:$0xf]
    %v8188 = vld [vmem:[%s4 + $0x1e8] sm:$0xf]
    %v8189 = vld [vmem:[%s4 + $0x1ec] sm:$0xf]
    %v8190 = vld [vmem:[%s4 + $0x1f0] sm:$0xf]
    %v8191 = vld [vmem:[%s4 + $0x1f4] sm:$0xf]
    %v8192 = vld [vmem:[%s4 + $0x1f8] sm:$0xf]
    %v8193 = vld [vmem:[%s4 + $0x1fc] sm:$0xf]
    %v8194 = vld [vmem:[%s5] sm:$0x1]
    %v8196 = vperm.slane %v8194, 0
    %v8326 = vunpack.c.l.b16 %v8066
    %v8327 = vunpack.c.l.b16 %v8067
    %v8328 = vunpack.c.l.b16 %v8068
    %v8329 = vunpack.c.l.b16 %v8069
    %v8330 = vunpack.c.l.b16 %v8070
    %v8331 = vunpack.c.l.b16 %v8071
    %v8332 = vunpack.c.l.b16 %v8072
    %v8333 = vunpack.c.l.b16 %v8073
    %v8334 = vunpack.c.l.b16 %v8074
    %v8335 = vunpack.c.l.b16 %v8075
    %v8336 = vunpack.c.l.b16 %v8076
    %v8337 = vunpack.c.l.b16 %v8077
    %v8338 = vunpack.c.l.b16 %v8078
    %v8339 = vunpack.c.l.b16 %v8079
    %v8340 = vunpack.c.l.b16 %v8080
    %v8341 = vunpack.c.l.b16 %v8081
    %v8342 = vunpack.c.l.b16 %v8082
    %v8343 = vunpack.c.l.b16 %v8083
    %v8344 = vunpack.c.l.b16 %v8084
    %v8345 = vunpack.c.l.b16 %v8085
    %v8346 = vunpack.c.l.b16 %v8086
    %v8347 = vunpack.c.l.b16 %v8087
    %v8348 = vunpack.c.l.b16 %v8088
    %v8349 = vunpack.c.l.b16 %v8089
    %v8350 = vunpack.c.l.b16 %v8090
    %v8351 = vunpack.c.l.b16 %v8091
    %v8352 = vunpack.c.l.b16 %v8092
    %v8353 = vunpack.c.l.b16 %v8093
    %v8354 = vunpack.c.l.b16 %v8094
    %v8355 = vunpack.c.l.b16 %v8095
    %v8356 = vunpack.c.l.b16 %v8096
    %v8357 = vunpack.c.l.b16 %v8097
    %v8358 = vunpack.c.l.b16 %v8098
    %v8359 = vunpack.c.l.b16 %v8099
    %v8360 = vunpack.c.l.b16 %v8100
    %v8361 = vunpack.c.l.b16 %v8101
    %v8362 = vunpack.c.l.b16 %v8102
    %v8363 = vunpack.c.l.b16 %v8103
    %v8364 = vunpack.c.l.b16 %v8104
    %v8365 = vunpack.c.l.b16 %v8105
    %v8366 = vunpack.c.l.b16 %v8106
    %v8367 = vunpack.c.l.b16 %v8107
    %v8368 = vunpack.c.l.b16 %v8108
    %v8369 = vunpack.c.l.b16 %v8109
    %v8370 = vunpack.c.l.b16 %v8110
    %v8371 = vunpack.c.l.b16 %v8111
    %v8372 = vunpack.c.l.b16 %v8112
    %v8373 = vunpack.c.l.b16 %v8113
    %v8374 = vunpack.c.l.b16 %v8114
    %v8375 = vunpack.c.l.b16 %v8115
    %v8376 = vunpack.c.l.b16 %v8116
    %v8377 = vunpack.c.l.b16 %v8117
    %v8378 = vunpack.c.l.b16 %v8118
    %v8379 = vunpack.c.l.b16 %v8119
    %v8380 = vunpack.c.l.b16 %v8120
    %v8381 = vunpack.c.l.b16 %v8121
    %v8382 = vunpack.c.l.b16 %v8122
    %v8383 = vunpack.c.l.b16 %v8123
    %v8384 = vunpack.c.l.b16 %v8124
    %v8385 = vunpack.c.l.b16 %v8125
    %v8386 = vunpack.c.l.b16 %v8126
    %v8387 = vunpack.c.l.b16 %v8127
    %v8388 = vunpack.c.l.b16 %v8128
    %v8389 = vunpack.c.l.b16 %v8129
    %v8390 = vunpack.c.l.b16 %v8130
    %v8391 = vunpack.c.l.b16 %v8131
    %v8392 = vunpack.c.l.b16 %v8132
    %v8393 = vunpack.c.l.b16 %v8133
    %v8394 = vunpack.c.l.b16 %v8134
    %v8395 = vunpack.c.l.b16 %v8135
    %v8396 = vunpack.c.l.b16 %v8136
    %v8397 = vunpack.c.l.b16 %v8137
    %v8398 = vunpack.c.l.b16 %v8138
    %v8399 = vunpack.c.l.b16 %v8139
    %v8400 = vunpack.c.l.b16 %v8140
    %v8401 = vunpack.c.l.b16 %v8141
    %v8402 = vunpack.c.l.b16 %v8142
    %v8403 = vunpack.c.l.b16 %v8143
    %v8404 = vunpack.c.l.b16 %v8144
    %v8405 = vunpack.c.l.b16 %v8145
    %v8406 = vunpack.c.l.b16 %v8146
    %v8407 = vunpack.c.l.b16 %v8147
    %v8408 = vunpack.c.l.b16 %v8148
    %v8409 = vunpack.c.l.b16 %v8149
    %v8410 = vunpack.c.l.b16 %v8150
    %v8411 = vunpack.c.l.b16 %v8151
    %v8412 = vunpack.c.l.b16 %v8152
    %v8413 = vunpack.c.l.b16 %v8153
    %v8414 = vunpack.c.l.b16 %v8154
    %v8415 = vunpack.c.l.b16 %v8155
    %v8416 = vunpack.c.l.b16 %v8156
    %v8417 = vunpack.c.l.b16 %v8157
    %v8418 = vunpack.c.l.b16 %v8158
    %v8419 = vunpack.c.l.b16 %v8159
    %v8420 = vunpack.c.l.b16 %v8160
    %v8421 = vunpack.c.l.b16 %v8161
    %v8422 = vunpack.c.l.b16 %v8162
    %v8423 = vunpack.c.l.b16 %v8163
    %v8424 = vunpack.c.l.b16 %v8164
    %v8425 = vunpack.c.l.b16 %v8165
    %v8426 = vunpack.c.l.b16 %v8166
    %v8427 = vunpack.c.l.b16 %v8167
    %v8428 = vunpack.c.l.b16 %v8168
    %v8429 = vunpack.c.l.b16 %v8169
    %v8430 = vunpack.c.l.b16 %v8170
    %v8431 = vunpack.c.l.b16 %v8171
    %v8432 = vunpack.c.l.b16 %v8172
    %v8433 = vunpack.c.l.b16 %v8173
    %v8434 = vunpack.c.l.b16 %v8174
    %v8435 = vunpack.c.l.b16 %v8175
    %v8436 = vunpack.c.l.b16 %v8176
    %v8437 = vunpack.c.l.b16 %v8177
    %v8438 = vunpack.c.l.b16 %v8178
    %v8439 = vunpack.c.l.b16 %v8179
    %v8440 = vunpack.c.l.b16 %v8180
    %v8441 = vunpack.c.l.b16 %v8181
    %v8442 = vunpack.c.l.b16 %v8182
    %v8443 = vunpack.c.l.b16 %v8183
    %v8444 = vunpack.c.l.b16 %v8184
    %v8445 = vunpack.c.l.b16 %v8185
    %v8446 = vunpack.c.l.b16 %v8186
    %v8447 = vunpack.c.l.b16 %v8187
    %v8448 = vunpack.c.l.b16 %v8188
    %v8449 = vunpack.c.l.b16 %v8189
    %v8450 = vunpack.c.l.b16 %v8190
    %v8451 = vunpack.c.l.b16 %v8191
    %v8452 = vunpack.c.l.b16 %v8192
    %v8453 = vunpack.c.l.b16 %v8193
    %v8454 = vpack.c.b16 %v8327, %v8326
    %v8455 = vpack.c.b16 %v8329, %v8328
    %v8456 = vpack.c.b16 %v8331, %v8330
    %v8457 = vpack.c.b16 %v8333, %v8332
    %v8458 = vpack.c.b16 %v8335, %v8334
    %v8459 = vpack.c.b16 %v8337, %v8336
    %v8460 = vpack.c.b16 %v8339, %v8338
    %v8461 = vpack.c.b16 %v8341, %v8340
    %v8462 = vpack.c.b16 %v8343, %v8342
    %v8463 = vpack.c.b16 %v8345, %v8344
    %v8464 = vpack.c.b16 %v8347, %v8346
    %v8465 = vpack.c.b16 %v8349, %v8348
    %v8466 = vpack.c.b16 %v8351, %v8350
    %v8467 = vpack.c.b16 %v8353, %v8352
    %v8468 = vpack.c.b16 %v8355, %v8354
    %v8469 = vpack.c.b16 %v8357, %v8356
    %v8470 = vpack.c.b16 %v8359, %v8358
    %v8471 = vpack.c.b16 %v8361, %v8360
    %v8472 = vpack.c.b16 %v8363, %v8362
    %v8473 = vpack.c.b16 %v8365, %v8364
    %v8474 = vpack.c.b16 %v8367, %v8366
    %v8475 = vpack.c.b16 %v8369, %v8368
    %v8476 = vpack.c.b16 %v8371, %v8370
    %v8477 = vpack.c.b16 %v8373, %v8372
    %v8478 = vpack.c.b16 %v8375, %v8374
    %v8479 = vpack.c.b16 %v8377, %v8376
    %v8480 = vpack.c.b16 %v8379, %v8378
    %v8481 = vpack.c.b16 %v8381, %v8380
    %v8482 = vpack.c.b16 %v8383, %v8382
    %v8483 = vpack.c.b16 %v8385, %v8384
    %v8484 = vpack.c.b16 %v8387, %v8386
    %v8485 = vpack.c.b16 %v8389, %v8388
    %v8486 = vpack.c.b16 %v8391, %v8390
    %v8487 = vpack.c.b16 %v8393, %v8392
    %v8488 = vpack.c.b16 %v8395, %v8394
    %v8489 = vpack.c.b16 %v8397, %v8396
    %v8490 = vpack.c.b16 %v8399, %v8398
    %v8491 = vpack.c.b16 %v8401, %v8400
    %v8492 = vpack.c.b16 %v8403, %v8402
    %v8493 = vpack.c.b16 %v8405, %v8404
    %v8494 = vpack.c.b16 %v8407, %v8406
    %v8495 = vpack.c.b16 %v8409, %v8408
    %v8496 = vpack.c.b16 %v8411, %v8410
    %v8497 = vpack.c.b16 %v8413, %v8412
    %v8498 = vpack.c.b16 %v8415, %v8414
    %v8499 = vpack.c.b16 %v8417, %v8416
    %v8500 = vpack.c.b16 %v8419, %v8418
    %v8501 = vpack.c.b16 %v8421, %v8420
    %v8502 = vpack.c.b16 %v8423, %v8422
    %v8503 = vpack.c.b16 %v8425, %v8424
    %v8504 = vpack.c.b16 %v8427, %v8426
    %v8505 = vpack.c.b16 %v8429, %v8428
    %v8506 = vpack.c.b16 %v8431, %v8430
    %v8507 = vpack.c.b16 %v8433, %v8432
    %v8508 = vpack.c.b16 %v8435, %v8434
    %v8509 = vpack.c.b16 %v8437, %v8436
    %v8510 = vpack.c.b16 %v8439, %v8438
    %v8511 = vpack.c.b16 %v8441, %v8440
    %v8512 = vpack.c.b16 %v8443, %v8442
    %v8513 = vpack.c.b16 %v8445, %v8444
    %v8514 = vpack.c.b16 %v8447, %v8446
    %v8515 = vpack.c.b16 %v8449, %v8448
    %v8516 = vpack.c.b16 %v8451, %v8450
    %v8517 = vpack.c.b16 %v8453, %v8452
    %8582 = vmatpush.bf16.msra.mxu0 %v8461
    %8583 = vmatpush.bf16.msra.mxu0 %v8460
    %8584 = vmatpush.bf16.msra.mxu0 %v8459
    %8585 = vmatpush.bf16.msra.mxu0 %v8458
    %8586 = vmatpush.bf16.msra.mxu0 %v8457
    %8587 = vmatpush.bf16.msra.mxu0 %v8456
    %8588 = vmatpush.bf16.msra.mxu0 %v8455
    %8589 = vmatpush.bf16.msra.mxu0 %v8454
    %8590 = vmatmul.bf16.gmra.mxu0 %v8058
    %v8591 = vpop.f32.mrf.mxu0
    %v8592 = vadd.f32 %v8196, %v8591
    %v8593 = vpop.f32.mrf.mxu0
    %8594 = vdwg.mxu0
    %8595 = vmatpush.bf16.msra.mxu0 %v8469
    %8596 = vmatpush.bf16.msra.mxu0 %v8468
    %8597 = vmatpush.bf16.msra.mxu0 %v8467
    %8598 = vmatpush.bf16.msra.mxu0 %v8466
    %8599 = vmatpush.bf16.msra.mxu0 %v8465
    %8600 = vmatpush.bf16.msra.mxu0 %v8464
    %8601 = vmatpush.bf16.msra.mxu0 %v8463
    %8602 = vmatpush.bf16.msra.mxu0 %v8462
    %8603 = vmatmul.bf16.gmra.mxu0 %v8059
    %v8604 = vpop.f32.mrf.mxu0
    %v8605 = vadd.f32 %v8592, %v8604
    %v8606 = vpop.f32.mrf.mxu0
    %8607 = vdwg.mxu0
    %8608 = vmatpush.bf16.msra.mxu0 %v8477
    %8609 = vmatpush.bf16.msra.mxu0 %v8476
    %8610 = vmatpush.bf16.msra.mxu0 %v8475
    %8611 = vmatpush.bf16.msra.mxu0 %v8474
    %8612 = vmatpush.bf16.msra.mxu0 %v8473
    %8613 = vmatpush.bf16.msra.mxu0 %v8472
    %8614 = vmatpush.bf16.msra.mxu0 %v8471
    %8615 = vmatpush.bf16.msra.mxu0 %v8470
    %8616 = vmatmul.bf16.gmra.mxu0 %v8060
    %v8617 = vpop.f32.mrf.mxu0
    %v8618 = vadd.f32 %v8605, %v8617
    %v8619 = vpop.f32.mrf.mxu0
    %8620 = vdwg.mxu0
    %8621 = vmatpush.bf16.msra.mxu0 %v8485
    %8622 = vmatpush.bf16.msra.mxu0 %v8484
    %8623 = vmatpush.bf16.msra.mxu0 %v8483
    %8624 = vmatpush.bf16.msra.mxu0 %v8482
    %8625 = vmatpush.bf16.msra.mxu0 %v8481
    %8626 = vmatpush.bf16.msra.mxu0 %v8480
    %8627 = vmatpush.bf16.msra.mxu0 %v8479
    %8628 = vmatpush.bf16.msra.mxu0 %v8478
    %8629 = vmatmul.bf16.gmra.mxu0 %v8061
    %v8630 = vpop.f32.mrf.mxu0
    %v8631 = vadd.f32 %v8618, %v8630
    %v8632 = vpop.f32.mrf.mxu0
    %8633 = vdwg.mxu0
    %8634 = vmatpush.bf16.msra.mxu0 %v8493
    %8635 = vmatpush.bf16.msra.mxu0 %v8492
    %8636 = vmatpush.bf16.msra.mxu0 %v8491
    %8637 = vmatpush.bf16.msra.mxu0 %v8490
    %8638 = vmatpush.bf16.msra.mxu0 %v8489
    %8639 = vmatpush.bf16.msra.mxu0 %v8488
    %8640 = vmatpush.bf16.msra.mxu0 %v8487
    %8641 = vmatpush.bf16.msra.mxu0 %v8486
    %8642 = vmatmul.bf16.gmra.mxu0 %v8062
    %v8643 = vpop.f32.mrf.mxu0
    %v8644 = vadd.f32 %v8631, %v8643
    %v8645 = vpop.f32.mrf.mxu0
    %8646 = vdwg.mxu0
    %8647 = vmatpush.bf16.msra.mxu0 %v8501
    %8648 = vmatpush.bf16.msra.mxu0 %v8500
    %8649 = vmatpush.bf16.msra.mxu0 %v8499
    %8650 = vmatpush.bf16.msra.mxu0 %v8498
    %8651 = vmatpush.bf16.msra.mxu0 %v8497
    %8652 = vmatpush.bf16.msra.mxu0 %v8496
    %8653 = vmatpush.bf16.msra.mxu0 %v8495
    %8654 = vmatpush.bf16.msra.mxu0 %v8494
    %8655 = vmatmul.bf16.gmra.mxu0 %v8063
    %v8656 = vpop.f32.mrf.mxu0
    %v8657 = vadd.f32 %v8644, %v8656
    %v8658 = vpop.f32.mrf.mxu0
    %8659 = vdwg.mxu0
    %8660 = vmatpush.bf16.msra.mxu0 %v8509
    %8661 = vmatpush.bf16.msra.mxu0 %v8508
    %8662 = vmatpush.bf16.msra.mxu0 %v8507
    %8663 = vmatpush.bf16.msra.mxu0 %v8506
    %8664 = vmatpush.bf16.msra.mxu0 %v8505
    %8665 = vmatpush.bf16.msra.mxu0 %v8504
    %8666 = vmatpush.bf16.msra.mxu0 %v8503
    %8667 = vmatpush.bf16.msra.mxu0 %v8502
    %8668 = vmatmul.bf16.gmra.mxu0 %v8064
    %v8669 = vpop.f32.mrf.mxu0
    %v8670 = vadd.f32 %v8657, %v8669
    %v8671 = vpop.f32.mrf.mxu0
    %8672 = vdwg.mxu0
    %8673 = vmatpush.bf16.msra.mxu0 %v8517
    %8674 = vmatpush.bf16.msra.mxu0 %v8516
    %8675 = vmatpush.bf16.msra.mxu0 %v8515
    %8676 = vmatpush.bf16.msra.mxu0 %v8514
    %8677 = vmatpush.bf16.msra.mxu0 %v8513
    %8678 = vmatpush.bf16.msra.mxu0 %v8512
    %8679 = vmatpush.bf16.msra.mxu0 %v8511
    %8680 = vmatpush.bf16.msra.mxu0 %v8510
    %8681 = vmatmul.bf16.gmra.mxu0 %v8065
    %v8682 = vpop.f32.mrf.mxu0
    %v8683 = vadd.f32 %v8670, %v8682
    %v8684 = vpop.f32.mrf.mxu0
    %8685 = vdwg.mxu0
    %v8686 = vmax.f32 %v8683, 0.0
    %s8687 = sadd.s32 %s7941, 2238012538
    %v8688 = vstv %s8687
    %v8689 = vadd.s32 %v8688, %v7943
    %v8690 = vadd.s32 %v8689, %v7946
    %v8691 = vshrl.u32 %v8690, 16
    %v8692 = vxor.u32 %v8690, %v8691
    %v8693 = vmul.u32 %v8692, 2246822507
    %v8694 = vshrl.u32 %v8693, 13
    %v8695 = vxor.u32 %v8693, %v8694
    %v8696 = vmul.u32 %v8695, 3266489909
    %v8697 = vshrl.u32 %v8696, 16
    %v8698 = vxor.u32 %v8696, %v8697
    %v8699 = vadd.s32 %v8698, 2147483648
    %vm8701 = vcmp.ge.s32.totalorder %v8699, 0
    %v8702 = vsel %vm8701, %v8686, 0.0
    %v8703 = vpack.c.bf16 %v8702, %v8702
    %v8704 = vld [vmem:[%s6] sm:$0xf]
    %v8705 = vld [vmem:[%s6 + $0x4] sm:$0xf]
    %v8706 = vld [vmem:[%s6 + $0x8] sm:$0xf]
    %v8707 = vld [vmem:[%s6 + $0xc] sm:$0xf]
    %v8708 = vld [vmem:[%s6 + $0x10] sm:$0xf]
    %v8709 = vld [vmem:[%s6 + $0x14] sm:$0xf]
    %v8710 = vld [vmem:[%s6 + $0x18] sm:$0xf]
    %v8711 = vld [vmem:[%s6 + $0x1c] sm:$0xf]
    %v8712 = vld [vmem:[%s6 + $0x20] sm:$0xf]
    %v8713 = vld [vmem:[%s6 + $0x24] sm:$0xf]
    %v8714 = vld [vmem:[%s6 + $0x28] sm:$0xf]
    %v8715 = vld [vmem:[%s6 + $0x2c] sm:$0xf]
    %v8716 = vld [vmem:[%s6 + $0x30] sm:$0xf]
    %v8717 = vld [vmem:[%s6 + $0x34] sm:$0xf]
    %v8718 = vld [vmem:[%s6 + $0x38] sm:$0xf]
    %v8719 = vld [vmem:[%s6 + $0x3c] sm:$0xf]
    %v8720 = vld [vmem:[%s7] sm:$0x1]
    %v8722 = vperm.slane %v8720, 0
    %v8740 = vunpack.c.l.b16 %v8704
    %v8741 = vunpack.c.l.b16 %v8705
    %v8742 = vunpack.c.l.b16 %v8706
    %v8743 = vunpack.c.l.b16 %v8707
    %v8744 = vunpack.c.l.b16 %v8708
    %v8745 = vunpack.c.l.b16 %v8709
    %v8746 = vunpack.c.l.b16 %v8710
    %v8747 = vunpack.c.l.b16 %v8711
    %v8748 = vunpack.c.l.b16 %v8712
    %v8749 = vunpack.c.l.b16 %v8713
    %v8750 = vunpack.c.l.b16 %v8714
    %v8751 = vunpack.c.l.b16 %v8715
    %v8752 = vunpack.c.l.b16 %v8716
    %v8753 = vunpack.c.l.b16 %v8717
    %v8754 = vunpack.c.l.b16 %v8718
    %v8755 = vunpack.c.l.b16 %v8719
    %v8756 = vpack.c.b16 %v8741, %v8740
    %v8757 = vpack.c.b16 %v8743, %v8742
    %v8758 = vpack.c.b16 %v8745, %v8744
    %v8759 = vpack.c.b16 %v8747, %v8746
    %v8760 = vpack.c.b16 %v8749, %v8748
    %v8761 = vpack.c.b16 %v8751, %v8750
    %v8762 = vpack.c.b16 %v8753, %v8752
    %v8763 = vpack.c.b16 %v8755, %v8754
    %8772 = vmatpush.bf16.msra.mxu0 %v8763
    %8773 = vmatpush.bf16.msra.mxu0 %v8762
    %8774 = vmatpush.bf16.msra.mxu0 %v8761
    %8775 = vmatpush.bf16.msra.mxu0 %v8760
    %8776 = vmatpush.bf16.msra.mxu0 %v8759
    %8777 = vmatpush.bf16.msra.mxu0 %v8758
    %8778 = vmatpush.bf16.msra.mxu0 %v8757
    %8779 = vmatpush.bf16.msra.mxu0 %v8756
    %8780 = vmatmul.bf16.gmra.mxu0 %v8703
    %v8781 = vpop.f32.mrf.mxu0
    %v8782 = vadd.f32 %v8722, %v8781
    %v8783 = vpop.f32.mrf.mxu0
    %8784 = vdwg.mxu0
    %vm8785 = vcmask 39936
    %8786 = vst.msk [vmem:[#allocation4] sm:$0xff] %vm8785, %v8782
    // Predicated region
    $region30: #{mc_dropout_forward.1} parent=1 // pred_check
      _
    $region31: #{mc_dropout_forward.1} parent=1 // pred_check_branch
      %8788 = sbr.rel (0) target = $region33
    $region32: #{mc_dropout_forward.1} parent=1 // pred_region
      %8790 = vsyncadd [#allocation5], 0
      %s8792 = sshll.u32 [#allocation4], 4
      %s8793 = int_to_ptr.vmem [resolvable:$true] %s8792
      %s8794 = sshll.u32 %s8, 4
      %s8795 = int_to_ptr.hbm [resolvable:$true] %s8794
      %8797 = dma.vmem_to_hbm [thread:$0]  %s8793, 128, %s8795, [#allocation5]
    $region33: #{mc_dropout_forward.1} parent=1 // pred_fallthru
      _
    // Predicated region
    $region34: #{mc_dropout_forward.1} parent=1 // pred_check
      _
    $region35: #{mc_dropout_forward.1} parent=1 // pred_check_branch
      %8799 = sbr.rel (0) target = $region37
    $region36: #{mc_dropout_forward.1} parent=1 // pred_region
      %8801 = dma.done [#allocation5], 128
    $region37: #{mc_dropout_forward.1} parent=1 // pred_fallthru
      _
    %8802 = vsyncpa [#allocation5], 1

</llo_original>
